<compile_context>
chip_gen: v7x
topology: tpu7x:2x2x1
jax: 0.10.0
libtpu: 0.0.40
codegen_flags: <defaults>
</compile_context>

<pallas_src>
import functools

import jax
import jax.numpy as jnp
from jax import lax
from jax.experimental import pallas as pl
from jax.experimental.pallas import tpu as pltpu

EPS = 1e-5
LANE = 128          # lane width / MXU tile


def _round_up(x, m):
    return (x + m - 1) // m * m


def _vmem_limit_bytes():
    """Generation-aware scoped-VMEM budget (v5e/v6e ~96MB, v7x ~48MB, safe fallback)."""
    cap = 64 * 1024 * 1024
    try:
        cap = int(getattr(pltpu.get_tpu_info(), "vmem_capacity_bytes", cap))
    except Exception:
        pass
    return max(32 * 1024 * 1024, min((cap * 3) // 4, 100 * 1024 * 1024))


def _roll_rows(a, k):
    """Circular shift along the (flattened) sublane axis, jnp.roll semantics, on the XLU."""
    size = a.shape[0]
    return pltpu.roll(a, shift=k % size, axis=0)


def _conv_stats_kernel(*refs, apply_act, padded_out, out_w):
    """One grid step == one image.

    3x3 SAME conv (input carries a zero halo) as 9 lane-dense bf16 MXU matmuls with f32
    accumulation.  Optionally applies a folded-BN per-channel affine + ReLU to the input
    first, masking the halo back to exactly zero with an in-kernel iota mask.  Per-channel
    sum / sum-of-squares of the conv output are accumulated across the batch grid axis
    into this core's partial-stats block (one-pass BN statistics).
    """
    if apply_act:
        x_ref, w_ref, scale_ref, shift_ref, y_ref, stats_ref = refs
    else:
        x_ref, w_ref, y_ref, stats_ref = refs

    n = pl.program_id(1)
    _, Hp, Wp, Ci = x_ref.shape          # (1, H+2, W_aligned, Ci)
    H = Hp - 2
    W = out_w
    Co = w_ref.shape[-1]

    x = x_ref[0]                         # (Hp, Wp, Ci) bf16

    if apply_act:
        # Folded BN1 affine + ReLU fused into the conv2 input.  The interior mask is
        # generated in-kernel (two iota compares) so the zero halo stays exactly zero
        # after the affine -- no materialized mask operand, no extra HBM traffic.
        xf = x.astype(jnp.float32)
        sc = scale_ref[...].reshape(1, 1, Ci)
        sh = shift_ref[...].reshape(1, 1, Ci)
        row = lax.broadcasted_iota(jnp.int32, (Hp, Wp, 1), 0)
        col = lax.broadcasted_iota(jnp.int32, (Hp, Wp, 1), 1)
        interior = (row >= 1) & (row <= H) & (col >= 1) & (col <= W)
        x = jnp.where(interior, jnp.maximum(xf * sc + sh, 0.0), 0.0).astype(jnp.bfloat16)

    # One matmul per tap on the full-width dy-slab; Wp is sublane-aligned so the reshape
    # is layout-free.  TODO(synk): concatenate the 3 dy slabs into a K=3*LANE operand to
    # raise occupancy on 256x256 MXUs once the HBM-traffic fixes make this compute-bound.
    accs = [jnp.zeros((H * Wp, Co), jnp.float32) for _ in range(3)]
    for dy in range(3):
        slab = x[dy:dy + H].reshape(H * Wp, Ci)
        for dx in range(3):
            accs[dx] = accs[dx] + jnp.dot(
                slab, w_ref[3 * dy + dx], preferred_element_type=jnp.float32)

    # dx alignment via XLU rolls instead of sublane-misaligned slice copies; roll
    # wrap-around only lands in columns that the interior column mask zeroes.
    if padded_out:
        # Place the result at halo-padded coordinates (+1 row/col) so the output is
        # written directly in the layout the next conv pass consumes.
        comb = _roll_rows(accs[0], 1) + accs[1] + _roll_rows(accs[2], -1)
        lo, hi = 1, W
    else:
        comb = accs[0] + _roll_rows(accs[1], -1) + _roll_rows(accs[2], -2)
        lo, hi = 0, W - 1
    col = lax.broadcasted_iota(jnp.int32, (1, Wp, 1), 1)
    out = jnp.where((col >= lo) & (col <= hi), comb.reshape(H, Wp, Co), 0.0)

    # One-pass BN statistics (per-core partial block, accumulated over the batch axis).
    out2d = out.reshape(H * Wp, Co)
    s = jnp.sum(out2d, axis=0, keepdims=True)               # (1, Co)
    ss = jnp.sum(out2d * out2d, axis=0, keepdims=True)      # (1, Co)

    @pl.when(n == 0)
    def _():
        stats_ref[...] = jnp.zeros_like(stats_ref)

    stats_ref[...] += jnp.concatenate([s, ss], axis=0).reshape(1, 2, Co)

    if padded_out:
        zr = jnp.zeros((1, Wp, Co), y_ref.dtype)
        y_ref[0] = jnp.concatenate([zr, out.astype(y_ref.dtype), zr], axis=0)
    else:
        y_ref[0] = out[:, :W, :].astype(y_ref.dtype)


def _conv_bn_stats(x_in, w_taps, scale=None, shift=None, *, out_hw, padded_out, out_dtype):
    """conv (+ fused BN-affine/ReLU on its input) + one-pass BN stats, tiled over the batch."""
    N, Hp, Wp, Ci = x_in.shape
    H, W = out_hw
    Co = w_taps.shape[-1]
    apply_act = scale is not None

    # Split the batch across TensorCores when possible (v7x megacore); each core
    # accumulates its own partial-stats block, summed later in _finalize_bn.
    cores = 2 if N % 2 == 0 else 1
    nb = N // cores

    operands = [x_in, w_taps]
    in_specs = [
        pl.BlockSpec((1, Hp, Wp, Ci), lambda c, n: (c * nb + n, 0, 0, 0)),
        pl.BlockSpec((9, Ci, Co), lambda c, n: (0, 0, 0)),
        # TODO(synk): pipeline_mode=pl.Buffered(1) on the invariant operands (weights,
        # scale, shift) to skip their double-buffering under v7x's tighter VMEM budget.
    ]
    if apply_act:
        operands += [scale, shift]
        in_specs += [
            pl.BlockSpec((1, Ci), lambda c, n: (0, 0)),
            pl.BlockSpec((1, Ci), lambda c, n: (0, 0)),
        ]

    if padded_out:   # halo-padded layout, consumed directly by the next conv pass
        y_shape = jax.ShapeDtypeStruct((N, Hp, Wp, Co), out_dtype)
        y_spec = pl.BlockSpec((1, Hp, Wp, Co), lambda c, n: (c * nb + n, 0, 0, 0))
    else:
        y_shape = jax.ShapeDtypeStruct((N, H, W, Co), out_dtype)
        y_spec = pl.BlockSpec((1, H, W, Co), lambda c, n: (c * nb + n, 0, 0, 0))

    y, stats = pl.pallas_call(
        functools.partial(_conv_stats_kernel, apply_act=apply_act,
                          padded_out=padded_out, out_w=W),
        grid=(cores, nb),
        in_specs=in_specs,
        out_specs=(
            y_spec,
            pl.BlockSpec((1, 2, Co), lambda c, n: (c, 0, 0)),
        ),
        out_shape=(y_shape, jax.ShapeDtypeStruct((cores, 2, Co), jnp.float32)),
        compiler_params=pltpu.CompilerParams(
            # The batch-within-core axis carries the BN-stats reduction -> sequential;
            # the core axis is independent -> megacore-splittable.
            dimension_semantics=("parallel", "arbitrary"),
            vmem_limit_bytes=_vmem_limit_bytes(),
        ),
    )(*operands)
    return y, stats


def _finalize_bn(stats, gamma_p, beta_p, m_total):
    """Per-core (sum, sumsq) partials -> folded per-channel scale/shift (tiny XLA math)."""
    # TODO(synk): one-pass E[x^2]-E[x]^2 can cancel for huge m_total; switch to a Welford
    # combine of the per-core partials if used far beyond these shapes.
    tot = jnp.sum(stats, axis=0)                        # (2, C)
    mean = tot[0] / m_total
    var = jnp.maximum(tot[1] / m_total - mean * mean, 0.0)
    scale = gamma_p * lax.rsqrt(var + EPS)
    shift = beta_p - mean * scale
    return scale.reshape(1, -1), shift.reshape(1, -1)


def _pad_weight(w, cp):
    kh, kw, ci, co = w.shape
    wp = jnp.zeros((kh * kw, cp, cp), jnp.float32)
    wp = wp.at[:, :ci, :co].set(w.reshape(kh * kw, ci, co).astype(jnp.float32))
    return wp.astype(jnp.bfloat16)


def _pad_vec(v, cp):
    return jnp.zeros((cp,), jnp.float32).at[: v.shape[0]].set(v.astype(jnp.float32))


def unet_encoder_forward(x_nchw, params):
    """PyTorch-equivalent forward. x_nchw: (N, Cin, H, W) -> (N, Cout, H, W)."""
    w1, g1, b1, w2, g2, b2 = params                     # conv weights in HWIO
    N, Cin, H, W = x_nchw.shape
    Cout = w1.shape[-1]
    cp = _round_up(max(Cin, Cout, 1), LANE)             # lane-padded channel width
    Hp = H + 2
    Wp = _round_up(W + 2, 16)                           # sublane-align padded width (bf16)
    m_total = N * H * W

    # TODO(synk): for large spatial dims (H,W >~ 128 on v7x's 64 MiB VMEM) add a row-band
    # grid axis with a 2-row halo so the input block and the f32 accumulators scale with
    # the band height instead of the full image.
    # TODO(synk): keep the pass-1 input at a narrow Cin-padded lane width instead of cp so
    # the first conv does not stream zero lanes from HBM when Cin is tiny.

    x = jnp.transpose(x_nchw, (0, 2, 3, 1)).astype(jnp.float32)
    x_pad = jnp.pad(
        x, ((0, 0), (1, 1), (1, Wp - W - 1), (0, cp - Cin))).astype(jnp.bfloat16)

    w1_p, w2_p = _pad_weight(w1, cp), _pad_weight(w2, cp)
    g1_p, b1_p = _pad_vec(g1, cp), _pad_vec(b1, cp)
    g2_p, b2_p = _pad_vec(g2, cp), _pad_vec(b2, cp)

    # pass 1: conv1 + one-pass BN1 stats; writes y1 directly in halo-padded bf16 layout.
    y1_pad, stats1 = _conv_bn_stats(
        x_pad, w1_p, out_hw=(H, W), padded_out=True, out_dtype=jnp.bfloat16)
    scale1, shift1 = _finalize_bn(stats1, g1_p, b1_p, m_total)

    # pass 2: BN1-affine + ReLU fused into conv2, + one-pass BN2 stats (consumes y1 as-is).
    y2, stats2 = _conv_bn_stats(
        y1_pad, w2_p, scale1, shift1, out_hw=(H, W), padded_out=False,
        out_dtype=jnp.float32)
    scale2, shift2 = _finalize_bn(stats2, g2_p, b2_p, m_total)

    # Epilogue in XLA: BN2 affine + ReLU fuse with the channel slice and NCHW transpose.
    out = jnp.maximum(y2[..., :Cout] * scale2[0, :Cout] + shift2[0, :Cout], 0.0)
    return jnp.transpose(out, (0, 3, 1, 2))


def ref_forward(x_nchw, w1, g1, b1, w2, g2, b2):
    """Pure-JAX/XLA reference with matching numerics: bf16 conv operands, f32 accumulation,
    f32 training-mode BatchNorm (biased variance, eps=1e-5)."""
    def conv(h, w):
        return lax.conv_general_dilated(
            h.astype(jnp.bfloat16), w.astype(jnp.bfloat16),
            window_strides=(1, 1), padding=((1, 1), (1, 1)),
            dimension_numbers=("NHWC", "HWIO", "NHWC"),
            preferred_element_type=jnp.float32)

    def bn_relu(h, g, b):
        mean = jnp.mean(h, axis=(0, 1, 2))
        var = jnp.mean((h - mean) ** 2, axis=(0, 1, 2))
        y = (h - mean) * lax.rsqrt(var + EPS) * g + b
        return jnp.maximum(y, 0.0)

    x = jnp.transpose(x_nchw, (0, 2, 3, 1)).astype(jnp.float32)
    h1 = bn_relu(conv(x, w1), g1, b1)
    h2 = bn_relu(conv(h1, w2), g2, b2)
    return jnp.transpose(h2, (0, 3, 1, 2))


if __name__ == "__main__":
    N, Cin, Cout, H, W = 2, 4, 8, 16, 16

    key = jax.random.PRNGKey(0)
    k = jax.random.split(key, 6)
    x = jax.random.normal(k[0], (N, Cin, H, W), jnp.float32)

    # Deterministic synthetic parameters (shapes from the module's __init__).
    w1 = 0.2 * jax.random.normal(k[1], (3, 3, Cin, Cout), jnp.float32)   # conv1 weight (HWIO)
    w2 = 0.2 * jax.random.normal(k[2], (3, 3, Cout, Cout), jnp.float32)  # conv2 weight (HWIO)
    g1 = 1.0 + 0.1 * jax.random.normal(k[3], (Cout,), jnp.float32)       # BN1 gamma
    b1 = 0.1 * jax.random.normal(k[4], (Cout,), jnp.float32)             # BN1 beta
    g2 = 1.0 + 0.1 * jax.random.normal(k[5], (Cout,), jnp.float32)       # BN2 gamma
    b2 = jnp.zeros((Cout,), jnp.float32)                                 # BN2 beta
    params = (w1, g1, b1, w2, g2, b2)

    out = jax.block_until_ready(jax.jit(unet_encoder_forward)(x, params))
    ref = jax.block_until_ready(ref_forward(x, *params))

    assert out.shape == (N, Cout, H, W), out.shape
    max_err = float(jnp.max(jnp.abs(out - ref)))
    # y1 is stored in bf16 between the two conv passes (HBM-traffic optimization), so allow
    # a few bf16 ulps of O(1) normalized activations propagated through conv2 + BN2.
    if max_err > 5e-2:
        raise AssertionError(f"Pallas output mismatch vs reference: max_err={max_err}")

    print("KERNEL_OK")
</pallas_src>

<mosaic_0001>
module attributes {stable_mosaic.version = 11 : i64} {
  func.func @_conv_stats_kernel(%arg0: i32, %arg1: i32, %arg2: memref<1x18x32x128xbf16, #tpu.memory_space<vmem>>, %arg3: memref<9x128x128xbf16, #tpu.memory_space<vmem>>, %arg4: memref<1x18x32x128xbf16, #tpu.memory_space<vmem>>, %arg5: memref<1x2x128xf32, #tpu.memory_space<vmem>>) attributes {dimension_semantics = [#tpu.dimension_semantics<parallel>, #tpu.dimension_semantics<arbitrary>], iteration_bounds = array<i64: 2, 1>, scalar_prefetch = 0 : i64, scratch_operands = 0 : i64, tpu.core_type = #tpu.core_type<tc>, window_params = [{transform_indices = @transform_0, window_bounds = array<i64: 1, 18, 32, 128>}, {pipeline_mode = #tpu.pipeline_mode<synchronous>, transform_indices = @transform_1, window_bounds = array<i64: 9, 128, 128>}, {transform_indices = @transform_2, window_bounds = array<i64: 1, 18, 32, 128>}, {transform_indices = @transform_3, window_bounds = array<i64: 1, 2, 128>}]} {
    %c0 = arith.constant 0 : index
    %c0_0 = arith.constant 0 : index
    %c0_1 = arith.constant 0 : index
    %c0_2 = arith.constant 0 : index
    %0 = vector.load %arg2[%c0, %c0_0, %c0_1, %c0_2] : memref<1x18x32x128xbf16, #tpu.memory_space<vmem>>, vector<1x18x32x128xbf16>
    %1 = vector.shape_cast %0 : vector<1x18x32x128xbf16> to vector<18x32x128xbf16>
    %cst = arith.constant 0.000000e+00 : f32
    %2 = vector.broadcast %cst : f32 to vector<512x128xf32>
    %cst_3 = arith.constant 0.000000e+00 : f32
    %3 = vector.broadcast %cst_3 : f32 to vector<512x128xf32>
    %cst_4 = arith.constant 0.000000e+00 : f32
    %4 = vector.broadcast %cst_4 : f32 to vector<512x128xf32>
    %5 = vector.extract_strided_slice %1 {offsets = [0, 0, 0], sizes = [16, 32, 128], strides = [1, 1, 1]} : vector<18x32x128xbf16> to vector<16x32x128xbf16>
    %6 = vector.shape_cast %5 : vector<16x32x128xbf16> to vector<512x128xbf16>
    %c0_5 = arith.constant 0 : index
    %c0_6 = arith.constant 0 : index
    %c0_7 = arith.constant 0 : index
    %7 = vector.load %arg3[%c0_5, %c0_6, %c0_7] : memref<9x128x128xbf16, #tpu.memory_space<vmem>>, vector<1x128x128xbf16>
    %8 = vector.shape_cast %7 : vector<1x128x128xbf16> to vector<128x128xbf16>
    %cst_8 = arith.constant dense<0.000000e+00> : vector<512x128xf32>
    %9 = tpu.matmul %6, %8, %cst_8 {dimension_numbers = #tpu.dot_dimension_numbers<[1], [0], [0], [1], [0, 0, 1, 1], [], []>} : vector<512x128xbf16>, vector<128x128xbf16>, vector<512x128xf32> -> vector<512x128xf32>
    %10 = arith.addf %2, %9 : vector<512x128xf32>
    %c1 = arith.constant 1 : index
    %c0_9 = arith.constant 0 : index
    %c0_10 = arith.constant 0 : index
    %11 = vector.load %arg3[%c1, %c0_9, %c0_10] : memref<9x128x128xbf16, #tpu.memory_space<vmem>>, vector<1x128x128xbf16>
    %12 = vector.shape_cast %11 : vector<1x128x128xbf16> to vector<128x128xbf16>
    %cst_11 = arith.constant dense<0.000000e+00> : vector<512x128xf32>
    %13 = tpu.matmul %6, %12, %cst_11 {dimension_numbers = #tpu.dot_dimension_numbers<[1], [0], [0], [1], [0, 0, 1, 1], [], []>} : vector<512x128xbf16>, vector<128x128xbf16>, vector<512x128xf32> -> vector<512x128xf32>
    %14 = arith.addf %3, %13 : vector<512x128xf32>
    %c2 = arith.constant 2 : index
    %c0_12 = arith.constant 0 : index
    %c0_13 = arith.constant 0 : index
    %15 = vector.load %arg3[%c2, %c0_12, %c0_13] : memref<9x128x128xbf16, #tpu.memory_space<vmem>>, vector<1x128x128xbf16>
    %16 = vector.shape_cast %15 : vector<1x128x128xbf16> to vector<128x128xbf16>
    %cst_14 = arith.constant dense<0.000000e+00> : vector<512x128xf32>
    %17 = tpu.matmul %6, %16, %cst_14 {dimension_numbers = #tpu.dot_dimension_numbers<[1], [0], [0], [1], [0, 0, 1, 1], [], []>} : vector<512x128xbf16>, vector<128x128xbf16>, vector<512x128xf32> -> vector<512x128xf32>
    %18 = arith.addf %4, %17 : vector<512x128xf32>
    %19 = vector.extract_strided_slice %1 {offsets = [1, 0, 0], sizes = [16, 32, 128], strides = [1, 1, 1]} : vector<18x32x128xbf16> to vector<16x32x128xbf16>
    %20 = vector.shape_cast %19 : vector<16x32x128xbf16> to vector<512x128xbf16>
    %c3 = arith.constant 3 : index
    %c0_15 = arith.constant 0 : index
    %c0_16 = arith.constant 0 : index
    %21 = vector.load %arg3[%c3, %c0_15, %c0_16] : memref<9x128x128xbf16, #tpu.memory_space<vmem>>, vector<1x128x128xbf16>
    %22 = vector.shape_cast %21 : vector<1x128x128xbf16> to vector<128x128xbf16>
    %cst_17 = arith.constant dense<0.000000e+00> : vector<512x128xf32>
    %23 = tpu.matmul %20, %22, %cst_17 {dimension_numbers = #tpu.dot_dimension_numbers<[1], [0], [0], [1], [0, 0, 1, 1], [], []>} : vector<512x128xbf16>, vector<128x128xbf16>, vector<512x128xf32> -> vector<512x128xf32>
    %24 = arith.addf %10, %23 : vector<512x128xf32>
    %c4 = arith.constant 4 : index
    %c0_18 = arith.constant 0 : index
    %c0_19 = arith.constant 0 : index
    %25 = vector.load %arg3[%c4, %c0_18, %c0_19] : memref<9x128x128xbf16, #tpu.memory_space<vmem>>, vector<1x128x128xbf16>
    %26 = vector.shape_cast %25 : vector<1x128x128xbf16> to vector<128x128xbf16>
    %cst_20 = arith.constant dense<0.000000e+00> : vector<512x128xf32>
    %27 = tpu.matmul %20, %26, %cst_20 {dimension_numbers = #tpu.dot_dimension_numbers<[1], [0], [0], [1], [0, 0, 1, 1], [], []>} : vector<512x128xbf16>, vector<128x128xbf16>, vector<512x128xf32> -> vector<512x128xf32>
    %28 = arith.addf %14, %27 : vector<512x128xf32>
    %c5 = arith.constant 5 : index
    %c0_21 = arith.constant 0 : index
    %c0_22 = arith.constant 0 : index
    %29 = vector.load %arg3[%c5, %c0_21, %c0_22] : memref<9x128x128xbf16, #tpu.memory_space<vmem>>, vector<1x128x128xbf16>
    %30 = vector.shape_cast %29 : vector<1x128x128xbf16> to vector<128x128xbf16>
    %cst_23 = arith.constant dense<0.000000e+00> : vector<512x128xf32>
    %31 = tpu.matmul %20, %30, %cst_23 {dimension_numbers = #tpu.dot_dimension_numbers<[1], [0], [0], [1], [0, 0, 1, 1], [], []>} : vector<512x128xbf16>, vector<128x128xbf16>, vector<512x128xf32> -> vector<512x128xf32>
    %32 = arith.addf %18, %31 : vector<512x128xf32>
    %33 = vector.extract_strided_slice %1 {offsets = [2, 0, 0], sizes = [16, 32, 128], strides = [1, 1, 1]} : vector<18x32x128xbf16> to vector<16x32x128xbf16>
    %34 = vector.shape_cast %33 : vector<16x32x128xbf16> to vector<512x128xbf16>
    %c6 = arith.constant 6 : index
    %c0_24 = arith.constant 0 : index
    %c0_25 = arith.constant 0 : index
    %35 = vector.load %arg3[%c6, %c0_24, %c0_25] : memref<9x128x128xbf16, #tpu.memory_space<vmem>>, vector<1x128x128xbf16>
    %36 = vector.shape_cast %35 : vector<1x128x128xbf16> to vector<128x128xbf16>
    %cst_26 = arith.constant dense<0.000000e+00> : vector<512x128xf32>
    %37 = tpu.matmul %34, %36, %cst_26 {dimension_numbers = #tpu.dot_dimension_numbers<[1], [0], [0], [1], [0, 0, 1, 1], [], []>} : vector<512x128xbf16>, vector<128x128xbf16>, vector<512x128xf32> -> vector<512x128xf32>
    %38 = arith.addf %24, %37 : vector<512x128xf32>
    %c7 = arith.constant 7 : index
    %c0_27 = arith.constant 0 : index
    %c0_28 = arith.constant 0 : index
    %39 = vector.load %arg3[%c7, %c0_27, %c0_28] : memref<9x128x128xbf16, #tpu.memory_space<vmem>>, vector<1x128x128xbf16>
    %40 = vector.shape_cast %39 : vector<1x128x128xbf16> to vector<128x128xbf16>
    %cst_29 = arith.constant dense<0.000000e+00> : vector<512x128xf32>
    %41 = tpu.matmul %34, %40, %cst_29 {dimension_numbers = #tpu.dot_dimension_numbers<[1], [0], [0], [1], [0, 0, 1, 1], [], []>} : vector<512x128xbf16>, vector<128x128xbf16>, vector<512x128xf32> -> vector<512x128xf32>
    %42 = arith.addf %28, %41 : vector<512x128xf32>
    %c8 = arith.constant 8 : index
    %c0_30 = arith.constant 0 : index
    %c0_31 = arith.constant 0 : index
    %43 = vector.load %arg3[%c8, %c0_30, %c0_31] : memref<9x128x128xbf16, #tpu.memory_space<vmem>>, vector<1x128x128xbf16>
    %44 = vector.shape_cast %43 : vector<1x128x128xbf16> to vector<128x128xbf16>
    %cst_32 = arith.constant dense<0.000000e+00> : vector<512x128xf32>
    %45 = tpu.matmul %34, %44, %cst_32 {dimension_numbers = #tpu.dot_dimension_numbers<[1], [0], [0], [1], [0, 0, 1, 1], [], []>} : vector<512x128xbf16>, vector<128x128xbf16>, vector<512x128xf32> -> vector<512x128xf32>
    %46 = arith.addf %32, %45 : vector<512x128xf32>
    %c1_i32 = arith.constant 1 : i32
    %47 = tpu.dynamic_rotate %38 by %c1_i32 dim 0 : vector<512x128xf32>, i32 -> vector<512x128xf32>
    %48 = arith.addf %47, %42 : vector<512x128xf32>
    %c511_i32 = arith.constant 511 : i32
    %49 = tpu.dynamic_rotate %46 by %c511_i32 dim 0 : vector<512x128xf32>, i32 -> vector<512x128xf32>
    %50 = arith.addf %48, %49 : vector<512x128xf32>
    %51 = tpu.iota {dimensions = array<i32: 1>} : vector<1x32x1xi32>
    %c1_i32_33 = arith.constant 1 : i32
    %52 = vector.broadcast %c1_i32_33 : i32 to vector<1x32x1xi32>
    %53 = arith.cmpi sge, %51, %52 : vector<1x32x1xi32>
    %c16_i32 = arith.constant 16 : i32
    %54 = vector.broadcast %c16_i32 : i32 to vector<1x32x1xi32>
    %55 = arith.cmpi sle, %51, %54 : vector<1x32x1xi32>
    %56 = arith.andi %53, %55 : vector<1x32x1xi1>
    %57 = vector.shape_cast %50 : vector<512x128xf32> to vector<16x32x128xf32>
    %cst_34 = arith.constant 0.000000e+00 : f32
    %58 = vector.shape_cast %56 : vector<1x32x1xi1> to vector<1x32x1xi1>
    %59 = vector.broadcast %58 : vector<1x32x1xi1> to vector<16x32x128xi1>
    %60 = vector.broadcast %cst_34 : f32 to vector<16x32x128xf32>
    %61 = arith.select %59, %57, %60 : vector<16x32x128xi1>, vector<16x32x128xf32>
    %62 = vector.shape_cast %61 : vector<16x32x128xf32> to vector<512x128xf32>
    %cst_35 = arith.constant dense<0.000000e+00> : vector<128xf32>
    %63 = vector.multi_reduction <add>, %62, %cst_35 [0] : vector<512x128xf32> to vector<128xf32>
    %64 = vector.shape_cast %63 : vector<128xf32> to vector<1x128xf32>
    %65 = arith.mulf %62, %62 : vector<512x128xf32>
    %cst_36 = arith.constant dense<0.000000e+00> : vector<128xf32>
    %66 = vector.multi_reduction <add>, %65, %cst_36 [0] : vector<512x128xf32> to vector<128xf32>
    %67 = vector.shape_cast %66 : vector<128xf32> to vector<1x128xf32>
    %c0_i32 = arith.constant 0 : i32
    %68 = arith.cmpi eq, %arg1, %c0_i32 : i32
    %69 = arith.extui %68 : i1 to i32
    %c0_i32_37 = arith.constant 0 : i32
    %70 = arith.cmpi ne, %69, %c0_i32_37 : i32
    scf.if %70 {
      %cst_49 = arith.constant 0.000000e+00 : f32
      %82 = vector.broadcast %cst_49 : f32 to vector<1x2x128xf32>
      %c0_50 = arith.constant 0 : index
      %c0_51 = arith.constant 0 : index
      %c0_52 = arith.constant 0 : index
      %83 = vector.load %arg5[%c0_50, %c0_51, %c0_52] : memref<1x2x128xf32, #tpu.memory_space<vmem>>, vector<1x2x128xf32>
      tpu.vector_store %arg5[%c0_50, %c0_51, %c0_52], %82 {strides = array<i32>} : memref<1x2x128xf32, #tpu.memory_space<vmem>>, vector<1x2x128xf32>,
    } else {
    }
    %c0_38 = arith.constant 0 : index
    %c0_39 = arith.constant 0 : index
    %c0_40 = arith.constant 0 : index
    %71 = vector.load %arg5[%c0_38, %c0_39, %c0_40] : memref<1x2x128xf32, #tpu.memory_space<vmem>>, vector<1x2x128xf32>
    %72 = tpu.concatenate %64, %67 in 0 : vector<1x128xf32>, vector<1x128xf32> -> vector<2x128xf32>
    %73 = vector.shape_cast %72 : vector<2x128xf32> to vector<1x2x128xf32>
    %74 = arith.addf %71, %73 : vector<1x2x128xf32>
    %c0_41 = arith.constant 0 : index
    %c0_42 = arith.constant 0 : index
    %c0_43 = arith.constant 0 : index
    %75 = vector.load %arg5[%c0_41, %c0_42, %c0_43] : memref<1x2x128xf32, #tpu.memory_space<vmem>>, vector<1x2x128xf32>
    tpu.vector_store %arg5[%c0_41, %c0_42, %c0_43], %74 {strides = array<i32>} : memref<1x2x128xf32, #tpu.memory_space<vmem>>, vector<1x2x128xf32>,
    %cst_44 = arith.constant 0.000000e+00 : bf16
    %76 = vector.broadcast %cst_44 : bf16 to vector<1x32x128xbf16>
    %77 = arith.truncf %61 : vector<16x32x128xf32> to vector<16x32x128xbf16>
    %78 = tpu.concatenate %76, %77, %76 in 0 : vector<1x32x128xbf16>, vector<16x32x128xbf16>, vector<1x32x128xbf16> -> vector<18x32x128xbf16>
    %c0_45 = arith.constant 0 : index
    %c0_46 = arith.constant 0 : index
    %c0_47 = arith.constant 0 : index
    %c0_48 = arith.constant 0 : index
    %79 = vector.load %arg4[%c0_45, %c0_46, %c0_47, %c0_48] : memref<1x18x32x128xbf16, #tpu.memory_space<vmem>>, vector<1x18x32x128xbf16>
    %80 = vector.shape_cast %79 : vector<1x18x32x128xbf16> to vector<18x32x128xbf16>
    %81 = vector.shape_cast %78 : vector<18x32x128xbf16> to vector<1x18x32x128xbf16>
    tpu.vector_store %arg4[%c0_45, %c0_46, %c0_47, %c0_48], %81 {strides = array<i32>} : memref<1x18x32x128xbf16, #tpu.memory_space<vmem>>, vector<1x18x32x128xbf16>,
    return
  }
  func.func @transform_0(%arg0: i32, %arg1: i32) -> (i32, i32, i32, i32) {
    %c1_i32 = arith.constant 1 : i32
    %0 = arith.muli %arg0, %c1_i32 : i32
    %1 = arith.addi %0, %arg1 : i32
    %c0_i32 = arith.constant 0 : i32
    %c0_i32_0 = arith.constant 0 : i32
    %c0_i32_1 = arith.constant 0 : i32
    %c0_i32_2 = arith.constant 0 : i32
    return %1, %c0_i32, %c0_i32_0, %c0_i32_1 : i32, i32, i32, i32
  }
  func.func @transform_1(%arg0: i32, %arg1: i32) -> (i32, i32, i32) {
    %c0_i32 = arith.constant 0 : i32
    %c0_i32_0 = arith.constant 0 : i32
    %c0_i32_1 = arith.constant 0 : i32
    %c0_i32_2 = arith.constant 0 : i32
    return %c0_i32, %c0_i32_0, %c0_i32_1 : i32, i32, i32
  }
  func.func @transform_2(%arg0: i32, %arg1: i32) -> (i32, i32, i32, i32) {
    %c1_i32 = arith.constant 1 : i32
    %0 = arith.muli %arg0, %c1_i32 : i32
    %1 = arith.addi %0, %arg1 : i32
    %c0_i32 = arith.constant 0 : i32
    %c0_i32_0 = arith.constant 0 : i32
    %c0_i32_1 = arith.constant 0 : i32
    %c0_i32_2 = arith.constant 0 : i32
    return %1, %c0_i32, %c0_i32_0, %c0_i32_1 : i32, i32, i32, i32
  }
  func.func @transform_3(%arg0: i32, %arg1: i32) -> (i32, i32, i32) {
    %c0_i32 = arith.constant 0 : i32
    %c0_i32_0 = arith.constant 0 : i32
    %c0_i32_1 = arith.constant 0 : i32
    return %arg0, %c0_i32, %c0_i32_0 : i32, i32, i32
  }
}

module attributes {stable_mosaic.version = 11 : i64} {
  func.func @_conv_stats_kernel(%arg0: i32, %arg1: i32, %arg2: memref<1x18x32x128xbf16, #tpu.memory_space<vmem>>, %arg3: memref<9x128x128xbf16, #tpu.memory_space<vmem>>, %arg4: memref<1x128xf32, #tpu.memory_space<vmem>>, %arg5: memref<1x128xf32, #tpu.memory_space<vmem>>, %arg6: memref<1x16x16x128xf32, #tpu.memory_space<vmem>>, %arg7: memref<1x2x128xf32, #tpu.memory_space<vmem>>) attributes {dimension_semantics = [#tpu.dimension_semantics<parallel>, #tpu.dimension_semantics<arbitrary>], iteration_bounds = array<i64: 2, 1>, scalar_prefetch = 0 : i64, scratch_operands = 0 : i64, tpu.core_type = #tpu.core_type<tc>, window_params = [{transform_indices = @transform_0, window_bounds = array<i64: 1, 18, 32, 128>}, {pipeline_mode = #tpu.pipeline_mode<synchronous>, transform_indices = @transform_1, window_bounds = array<i64: 9, 128, 128>}, {pipeline_mode = #tpu.pipeline_mode<synchronous>, transform_indices = @transform_2, window_bounds = array<i64: 1, 128>}, {pipeline_mode = #tpu.pipeline_mode<synchronous>, transform_indices = @transform_3, window_bounds = array<i64: 1, 128>}, {transform_indices = @transform_4, window_bounds = array<i64: 1, 16, 16, 128>}, {transform_indices = @transform_5, window_bounds = array<i64: 1, 2, 128>}]} {
    %c0 = arith.constant 0 : index
    %c0_0 = arith.constant 0 : index
    %c0_1 = arith.constant 0 : index
    %c0_2 = arith.constant 0 : index
    %0 = vector.load %arg2[%c0, %c0_0, %c0_1, %c0_2] : memref<1x18x32x128xbf16, #tpu.memory_space<vmem>>, vector<1x18x32x128xbf16>
    %1 = vector.shape_cast %0 : vector<1x18x32x128xbf16> to vector<18x32x128xbf16>
    %2 = arith.extf %1 : vector<18x32x128xbf16> to vector<18x32x128xf32>
    %c0_3 = arith.constant 0 : index
    %c0_4 = arith.constant 0 : index
    %3 = vector.load %arg4[%c0_3, %c0_4] : memref<1x128xf32, #tpu.memory_space<vmem>>, vector<1x128xf32>
    %4 = vector.shape_cast %3 : vector<1x128xf32> to vector<1x1x128xf32>
    %c0_5 = arith.constant 0 : index
    %c0_6 = arith.constant 0 : index
    %5 = vector.load %arg5[%c0_5, %c0_6] : memref<1x128xf32, #tpu.memory_space<vmem>>, vector<1x128xf32>
    %6 = vector.shape_cast %5 : vector<1x128xf32> to vector<1x1x128xf32>
    %7 = tpu.iota {dimensions = array<i32: 0>} : vector<18x32x1xi32>
    %8 = tpu.iota {dimensions = array<i32: 1>} : vector<18x32x1xi32>
    %c1_i32 = arith.constant 1 : i32
    %9 = vector.broadcast %c1_i32 : i32 to vector<18x32x1xi32>
    %10 = arith.cmpi sge, %7, %9 : vector<18x32x1xi32>
    %c16_i32 = arith.constant 16 : i32
    %11 = vector.broadcast %c16_i32 : i32 to vector<18x32x1xi32>
    %12 = arith.cmpi sle, %7, %11 : vector<18x32x1xi32>
    %13 = arith.andi %10, %12 : vector<18x32x1xi1>
    %c1_i32_7 = arith.constant 1 : i32
    %14 = vector.broadcast %c1_i32_7 : i32 to vector<18x32x1xi32>
    %15 = arith.cmpi sge, %8, %14 : vector<18x32x1xi32>
    %16 = arith.andi %13, %15 : vector<18x32x1xi1>
    %c16_i32_8 = arith.constant 16 : i32
    %17 = vector.broadcast %c16_i32_8 : i32 to vector<18x32x1xi32>
    %18 = arith.cmpi sle, %8, %17 : vector<18x32x1xi32>
    %19 = arith.andi %16, %18 : vector<18x32x1xi1>
    %20 = vector.broadcast %4 : vector<1x1x128xf32> to vector<18x32x128xf32>
    %21 = arith.mulf %2, %20 : vector<18x32x128xf32>
    %22 = vector.broadcast %6 : vector<1x1x128xf32> to vector<18x32x128xf32>
    %23 = arith.addf %21, %22 : vector<18x32x128xf32>
    %cst = arith.constant 0.000000e+00 : f32
    %24 = vector.broadcast %cst : f32 to vector<18x32x128xf32>
    %25 = arith.maximumf %23, %24 : vector<18x32x128xf32>
    %cst_9 = arith.constant 0.000000e+00 : f32
    %26 = vector.shape_cast %19 : vector<18x32x1xi1> to vector<18x32x1xi1>
    %27 = vector.broadcast %26 : vector<18x32x1xi1> to vector<18x32x128xi1>
    %28 = vector.broadcast %cst_9 : f32 to vector<18x32x128xf32>
    %29 = arith.select %27, %25, %28 : vector<18x32x128xi1>, vector<18x32x128xf32>
    %30 = arith.truncf %29 : vector<18x32x128xf32> to vector<18x32x128xbf16>
    %cst_10 = arith.constant 0.000000e+00 : f32
    %31 = vector.broadcast %cst_10 : f32 to vector<512x128xf32>
    %cst_11 = arith.constant 0.000000e+00 : f32
    %32 = vector.broadcast %cst_11 : f32 to vector<512x128xf32>
    %cst_12 = arith.constant 0.000000e+00 : f32
    %33 = vector.broadcast %cst_12 : f32 to vector<512x128xf32>
    %34 = vector.extract_strided_slice %30 {offsets = [0, 0, 0], sizes = [16, 32, 128], strides = [1, 1, 1]} : vector<18x32x128xbf16> to vector<16x32x128xbf16>
    %35 = vector.shape_cast %34 : vector<16x32x128xbf16> to vector<512x128xbf16>
    %c0_13 = arith.constant 0 : index
    %c0_14 = arith.constant 0 : index
    %c0_15 = arith.constant 0 : index
    %36 = vector.load %arg3[%c0_13, %c0_14, %c0_15] : memref<9x128x128xbf16, #tpu.memory_space<vmem>>, vector<1x128x128xbf16>
    %37 = vector.shape_cast %36 : vector<1x128x128xbf16> to vector<128x128xbf16>
    %cst_16 = arith.constant dense<0.000000e+00> : vector<512x128xf32>
    %38 = tpu.matmul %35, %37, %cst_16 {dimension_numbers = #tpu.dot_dimension_numbers<[1], [0], [0], [1], [0, 0, 1, 1], [], []>} : vector<512x128xbf16>, vector<128x128xbf16>, vector<512x128xf32> -> vector<512x128xf32>
    %39 = arith.addf %31, %38 : vector<512x128xf32>
    %c1 = arith.constant 1 : index
    %c0_17 = arith.constant 0 : index
    %c0_18 = arith.constant 0 : index
    %40 = vector.load %arg3[%c1, %c0_17, %c0_18] : memref<9x128x128xbf16, #tpu.memory_space<vmem>>, vector<1x128x128xbf16>
    %41 = vector.shape_cast %40 : vector<1x128x128xbf16> to vector<128x128xbf16>
    %cst_19 = arith.constant dense<0.000000e+00> : vector<512x128xf32>
    %42 = tpu.matmul %35, %41, %cst_19 {dimension_numbers = #tpu.dot_dimension_numbers<[1], [0], [0], [1], [0, 0, 1, 1], [], []>} : vector<512x128xbf16>, vector<128x128xbf16>, vector<512x128xf32> -> vector<512x128xf32>
    %43 = arith.addf %32, %42 : vector<512x128xf32>
    %c2 = arith.constant 2 : index
    %c0_20 = arith.constant 0 : index
    %c0_21 = arith.constant 0 : index
    %44 = vector.load %arg3[%c2, %c0_20, %c0_21] : memref<9x128x128xbf16, #tpu.memory_space<vmem>>, vector<1x128x128xbf16>
    %45 = vector.shape_cast %44 : vector<1x128x128xbf16> to vector<128x128xbf16>
    %cst_22 = arith.constant dense<0.000000e+00> : vector<512x128xf32>
    %46 = tpu.matmul %35, %45, %cst_22 {dimension_numbers = #tpu.dot_dimension_numbers<[1], [0], [0], [1], [0, 0, 1, 1], [], []>} : vector<512x128xbf16>, vector<128x128xbf16>, vector<512x128xf32> -> vector<512x128xf32>
    %47 = arith.addf %33, %46 : vector<512x128xf32>
    %48 = vector.extract_strided_slice %30 {offsets = [1, 0, 0], sizes = [16, 32, 128], strides = [1, 1, 1]} : vector<18x32x128xbf16> to vector<16x32x128xbf16>
    %49 = vector.shape_cast %48 : vector<16x32x128xbf16> to vector<512x128xbf16>
    %c3 = arith.constant 3 : index
    %c0_23 = arith.constant 0 : index
    %c0_24 = arith.constant 0 : index
    %50 = vector.load %arg3[%c3, %c0_23, %c0_24] : memref<9x128x128xbf16, #tpu.memory_space<vmem>>, vector<1x128x128xbf16>
    %51 = vector.shape_cast %50 : vector<1x128x128xbf16> to vector<128x128xbf16>
    %cst_25 = arith.constant dense<0.000000e+00> : vector<512x128xf32>
    %52 = tpu.matmul %49, %51, %cst_25 {dimension_numbers = #tpu.dot_dimension_numbers<[1], [0], [0], [1], [0, 0, 1, 1], [], []>} : vector<512x128xbf16>, vector<128x128xbf16>, vector<512x128xf32> -> vector<512x128xf32>
    %53 = arith.addf %39, %52 : vector<512x128xf32>
    %c4 = arith.constant 4 : index
    %c0_26 = arith.constant 0 : index
    %c0_27 = arith.constant 0 : index
    %54 = vector.load %arg3[%c4, %c0_26, %c0_27] : memref<9x128x128xbf16, #tpu.memory_space<vmem>>, vector<1x128x128xbf16>
    %55 = vector.shape_cast %54 : vector<1x128x128xbf16> to vector<128x128xbf16>
    %cst_28 = arith.constant dense<0.000000e+00> : vector<512x128xf32>
    %56 = tpu.matmul %49, %55, %cst_28 {dimension_numbers = #tpu.dot_dimension_numbers<[1], [0], [0], [1], [0, 0, 1, 1], [], []>} : vector<512x128xbf16>, vector<128x128xbf16>, vector<512x128xf32> -> vector<512x128xf32>
    %57 = arith.addf %43, %56 : vector<512x128xf32>
    %c5 = arith.constant 5 : index
    %c0_29 = arith.constant 0 : index
    %c0_30 = arith.constant 0 : index
    %58 = vector.load %arg3[%c5, %c0_29, %c0_30] : memref<9x128x128xbf16, #tpu.memory_space<vmem>>, vector<1x128x128xbf16>
    %59 = vector.shape_cast %58 : vector<1x128x128xbf16> to vector<128x128xbf16>
    %cst_31 = arith.constant dense<0.000000e+00> : vector<512x128xf32>
    %60 = tpu.matmul %49, %59, %cst_31 {dimension_numbers = #tpu.dot_dimension_numbers<[1], [0], [0], [1], [0, 0, 1, 1], [], []>} : vector<512x128xbf16>, vector<128x128xbf16>, vector<512x128xf32> -> vector<512x128xf32>
    %61 = arith.addf %47, %60 : vector<512x128xf32>
    %62 = vector.extract_strided_slice %30 {offsets = [2, 0, 0], sizes = [16, 32, 128], strides = [1, 1, 1]} : vector<18x32x128xbf16> to vector<16x32x128xbf16>
    %63 = vector.shape_cast %62 : vector<16x32x128xbf16> to vector<512x128xbf16>
    %c6 = arith.constant 6 : index
    %c0_32 = arith.constant 0 : index
    %c0_33 = arith.constant 0 : index
    %64 = vector.load %arg3[%c6, %c0_32, %c0_33] : memref<9x128x128xbf16, #tpu.memory_space<vmem>>, vector<1x128x128xbf16>
    %65 = vector.shape_cast %64 : vector<1x128x128xbf16> to vector<128x128xbf16>
    %cst_34 = arith.constant dense<0.000000e+00> : vector<512x128xf32>
    %66 = tpu.matmul %63, %65, %cst_34 {dimension_numbers = #tpu.dot_dimension_numbers<[1], [0], [0], [1], [0, 0, 1, 1], [], []>} : vector<512x128xbf16>, vector<128x128xbf16>, vector<512x128xf32> -> vector<512x128xf32>
    %67 = arith.addf %53, %66 : vector<512x128xf32>
    %c7 = arith.constant 7 : index
    %c0_35 = arith.constant 0 : index
    %c0_36 = arith.constant 0 : index
    %68 = vector.load %arg3[%c7, %c0_35, %c0_36] : memref<9x128x128xbf16, #tpu.memory_space<vmem>>, vector<1x128x128xbf16>
    %69 = vector.shape_cast %68 : vector<1x128x128xbf16> to vector<128x128xbf16>
    %cst_37 = arith.constant dense<0.000000e+00> : vector<512x128xf32>
    %70 = tpu.matmul %63, %69, %cst_37 {dimension_numbers = #tpu.dot_dimension_numbers<[1], [0], [0], [1], [0, 0, 1, 1], [], []>} : vector<512x128xbf16>, vector<128x128xbf16>, vector<512x128xf32> -> vector<512x128xf32>
    %71 = arith.addf %57, %70 : vector<512x128xf32>
    %c8 = arith.constant 8 : index
    %c0_38 = arith.constant 0 : index
    %c0_39 = arith.constant 0 : index
    %72 = vector.load %arg3[%c8, %c0_38, %c0_39] : memref<9x128x128xbf16, #tpu.memory_space<vmem>>, vector<1x128x128xbf16>
    %73 = vector.shape_cast %72 : vector<1x128x128xbf16> to vector<128x128xbf16>
    %cst_40 = arith.constant dense<0.000000e+00> : vector<512x128xf32>
    %74 = tpu.matmul %63, %73, %cst_40 {dimension_numbers = #tpu.dot_dimension_numbers<[1], [0], [0], [1], [0, 0, 1, 1], [], []>} : vector<512x128xbf16>, vector<128x128xbf16>, vector<512x128xf32> -> vector<512x128xf32>
    %75 = arith.addf %61, %74 : vector<512x128xf32>
    %c511_i32 = arith.constant 511 : i32
    %76 = tpu.dynamic_rotate %71 by %c511_i32 dim 0 : vector<512x128xf32>, i32 -> vector<512x128xf32>
    %77 = arith.addf %67, %76 : vector<512x128xf32>
    %c510_i32 = arith.constant 510 : i32
    %78 = tpu.dynamic_rotate %75 by %c510_i32 dim 0 : vector<512x128xf32>, i32 -> vector<512x128xf32>
    %79 = arith.addf %77, %78 : vector<512x128xf32>
    %80 = tpu.iota {dimensions = array<i32: 1>} : vector<1x32x1xi32>
    %c0_i32 = arith.constant 0 : i32
    %81 = vector.broadcast %c0_i32 : i32 to vector<1x32x1xi32>
    %82 = arith.cmpi sge, %80, %81 : vector<1x32x1xi32>
    %c15_i32 = arith.constant 15 : i32
    %83 = vector.broadcast %c15_i32 : i32 to vector<1x32x1xi32>
    %84 = arith.cmpi sle, %80, %83 : vector<1x32x1xi32>
    %85 = arith.andi %82, %84 : vector<1x32x1xi1>
    %86 = vector.shape_cast %79 : vector<512x128xf32> to vector<16x32x128xf32>
    %cst_41 = arith.constant 0.000000e+00 : f32
    %87 = vector.shape_cast %85 : vector<1x32x1xi1> to vector<1x32x1xi1>
    %88 = vector.broadcast %87 : vector<1x32x1xi1> to vector<16x32x128xi1>
    %89 = vector.broadcast %cst_41 : f32 to vector<16x32x128xf32>
    %90 = arith.select %88, %86, %89 : vector<16x32x128xi1>, vector<16x32x128xf32>
    %91 = vector.shape_cast %90 : vector<16x32x128xf32> to vector<512x128xf32>
    %cst_42 = arith.constant dense<0.000000e+00> : vector<128xf32>
    %92 = vector.multi_reduction <add>, %91, %cst_42 [0] : vector<512x128xf32> to vector<128xf32>
    %93 = vector.shape_cast %92 : vector<128xf32> to vector<1x128xf32>
    %94 = arith.mulf %91, %91 : vector<512x128xf32>
    %cst_43 = arith.constant dense<0.000000e+00> : vector<128xf32>
    %95 = vector.multi_reduction <add>, %94, %cst_43 [0] : vector<512x128xf32> to vector<128xf32>
    %96 = vector.shape_cast %95 : vector<128xf32> to vector<1x128xf32>
    %c0_i32_44 = arith.constant 0 : i32
    %97 = arith.cmpi eq, %arg1, %c0_i32_44 : i32
    %98 = arith.extui %97 : i1 to i32
    %c0_i32_45 = arith.constant 0 : i32
    %99 = arith.cmpi ne, %98, %c0_i32_45 : i32
    scf.if %99 {
      %cst_56 = arith.constant 0.000000e+00 : f32
      %109 = vector.broadcast %cst_56 : f32 to vector<1x2x128xf32>
      %c0_57 = arith.constant 0 : index
      %c0_58 = arith.constant 0 : index
      %c0_59 = arith.constant 0 : index
      %110 = vector.load %arg7[%c0_57, %c0_58, %c0_59] : memref<1x2x128xf32, #tpu.memory_space<vmem>>, vector<1x2x128xf32>
      tpu.vector_store %arg7[%c0_57, %c0_58, %c0_59], %109 {strides = array<i32>} : memref<1x2x128xf32, #tpu.memory_space<vmem>>, vector<1x2x128xf32>,
    } else {
    }
    %c0_46 = arith.constant 0 : index
    %c0_47 = arith.constant 0 : index
    %c0_48 = arith.constant 0 : index
    %100 = vector.load %arg7[%c0_46, %c0_47, %c0_48] : memref<1x2x128xf32, #tpu.memory_space<vmem>>, vector<1x2x128xf32>
    %101 = tpu.concatenate %93, %96 in 0 : vector<1x128xf32>, vector<1x128xf32> -> vector<2x128xf32>
    %102 = vector.shape_cast %101 : vector<2x128xf32> to vector<1x2x128xf32>
    %103 = arith.addf %100, %102 : vector<1x2x128xf32>
    %c0_49 = arith.constant 0 : index
    %c0_50 = arith.constant 0 : index
    %c0_51 = arith.constant 0 : index
    %104 = vector.load %arg7[%c0_49, %c0_50, %c0_51] : memref<1x2x128xf32, #tpu.memory_space<vmem>>, vector<1x2x128xf32>
    tpu.vector_store %arg7[%c0_49, %c0_50, %c0_51], %103 {strides = array<i32>} : memref<1x2x128xf32, #tpu.memory_space<vmem>>, vector<1x2x128xf32>,
    %105 = vector.extract_strided_slice %90 {offsets = [0, 0, 0], sizes = [16, 16, 128], strides = [1, 1, 1]} : vector<16x32x128xf32> to vector<16x16x128xf32>
    %c0_52 = arith.constant 0 : index
    %c0_53 = arith.constant 0 : index
    %c0_54 = arith.constant 0 : index
    %c0_55 = arith.constant 0 : index
    %106 = vector.load %arg6[%c0_52, %c0_53, %c0_54, %c0_55] : memref<1x16x16x128xf32, #tpu.memory_space<vmem>>, vector<1x16x16x128xf32>
    %107 = vector.shape_cast %106 : vector<1x16x16x128xf32> to vector<16x16x128xf32>
    %108 = vector.shape_cast %105 : vector<16x16x128xf32> to vector<1x16x16x128xf32>
    tpu.vector_store %arg6[%c0_52, %c0_53, %c0_54, %c0_55], %108 {strides = array<i32>} : memref<1x16x16x128xf32, #tpu.memory_space<vmem>>, vector<1x16x16x128xf32>,
    return
  }
  func.func @transform_0(%arg0: i32, %arg1: i32) -> (i32, i32, i32, i32) {
    %c1_i32 = arith.constant 1 : i32
    %0 = arith.muli %arg0, %c1_i32 : i32
    %1 = arith.addi %0, %arg1 : i32
    %c0_i32 = arith.constant 0 : i32
    %c0_i32_0 = arith.constant 0 : i32
    %c0_i32_1 = arith.constant 0 : i32
    %c0_i32_2 = arith.constant 0 : i32
    return %1, %c0_i32, %c0_i32_0, %c0_i32_1 : i32, i32, i32, i32
  }
  func.func @transform_1(%arg0: i32, %arg1: i32) -> (i32, i32, i32) {
    %c0_i32 = arith.constant 0 : i32
    %c0_i32_0 = arith.constant 0 : i32
    %c0_i32_1 = arith.constant 0 : i32
    %c0_i32_2 = arith.constant 0 : i32
    return %c0_i32, %c0_i32_0, %c0_i32_1 : i32, i32, i32
  }
  func.func @transform_2(%arg0: i32, %arg1: i32) -> (i32, i32) {
    %c0_i32 = arith.constant 0 : i32
    %c0_i32_0 = arith.constant 0 : i32
    %c0_i32_1 = arith.constant 0 : i32
    return %c0_i32, %c0_i32_0 : i32, i32
  }
  func.func @transform_3(%arg0: i32, %arg1: i32) -> (i32, i32) {
    %c0_i32 = arith.constant 0 : i32
    %c0_i32_0 = arith.constant 0 : i32
    %c0_i32_1 = arith.constant 0 : i32
    return %c0_i32, %c0_i32_0 : i32, i32
  }
  func.func @transform_4(%arg0: i32, %arg1: i32) -> (i32, i32, i32, i32) {
    %c1_i32 = arith.constant 1 : i32
    %0 = arith.muli %arg0, %c1_i32 : i32
    %1 = arith.addi %0, %arg1 : i32
    %c0_i32 = arith.constant 0 : i32
    %c0_i32_0 = arith.constant 0 : i32
    %c0_i32_1 = arith.constant 0 : i32
    %c0_i32_2 = arith.constant 0 : i32
    return %1, %c0_i32, %c0_i32_0, %c0_i32_1 : i32, i32, i32, i32
  }
  func.func @transform_5(%arg0: i32, %arg1: i32) -> (i32, i32, i32) {
    %c0_i32 = arith.constant 0 : i32
    %c0_i32_0 = arith.constant 0 : i32
    %c0_i32_1 = arith.constant 0 : i32
    return %arg0, %c0_i32, %c0_i32_0 : i32, i32, i32
  }
}

</mosaic_0001>

<llo_original>
// kernel: unet_encoder_forward.3
$region0: #{unet_encoder_forward.3}
  #allocation0 [shape = 'u32[]', space=smem, size = 0x4, offset = 0x4, fixed_abs, tag = 'smem constant byte address 0x4 - core index']
  #allocation1 [shape = 'u32[144,128]{1,0:T(1,128)}', space=vmem, size = 0x12000, scoped, tag = 'internal scratch']
  %s0 = inlined_call_operand.vmem [shape: bf16[2,18,32,128], index: 0, kind: input, shape index: {}]
  %s1 = inlined_call_operand.vmem [shape: bf16[9,128,128], index: 1, kind: input, shape index: {}]
  %s2 = inlined_call_operand.vmem [shape: f32[1,128], index: 2, kind: input, shape index: {}]
  %s3 = inlined_call_operand.vmem [shape: f32[1,128], index: 3, kind: input, shape index: {}]
  %s4 = inlined_call_operand.vmem [shape: f32[2,16,16,128], index: 4, kind: output, shape index: {0}]
  %s5 = inlined_call_operand.vmem [shape: f32[2,2,128], index: 5, kind: output, shape index: {1}]
  %6 = xla_tuple %s4, %s5
  %s7 = sld [smem:[#allocation0]]
  $region61: #{unet_encoder_forward.3} parent=0
    _
  %s9 = ssub.s32 1, %s7
  %s10 = scalar_select 0, %s9, %s7
  loop: start=0, step=1, limit=4
  $region2: #{unet_encoder_forward.3} parent=0 // loop_pre_header
    _
  $region3: #{unet_encoder_forward.3} parent=0 // loop_header
    %s12 = sphi 0, %s16
    %p13 = scmp.ge.s32.totalorder %s12, 4
    %s19 = sphi 0, %s31
    %s20 = sphi 0, %s27
    %s21 = sphi 0, %s19
    %s22 = sphi 0, %s20
    %s23 = sphi 0, %s21
    %s24 = sphi 0, %s22
    %s36 = sphi 0, %s38
    %s39 = sphi 0, %s36
    %s40 = sphi 0, %s39
    %s56 = sphi 0, %s40
    %s60 = sphi 0, %s60
    %s62 = sphi 0, %s60
    %s63 = sphi 0, %s62
    %s77 = sphi 0, %s63
    %s81 = sphi 0, %s81
    %s83 = sphi 0, %s81
    %s84 = sphi 0, %s83
    %s98 = sphi 0, %s84
    %s102 = sphi 0, %s102
    %s104 = sphi 0, %s102
    %s105 = sphi 0, %s104
    %s119 = sphi 0, %s105
    %s127 = sphi 0, %s129
    %s130 = sphi 0, %s127
    %s131 = sphi 0, %s130
    %s147 = sphi 0, %s131
    %s153 = sphi 0, %s155
    %s156 = sphi 0, %s153
    %s157 = sphi 0, %s156
    %s173 = sphi 0, %s157
  $region4: #{unet_encoder_forward.3} parent=0 // loop_header_branch
    %15 = sbr.rel (%p13) target = $region8
  $region5: #{unet_encoder_forward.3} parent=0 // loop_body
    %s17 = ssub.s32 %s12, 1
    %s18 = ssub.s32 %s12, 2
    %s25 = sadd.s32 1, %s20
    %p26 = scmp.ge.s32.totalorder %s25, 1
    %s27 = scalar_select %p26, 0, %s25
    %s28 = sadd.s32 1, %s19
    %s29 = scalar_select %p26, %s28, %s19
    %p30 = scmp.ge.s32.totalorder %s29, 2
    %s31 = scalar_select %p30, 0, %s29
    %s32 = sadd.s32 %s19, %s20
    %s33 = sadd.s32 %s31, %s27
    %s34 = ssub.s32 %s32, %s33
    %p35 = scmp.eq.s32.totalorder %s34, 0
    %s37 = sadd.s32 %s36, 1
    %s38 = scalar_select %p35, %s36, %s37
    %p41 = pneg %p35
    %p42 = scmp.eq.s32.totalorder %s12, 1
    %p43 = por %p41, %p42
    %p44 = scmp.ne.s32.totalorder %s36, %s39
    %p45 = scmp.eq.s32.totalorder %s12, 0
    %p46 = por %p44, %p45
    %p47 = scmp.ne.s32.totalorder %s36, %s39
    %p48 = scmp.eq.s32.totalorder %s17, 1
    %p49 = por %p47, %p48
    %p50 = scmp.ne.s32.totalorder %s39, %s40
    %p51 = scmp.eq.s32.totalorder %s17, 0
    %p52 = por %p50, %p51
    %p53 = scmp.ne.s32.totalorder %s39, %s40
    %p54 = scmp.eq.s32.totalorder %s18, 1
    %p55 = por %p53, %p54
    %p57 = scmp.ne.s32.totalorder %s40, %s56
    %p58 = scmp.eq.s32.totalorder %s18, 0
    %p59 = por %p57, %p58
    %s61 = sadd.s32 %s60, 1
    %p64 = scmp.eq.s32.totalorder %s12, 1
    %p65 = scmp.ne.s32.totalorder %s60, %s62
    %p66 = scmp.eq.s32.totalorder %s12, 0
    %p67 = por %p65, %p66
    %p68 = scmp.ne.s32.totalorder %s60, %s62
    %p69 = scmp.eq.s32.totalorder %s17, 1
    %p70 = por %p68, %p69
    %p71 = scmp.ne.s32.totalorder %s62, %s63
    %p72 = scmp.eq.s32.totalorder %s17, 0
    %p73 = por %p71, %p72
    %p74 = scmp.ne.s32.totalorder %s62, %s63
    %p75 = scmp.eq.s32.totalorder %s18, 1
    %p76 = por %p74, %p75
    %p78 = scmp.ne.s32.totalorder %s63, %s77
    %p79 = scmp.eq.s32.totalorder %s18, 0
    %p80 = por %p78, %p79
    %s82 = sadd.s32 %s81, 1
    %p85 = scmp.eq.s32.totalorder %s12, 1
    %p86 = scmp.ne.s32.totalorder %s81, %s83
    %p87 = scmp.eq.s32.totalorder %s12, 0
    %p88 = por %p86, %p87
    %p89 = scmp.ne.s32.totalorder %s81, %s83
    %p90 = scmp.eq.s32.totalorder %s17, 1
    %p91 = por %p89, %p90
    %p92 = scmp.ne.s32.totalorder %s83, %s84
    %p93 = scmp.eq.s32.totalorder %s17, 0
    %p94 = por %p92, %p93
    %p95 = scmp.ne.s32.totalorder %s83, %s84
    %p96 = scmp.eq.s32.totalorder %s18, 1
    %p97 = por %p95, %p96
    %p99 = scmp.ne.s32.totalorder %s84, %s98
    %p100 = scmp.eq.s32.totalorder %s18, 0
    %p101 = por %p99, %p100
    %s103 = sadd.s32 %s102, 1
    %p106 = scmp.eq.s32.totalorder %s12, 1
    %p107 = scmp.ne.s32.totalorder %s102, %s104
    %p108 = scmp.eq.s32.totalorder %s12, 0
    %p109 = por %p107, %p108
    %p110 = scmp.ne.s32.totalorder %s102, %s104
    %p111 = scmp.eq.s32.totalorder %s17, 1
    %p112 = por %p110, %p111
    %p113 = scmp.ne.s32.totalorder %s104, %s105
    %p114 = scmp.eq.s32.totalorder %s17, 0
    %p115 = por %p113, %p114
    %p116 = scmp.ne.s32.totalorder %s104, %s105
    %p117 = scmp.eq.s32.totalorder %s18, 1
    %p118 = por %p116, %p117
    %p120 = scmp.ne.s32.totalorder %s105, %s119
    %p121 = scmp.eq.s32.totalorder %s18, 0
    %p122 = por %p120, %p121
    %s123 = sadd.s32 %s19, %s20
    %s124 = sadd.s32 %s31, %s27
    %s125 = ssub.s32 %s123, %s124
    %p126 = scmp.eq.s32.totalorder %s125, 0
    %s128 = sadd.s32 %s127, 1
    %s129 = scalar_select %p126, %s127, %s128
    %p132 = pneg %p126
    %p133 = scmp.eq.s32.totalorder %s12, 1
    %p134 = por %p132, %p133
    %p135 = scmp.ne.s32.totalorder %s127, %s130
    %p136 = scmp.eq.s32.totalorder %s12, 0
    %p137 = por %p135, %p136
    %p138 = scmp.ne.s32.totalorder %s127, %s130
    %p139 = scmp.eq.s32.totalorder %s17, 1
    %p140 = por %p138, %p139
    %p141 = scmp.ne.s32.totalorder %s130, %s131
    %p142 = scmp.eq.s32.totalorder %s17, 0
    %p143 = por %p141, %p142
    %p144 = scmp.ne.s32.totalorder %s130, %s131
    %p145 = scmp.eq.s32.totalorder %s18, 1
    %p146 = por %p144, %p145
    %p148 = scmp.ne.s32.totalorder %s131, %s147
    %p149 = scmp.eq.s32.totalorder %s18, 0
    %p150 = por %p148, %p149
    %s151 = ssub.s32 %s19, %s31
    %p152 = scmp.eq.s32.totalorder %s151, 0
    %s154 = sadd.s32 %s153, 1
    %s155 = scalar_select %p152, %s153, %s154
    %p158 = pneg %p152
    %p159 = scmp.eq.s32.totalorder %s12, 1
    %p160 = por %p158, %p159
    %p161 = scmp.ne.s32.totalorder %s153, %s156
    %p162 = scmp.eq.s32.totalorder %s12, 0
    %p163 = por %p161, %p162
    %p164 = scmp.ne.s32.totalorder %s153, %s156
    %p165 = scmp.eq.s32.totalorder %s17, 1
    %p166 = por %p164, %p165
    %p167 = scmp.ne.s32.totalorder %s156, %s157
    %p168 = scmp.eq.s32.totalorder %s17, 0
    %p169 = por %p167, %p168
    %p170 = scmp.ne.s32.totalorder %s156, %s157
    %p171 = scmp.eq.s32.totalorder %s18, 1
    %p172 = por %p170, %p171
    %p174 = scmp.ne.s32.totalorder %s157, %s173
    %p175 = scmp.eq.s32.totalorder %s18, 0
    %p176 = por %p174, %p175
    %p177 = scmp.le.s32.totalorder 1, %s12
    %p178 = scmp.lt.s32.totalorder %s12, 3
    %p179 = pnand %p177, %p178
    %p180 = pneg %p179
    // Predicated region
    $region9: #{unet_encoder_forward.3} parent=5 // pred_check
      _
    $region10: #{unet_encoder_forward.3} parent=5 // pred_check_branch
      %182 = sbr.rel (%p179) target = $region12
    $region11: #{unet_encoder_forward.3} parent=5 // pred_region
      %s183 = ssub.s32 %s12, 1
      // Predicated region
      $region13: #{unet_encoder_forward.3} parent=11 // pred_check
        %p184 = pneg %p73
      $region14: #{unet_encoder_forward.3} parent=11 // pred_check_branch
        %186 = sbr.rel (%p184) target = $region16
      $region15: #{unet_encoder_forward.3} parent=11 // pred_region
        _
      $region16: #{unet_encoder_forward.3} parent=11 // pred_fallthru
        _
      // Predicated region
      $region17: #{unet_encoder_forward.3} parent=11 // pred_check
        %p187 = pneg %p94
      $region18: #{unet_encoder_forward.3} parent=11 // pred_check_branch
        %189 = sbr.rel (%p187) target = $region20
      $region19: #{unet_encoder_forward.3} parent=11 // pred_region
        _
      $region20: #{unet_encoder_forward.3} parent=11 // pred_fallthru
        _
      // Predicated region
      $region21: #{unet_encoder_forward.3} parent=11 // pred_check
        %p190 = pneg %p115
      $region22: #{unet_encoder_forward.3} parent=11 // pred_check_branch
        %192 = sbr.rel (%p190) target = $region24
      $region23: #{unet_encoder_forward.3} parent=11 // pred_region
        _
      $region24: #{unet_encoder_forward.3} parent=11 // pred_fallthru
        _
    $region12: #{unet_encoder_forward.3} parent=5 // pred_fallthru
      _
    %p193 = scmp.lt.s32.totalorder %s12, 2
    // Predicated region
    $region25: #{unet_encoder_forward.3} parent=5 // pred_check
      %p194 = pneg %p193
    $region26: #{unet_encoder_forward.3} parent=5 // pred_check_branch
      %196 = sbr.rel (%p194) target = $region28
    $region27: #{unet_encoder_forward.3} parent=5 // pred_region
      // Predicated region
      $region29: #{unet_encoder_forward.3} parent=27 // pred_check
        %p197 = pneg %p46
      $region30: #{unet_encoder_forward.3} parent=27 // pred_check_branch
        %199 = sbr.rel (%p197) target = $region32
      $region31: #{unet_encoder_forward.3} parent=27 // pred_region
        %s200 = sadd.s32 %s19, %s20
        %p201 = scmp.lt.s32.totalorder %s200, 1
        %s202 = scalar_select %p201, %s200, 1
        %s203 = smul.addr %s202, 72
        %s204 = smul.addr %s203, 4
        %s205 = scalar_lea.vmem %s0, %s204
        %s206 = sadd.s32 %s19, %s20
      $region32: #{unet_encoder_forward.3} parent=27 // pred_fallthru
        _
    $region28: #{unet_encoder_forward.3} parent=5 // pred_fallthru
      _
    %p207 = scmp.le.s32.totalorder 1, %s12
    %p208 = scmp.lt.s32.totalorder %s12, 3
    %p209 = pnand %p207, %p208
    %p210 = pneg %p209
    // Predicated region
    $region33: #{unet_encoder_forward.3} parent=5 // pred_check
      _
    $region34: #{unet_encoder_forward.3} parent=5 // pred_check_branch
      %212 = sbr.rel (%p209) target = $region36
    $region35: #{unet_encoder_forward.3} parent=5 // pred_region
      %s213 = ssub.s32 %s12, 1
      %s214 = sadd.s32 %s21, %s22
      %p215 = scmp.lt.s32.totalorder %s214, 1
      %s216 = scalar_select %p215, %s214, 1
      %s217 = smul.addr %s216, 72
      %s218 = smul.addr %s217, 4
      %s219 = scalar_lea.vmem %s0, %s218
      %p220 = pneg %p52
      %p221 = pneg %p49
      %p222 = pneg %p73
      %p223 = pneg %p70
      %p224 = pneg %p94
      %p225 = pneg %p91
      %p226 = pneg %p115
      %p227 = pneg %p112
      %p228 = pneg %p143
      %p229 = pneg %p140
      %s230 = sadd.s32 %s21, %s22
      %p231 = scmp.lt.s32.totalorder %s230, 1
      %s232 = scalar_select %p231, %s230, 1
      %s233 = smul.addr %s232, 32
      %s234 = smul.addr %s233, 8
      %s235 = scalar_lea.vmem %s4, %s234
      %p236 = pneg %p169
      %p237 = pneg %p166
      %p238 = scmp.lt.s32.totalorder %s21, 1
      %s239 = scalar_select %p238, %s21, 1
      %s240 = smul.addr %s239, 2
      %s241 = scalar_lea.vmem %s5, %s240
      %s242 = sadd.s32 %s21, %s22
      %p243 = scmp.lt.s32.totalorder %s242, 1
      %s244 = scalar_select %p243, %s242, 1
      %s245 = smul.addr %s244, 72
      %s246 = smul.addr %s245, 4
      %s247 = scalar_lea.vmem %s0, %s246
      %s248 = sadd.s32 %s21, %s22
      %s249 = sadd.s32 %s21, %s22
      %p250 = scmp.lt.s32.totalorder %s249, 1
      %s251 = scalar_select %p250, %s249, 1
      %s252 = smul.addr %s251, 32
      %s253 = smul.addr %s252, 8
      %s254 = scalar_lea.vmem %s4, %s253
      %s255 = sadd.s32 %s21, %s22
      %p256 = scmp.lt.s32.totalorder %s21, 1
      %s257 = scalar_select %p256, %s21, 1
      %s258 = smul.addr %s257, 2
      %s259 = scalar_lea.vmem %s5, %s258
      %v261 = vld [vmem:[%s247] sm:$0xf]
      %v262 = vld [vmem:[%s247 + $0x4] sm:$0xf]
      %v263 = vld [vmem:[%s247 + $0x8] sm:$0xf]
      %v264 = vld [vmem:[%s247 + $0xc] sm:$0xf]
      %v265 = vld [vmem:[%s247 + $0x10] sm:$0xf]
      %v266 = vld [vmem:[%s247 + $0x14] sm:$0xf]
      %v267 = vld [vmem:[%s247 + $0x18] sm:$0xf]
      %v268 = vld [vmem:[%s247 + $0x1c] sm:$0xf]
      %v269 = vld [vmem:[%s247 + $0x20] sm:$0xf]
      %v270 = vld [vmem:[%s247 + $0x24] sm:$0xf]
      %v271 = vld [vmem:[%s247 + $0x28] sm:$0xf]
      %v272 = vld [vmem:[%s247 + $0x2c] sm:$0xf]
      %v273 = vld [vmem:[%s247 + $0x30] sm:$0xf]
      %v274 = vld [vmem:[%s247 + $0x34] sm:$0xf]
      %v275 = vld [vmem:[%s247 + $0x38] sm:$0xf]
      %v276 = vld [vmem:[%s247 + $0x3c] sm:$0xf]
      %v277 = vld [vmem:[%s247 + $0x40] sm:$0xf]
      %v278 = vld [vmem:[%s247 + $0x44] sm:$0xf]
      %v279 = vld [vmem:[%s247 + $0x48] sm:$0xf]
      %v280 = vld [vmem:[%s247 + $0x4c] sm:$0xf]
      %v281 = vld [vmem:[%s247 + $0x50] sm:$0xf]
      %v282 = vld [vmem:[%s247 + $0x54] sm:$0xf]
      %v283 = vld [vmem:[%s247 + $0x58] sm:$0xf]
      %v284 = vld [vmem:[%s247 + $0x5c] sm:$0xf]
      %v285 = vld [vmem:[%s247 + $0x60] sm:$0xf]
      %v286 = vld [vmem:[%s247 + $0x64] sm:$0xf]
      %v287 = vld [vmem:[%s247 + $0x68] sm:$0xf]
      %v288 = vld [vmem:[%s247 + $0x6c] sm:$0xf]
      %v289 = vld [vmem:[%s247 + $0x70] sm:$0xf]
      %v290 = vld [vmem:[%s247 + $0x74] sm:$0xf]
      %v291 = vld [vmem:[%s247 + $0x78] sm:$0xf]
      %v292 = vld [vmem:[%s247 + $0x7c] sm:$0xf]
      %v293 = vld [vmem:[%s247 + $0x80] sm:$0xf]
      %v294 = vld [vmem:[%s247 + $0x84] sm:$0xf]
      %v295 = vld [vmem:[%s247 + $0x88] sm:$0xf]
      %v296 = vld [vmem:[%s247 + $0x8c] sm:$0xf]
      %v297 = vld [vmem:[%s247 + $0x90] sm:$0xf]
      %v298 = vld [vmem:[%s247 + $0x94] sm:$0xf]
      %v299 = vld [vmem:[%s247 + $0x98] sm:$0xf]
      %v300 = vld [vmem:[%s247 + $0x9c] sm:$0xf]
      %v301 = vld [vmem:[%s247 + $0xa0] sm:$0xf]
      %v302 = vld [vmem:[%s247 + $0xa4] sm:$0xf]
      %v303 = vld [vmem:[%s247 + $0xa8] sm:$0xf]
      %v304 = vld [vmem:[%s247 + $0xac] sm:$0xf]
      %v305 = vld [vmem:[%s247 + $0xb0] sm:$0xf]
      %v306 = vld [vmem:[%s247 + $0xb4] sm:$0xf]
      %v307 = vld [vmem:[%s247 + $0xb8] sm:$0xf]
      %v308 = vld [vmem:[%s247 + $0xbc] sm:$0xf]
      %v309 = vld [vmem:[%s247 + $0xc0] sm:$0xf]
      %v310 = vld [vmem:[%s247 + $0xc4] sm:$0xf]
      %v311 = vld [vmem:[%s247 + $0xc8] sm:$0xf]
      %v312 = vld [vmem:[%s247 + $0xcc] sm:$0xf]
      %v313 = vld [vmem:[%s247 + $0xd0] sm:$0xf]
      %v314 = vld [vmem:[%s247 + $0xd4] sm:$0xf]
      %v315 = vld [vmem:[%s247 + $0xd8] sm:$0xf]
      %v316 = vld [vmem:[%s247 + $0xdc] sm:$0xf]
      %v317 = vld [vmem:[%s247 + $0xe0] sm:$0xf]
      %v318 = vld [vmem:[%s247 + $0xe4] sm:$0xf]
      %v319 = vld [vmem:[%s247 + $0xe8] sm:$0xf]
      %v320 = vld [vmem:[%s247 + $0xec] sm:$0xf]
      %v321 = vld [vmem:[%s247 + $0xf0] sm:$0xf]
      %v322 = vld [vmem:[%s247 + $0xf4] sm:$0xf]
      %v323 = vld [vmem:[%s247 + $0xf8] sm:$0xf]
      %v324 = vld [vmem:[%s247 + $0xfc] sm:$0xf]
      %v325 = vld [vmem:[%s247 + $0x100] sm:$0xf]
      %v326 = vld [vmem:[%s247 + $0x104] sm:$0xf]
      %v327 = vld [vmem:[%s247 + $0x108] sm:$0xf]
      %v328 = vld [vmem:[%s247 + $0x10c] sm:$0xf]
      %v329 = vld [vmem:[%s247 + $0x110] sm:$0xf]
      %v330 = vld [vmem:[%s247 + $0x114] sm:$0xf]
      %v331 = vld [vmem:[%s247 + $0x118] sm:$0xf]
      %v332 = vld [vmem:[%s247 + $0x11c] sm:$0xf]
      %v333 = vunpack.c.l.bf16 %v261
      %v334 = vunpack.c.l.bf16 %v262
      %v335 = vunpack.c.l.bf16 %v263
      %v336 = vunpack.c.l.bf16 %v264
      %v337 = vunpack.c.l.bf16 %v265
      %v338 = vunpack.c.l.bf16 %v266
      %v339 = vunpack.c.l.bf16 %v267
      %v340 = vunpack.c.l.bf16 %v268
      %v341 = vunpack.c.l.bf16 %v269
      %v342 = vunpack.c.l.bf16 %v270
      %v343 = vunpack.c.l.bf16 %v271
      %v344 = vunpack.c.l.bf16 %v272
      %v345 = vunpack.c.l.bf16 %v273
      %v346 = vunpack.c.l.bf16 %v274
      %v347 = vunpack.c.l.bf16 %v275
      %v348 = vunpack.c.l.bf16 %v276
      %v349 = vunpack.c.l.bf16 %v277
      %v350 = vunpack.c.l.bf16 %v278
      %v351 = vunpack.c.l.bf16 %v279
      %v352 = vunpack.c.l.bf16 %v280
      %v353 = vunpack.c.l.bf16 %v281
      %v354 = vunpack.c.l.bf16 %v282
      %v355 = vunpack.c.l.bf16 %v283
      %v356 = vunpack.c.l.bf16 %v284
      %v357 = vunpack.c.l.bf16 %v285
      %v358 = vunpack.c.l.bf16 %v286
      %v359 = vunpack.c.l.bf16 %v287
      %v360 = vunpack.c.l.bf16 %v288
      %v361 = vunpack.c.l.bf16 %v289
      %v362 = vunpack.c.l.bf16 %v290
      %v363 = vunpack.c.l.bf16 %v291
      %v364 = vunpack.c.l.bf16 %v292
      %v365 = vunpack.c.l.bf16 %v293
      %v366 = vunpack.c.l.bf16 %v294
      %v367 = vunpack.c.l.bf16 %v295
      %v368 = vunpack.c.l.bf16 %v296
      %v369 = vunpack.c.l.bf16 %v297
      %v370 = vunpack.c.l.bf16 %v298
      %v371 = vunpack.c.l.bf16 %v299
      %v372 = vunpack.c.l.bf16 %v300
      %v373 = vunpack.c.l.bf16 %v301
      %v374 = vunpack.c.l.bf16 %v302
      %v375 = vunpack.c.l.bf16 %v303
      %v376 = vunpack.c.l.bf16 %v304
      %v377 = vunpack.c.l.bf16 %v305
      %v378 = vunpack.c.l.bf16 %v306
      %v379 = vunpack.c.l.bf16 %v307
      %v380 = vunpack.c.l.bf16 %v308
      %v381 = vunpack.c.l.bf16 %v309
      %v382 = vunpack.c.l.bf16 %v310
      %v383 = vunpack.c.l.bf16 %v311
      %v384 = vunpack.c.l.bf16 %v312
      %v385 = vunpack.c.l.bf16 %v313
      %v386 = vunpack.c.l.bf16 %v314
      %v387 = vunpack.c.l.bf16 %v315
      %v388 = vunpack.c.l.bf16 %v316
      %v389 = vunpack.c.l.bf16 %v317
      %v390 = vunpack.c.l.bf16 %v318
      %v391 = vunpack.c.l.bf16 %v319
      %v392 = vunpack.c.l.bf16 %v320
      %v393 = vunpack.c.l.bf16 %v321
      %v394 = vunpack.c.l.bf16 %v322
      %v395 = vunpack.c.l.bf16 %v323
      %v396 = vunpack.c.l.bf16 %v324
      %v397 = vunpack.c.l.bf16 %v325
      %v398 = vunpack.c.l.bf16 %v326
      %v399 = vunpack.c.l.bf16 %v327
      %v400 = vunpack.c.l.bf16 %v328
      %v401 = vunpack.c.l.bf16 %v329
      %v402 = vunpack.c.l.bf16 %v330
      %v403 = vunpack.c.l.bf16 %v331
      %v404 = vunpack.c.l.bf16 %v332
      %v405 = vld [vmem:[%s2] sm:$0x1]
      %v406 = vld [vmem:[%s3] sm:$0x1]
      %v407 = vlaneseq
      %v408 = vshrl.u32 %v407, 7
      %v409 = vadd.s32 %v408, 8
      %v410 = vadd.s32 %v408, 16
      %v411 = vadd.s32 %v408, 24
      %vm412 = vcmp.ge.s32.totalorder %v408, 1
      %vm413 = vcmp.ge.s32.totalorder %v409, 1
      %vm414 = vcmp.ge.s32.totalorder %v410, 1
      %vm415 = vcmp.ge.s32.totalorder %v411, 1
      %vm416 = vmand 0, %vm412
      %vm417 = vmand 0, %vm413
      %vm418 = vmand 0, %vm414
      %vm419 = vmand 0, %vm415
      %vm420 = vmand 1, %vm412
      %vm421 = vmand 1, %vm413
      %vm422 = vmand 1, %vm414
      %vm423 = vmand 1, %vm415
      %vm424 = vcmp.le.s32.totalorder %v408, 16
      %vm425 = vcmp.le.s32.totalorder %v409, 16
      %vm426 = vcmp.le.s32.totalorder %v410, 16
      %vm427 = vcmp.le.s32.totalorder %v411, 16
      %vm428 = vmand %vm416, %vm424
      %vm429 = vmand %vm417, %vm425
      %vm430 = vmand %vm418, %vm426
      %vm431 = vmand %vm419, %vm427
      %vm432 = vmand %vm420, %vm424
      %vm433 = vmand %vm421, %vm425
      %vm434 = vmand %vm422, %vm426
      %vm435 = vmand %vm423, %vm427
      %v437 = vlaneseq
      %v438 = vshrl.u32 %v437, 7
      %v439 = vsub.s32 0, %v438
      %v440 = vrot.slane %v405, %v439
      %v442 = vmul.f32 %v333, %v440
      %v443 = vmul.f32 %v334, %v440
      %v444 = vmul.f32 %v335, %v440
      %v445 = vmul.f32 %v336, %v440
      %v446 = vmul.f32 %v337, %v440
      %v447 = vmul.f32 %v338, %v440
      %v448 = vmul.f32 %v339, %v440
      %v449 = vmul.f32 %v340, %v440
      %v450 = vmul.f32 %v341, %v440
      %v451 = vmul.f32 %v342, %v440
      %v452 = vmul.f32 %v343, %v440
      %v453 = vmul.f32 %v344, %v440
      %v454 = vmul.f32 %v345, %v440
      %v455 = vmul.f32 %v346, %v440
      %v456 = vmul.f32 %v347, %v440
      %v457 = vmul.f32 %v348, %v440
      %v458 = vmul.f32 %v349, %v440
      %v459 = vmul.f32 %v350, %v440
      %v460 = vmul.f32 %v351, %v440
      %v461 = vmul.f32 %v352, %v440
      %v462 = vmul.f32 %v353, %v440
      %v463 = vmul.f32 %v354, %v440
      %v464 = vmul.f32 %v355, %v440
      %v465 = vmul.f32 %v356, %v440
      %v466 = vmul.f32 %v357, %v440
      %v467 = vmul.f32 %v358, %v440
      %v468 = vmul.f32 %v359, %v440
      %v469 = vmul.f32 %v360, %v440
      %v470 = vmul.f32 %v361, %v440
      %v471 = vmul.f32 %v362, %v440
      %v472 = vmul.f32 %v363, %v440
      %v473 = vmul.f32 %v364, %v440
      %v474 = vmul.f32 %v365, %v440
      %v475 = vmul.f32 %v366, %v440
      %v476 = vmul.f32 %v367, %v440
      %v477 = vmul.f32 %v368, %v440
      %v478 = vmul.f32 %v369, %v440
      %v479 = vmul.f32 %v370, %v440
      %v480 = vmul.f32 %v371, %v440
      %v481 = vmul.f32 %v372, %v440
      %v482 = vmul.f32 %v373, %v440
      %v483 = vmul.f32 %v374, %v440
      %v484 = vmul.f32 %v375, %v440
      %v485 = vmul.f32 %v376, %v440
      %v486 = vmul.f32 %v377, %v440
      %v487 = vmul.f32 %v378, %v440
      %v488 = vmul.f32 %v379, %v440
      %v489 = vmul.f32 %v380, %v440
      %v490 = vmul.f32 %v381, %v440
      %v491 = vmul.f32 %v382, %v440
      %v492 = vmul.f32 %v383, %v440
      %v493 = vmul.f32 %v384, %v440
      %v494 = vmul.f32 %v385, %v440
      %v495 = vmul.f32 %v386, %v440
      %v496 = vmul.f32 %v387, %v440
      %v497 = vmul.f32 %v388, %v440
      %v498 = vmul.f32 %v389, %v440
      %v499 = vmul.f32 %v390, %v440
      %v500 = vmul.f32 %v391, %v440
      %v501 = vmul.f32 %v392, %v440
      %v502 = vmul.f32 %v393, %v440
      %v503 = vmul.f32 %v394, %v440
      %v504 = vmul.f32 %v395, %v440
      %v505 = vmul.f32 %v396, %v440
      %v506 = vmul.f32 %v397, %v440
      %v507 = vmul.f32 %v398, %v440
      %v508 = vmul.f32 %v399, %v440
      %v509 = vmul.f32 %v400, %v440
      %v510 = vmul.f32 %v401, %v440
      %v511 = vmul.f32 %v402, %v440
      %v512 = vmul.f32 %v403, %v440
      %v513 = vmul.f32 %v404, %v440
      %v515 = vlaneseq
      %v516 = vshrl.u32 %v515, 7
      %v517 = vsub.s32 0, %v516
      %v518 = vrot.slane %v406, %v517
      %v520 = vadd.f32 %v442, %v518
      %v521 = vadd.f32 %v443, %v518
      %v522 = vadd.f32 %v444, %v518
      %v523 = vadd.f32 %v445, %v518
      %v524 = vadd.f32 %v446, %v518
      %v525 = vadd.f32 %v447, %v518
      %v526 = vadd.f32 %v448, %v518
      %v527 = vadd.f32 %v449, %v518
      %v528 = vadd.f32 %v450, %v518
      %v529 = vadd.f32 %v451, %v518
      %v530 = vadd.f32 %v452, %v518
      %v531 = vadd.f32 %v453, %v518
      %v532 = vadd.f32 %v454, %v518
      %v533 = vadd.f32 %v455, %v518
      %v534 = vadd.f32 %v456, %v518
      %v535 = vadd.f32 %v457, %v518
      %v536 = vadd.f32 %v458, %v518
      %v537 = vadd.f32 %v459, %v518
      %v538 = vadd.f32 %v460, %v518
      %v539 = vadd.f32 %v461, %v518
      %v540 = vadd.f32 %v462, %v518
      %v541 = vadd.f32 %v463, %v518
      %v542 = vadd.f32 %v464, %v518
      %v543 = vadd.f32 %v465, %v518
      %v544 = vadd.f32 %v466, %v518
      %v545 = vadd.f32 %v467, %v518
      %v546 = vadd.f32 %v468, %v518
      %v547 = vadd.f32 %v469, %v518
      %v548 = vadd.f32 %v470, %v518
      %v549 = vadd.f32 %v471, %v518
      %v550 = vadd.f32 %v472, %v518
      %v551 = vadd.f32 %v473, %v518
      %v552 = vadd.f32 %v474, %v518
      %v553 = vadd.f32 %v475, %v518
      %v554 = vadd.f32 %v476, %v518
      %v555 = vadd.f32 %v477, %v518
      %v556 = vadd.f32 %v478, %v518
      %v557 = vadd.f32 %v479, %v518
      %v558 = vadd.f32 %v480, %v518
      %v559 = vadd.f32 %v481, %v518
      %v560 = vadd.f32 %v482, %v518
      %v561 = vadd.f32 %v483, %v518
      %v562 = vadd.f32 %v484, %v518
      %v563 = vadd.f32 %v485, %v518
      %v564 = vadd.f32 %v486, %v518
      %v565 = vadd.f32 %v487, %v518
      %v566 = vadd.f32 %v488, %v518
      %v567 = vadd.f32 %v489, %v518
      %v568 = vadd.f32 %v490, %v518
      %v569 = vadd.f32 %v491, %v518
      %v570 = vadd.f32 %v492, %v518
      %v571 = vadd.f32 %v493, %v518
      %v572 = vadd.f32 %v494, %v518
      %v573 = vadd.f32 %v495, %v518
      %v574 = vadd.f32 %v496, %v518
      %v575 = vadd.f32 %v497, %v518
      %v576 = vadd.f32 %v498, %v518
      %v577 = vadd.f32 %v499, %v518
      %v578 = vadd.f32 %v500, %v518
      %v579 = vadd.f32 %v501, %v518
      %v580 = vadd.f32 %v502, %v518
      %v581 = vadd.f32 %v503, %v518
      %v582 = vadd.f32 %v504, %v518
      %v583 = vadd.f32 %v505, %v518
      %v584 = vadd.f32 %v506, %v518
      %v585 = vadd.f32 %v507, %v518
      %v586 = vadd.f32 %v508, %v518
      %v587 = vadd.f32 %v509, %v518
      %v588 = vadd.f32 %v510, %v518
      %v589 = vadd.f32 %v511, %v518
      %v590 = vadd.f32 %v512, %v518
      %v591 = vadd.f32 %v513, %v518
      %v592 = vmax.f32 %v520, 0.0
      %v593 = vmax.f32 %v521, 0.0
      %v594 = vmax.f32 %v522, 0.0
      %v595 = vmax.f32 %v523, 0.0
      %v596 = vmax.f32 %v524, 0.0
      %v597 = vmax.f32 %v525, 0.0
      %v598 = vmax.f32 %v526, 0.0
      %v599 = vmax.f32 %v527, 0.0
      %v600 = vmax.f32 %v528, 0.0
      %v601 = vmax.f32 %v529, 0.0
      %v602 = vmax.f32 %v530, 0.0
      %v603 = vmax.f32 %v531, 0.0
      %v604 = vmax.f32 %v532, 0.0
      %v605 = vmax.f32 %v533, 0.0
      %v606 = vmax.f32 %v534, 0.0
      %v607 = vmax.f32 %v535, 0.0
      %v608 = vmax.f32 %v536, 0.0
      %v609 = vmax.f32 %v537, 0.0
      %v610 = vmax.f32 %v538, 0.0
      %v611 = vmax.f32 %v539, 0.0
      %v612 = vmax.f32 %v540, 0.0
      %v613 = vmax.f32 %v541, 0.0
      %v614 = vmax.f32 %v542, 0.0
      %v615 = vmax.f32 %v543, 0.0
      %v616 = vmax.f32 %v544, 0.0
      %v617 = vmax.f32 %v545, 0.0
      %v618 = vmax.f32 %v546, 0.0
      %v619 = vmax.f32 %v547, 0.0
      %v620 = vmax.f32 %v548, 0.0
      %v621 = vmax.f32 %v549, 0.0
      %v622 = vmax.f32 %v550, 0.0
      %v623 = vmax.f32 %v551, 0.0
      %v624 = vmax.f32 %v552, 0.0
      %v625 = vmax.f32 %v553, 0.0
      %v626 = vmax.f32 %v554, 0.0
      %v627 = vmax.f32 %v555, 0.0
      %v628 = vmax.f32 %v556, 0.0
      %v629 = vmax.f32 %v557, 0.0
      %v630 = vmax.f32 %v558, 0.0
      %v631 = vmax.f32 %v559, 0.0
      %v632 = vmax.f32 %v560, 0.0
      %v633 = vmax.f32 %v561, 0.0
      %v634 = vmax.f32 %v562, 0.0
      %v635 = vmax.f32 %v563, 0.0
      %v636 = vmax.f32 %v564, 0.0
      %v637 = vmax.f32 %v565, 0.0
      %v638 = vmax.f32 %v566, 0.0
      %v639 = vmax.f32 %v567, 0.0
      %v640 = vmax.f32 %v568, 0.0
      %v641 = vmax.f32 %v569, 0.0
      %v642 = vmax.f32 %v570, 0.0
      %v643 = vmax.f32 %v571, 0.0
      %v644 = vmax.f32 %v572, 0.0
      %v645 = vmax.f32 %v573, 0.0
      %v646 = vmax.f32 %v574, 0.0
      %v647 = vmax.f32 %v575, 0.0
      %v648 = vmax.f32 %v576, 0.0
      %v649 = vmax.f32 %v577, 0.0
      %v650 = vmax.f32 %v578, 0.0
      %v651 = vmax.f32 %v579, 0.0
      %v652 = vmax.f32 %v580, 0.0
      %v653 = vmax.f32 %v581, 0.0
      %v654 = vmax.f32 %v582, 0.0
      %v655 = vmax.f32 %v583, 0.0
      %v656 = vmax.f32 %v584, 0.0
      %v657 = vmax.f32 %v585, 0.0
      %v658 = vmax.f32 %v586, 0.0
      %v659 = vmax.f32 %v587, 0.0
      %v660 = vmax.f32 %v588, 0.0
      %v661 = vmax.f32 %v589, 0.0
      %v662 = vmax.f32 %v590, 0.0
      %v663 = vmax.f32 %v591, 0.0
      %v664 = vsel %vm428, 1, 0
      %v665 = vsel %vm429, 1, 0
      %v666 = vsel %vm430, 1, 0
      %v667 = vsel %vm431, 1, 0
      %v668 = vsel %vm432, 1, 0
      %v669 = vsel %vm433, 1, 0
      %v670 = vsel %vm434, 1, 0
      %v671 = vsel %vm435, 1, 0
      %vm672 = vcmp.eq.s32.totalorder %v664, 1
      %vm673 = vcmp.eq.s32.totalorder %v665, 1
      %vm674 = vcmp.eq.s32.totalorder %v666, 1
      %vm675 = vcmp.eq.s32.totalorder %v667, 1
      %vm676 = vcmp.eq.s32.totalorder %v668, 1
      %vm677 = vcmp.eq.s32.totalorder %v669, 1
      %vm678 = vcmp.eq.s32.totalorder %v670, 1
      %vm679 = vcmp.eq.s32.totalorder %v671, 1
      %v680 = vsel %vm672, %v592, 0.0
      %v681 = vsel %vm673, %v593, 0.0
      %v682 = vsel %vm674, %v594, 0.0
      %v683 = vsel %vm675, %v595, 0.0
      %v684 = vsel %vm676, %v596, 0.0
      %v685 = vsel %vm677, %v597, 0.0
      %v686 = vsel %vm678, %v598, 0.0
      %v687 = vsel %vm679, %v599, 0.0
      %v688 = vsel %vm676, %v600, 0.0
      %v689 = vsel %vm677, %v601, 0.0
      %v690 = vsel %vm678, %v602, 0.0
      %v691 = vsel %vm679, %v603, 0.0
      %v692 = vsel %vm676, %v604, 0.0
      %v693 = vsel %vm677, %v605, 0.0
      %v694 = vsel %vm678, %v606, 0.0
      %v695 = vsel %vm679, %v607, 0.0
      %v696 = vsel %vm676, %v608, 0.0
      %v697 = vsel %vm677, %v609, 0.0
      %v698 = vsel %vm678, %v610, 0.0
      %v699 = vsel %vm679, %v611, 0.0
      %v700 = vsel %vm676, %v612, 0.0
      %v701 = vsel %vm677, %v613, 0.0
      %v702 = vsel %vm678, %v614, 0.0
      %v703 = vsel %vm679, %v615, 0.0
      %v704 = vsel %vm676, %v616, 0.0
      %v705 = vsel %vm677, %v617, 0.0
      %v706 = vsel %vm678, %v618, 0.0
      %v707 = vsel %vm679, %v619, 0.0
      %v708 = vsel %vm676, %v620, 0.0
      %v709 = vsel %vm677, %v621, 0.0
      %v710 = vsel %vm678, %v622, 0.0
      %v711 = vsel %vm679, %v623, 0.0
      %v712 = vsel %vm676, %v624, 0.0
      %v713 = vsel %vm677, %v625, 0.0
      %v714 = vsel %vm678, %v626, 0.0
      %v715 = vsel %vm679, %v627, 0.0
      %v716 = vsel %vm676, %v628, 0.0
      %v717 = vsel %vm677, %v629, 0.0
      %v718 = vsel %vm678, %v630, 0.0
      %v719 = vsel %vm679, %v631, 0.0
      %v720 = vsel %vm676, %v632, 0.0
      %v721 = vsel %vm677, %v633, 0.0
      %v722 = vsel %vm678, %v634, 0.0
      %v723 = vsel %vm679, %v635, 0.0
      %v724 = vsel %vm676, %v636, 0.0
      %v725 = vsel %vm677, %v637, 0.0
      %v726 = vsel %vm678, %v638, 0.0
      %v727 = vsel %vm679, %v639, 0.0
      %v728 = vsel %vm676, %v640, 0.0
      %v729 = vsel %vm677, %v641, 0.0
      %v730 = vsel %vm678, %v642, 0.0
      %v731 = vsel %vm679, %v643, 0.0
      %v732 = vsel %vm676, %v644, 0.0
      %v733 = vsel %vm677, %v645, 0.0
      %v734 = vsel %vm678, %v646, 0.0
      %v735 = vsel %vm679, %v647, 0.0
      %v736 = vsel %vm676, %v648, 0.0
      %v737 = vsel %vm677, %v649, 0.0
      %v738 = vsel %vm678, %v650, 0.0
      %v739 = vsel %vm679, %v651, 0.0
      %v740 = vsel %vm676, %v652, 0.0
      %v741 = vsel %vm677, %v653, 0.0
      %v742 = vsel %vm678, %v654, 0.0
      %v743 = vsel %vm679, %v655, 0.0
      %v744 = vsel %vm676, %v656, 0.0
      %v745 = vsel %vm677, %v657, 0.0
      %v746 = vsel %vm678, %v658, 0.0
      %v747 = vsel %vm679, %v659, 0.0
      %v748 = vsel %vm672, %v660, 0.0
      %v749 = vsel %vm673, %v661, 0.0
      %v750 = vsel %vm674, %v662, 0.0
      %v751 = vsel %vm675, %v663, 0.0
      %v752 = vpack.c.bf16 %v681, %v680
      %v753 = vpack.c.bf16 %v683, %v682
      %v754 = vpack.c.bf16 %v685, %v684
      %v755 = vpack.c.bf16 %v687, %v686
      %v756 = vpack.c.bf16 %v689, %v688
      %v757 = vpack.c.bf16 %v691, %v690
      %v758 = vpack.c.bf16 %v693, %v692
      %v759 = vpack.c.bf16 %v695, %v694
      %v760 = vpack.c.bf16 %v697, %v696
      %v761 = vpack.c.bf16 %v699, %v698
      %v762 = vpack.c.bf16 %v701, %v700
      %v763 = vpack.c.bf16 %v703, %v702
      %v764 = vpack.c.bf16 %v705, %v704
      %v765 = vpack.c.bf16 %v707, %v706
      %v766 = vpack.c.bf16 %v709, %v708
      %v767 = vpack.c.bf16 %v711, %v710
      %v768 = vpack.c.bf16 %v713, %v712
      %v769 = vpack.c.bf16 %v715, %v714
      %v770 = vpack.c.bf16 %v717, %v716
      %v771 = vpack.c.bf16 %v719, %v718
      %v772 = vpack.c.bf16 %v721, %v720
      %v773 = vpack.c.bf16 %v723, %v722
      %v774 = vpack.c.bf16 %v725, %v724
      %v775 = vpack.c.bf16 %v727, %v726
      %v776 = vpack.c.bf16 %v729, %v728
      %v777 = vpack.c.bf16 %v731, %v730
      %v778 = vpack.c.bf16 %v733, %v732
      %v779 = vpack.c.bf16 %v735, %v734
      %v780 = vpack.c.bf16 %v737, %v736
      %v781 = vpack.c.bf16 %v739, %v738
      %v782 = vpack.c.bf16 %v741, %v740
      %v783 = vpack.c.bf16 %v743, %v742
      %v784 = vpack.c.bf16 %v745, %v744
      %v785 = vpack.c.bf16 %v747, %v746
      %v786 = vpack.c.bf16 %v749, %v748
      %v787 = vpack.c.bf16 %v751, %v750
      %v788 = vld [vmem:[%s1] sm:$0xf]
      %v789 = vld [vmem:[%s1 + $0x4] sm:$0xf]
      %v790 = vld [vmem:[%s1 + $0x8] sm:$0xf]
      %v791 = vld [vmem:[%s1 + $0xc] sm:$0xf]
      %v792 = vld [vmem:[%s1 + $0x10] sm:$0xf]
      %v793 = vld [vmem:[%s1 + $0x14] sm:$0xf]
      %v794 = vld [vmem:[%s1 + $0x18] sm:$0xf]
      %v795 = vld [vmem:[%s1 + $0x1c] sm:$0xf]
      %v796 = vld [vmem:[%s1 + $0x20] sm:$0xf]
      %v797 = vld [vmem:[%s1 + $0x24] sm:$0xf]
      %v798 = vld [vmem:[%s1 + $0x28] sm:$0xf]
      %v799 = vld [vmem:[%s1 + $0x2c] sm:$0xf]
      %v800 = vld [vmem:[%s1 + $0x30] sm:$0xf]
      %v801 = vld [vmem:[%s1 + $0x34] sm:$0xf]
      %v802 = vld [vmem:[%s1 + $0x38] sm:$0xf]
      %v803 = vld [vmem:[%s1 + $0x3c] sm:$0xf]
      %s804 = scalar_lea.vmem %s1, 64
      %v805 = vld [vmem:[%s804] sm:$0xf]
      %v806 = vld [vmem:[%s804 + $0x4] sm:$0xf]
      %v807 = vld [vmem:[%s804 + $0x8] sm:$0xf]
      %v808 = vld [vmem:[%s804 + $0xc] sm:$0xf]
      %v809 = vld [vmem:[%s804 + $0x10] sm:$0xf]
      %v810 = vld [vmem:[%s804 + $0x14] sm:$0xf]
      %v811 = vld [vmem:[%s804 + $0x18] sm:$0xf]
      %v812 = vld [vmem:[%s804 + $0x1c] sm:$0xf]
      %v813 = vld [vmem:[%s804 + $0x20] sm:$0xf]
      %v814 = vld [vmem:[%s804 + $0x24] sm:$0xf]
      %v815 = vld [vmem:[%s804 + $0x28] sm:$0xf]
      %v816 = vld [vmem:[%s804 + $0x2c] sm:$0xf]
      %v817 = vld [vmem:[%s804 + $0x30] sm:$0xf]
      %v818 = vld [vmem:[%s804 + $0x34] sm:$0xf]
      %v819 = vld [vmem:[%s804 + $0x38] sm:$0xf]
      %v820 = vld [vmem:[%s804 + $0x3c] sm:$0xf]
      %s821 = scalar_lea.vmem %s1, 128
      %v822 = vld [vmem:[%s821] sm:$0xf]
      %v823 = vld [vmem:[%s821 + $0x4] sm:$0xf]
      %v824 = vld [vmem:[%s821 + $0x8] sm:$0xf]
      %v825 = vld [vmem:[%s821 + $0xc] sm:$0xf]
      %v826 = vld [vmem:[%s821 + $0x10] sm:$0xf]
      %v827 = vld [vmem:[%s821 + $0x14] sm:$0xf]
      %v828 = vld [vmem:[%s821 + $0x18] sm:$0xf]
      %v829 = vld [vmem:[%s821 + $0x1c] sm:$0xf]
      %v830 = vld [vmem:[%s821 + $0x20] sm:$0xf]
      %v831 = vld [vmem:[%s821 + $0x24] sm:$0xf]
      %v832 = vld [vmem:[%s821 + $0x28] sm:$0xf]
      %v833 = vld [vmem:[%s821 + $0x2c] sm:$0xf]
      %v834 = vld [vmem:[%s821 + $0x30] sm:$0xf]
      %v835 = vld [vmem:[%s821 + $0x34] sm:$0xf]
      %v836 = vld [vmem:[%s821 + $0x38] sm:$0xf]
      %v837 = vld [vmem:[%s821 + $0x3c] sm:$0xf]
      %s838 = scalar_lea.vmem %s1, 192
      %v839 = vld [vmem:[%s838] sm:$0xf]
      %v840 = vld [vmem:[%s838 + $0x4] sm:$0xf]
      %v841 = vld [vmem:[%s838 + $0x8] sm:$0xf]
      %v842 = vld [vmem:[%s838 + $0xc] sm:$0xf]
      %v843 = vld [vmem:[%s838 + $0x10] sm:$0xf]
      %v844 = vld [vmem:[%s838 + $0x14] sm:$0xf]
      %v845 = vld [vmem:[%s838 + $0x18] sm:$0xf]
      %v846 = vld [vmem:[%s838 + $0x1c] sm:$0xf]
      %v847 = vld [vmem:[%s838 + $0x20] sm:$0xf]
      %v848 = vld [vmem:[%s838 + $0x24] sm:$0xf]
      %v849 = vld [vmem:[%s838 + $0x28] sm:$0xf]
      %v850 = vld [vmem:[%s838 + $0x2c] sm:$0xf]
      %v851 = vld [vmem:[%s838 + $0x30] sm:$0xf]
      %v852 = vld [vmem:[%s838 + $0x34] sm:$0xf]
      %v853 = vld [vmem:[%s838 + $0x38] sm:$0xf]
      %v854 = vld [vmem:[%s838 + $0x3c] sm:$0xf]
      %v871 = vunpack.c.l.b16 %v839
      %v872 = vunpack.c.l.b16 %v840
      %v873 = vunpack.c.l.b16 %v841
      %v874 = vunpack.c.l.b16 %v842
      %v875 = vunpack.c.l.b16 %v843
      %v876 = vunpack.c.l.b16 %v844
      %v877 = vunpack.c.l.b16 %v845
      %v878 = vunpack.c.l.b16 %v846
      %v879 = vunpack.c.l.b16 %v847
      %v880 = vunpack.c.l.b16 %v848
      %v881 = vunpack.c.l.b16 %v849
      %v882 = vunpack.c.l.b16 %v850
      %v883 = vunpack.c.l.b16 %v851
      %v884 = vunpack.c.l.b16 %v852
      %v885 = vunpack.c.l.b16 %v853
      %v886 = vunpack.c.l.b16 %v854
      %v887 = vpack.c.b16 %v872, %v871
      %v888 = vpack.c.b16 %v874, %v873
      %v889 = vpack.c.b16 %v876, %v875
      %v890 = vpack.c.b16 %v878, %v877
      %v891 = vpack.c.b16 %v880, %v879
      %v892 = vpack.c.b16 %v882, %v881
      %v893 = vpack.c.b16 %v884, %v883
      %v894 = vpack.c.b16 %v886, %v885
      %903 = vmatprep.subr.bf16.mxu0 0
      %904 = vmatpush1.bf16.msra.mxu0 %v887
      %905 = vmatprep.subr.bf16.mxu0 0
      %906 = vmatpush1.bf16.msra.mxu0 %v888
      %907 = vmatprep.subr.bf16.mxu0 0
      %908 = vmatpush1.bf16.msra.mxu0 %v889
      %909 = vmatprep.subr.bf16.mxu0 0
      %910 = vmatpush1.bf16.msra.mxu0 %v890
      %911 = vmatprep.subr.bf16.mxu0 0
      %912 = vmatpush1.bf16.msra.mxu0 %v891
      %913 = vmatprep.subr.bf16.mxu0 0
      %914 = vmatpush1.bf16.msra.mxu0 %v892
      %915 = vmatprep.subr.bf16.mxu0 0
      %916 = vmatpush1.bf16.msra.mxu0 %v893
      %917 = vmatprep.subr.bf16.mxu0 0
      %918 = vmatpush1.bf16.msra.mxu0 %v894
      %919 = vmatprep.subr.bf16.mxu0 0
      %920 = vmatpush1.bf16.msra.mxu0 0
      %921 = vmatprep.subr.bf16.mxu0 0
      %922 = vmatpush1.bf16.msra.mxu0 0
      %923 = vmatprep.subr.bf16.mxu0 0
      %924 = vmatpush1.bf16.msra.mxu0 0
      %925 = vmatprep.subr.bf16.mxu0 0
      %926 = vmatpush1.bf16.msra.mxu0 0
      %927 = vmatprep.subr.bf16.mxu0 0
      %928 = vmatpush1.bf16.msra.mxu0 0
      %929 = vmatprep.subr.bf16.mxu0 0
      %930 = vmatpush1.bf16.msra.mxu0 0
      %931 = vmatprep.subr.bf16.mxu0 0
      %932 = vmatpush1.bf16.msra.mxu0 0
      %933 = vmatprep.subr.bf16.mxu0 0
      %934 = vmatpush1.bf16.msra.mxu0 0
      %935 = vmatprep.mubr.bf16.mxu0 0
      %936 = vmatmul.mubr.bf16.gmra.mrb[0].mxu0 %v754
      %v937 = vpop.f32.mrb[0].mxu0
      %v938 = vadd.f32 0.0, %v937
      %v939 = vpop.f32.mrb[0].mxu0
      %v940 = vpop.f32.mrb[0].mxu0
      %v941 = vadd.f32 0.0, %v940
      %v942 = vpop.f32.mrb[0].mxu0
      %943 = vmatprep.mubr.bf16.mxu0 0
      %944 = vmatmul.mubr.bf16.gmra.mrb[0].mxu0 %v755
      %v945 = vpop.f32.mrb[0].mxu0
      %v946 = vadd.f32 0.0, %v945
      %v947 = vpop.f32.mrb[0].mxu0
      %v948 = vpop.f32.mrb[0].mxu0
      %v949 = vadd.f32 0.0, %v948
      %v950 = vpop.f32.mrb[0].mxu0
      %951 = vmatprep.mubr.bf16.mxu0 0
      %952 = vmatmul.mubr.bf16.gmra.mrb[0].mxu0 %v756
      %v953 = vpop.f32.mrb[0].mxu0
      %v954 = vadd.f32 0.0, %v953
      %v955 = vpop.f32.mrb[0].mxu0
      %v956 = vpop.f32.mrb[0].mxu0
      %v957 = vadd.f32 0.0, %v956
      %v958 = vpop.f32.mrb[0].mxu0
      %959 = vmatprep.mubr.bf16.mxu0 0
      %960 = vmatmul.mubr.bf16.gmra.mrb[0].mxu0 %v757
      %v961 = vpop.f32.mrb[0].mxu0
      %v962 = vadd.f32 0.0, %v961
      %v963 = vpop.f32.mrb[0].mxu0
      %v964 = vpop.f32.mrb[0].mxu0
      %v965 = vadd.f32 0.0, %v964
      %v966 = vpop.f32.mrb[0].mxu0
      %967 = vmatprep.mubr.bf16.mxu0 0
      %968 = vmatmul.mubr.bf16.gmra.mrb[0].mxu0 %v758
      %v969 = vpop.f32.mrb[0].mxu0
      %v970 = vadd.f32 0.0, %v969
      %v971 = vpop.f32.mrb[0].mxu0
      %v972 = vpop.f32.mrb[0].mxu0
      %v973 = vadd.f32 0.0, %v972
      %v974 = vpop.f32.mrb[0].mxu0
      %975 = vmatprep.mubr.bf16.mxu0 0
      %976 = vmatmul.mubr.bf16.gmra.mrb[0].mxu0 %v759
      %v977 = vpop.f32.mrb[0].mxu0
      %v978 = vadd.f32 0.0, %v977
      %v979 = vpop.f32.mrb[0].mxu0
      %v980 = vpop.f32.mrb[0].mxu0
      %v981 = vadd.f32 0.0, %v980
      %v982 = vpop.f32.mrb[0].mxu0
      %983 = vmatprep.mubr.bf16.mxu0 0
      %984 = vmatmul.mubr.bf16.gmra.mrb[0].mxu0 %v760
      %v985 = vpop.f32.mrb[0].mxu0
      %v986 = vadd.f32 0.0, %v985
      %v987 = vpop.f32.mrb[0].mxu0
      %v988 = vpop.f32.mrb[0].mxu0
      %v989 = vadd.f32 0.0, %v988
      %v990 = vpop.f32.mrb[0].mxu0
      %991 = vmatprep.mubr.bf16.mxu0 0
      %992 = vmatmul.mubr.bf16.gmra.mrb[0].mxu0 %v761
      %v993 = vpop.f32.mrb[0].mxu0
      %v994 = vadd.f32 0.0, %v993
      %v995 = vpop.f32.mrb[0].mxu0
      %v996 = vpop.f32.mrb[0].mxu0
      %v997 = vadd.f32 0.0, %v996
      %v998 = vpop.f32.mrb[0].mxu0
      %999 = vmatprep.mubr.bf16.mxu0 0
      %1000 = vmatmul.mubr.bf16.gmra.mrb[0].mxu0 %v762
      %v1001 = vpop.f32.mrb[0].mxu0
      %v1002 = vadd.f32 0.0, %v1001
      %v1003 = vpop.f32.mrb[0].mxu0
      %v1004 = vpop.f32.mrb[0].mxu0
      %v1005 = vadd.f32 0.0, %v1004
      %v1006 = vpop.f32.mrb[0].mxu0
      %1007 = vmatprep.mubr.bf16.mxu0 0
      %1008 = vmatmul.mubr.bf16.gmra.mrb[0].mxu0 %v763
      %v1009 = vpop.f32.mrb[0].mxu0
      %v1010 = vadd.f32 0.0, %v1009
      %v1011 = vpop.f32.mrb[0].mxu0
      %v1012 = vpop.f32.mrb[0].mxu0
      %v1013 = vadd.f32 0.0, %v1012
      %v1014 = vpop.f32.mrb[0].mxu0
      %1015 = vmatprep.mubr.bf16.mxu0 0
      %1016 = vmatmul.mubr.bf16.gmra.mrb[0].mxu0 %v764
      %v1017 = vpop.f32.mrb[0].mxu0
      %v1018 = vadd.f32 0.0, %v1017
      %v1019 = vpop.f32.mrb[0].mxu0
      %v1020 = vpop.f32.mrb[0].mxu0
      %v1021 = vadd.f32 0.0, %v1020
      %v1022 = vpop.f32.mrb[0].mxu0
      %1023 = vmatprep.mubr.bf16.mxu0 0
      %1024 = vmatmul.mubr.bf16.gmra.mrb[0].mxu0 %v765
      %v1025 = vpop.f32.mrb[0].mxu0
      %v1026 = vadd.f32 0.0, %v1025
      %v1027 = vpop.f32.mrb[0].mxu0
      %v1028 = vpop.f32.mrb[0].mxu0
      %v1029 = vadd.f32 0.0, %v1028
      %v1030 = vpop.f32.mrb[0].mxu0
      %1031 = vmatprep.mubr.bf16.mxu0 0
      %1032 = vmatmul.mubr.bf16.gmra.mrb[0].mxu0 %v766
      %v1033 = vpop.f32.mrb[0].mxu0
      %v1034 = vadd.f32 0.0, %v1033
      %v1035 = vpop.f32.mrb[0].mxu0
      %v1036 = vpop.f32.mrb[0].mxu0
      %v1037 = vadd.f32 0.0, %v1036
      %v1038 = vpop.f32.mrb[0].mxu0
      %1039 = vmatprep.mubr.bf16.mxu0 0
      %1040 = vmatmul.mubr.bf16.gmra.mrb[0].mxu0 %v767
      %v1041 = vpop.f32.mrb[0].mxu0
      %v1042 = vadd.f32 0.0, %v1041
      %v1043 = vpop.f32.mrb[0].mxu0
      %v1044 = vpop.f32.mrb[0].mxu0
      %v1045 = vadd.f32 0.0, %v1044
      %v1046 = vpop.f32.mrb[0].mxu0
      %1047 = vmatprep.mubr.bf16.mxu0 0
      %1048 = vmatmul.mubr.bf16.gmra.mrb[0].mxu0 %v768
      %v1049 = vpop.f32.mrb[0].mxu0
      %v1050 = vadd.f32 0.0, %v1049
      %v1051 = vpop.f32.mrb[0].mxu0
      %v1052 = vpop.f32.mrb[0].mxu0
      %v1053 = vadd.f32 0.0, %v1052
      %v1054 = vpop.f32.mrb[0].mxu0
      %1055 = vmatprep.mubr.bf16.mxu0 0
      %1056 = vmatmul.mubr.bf16.gmra.mrb[0].mxu0 %v769
      %v1057 = vpop.f32.mrb[0].mxu0
      %v1058 = vadd.f32 0.0, %v1057
      %v1059 = vpop.f32.mrb[0].mxu0
      %v1060 = vpop.f32.mrb[0].mxu0
      %v1061 = vadd.f32 0.0, %v1060
      %v1062 = vpop.f32.mrb[0].mxu0
      %1063 = vmatprep.mubr.bf16.mxu0 0
      %1064 = vmatmul.mubr.bf16.gmra.mrb[0].mxu0 %v770
      %v1065 = vpop.f32.mrb[0].mxu0
      %v1066 = vadd.f32 0.0, %v1065
      %v1067 = vpop.f32.mrb[0].mxu0
      %v1068 = vpop.f32.mrb[0].mxu0
      %v1069 = vadd.f32 0.0, %v1068
      %v1070 = vpop.f32.mrb[0].mxu0
      %1071 = vmatprep.mubr.bf16.mxu0 0
      %1072 = vmatmul.mubr.bf16.gmra.mrb[0].mxu0 %v771
      %v1073 = vpop.f32.mrb[0].mxu0
      %v1074 = vadd.f32 0.0, %v1073
      %v1075 = vpop.f32.mrb[0].mxu0
      %v1076 = vpop.f32.mrb[0].mxu0
      %v1077 = vadd.f32 0.0, %v1076
      %v1078 = vpop.f32.mrb[0].mxu0
      %1079 = vmatprep.mubr.bf16.mxu0 0
      %1080 = vmatmul.mubr.bf16.gmra.mrb[0].mxu0 %v772
      %v1081 = vpop.f32.mrb[0].mxu0
      %v1082 = vadd.f32 0.0, %v1081
      %v1083 = vpop.f32.mrb[0].mxu0
      %v1084 = vpop.f32.mrb[0].mxu0
      %v1085 = vadd.f32 0.0, %v1084
      %v1086 = vpop.f32.mrb[0].mxu0
      %1087 = vmatprep.mubr.bf16.mxu0 0
      %1088 = vmatmul.mubr.bf16.gmra.mrb[0].mxu0 %v773
      %v1089 = vpop.f32.mrb[0].mxu0
      %v1090 = vadd.f32 0.0, %v1089
      %v1091 = vpop.f32.mrb[0].mxu0
      %v1092 = vpop.f32.mrb[0].mxu0
      %v1093 = vadd.f32 0.0, %v1092
      %v1094 = vpop.f32.mrb[0].mxu0
      %1095 = vmatprep.mubr.bf16.mxu0 0
      %1096 = vmatmul.mubr.bf16.gmra.mrb[0].mxu0 %v774
      %v1097 = vpop.f32.mrb[0].mxu0
      %v1098 = vadd.f32 0.0, %v1097
      %v1099 = vpop.f32.mrb[0].mxu0
      %v1100 = vpop.f32.mrb[0].mxu0
      %v1101 = vadd.f32 0.0, %v1100
      %v1102 = vpop.f32.mrb[0].mxu0
      %1103 = vmatprep.mubr.bf16.mxu0 0
      %1104 = vmatmul.mubr.bf16.gmra.mrb[0].mxu0 %v775
      %v1105 = vpop.f32.mrb[0].mxu0
      %v1106 = vadd.f32 0.0, %v1105
      %v1107 = vpop.f32.mrb[0].mxu0
      %v1108 = vpop.f32.mrb[0].mxu0
      %v1109 = vadd.f32 0.0, %v1108
      %v1110 = vpop.f32.mrb[0].mxu0
      %1111 = vmatprep.mubr.bf16.mxu0 0
      %1112 = vmatmul.mubr.bf16.gmra.mrb[0].mxu0 %v776
      %v1113 = vpop.f32.mrb[0].mxu0
      %v1114 = vadd.f32 0.0, %v1113
      %v1115 = vpop.f32.mrb[0].mxu0
      %v1116 = vpop.f32.mrb[0].mxu0
      %v1117 = vadd.f32 0.0, %v1116
      %v1118 = vpop.f32.mrb[0].mxu0
      %1119 = vmatprep.mubr.bf16.mxu0 0
      %1120 = vmatmul.mubr.bf16.gmra.mrb[0].mxu0 %v777
      %v1121 = vpop.f32.mrb[0].mxu0
      %v1122 = vadd.f32 0.0, %v1121
      %v1123 = vpop.f32.mrb[0].mxu0
      %v1124 = vpop.f32.mrb[0].mxu0
      %v1125 = vadd.f32 0.0, %v1124
      %v1126 = vpop.f32.mrb[0].mxu0
      %1127 = vmatprep.mubr.bf16.mxu0 0
      %1128 = vmatmul.mubr.bf16.gmra.mrb[0].mxu0 %v778
      %v1129 = vpop.f32.mrb[0].mxu0
      %v1130 = vadd.f32 0.0, %v1129
      %v1131 = vpop.f32.mrb[0].mxu0
      %v1132 = vpop.f32.mrb[0].mxu0
      %v1133 = vadd.f32 0.0, %v1132
      %v1134 = vpop.f32.mrb[0].mxu0
      %1135 = vmatprep.mubr.bf16.mxu0 0
      %1136 = vmatmul.mubr.bf16.gmra.mrb[0].mxu0 %v779
      %v1137 = vpop.f32.mrb[0].mxu0
      %v1138 = vadd.f32 0.0, %v1137
      %v1139 = vpop.f32.mrb[0].mxu0
      %v1140 = vpop.f32.mrb[0].mxu0
      %v1141 = vadd.f32 0.0, %v1140
      %v1142 = vpop.f32.mrb[0].mxu0
      %1143 = vmatprep.mubr.bf16.mxu0 0
      %1144 = vmatmul.mubr.bf16.gmra.mrb[0].mxu0 %v780
      %v1145 = vpop.f32.mrb[0].mxu0
      %v1146 = vadd.f32 0.0, %v1145
      %v1147 = vpop.f32.mrb[0].mxu0
      %v1148 = vpop.f32.mrb[0].mxu0
      %v1149 = vadd.f32 0.0, %v1148
      %v1150 = vpop.f32.mrb[0].mxu0
      %1151 = vmatprep.mubr.bf16.mxu0 0
      %1152 = vmatmul.mubr.bf16.gmra.mrb[0].mxu0 %v781
      %v1153 = vpop.f32.mrb[0].mxu0
      %v1154 = vadd.f32 0.0, %v1153
      %v1155 = vpop.f32.mrb[0].mxu0
      %v1156 = vpop.f32.mrb[0].mxu0
      %v1157 = vadd.f32 0.0, %v1156
      %v1158 = vpop.f32.mrb[0].mxu0
      %1159 = vmatprep.mubr.bf16.mxu0 0
      %1160 = vmatmul.mubr.bf16.gmra.mrb[0].mxu0 %v782
      %v1161 = vpop.f32.mrb[0].mxu0
      %v1162 = vadd.f32 0.0, %v1161
      %v1163 = vpop.f32.mrb[0].mxu0
      %v1164 = vpop.f32.mrb[0].mxu0
      %v1165 = vadd.f32 0.0, %v1164
      %v1166 = vpop.f32.mrb[0].mxu0
      %1167 = vmatprep.mubr.bf16.mxu0 0
      %1168 = vmatmul.mubr.bf16.gmra.mrb[0].mxu0 %v783
      %v1169 = vpop.f32.mrb[0].mxu0
      %v1170 = vadd.f32 0.0, %v1169
      %v1171 = vpop.f32.mrb[0].mxu0
      %v1172 = vpop.f32.mrb[0].mxu0
      %v1173 = vadd.f32 0.0, %v1172
      %v1174 = vpop.f32.mrb[0].mxu0
      %1175 = vmatprep.mubr.bf16.mxu0 0
      %1176 = vmatmul.mubr.bf16.gmra.mrb[0].mxu0 %v784
      %v1177 = vpop.f32.mrb[0].mxu0
      %v1178 = vadd.f32 0.0, %v1177
      %v1179 = vpop.f32.mrb[0].mxu0
      %v1180 = vpop.f32.mrb[0].mxu0
      %v1181 = vadd.f32 0.0, %v1180
      %v1182 = vpop.f32.mrb[0].mxu0
      %1183 = vmatprep.mubr.bf16.mxu0 0
      %1184 = vmatmul.mubr.bf16.gmra.mrb[0].mxu0 %v785
      %v1185 = vpop.f32.mrb[0].mxu0
      %v1186 = vadd.f32 0.0, %v1185
      %v1187 = vpop.f32.mrb[0].mxu0
      %v1188 = vpop.f32.mrb[0].mxu0
      %v1189 = vadd.f32 0.0, %v1188
      %v1190 = vpop.f32.mrb[0].mxu0
      %1191 = vdwg.mxu0
      %v1208 = vunpack.c.l.b16 %v788
      %v1209 = vunpack.c.l.b16 %v789
      %v1210 = vunpack.c.l.b16 %v790
      %v1211 = vunpack.c.l.b16 %v791
      %v1212 = vunpack.c.l.b16 %v792
      %v1213 = vunpack.c.l.b16 %v793
      %v1214 = vunpack.c.l.b16 %v794
      %v1215 = vunpack.c.l.b16 %v795
      %v1216 = vunpack.c.l.b16 %v796
      %v1217 = vunpack.c.l.b16 %v797
      %v1218 = vunpack.c.l.b16 %v798
      %v1219 = vunpack.c.l.b16 %v799
      %v1220 = vunpack.c.l.b16 %v800
      %v1221 = vunpack.c.l.b16 %v801
      %v1222 = vunpack.c.l.b16 %v802
      %v1223 = vunpack.c.l.b16 %v803
      %v1224 = vpack.c.b16 %v1209, %v1208
      %v1225 = vpack.c.b16 %v1211, %v1210
      %v1226 = vpack.c.b16 %v1213, %v1212
      %v1227 = vpack.c.b16 %v1215, %v1214
      %v1228 = vpack.c.b16 %v1217, %v1216
      %v1229 = vpack.c.b16 %v1219, %v1218
      %v1230 = vpack.c.b16 %v1221, %v1220
      %v1231 = vpack.c.b16 %v1223, %v1222
      %1240 = vmatprep.subr.bf16.mxu0 0
      %1241 = vmatpush1.bf16.msra.mxu0 %v1224
      %1242 = vmatprep.subr.bf16.mxu0 0
      %1243 = vmatpush1.bf16.msra.mxu0 %v1225
      %1244 = vmatprep.subr.bf16.mxu0 0
      %1245 = vmatpush1.bf16.msra.mxu0 %v1226
      %1246 = vmatprep.subr.bf16.mxu0 0
      %1247 = vmatpush1.bf16.msra.mxu0 %v1227
      %1248 = vmatprep.subr.bf16.mxu0 0
      %1249 = vmatpush1.bf16.msra.mxu0 %v1228
      %1250 = vmatprep.subr.bf16.mxu0 0
      %1251 = vmatpush1.bf16.msra.mxu0 %v1229
      %1252 = vmatprep.subr.bf16.mxu0 0
      %1253 = vmatpush1.bf16.msra.mxu0 %v1230
      %1254 = vmatprep.subr.bf16.mxu0 0
      %1255 = vmatpush1.bf16.msra.mxu0 %v1231
      %1256 = vmatprep.subr.bf16.mxu0 0
      %1257 = vmatpush1.bf16.msra.mxu0 0
      %1258 = vmatprep.subr.bf16.mxu0 0
      %1259 = vmatpush1.bf16.msra.mxu0 0
      %1260 = vmatprep.subr.bf16.mxu0 0
      %1261 = vmatpush1.bf16.msra.mxu0 0
      %1262 = vmatprep.subr.bf16.mxu0 0
      %1263 = vmatpush1.bf16.msra.mxu0 0
      %1264 = vmatprep.subr.bf16.mxu0 0
      %1265 = vmatpush1.bf16.msra.mxu0 0
      %1266 = vmatprep.subr.bf16.mxu0 0
      %1267 = vmatpush1.bf16.msra.mxu0 0
      %1268 = vmatprep.subr.bf16.mxu0 0
      %1269 = vmatpush1.bf16.msra.mxu0 0
      %1270 = vmatprep.subr.bf16.mxu0 0
      %1271 = vmatpush1.bf16.msra.mxu0 0
      %1272 = vmatprep.mubr.bf16.mxu0 0
      %1273 = vmatmul.mubr.bf16.gmra.mrb[0].mxu0 %v752
      %v1274 = vpop.f32.mrb[0].mxu0
      %v1275 = vadd.f32 %v938, %v1274
      %v1276 = vpop.f32.mrb[0].mxu0
      %v1277 = vpop.f32.mrb[0].mxu0
      %v1278 = vadd.f32 %v941, %v1277
      %v1279 = vpop.f32.mrb[0].mxu0
      %1280 = vmatprep.mubr.bf16.mxu0 0
      %1281 = vmatmul.mubr.bf16.gmra.mrb[0].mxu0 %v753
      %v1282 = vpop.f32.mrb[0].mxu0
      %v1283 = vadd.f32 %v946, %v1282
      %v1284 = vpop.f32.mrb[0].mxu0
      %v1285 = vpop.f32.mrb[0].mxu0
      %v1286 = vadd.f32 %v949, %v1285
      %v1287 = vpop.f32.mrb[0].mxu0
      %1288 = vmatprep.mubr.bf16.mxu0 0
      %1289 = vmatmul.mubr.bf16.gmra.mrb[0].mxu0 %v754
      %v1290 = vpop.f32.mrb[0].mxu0
      %v1291 = vadd.f32 %v954, %v1290
      %v1292 = vpop.f32.mrb[0].mxu0
      %v1293 = vpop.f32.mrb[0].mxu0
      %v1294 = vadd.f32 %v957, %v1293
      %v1295 = vpop.f32.mrb[0].mxu0
      %1296 = vmatprep.mubr.bf16.mxu0 0
      %1297 = vmatmul.mubr.bf16.gmra.mrb[0].mxu0 %v755
      %v1298 = vpop.f32.mrb[0].mxu0
      %v1299 = vadd.f32 %v962, %v1298
      %v1300 = vpop.f32.mrb[0].mxu0
      %v1301 = vpop.f32.mrb[0].mxu0
      %v1302 = vadd.f32 %v965, %v1301
      %v1303 = vpop.f32.mrb[0].mxu0
      %1304 = vmatprep.mubr.bf16.mxu0 0
      %1305 = vmatmul.mubr.bf16.gmra.mrb[0].mxu0 %v756
      %v1306 = vpop.f32.mrb[0].mxu0
      %v1307 = vadd.f32 %v970, %v1306
      %v1308 = vpop.f32.mrb[0].mxu0
      %v1309 = vpop.f32.mrb[0].mxu0
      %v1310 = vadd.f32 %v973, %v1309
      %v1311 = vpop.f32.mrb[0].mxu0
      %1312 = vmatprep.mubr.bf16.mxu0 0
      %1313 = vmatmul.mubr.bf16.gmra.mrb[0].mxu0 %v757
      %v1314 = vpop.f32.mrb[0].mxu0
      %v1315 = vadd.f32 %v978, %v1314
      %v1316 = vpop.f32.mrb[0].mxu0
      %v1317 = vpop.f32.mrb[0].mxu0
      %v1318 = vadd.f32 %v981, %v1317
      %v1319 = vpop.f32.mrb[0].mxu0
      %1320 = vmatprep.mubr.bf16.mxu0 0
      %1321 = vmatmul.mubr.bf16.gmra.mrb[0].mxu0 %v758
      %v1322 = vpop.f32.mrb[0].mxu0
      %v1323 = vadd.f32 %v986, %v1322
      %v1324 = vpop.f32.mrb[0].mxu0
      %v1325 = vpop.f32.mrb[0].mxu0
      %v1326 = vadd.f32 %v989, %v1325
      %v1327 = vpop.f32.mrb[0].mxu0
      %1328 = vmatprep.mubr.bf16.mxu0 0
      %1329 = vmatmul.mubr.bf16.gmra.mrb[0].mxu0 %v759
      %v1330 = vpop.f32.mrb[0].mxu0
      %v1331 = vadd.f32 %v994, %v1330
      %v1332 = vpop.f32.mrb[0].mxu0
      %v1333 = vpop.f32.mrb[0].mxu0
      %v1334 = vadd.f32 %v997, %v1333
      %v1335 = vpop.f32.mrb[0].mxu0
      %1336 = vmatprep.mubr.bf16.mxu0 0
      %1337 = vmatmul.mubr.bf16.gmra.mrb[0].mxu0 %v760
      %v1338 = vpop.f32.mrb[0].mxu0
      %v1339 = vadd.f32 %v1002, %v1338
      %v1340 = vpop.f32.mrb[0].mxu0
      %v1341 = vpop.f32.mrb[0].mxu0
      %v1342 = vadd.f32 %v1005, %v1341
      %v1343 = vpop.f32.mrb[0].mxu0
      %1344 = vmatprep.mubr.bf16.mxu0 0
      %1345 = vmatmul.mubr.bf16.gmra.mrb[0].mxu0 %v761
      %v1346 = vpop.f32.mrb[0].mxu0
      %v1347 = vadd.f32 %v1010, %v1346
      %v1348 = vpop.f32.mrb[0].mxu0
      %v1349 = vpop.f32.mrb[0].mxu0
      %v1350 = vadd.f32 %v1013, %v1349
      %v1351 = vpop.f32.mrb[0].mxu0
      %1352 = vmatprep.mubr.bf16.mxu0 0
      %1353 = vmatmul.mubr.bf16.gmra.mrb[0].mxu0 %v762
      %v1354 = vpop.f32.mrb[0].mxu0
      %v1355 = vadd.f32 %v1018, %v1354
      %v1356 = vpop.f32.mrb[0].mxu0
      %v1357 = vpop.f32.mrb[0].mxu0
      %v1358 = vadd.f32 %v1021, %v1357
      %v1359 = vpop.f32.mrb[0].mxu0
      %1360 = vmatprep.mubr.bf16.mxu0 0
      %1361 = vmatmul.mubr.bf16.gmra.mrb[0].mxu0 %v763
      %v1362 = vpop.f32.mrb[0].mxu0
      %v1363 = vadd.f32 %v1026, %v1362
      %v1364 = vpop.f32.mrb[0].mxu0
      %v1365 = vpop.f32.mrb[0].mxu0
      %v1366 = vadd.f32 %v1029, %v1365
      %v1367 = vpop.f32.mrb[0].mxu0
      %1368 = vmatprep.mubr.bf16.mxu0 0
      %1369 = vmatmul.mubr.bf16.gmra.mrb[0].mxu0 %v764
      %v1370 = vpop.f32.mrb[0].mxu0
      %v1371 = vadd.f32 %v1034, %v1370
      %v1372 = vpop.f32.mrb[0].mxu0
      %v1373 = vpop.f32.mrb[0].mxu0
      %v1374 = vadd.f32 %v1037, %v1373
      %v1375 = vpop.f32.mrb[0].mxu0
      %1376 = vmatprep.mubr.bf16.mxu0 0
      %1377 = vmatmul.mubr.bf16.gmra.mrb[0].mxu0 %v765
      %v1378 = vpop.f32.mrb[0].mxu0
      %v1379 = vadd.f32 %v1042, %v1378
      %v1380 = vpop.f32.mrb[0].mxu0
      %v1381 = vpop.f32.mrb[0].mxu0
      %v1382 = vadd.f32 %v1045, %v1381
      %v1383 = vpop.f32.mrb[0].mxu0
      %1384 = vmatprep.mubr.bf16.mxu0 0
      %1385 = vmatmul.mubr.bf16.gmra.mrb[0].mxu0 %v766
      %v1386 = vpop.f32.mrb[0].mxu0
      %v1387 = vadd.f32 %v1050, %v1386
      %v1388 = vpop.f32.mrb[0].mxu0
      %v1389 = vpop.f32.mrb[0].mxu0
      %v1390 = vadd.f32 %v1053, %v1389
      %v1391 = vpop.f32.mrb[0].mxu0
      %1392 = vmatprep.mubr.bf16.mxu0 0
      %1393 = vmatmul.mubr.bf16.gmra.mrb[0].mxu0 %v767
      %v1394 = vpop.f32.mrb[0].mxu0
      %v1395 = vadd.f32 %v1058, %v1394
      %v1396 = vpop.f32.mrb[0].mxu0
      %v1397 = vpop.f32.mrb[0].mxu0
      %v1398 = vadd.f32 %v1061, %v1397
      %v1399 = vpop.f32.mrb[0].mxu0
      %1400 = vmatprep.mubr.bf16.mxu0 0
      %1401 = vmatmul.mubr.bf16.gmra.mrb[0].mxu0 %v768
      %v1402 = vpop.f32.mrb[0].mxu0
      %v1403 = vadd.f32 %v1066, %v1402
      %v1404 = vpop.f32.mrb[0].mxu0
      %v1405 = vpop.f32.mrb[0].mxu0
      %v1406 = vadd.f32 %v1069, %v1405
      %v1407 = vpop.f32.mrb[0].mxu0
      %1408 = vmatprep.mubr.bf16.mxu0 0
      %1409 = vmatmul.mubr.bf16.gmra.mrb[0].mxu0 %v769
      %v1410 = vpop.f32.mrb[0].mxu0
      %v1411 = vadd.f32 %v1074, %v1410
      %v1412 = vpop.f32.mrb[0].mxu0
      %v1413 = vpop.f32.mrb[0].mxu0
      %v1414 = vadd.f32 %v1077, %v1413
      %v1415 = vpop.f32.mrb[0].mxu0
      %1416 = vmatprep.mubr.bf16.mxu0 0
      %1417 = vmatmul.mubr.bf16.gmra.mrb[0].mxu0 %v770
      %v1418 = vpop.f32.mrb[0].mxu0
      %v1419 = vadd.f32 %v1082, %v1418
      %v1420 = vpop.f32.mrb[0].mxu0
      %v1421 = vpop.f32.mrb[0].mxu0
      %v1422 = vadd.f32 %v1085, %v1421
      %v1423 = vpop.f32.mrb[0].mxu0
      %1424 = vmatprep.mubr.bf16.mxu0 0
      %1425 = vmatmul.mubr.bf16.gmra.mrb[0].mxu0 %v771
      %v1426 = vpop.f32.mrb[0].mxu0
      %v1427 = vadd.f32 %v1090, %v1426
      %v1428 = vpop.f32.mrb[0].mxu0
      %v1429 = vpop.f32.mrb[0].mxu0
      %v1430 = vadd.f32 %v1093, %v1429
      %v1431 = vpop.f32.mrb[0].mxu0
      %1432 = vmatprep.mubr.bf16.mxu0 0
      %1433 = vmatmul.mubr.bf16.gmra.mrb[0].mxu0 %v772
      %v1434 = vpop.f32.mrb[0].mxu0
      %v1435 = vadd.f32 %v1098, %v1434
      %v1436 = vpop.f32.mrb[0].mxu0
      %v1437 = vpop.f32.mrb[0].mxu0
      %v1438 = vadd.f32 %v1101, %v1437
      %v1439 = vpop.f32.mrb[0].mxu0
      %1440 = vmatprep.mubr.bf16.mxu0 0
      %1441 = vmatmul.mubr.bf16.gmra.mrb[0].mxu0 %v773
      %v1442 = vpop.f32.mrb[0].mxu0
      %v1443 = vadd.f32 %v1106, %v1442
      %v1444 = vpop.f32.mrb[0].mxu0
      %v1445 = vpop.f32.mrb[0].mxu0
      %v1446 = vadd.f32 %v1109, %v1445
      %v1447 = vpop.f32.mrb[0].mxu0
      %1448 = vmatprep.mubr.bf16.mxu0 0
      %1449 = vmatmul.mubr.bf16.gmra.mrb[0].mxu0 %v774
      %v1450 = vpop.f32.mrb[0].mxu0
      %v1451 = vadd.f32 %v1114, %v1450
      %v1452 = vpop.f32.mrb[0].mxu0
      %v1453 = vpop.f32.mrb[0].mxu0
      %v1454 = vadd.f32 %v1117, %v1453
      %v1455 = vpop.f32.mrb[0].mxu0
      %1456 = vmatprep.mubr.bf16.mxu0 0
      %1457 = vmatmul.mubr.bf16.gmra.mrb[0].mxu0 %v775
      %v1458 = vpop.f32.mrb[0].mxu0
      %v1459 = vadd.f32 %v1122, %v1458
      %v1460 = vpop.f32.mrb[0].mxu0
      %v1461 = vpop.f32.mrb[0].mxu0
      %v1462 = vadd.f32 %v1125, %v1461
      %v1463 = vpop.f32.mrb[0].mxu0
      %1464 = vmatprep.mubr.bf16.mxu0 0
      %1465 = vmatmul.mubr.bf16.gmra.mrb[0].mxu0 %v776
      %v1466 = vpop.f32.mrb[0].mxu0
      %v1467 = vadd.f32 %v1130, %v1466
      %v1468 = vpop.f32.mrb[0].mxu0
      %v1469 = vpop.f32.mrb[0].mxu0
      %v1470 = vadd.f32 %v1133, %v1469
      %v1471 = vpop.f32.mrb[0].mxu0
      %1472 = vmatprep.mubr.bf16.mxu0 0
      %1473 = vmatmul.mubr.bf16.gmra.mrb[0].mxu0 %v777
      %v1474 = vpop.f32.mrb[0].mxu0
      %v1475 = vadd.f32 %v1138, %v1474
      %v1476 = vpop.f32.mrb[0].mxu0
      %v1477 = vpop.f32.mrb[0].mxu0
      %v1478 = vadd.f32 %v1141, %v1477
      %v1479 = vpop.f32.mrb[0].mxu0
      %1480 = vmatprep.mubr.bf16.mxu0 0
      %1481 = vmatmul.mubr.bf16.gmra.mrb[0].mxu0 %v778
      %v1482 = vpop.f32.mrb[0].mxu0
      %v1483 = vadd.f32 %v1146, %v1482
      %v1484 = vpop.f32.mrb[0].mxu0
      %v1485 = vpop.f32.mrb[0].mxu0
      %v1486 = vadd.f32 %v1149, %v1485
      %v1487 = vpop.f32.mrb[0].mxu0
      %1488 = vmatprep.mubr.bf16.mxu0 0
      %1489 = vmatmul.mubr.bf16.gmra.mrb[0].mxu0 %v779
      %v1490 = vpop.f32.mrb[0].mxu0
      %v1491 = vadd.f32 %v1154, %v1490
      %v1492 = vpop.f32.mrb[0].mxu0
      %v1493 = vpop.f32.mrb[0].mxu0
      %v1494 = vadd.f32 %v1157, %v1493
      %v1495 = vpop.f32.mrb[0].mxu0
      %1496 = vmatprep.mubr.bf16.mxu0 0
      %1497 = vmatmul.mubr.bf16.gmra.mrb[0].mxu0 %v780
      %v1498 = vpop.f32.mrb[0].mxu0
      %v1499 = vadd.f32 %v1162, %v1498
      %v1500 = vpop.f32.mrb[0].mxu0
      %v1501 = vpop.f32.mrb[0].mxu0
      %v1502 = vadd.f32 %v1165, %v1501
      %v1503 = vpop.f32.mrb[0].mxu0
      %1504 = vmatprep.mubr.bf16.mxu0 0
      %1505 = vmatmul.mubr.bf16.gmra.mrb[0].mxu0 %v781
      %v1506 = vpop.f32.mrb[0].mxu0
      %v1507 = vadd.f32 %v1170, %v1506
      %v1508 = vpop.f32.mrb[0].mxu0
      %v1509 = vpop.f32.mrb[0].mxu0
      %v1510 = vadd.f32 %v1173, %v1509
      %v1511 = vpop.f32.mrb[0].mxu0
      %1512 = vmatprep.mubr.bf16.mxu0 0
      %1513 = vmatmul.mubr.bf16.gmra.mrb[0].mxu0 %v782
      %v1514 = vpop.f32.mrb[0].mxu0
      %v1515 = vadd.f32 %v1178, %v1514
      %v1516 = vpop.f32.mrb[0].mxu0
      %v1517 = vpop.f32.mrb[0].mxu0
      %v1518 = vadd.f32 %v1181, %v1517
      %v1519 = vpop.f32.mrb[0].mxu0
      %1520 = vmatprep.mubr.bf16.mxu0 0
      %1521 = vmatmul.mubr.bf16.gmra.mrb[0].mxu0 %v783
      %v1522 = vpop.f32.mrb[0].mxu0
      %v1523 = vadd.f32 %v1186, %v1522
      %v1524 = vpop.f32.mrb[0].mxu0
      %v1525 = vpop.f32.mrb[0].mxu0
      %v1526 = vadd.f32 %v1189, %v1525
      %v1527 = vpop.f32.mrb[0].mxu0
      %1528 = vdwg.mxu0
      %s1529 = scalar_lea.vmem %s1, 256
      %v1530 = vld [vmem:[%s1529] sm:$0xf]
      %v1531 = vld [vmem:[%s1529 + $0x4] sm:$0xf]
      %v1532 = vld [vmem:[%s1529 + $0x8] sm:$0xf]
      %v1533 = vld [vmem:[%s1529 + $0xc] sm:$0xf]
      %v1534 = vld [vmem:[%s1529 + $0x10] sm:$0xf]
      %v1535 = vld [vmem:[%s1529 + $0x14] sm:$0xf]
      %v1536 = vld [vmem:[%s1529 + $0x18] sm:$0xf]
      %v1537 = vld [vmem:[%s1529 + $0x1c] sm:$0xf]
      %v1538 = vld [vmem:[%s1529 + $0x20] sm:$0xf]
      %v1539 = vld [vmem:[%s1529 + $0x24] sm:$0xf]
      %v1540 = vld [vmem:[%s1529 + $0x28] sm:$0xf]
      %v1541 = vld [vmem:[%s1529 + $0x2c] sm:$0xf]
      %v1542 = vld [vmem:[%s1529 + $0x30] sm:$0xf]
      %v1543 = vld [vmem:[%s1529 + $0x34] sm:$0xf]
      %v1544 = vld [vmem:[%s1529 + $0x38] sm:$0xf]
      %v1545 = vld [vmem:[%s1529 + $0x3c] sm:$0xf]
      %v1562 = vunpack.c.l.b16 %v1530
      %v1563 = vunpack.c.l.b16 %v1531
      %v1564 = vunpack.c.l.b16 %v1532
      %v1565 = vunpack.c.l.b16 %v1533
      %v1566 = vunpack.c.l.b16 %v1534
      %v1567 = vunpack.c.l.b16 %v1535
      %v1568 = vunpack.c.l.b16 %v1536
      %v1569 = vunpack.c.l.b16 %v1537
      %v1570 = vunpack.c.l.b16 %v1538
      %v1571 = vunpack.c.l.b16 %v1539
      %v1572 = vunpack.c.l.b16 %v1540
      %v1573 = vunpack.c.l.b16 %v1541
      %v1574 = vunpack.c.l.b16 %v1542
      %v1575 = vunpack.c.l.b16 %v1543
      %v1576 = vunpack.c.l.b16 %v1544
      %v1577 = vunpack.c.l.b16 %v1545
      %v1578 = vpack.c.b16 %v1563, %v1562
      %v1579 = vpack.c.b16 %v1565, %v1564
      %v1580 = vpack.c.b16 %v1567, %v1566
      %v1581 = vpack.c.b16 %v1569, %v1568
      %v1582 = vpack.c.b16 %v1571, %v1570
      %v1583 = vpack.c.b16 %v1573, %v1572
      %v1584 = vpack.c.b16 %v1575, %v1574
      %v1585 = vpack.c.b16 %v1577, %v1576
      %1594 = vmatprep.subr.bf16.mxu0 0
      %1595 = vmatpush1.bf16.msra.mxu0 %v1578
      %1596 = vmatprep.subr.bf16.mxu0 0
      %1597 = vmatpush1.bf16.msra.mxu0 %v1579
      %1598 = vmatprep.subr.bf16.mxu0 0
      %1599 = vmatpush1.bf16.msra.mxu0 %v1580
      %1600 = vmatprep.subr.bf16.mxu0 0
      %1601 = vmatpush1.bf16.msra.mxu0 %v1581
      %1602 = vmatprep.subr.bf16.mxu0 0
      %1603 = vmatpush1.bf16.msra.mxu0 %v1582
      %1604 = vmatprep.subr.bf16.mxu0 0
      %1605 = vmatpush1.bf16.msra.mxu0 %v1583
      %1606 = vmatprep.subr.bf16.mxu0 0
      %1607 = vmatpush1.bf16.msra.mxu0 %v1584
      %1608 = vmatprep.subr.bf16.mxu0 0
      %1609 = vmatpush1.bf16.msra.mxu0 %v1585
      %1610 = vmatprep.subr.bf16.mxu0 0
      %1611 = vmatpush1.bf16.msra.mxu0 0
      %1612 = vmatprep.subr.bf16.mxu0 0
      %1613 = vmatpush1.bf16.msra.mxu0 0
      %1614 = vmatprep.subr.bf16.mxu0 0
      %1615 = vmatpush1.bf16.msra.mxu0 0
      %1616 = vmatprep.subr.bf16.mxu0 0
      %1617 = vmatpush1.bf16.msra.mxu0 0
      %1618 = vmatprep.subr.bf16.mxu0 0
      %1619 = vmatpush1.bf16.msra.mxu0 0
      %1620 = vmatprep.subr.bf16.mxu0 0
      %1621 = vmatpush1.bf16.msra.mxu0 0
      %1622 = vmatprep.subr.bf16.mxu0 0
      %1623 = vmatpush1.bf16.msra.mxu0 0
      %1624 = vmatprep.subr.bf16.mxu0 0
      %1625 = vmatpush1.bf16.msra.mxu0 0
      %1626 = vmatprep.mubr.bf16.mxu0 0
      %1627 = vmatmul.mubr.bf16.gmra.mrb[0].mxu0 %v754
      %v1628 = vpop.f32.mrb[0].mxu0
      %v1629 = vadd.f32 0.0, %v1628
      %v1630 = vpop.f32.mrb[0].mxu0
      %v1631 = vpop.f32.mrb[0].mxu0
      %v1632 = vadd.f32 0.0, %v1631
      %v1633 = vpop.f32.mrb[0].mxu0
      %1634 = vmatprep.mubr.bf16.mxu0 0
      %1635 = vmatmul.mubr.bf16.gmra.mrb[0].mxu0 %v755
      %v1636 = vpop.f32.mrb[0].mxu0
      %v1637 = vadd.f32 0.0, %v1636
      %v1638 = vpop.f32.mrb[0].mxu0
      %v1639 = vpop.f32.mrb[0].mxu0
      %v1640 = vadd.f32 0.0, %v1639
      %v1641 = vpop.f32.mrb[0].mxu0
      %1642 = vmatprep.mubr.bf16.mxu0 0
      %1643 = vmatmul.mubr.bf16.gmra.mrb[0].mxu0 %v756
      %v1644 = vpop.f32.mrb[0].mxu0
      %v1645 = vadd.f32 0.0, %v1644
      %v1646 = vpop.f32.mrb[0].mxu0
      %v1647 = vpop.f32.mrb[0].mxu0
      %v1648 = vadd.f32 0.0, %v1647
      %v1649 = vpop.f32.mrb[0].mxu0
      %1650 = vmatprep.mubr.bf16.mxu0 0
      %1651 = vmatmul.mubr.bf16.gmra.mrb[0].mxu0 %v757
      %v1652 = vpop.f32.mrb[0].mxu0
      %v1653 = vadd.f32 0.0, %v1652
      %v1654 = vpop.f32.mrb[0].mxu0
      %v1655 = vpop.f32.mrb[0].mxu0
      %v1656 = vadd.f32 0.0, %v1655
      %v1657 = vpop.f32.mrb[0].mxu0
      %1658 = vmatprep.mubr.bf16.mxu0 0
      %1659 = vmatmul.mubr.bf16.gmra.mrb[0].mxu0 %v758
      %v1660 = vpop.f32.mrb[0].mxu0
      %v1661 = vadd.f32 0.0, %v1660
      %v1662 = vpop.f32.mrb[0].mxu0
      %v1663 = vpop.f32.mrb[0].mxu0
      %v1664 = vadd.f32 0.0, %v1663
      %v1665 = vpop.f32.mrb[0].mxu0
      %1666 = vmatprep.mubr.bf16.mxu0 0
      %1667 = vmatmul.mubr.bf16.gmra.mrb[0].mxu0 %v759
      %v1668 = vpop.f32.mrb[0].mxu0
      %v1669 = vadd.f32 0.0, %v1668
      %v1670 = vpop.f32.mrb[0].mxu0
      %v1671 = vpop.f32.mrb[0].mxu0
      %v1672 = vadd.f32 0.0, %v1671
      %v1673 = vpop.f32.mrb[0].mxu0
      %1674 = vmatprep.mubr.bf16.mxu0 0
      %1675 = vmatmul.mubr.bf16.gmra.mrb[0].mxu0 %v760
      %v1676 = vpop.f32.mrb[0].mxu0
      %v1677 = vadd.f32 0.0, %v1676
      %v1678 = vpop.f32.mrb[0].mxu0
      %v1679 = vpop.f32.mrb[0].mxu0
      %v1680 = vadd.f32 0.0, %v1679
      %v1681 = vpop.f32.mrb[0].mxu0
      %1682 = vmatprep.mubr.bf16.mxu0 0
      %1683 = vmatmul.mubr.bf16.gmra.mrb[0].mxu0 %v761
      %v1684 = vpop.f32.mrb[0].mxu0
      %v1685 = vadd.f32 0.0, %v1684
      %v1686 = vpop.f32.mrb[0].mxu0
      %v1687 = vpop.f32.mrb[0].mxu0
      %v1688 = vadd.f32 0.0, %v1687
      %v1689 = vpop.f32.mrb[0].mxu0
      %1690 = vmatprep.mubr.bf16.mxu0 0
      %1691 = vmatmul.mubr.bf16.gmra.mrb[0].mxu0 %v762
      %v1692 = vpop.f32.mrb[0].mxu0
      %v1693 = vadd.f32 0.0, %v1692
      %v1694 = vpop.f32.mrb[0].mxu0
      %v1695 = vpop.f32.mrb[0].mxu0
      %v1696 = vadd.f32 0.0, %v1695
      %v1697 = vpop.f32.mrb[0].mxu0
      %1698 = vmatprep.mubr.bf16.mxu0 0
      %1699 = vmatmul.mubr.bf16.gmra.mrb[0].mxu0 %v763
      %v1700 = vpop.f32.mrb[0].mxu0
      %v1701 = vadd.f32 0.0, %v1700
      %v1702 = vpop.f32.mrb[0].mxu0
      %v1703 = vpop.f32.mrb[0].mxu0
      %v1704 = vadd.f32 0.0, %v1703
      %v1705 = vpop.f32.mrb[0].mxu0
      %1706 = vmatprep.mubr.bf16.mxu0 0
      %1707 = vmatmul.mubr.bf16.gmra.mrb[0].mxu0 %v764
      %v1708 = vpop.f32.mrb[0].mxu0
      %v1709 = vadd.f32 0.0, %v1708
      %v1710 = vpop.f32.mrb[0].mxu0
      %v1711 = vpop.f32.mrb[0].mxu0
      %v1712 = vadd.f32 0.0, %v1711
      %v1713 = vpop.f32.mrb[0].mxu0
      %1714 = vmatprep.mubr.bf16.mxu0 0
      %1715 = vmatmul.mubr.bf16.gmra.mrb[0].mxu0 %v765
      %v1716 = vpop.f32.mrb[0].mxu0
      %v1717 = vadd.f32 0.0, %v1716
      %v1718 = vpop.f32.mrb[0].mxu0
      %v1719 = vpop.f32.mrb[0].mxu0
      %v1720 = vadd.f32 0.0, %v1719
      %v1721 = vpop.f32.mrb[0].mxu0
      %1722 = vmatprep.mubr.bf16.mxu0 0
      %1723 = vmatmul.mubr.bf16.gmra.mrb[0].mxu0 %v766
      %v1724 = vpop.f32.mrb[0].mxu0
      %v1725 = vadd.f32 0.0, %v1724
      %v1726 = vpop.f32.mrb[0].mxu0
      %v1727 = vpop.f32.mrb[0].mxu0
      %v1728 = vadd.f32 0.0, %v1727
      %v1729 = vpop.f32.mrb[0].mxu0
      %1730 = vmatprep.mubr.bf16.mxu0 0
      %1731 = vmatmul.mubr.bf16.gmra.mrb[0].mxu0 %v767
      %v1732 = vpop.f32.mrb[0].mxu0
      %v1733 = vadd.f32 0.0, %v1732
      %v1734 = vpop.f32.mrb[0].mxu0
      %v1735 = vpop.f32.mrb[0].mxu0
      %v1736 = vadd.f32 0.0, %v1735
      %v1737 = vpop.f32.mrb[0].mxu0
      %1738 = vmatprep.mubr.bf16.mxu0 0
      %1739 = vmatmul.mubr.bf16.gmra.mrb[0].mxu0 %v768
      %v1740 = vpop.f32.mrb[0].mxu0
      %v1741 = vadd.f32 0.0, %v1740
      %v1742 = vpop.f32.mrb[0].mxu0
      %v1743 = vpop.f32.mrb[0].mxu0
      %v1744 = vadd.f32 0.0, %v1743
      %v1745 = vpop.f32.mrb[0].mxu0
      %1746 = vmatprep.mubr.bf16.mxu0 0
      %1747 = vmatmul.mubr.bf16.gmra.mrb[0].mxu0 %v769
      %v1748 = vpop.f32.mrb[0].mxu0
      %v1749 = vadd.f32 0.0, %v1748
      %v1750 = vpop.f32.mrb[0].mxu0
      %v1751 = vpop.f32.mrb[0].mxu0
      %v1752 = vadd.f32 0.0, %v1751
      %v1753 = vpop.f32.mrb[0].mxu0
      %1754 = vmatprep.mubr.bf16.mxu0 0
      %1755 = vmatmul.mubr.bf16.gmra.mrb[0].mxu0 %v770
      %v1756 = vpop.f32.mrb[0].mxu0
      %v1757 = vadd.f32 0.0, %v1756
      %v1758 = vpop.f32.mrb[0].mxu0
      %v1759 = vpop.f32.mrb[0].mxu0
      %v1760 = vadd.f32 0.0, %v1759
      %v1761 = vpop.f32.mrb[0].mxu0
      %1762 = vmatprep.mubr.bf16.mxu0 0
      %1763 = vmatmul.mubr.bf16.gmra.mrb[0].mxu0 %v771
      %v1764 = vpop.f32.mrb[0].mxu0
      %v1765 = vadd.f32 0.0, %v1764
      %v1766 = vpop.f32.mrb[0].mxu0
      %v1767 = vpop.f32.mrb[0].mxu0
      %v1768 = vadd.f32 0.0, %v1767
      %v1769 = vpop.f32.mrb[0].mxu0
      %1770 = vmatprep.mubr.bf16.mxu0 0
      %1771 = vmatmul.mubr.bf16.gmra.mrb[0].mxu0 %v772
      %v1772 = vpop.f32.mrb[0].mxu0
      %v1773 = vadd.f32 0.0, %v1772
      %v1774 = vpop.f32.mrb[0].mxu0
      %v1775 = vpop.f32.mrb[0].mxu0
      %v1776 = vadd.f32 0.0, %v1775
      %v1777 = vpop.f32.mrb[0].mxu0
      %1778 = vmatprep.mubr.bf16.mxu0 0
      %1779 = vmatmul.mubr.bf16.gmra.mrb[0].mxu0 %v773
      %v1780 = vpop.f32.mrb[0].mxu0
      %v1781 = vadd.f32 0.0, %v1780
      %v1782 = vpop.f32.mrb[0].mxu0
      %v1783 = vpop.f32.mrb[0].mxu0
      %v1784 = vadd.f32 0.0, %v1783
      %v1785 = vpop.f32.mrb[0].mxu0
      %1786 = vmatprep.mubr.bf16.mxu0 0
      %1787 = vmatmul.mubr.bf16.gmra.mrb[0].mxu0 %v774
      %v1788 = vpop.f32.mrb[0].mxu0
      %v1789 = vadd.f32 0.0, %v1788
      %v1790 = vpop.f32.mrb[0].mxu0
      %v1791 = vpop.f32.mrb[0].mxu0
      %v1792 = vadd.f32 0.0, %v1791
      %v1793 = vpop.f32.mrb[0].mxu0
      %1794 = vmatprep.mubr.bf16.mxu0 0
      %1795 = vmatmul.mubr.bf16.gmra.mrb[0].mxu0 %v775
      %v1796 = vpop.f32.mrb[0].mxu0
      %v1797 = vadd.f32 0.0, %v1796
      %v1798 = vpop.f32.mrb[0].mxu0
      %v1799 = vpop.f32.mrb[0].mxu0
      %v1800 = vadd.f32 0.0, %v1799
      %v1801 = vpop.f32.mrb[0].mxu0
      %1802 = vmatprep.mubr.bf16.mxu0 0
      %1803 = vmatmul.mubr.bf16.gmra.mrb[0].mxu0 %v776
      %v1804 = vpop.f32.mrb[0].mxu0
      %v1805 = vadd.f32 0.0, %v1804
      %v1806 = vpop.f32.mrb[0].mxu0
      %v1807 = vpop.f32.mrb[0].mxu0
      %v1808 = vadd.f32 0.0, %v1807
      %v1809 = vpop.f32.mrb[0].mxu0
      %1810 = vmatprep.mubr.bf16.mxu0 0
      %1811 = vmatmul.mubr.bf16.gmra.mrb[0].mxu0 %v777
      %v1812 = vpop.f32.mrb[0].mxu0
      %v1813 = vadd.f32 0.0, %v1812
      %v1814 = vpop.f32.mrb[0].mxu0
      %v1815 = vpop.f32.mrb[0].mxu0
      %v1816 = vadd.f32 0.0, %v1815
      %v1817 = vpop.f32.mrb[0].mxu0
      %1818 = vmatprep.mubr.bf16.mxu0 0
      %1819 = vmatmul.mubr.bf16.gmra.mrb[0].mxu0 %v778
      %v1820 = vpop.f32.mrb[0].mxu0
      %v1821 = vadd.f32 0.0, %v1820
      %v1822 = vpop.f32.mrb[0].mxu0
      %v1823 = vpop.f32.mrb[0].mxu0
      %v1824 = vadd.f32 0.0, %v1823
      %v1825 = vpop.f32.mrb[0].mxu0
      %1826 = vmatprep.mubr.bf16.mxu0 0
      %1827 = vmatmul.mubr.bf16.gmra.mrb[0].mxu0 %v779
      %v1828 = vpop.f32.mrb[0].mxu0
      %v1829 = vadd.f32 0.0, %v1828
      %v1830 = vpop.f32.mrb[0].mxu0
      %v1831 = vpop.f32.mrb[0].mxu0
      %v1832 = vadd.f32 0.0, %v1831
      %v1833 = vpop.f32.mrb[0].mxu0
      %1834 = vmatprep.mubr.bf16.mxu0 0
      %1835 = vmatmul.mubr.bf16.gmra.mrb[0].mxu0 %v780
      %v1836 = vpop.f32.mrb[0].mxu0
      %v1837 = vadd.f32 0.0, %v1836
      %v1838 = vpop.f32.mrb[0].mxu0
      %v1839 = vpop.f32.mrb[0].mxu0
      %v1840 = vadd.f32 0.0, %v1839
      %v1841 = vpop.f32.mrb[0].mxu0
      %1842 = vmatprep.mubr.bf16.mxu0 0
      %1843 = vmatmul.mubr.bf16.gmra.mrb[0].mxu0 %v781
      %v1844 = vpop.f32.mrb[0].mxu0
      %v1845 = vadd.f32 0.0, %v1844
      %v1846 = vpop.f32.mrb[0].mxu0
      %v1847 = vpop.f32.mrb[0].mxu0
      %v1848 = vadd.f32 0.0, %v1847
      %v1849 = vpop.f32.mrb[0].mxu0
      %1850 = vmatprep.mubr.bf16.mxu0 0
      %1851 = vmatmul.mubr.bf16.gmra.mrb[0].mxu0 %v782
      %v1852 = vpop.f32.mrb[0].mxu0
      %v1853 = vadd.f32 0.0, %v1852
      %v1854 = vpop.f32.mrb[0].mxu0
      %v1855 = vpop.f32.mrb[0].mxu0
      %v1856 = vadd.f32 0.0, %v1855
      %v1857 = vpop.f32.mrb[0].mxu0
      %1858 = vmatprep.mubr.bf16.mxu0 0
      %1859 = vmatmul.mubr.bf16.gmra.mrb[0].mxu0 %v783
      %v1860 = vpop.f32.mrb[0].mxu0
      %v1861 = vadd.f32 0.0, %v1860
      %v1862 = vpop.f32.mrb[0].mxu0
      %v1863 = vpop.f32.mrb[0].mxu0
      %v1864 = vadd.f32 0.0, %v1863
      %v1865 = vpop.f32.mrb[0].mxu0
      %1866 = vmatprep.mubr.bf16.mxu0 0
      %1867 = vmatmul.mubr.bf16.gmra.mrb[0].mxu0 %v784
      %v1868 = vpop.f32.mrb[0].mxu0
      %v1869 = vadd.f32 0.0, %v1868
      %v1870 = vpop.f32.mrb[0].mxu0
      %v1871 = vpop.f32.mrb[0].mxu0
      %v1872 = vadd.f32 0.0, %v1871
      %v1873 = vpop.f32.mrb[0].mxu0
      %1874 = vmatprep.mubr.bf16.mxu0 0
      %1875 = vmatmul.mubr.bf16.gmra.mrb[0].mxu0 %v785
      %v1876 = vpop.f32.mrb[0].mxu0
      %v1877 = vadd.f32 0.0, %v1876
      %v1878 = vpop.f32.mrb[0].mxu0
      %v1879 = vpop.f32.mrb[0].mxu0
      %v1880 = vadd.f32 0.0, %v1879
      %v1881 = vpop.f32.mrb[0].mxu0
      %1882 = vdwg.mxu0
      %v1899 = vunpack.c.l.b16 %v805
      %v1900 = vunpack.c.l.b16 %v806
      %v1901 = vunpack.c.l.b16 %v807
      %v1902 = vunpack.c.l.b16 %v808
      %v1903 = vunpack.c.l.b16 %v809
      %v1904 = vunpack.c.l.b16 %v810
      %v1905 = vunpack.c.l.b16 %v811
      %v1906 = vunpack.c.l.b16 %v812
      %v1907 = vunpack.c.l.b16 %v813
      %v1908 = vunpack.c.l.b16 %v814
      %v1909 = vunpack.c.l.b16 %v815
      %v1910 = vunpack.c.l.b16 %v816
      %v1911 = vunpack.c.l.b16 %v817
      %v1912 = vunpack.c.l.b16 %v818
      %v1913 = vunpack.c.l.b16 %v819
      %v1914 = vunpack.c.l.b16 %v820
      %v1915 = vpack.c.b16 %v1900, %v1899
      %v1916 = vpack.c.b16 %v1902, %v1901
      %v1917 = vpack.c.b16 %v1904, %v1903
      %v1918 = vpack.c.b16 %v1906, %v1905
      %v1919 = vpack.c.b16 %v1908, %v1907
      %v1920 = vpack.c.b16 %v1910, %v1909
      %v1921 = vpack.c.b16 %v1912, %v1911
      %v1922 = vpack.c.b16 %v1914, %v1913
      %1931 = vmatprep.subr.bf16.mxu0 0
      %1932 = vmatpush1.bf16.msra.mxu0 %v1915
      %1933 = vmatprep.subr.bf16.mxu0 0
      %1934 = vmatpush1.bf16.msra.mxu0 %v1916
      %1935 = vmatprep.subr.bf16.mxu0 0
      %1936 = vmatpush1.bf16.msra.mxu0 %v1917
      %1937 = vmatprep.subr.bf16.mxu0 0
      %1938 = vmatpush1.bf16.msra.mxu0 %v1918
      %1939 = vmatprep.subr.bf16.mxu0 0
      %1940 = vmatpush1.bf16.msra.mxu0 %v1919
      %1941 = vmatprep.subr.bf16.mxu0 0
      %1942 = vmatpush1.bf16.msra.mxu0 %v1920
      %1943 = vmatprep.subr.bf16.mxu0 0
      %1944 = vmatpush1.bf16.msra.mxu0 %v1921
      %1945 = vmatprep.subr.bf16.mxu0 0
      %1946 = vmatpush1.bf16.msra.mxu0 %v1922
      %1947 = vmatprep.subr.bf16.mxu0 0
      %1948 = vmatpush1.bf16.msra.mxu0 0
      %1949 = vmatprep.subr.bf16.mxu0 0
      %1950 = vmatpush1.bf16.msra.mxu0 0
      %1951 = vmatprep.subr.bf16.mxu0 0
      %1952 = vmatpush1.bf16.msra.mxu0 0
      %1953 = vmatprep.subr.bf16.mxu0 0
      %1954 = vmatpush1.bf16.msra.mxu0 0
      %1955 = vmatprep.subr.bf16.mxu0 0
      %1956 = vmatpush1.bf16.msra.mxu0 0
      %1957 = vmatprep.subr.bf16.mxu0 0
      %1958 = vmatpush1.bf16.msra.mxu0 0
      %1959 = vmatprep.subr.bf16.mxu0 0
      %1960 = vmatpush1.bf16.msra.mxu0 0
      %1961 = vmatprep.subr.bf16.mxu0 0
      %1962 = vmatpush1.bf16.msra.mxu0 0
      %1963 = vmatprep.mubr.bf16.mxu0 0
      %1964 = vmatmul.mubr.bf16.gmra.mrb[0].mxu0 %v752
      %v1965 = vpop.f32.mrb[0].mxu0
      %v1966 = vadd.f32 %v1629, %v1965
      %v1967 = vpop.f32.mrb[0].mxu0
      %v1968 = vpop.f32.mrb[0].mxu0
      %v1969 = vadd.f32 %v1632, %v1968
      %v1970 = vpop.f32.mrb[0].mxu0
      %1971 = vmatprep.mubr.bf16.mxu0 0
      %1972 = vmatmul.mubr.bf16.gmra.mrb[0].mxu0 %v753
      %v1973 = vpop.f32.mrb[0].mxu0
      %v1974 = vadd.f32 %v1637, %v1973
      %v1975 = vpop.f32.mrb[0].mxu0
      %v1976 = vpop.f32.mrb[0].mxu0
      %v1977 = vadd.f32 %v1640, %v1976
      %v1978 = vpop.f32.mrb[0].mxu0
      %1979 = vmatprep.mubr.bf16.mxu0 0
      %1980 = vmatmul.mubr.bf16.gmra.mrb[0].mxu0 %v754
      %v1981 = vpop.f32.mrb[0].mxu0
      %v1982 = vadd.f32 %v1645, %v1981
      %v1983 = vpop.f32.mrb[0].mxu0
      %v1984 = vpop.f32.mrb[0].mxu0
      %v1985 = vadd.f32 %v1648, %v1984
      %v1986 = vpop.f32.mrb[0].mxu0
      %1987 = vmatprep.mubr.bf16.mxu0 0
      %1988 = vmatmul.mubr.bf16.gmra.mrb[0].mxu0 %v755
      %v1989 = vpop.f32.mrb[0].mxu0
      %v1990 = vadd.f32 %v1653, %v1989
      %v1991 = vpop.f32.mrb[0].mxu0
      %v1992 = vpop.f32.mrb[0].mxu0
      %v1993 = vadd.f32 %v1656, %v1992
      %v1994 = vpop.f32.mrb[0].mxu0
      %1995 = vmatprep.mubr.bf16.mxu0 0
      %1996 = vmatmul.mubr.bf16.gmra.mrb[0].mxu0 %v756
      %v1997 = vpop.f32.mrb[0].mxu0
      %v1998 = vadd.f32 %v1661, %v1997
      %v1999 = vpop.f32.mrb[0].mxu0
      %v2000 = vpop.f32.mrb[0].mxu0
      %v2001 = vadd.f32 %v1664, %v2000
      %v2002 = vpop.f32.mrb[0].mxu0
      %2003 = vmatprep.mubr.bf16.mxu0 0
      %2004 = vmatmul.mubr.bf16.gmra.mrb[0].mxu0 %v757
      %v2005 = vpop.f32.mrb[0].mxu0
      %v2006 = vadd.f32 %v1669, %v2005
      %v2007 = vpop.f32.mrb[0].mxu0
      %v2008 = vpop.f32.mrb[0].mxu0
      %v2009 = vadd.f32 %v1672, %v2008
      %v2010 = vpop.f32.mrb[0].mxu0
      %2011 = vmatprep.mubr.bf16.mxu0 0
      %2012 = vmatmul.mubr.bf16.gmra.mrb[0].mxu0 %v758
      %v2013 = vpop.f32.mrb[0].mxu0
      %v2014 = vadd.f32 %v1677, %v2013
      %v2015 = vpop.f32.mrb[0].mxu0
      %v2016 = vpop.f32.mrb[0].mxu0
      %v2017 = vadd.f32 %v1680, %v2016
      %v2018 = vpop.f32.mrb[0].mxu0
      %2019 = vmatprep.mubr.bf16.mxu0 0
      %2020 = vmatmul.mubr.bf16.gmra.mrb[0].mxu0 %v759
      %v2021 = vpop.f32.mrb[0].mxu0
      %v2022 = vadd.f32 %v1685, %v2021
      %v2023 = vpop.f32.mrb[0].mxu0
      %v2024 = vpop.f32.mrb[0].mxu0
      %v2025 = vadd.f32 %v1688, %v2024
      %v2026 = vpop.f32.mrb[0].mxu0
      %2027 = vmatprep.mubr.bf16.mxu0 0
      %2028 = vmatmul.mubr.bf16.gmra.mrb[0].mxu0 %v760
      %v2029 = vpop.f32.mrb[0].mxu0
      %v2030 = vadd.f32 %v1693, %v2029
      %v2031 = vpop.f32.mrb[0].mxu0
      %v2032 = vpop.f32.mrb[0].mxu0
      %v2033 = vadd.f32 %v1696, %v2032
      %v2034 = vpop.f32.mrb[0].mxu0
      %2035 = vmatprep.mubr.bf16.mxu0 0
      %2036 = vmatmul.mubr.bf16.gmra.mrb[0].mxu0 %v761
      %v2037 = vpop.f32.mrb[0].mxu0
      %v2038 = vadd.f32 %v1701, %v2037
      %v2039 = vpop.f32.mrb[0].mxu0
      %v2040 = vpop.f32.mrb[0].mxu0
      %v2041 = vadd.f32 %v1704, %v2040
      %v2042 = vpop.f32.mrb[0].mxu0
      %2043 = vmatprep.mubr.bf16.mxu0 0
      %2044 = vmatmul.mubr.bf16.gmra.mrb[0].mxu0 %v762
      %v2045 = vpop.f32.mrb[0].mxu0
      %v2046 = vadd.f32 %v1709, %v2045
      %v2047 = vpop.f32.mrb[0].mxu0
      %v2048 = vpop.f32.mrb[0].mxu0
      %v2049 = vadd.f32 %v1712, %v2048
      %v2050 = vpop.f32.mrb[0].mxu0
      %2051 = vmatprep.mubr.bf16.mxu0 0
      %2052 = vmatmul.mubr.bf16.gmra.mrb[0].mxu0 %v763
      %v2053 = vpop.f32.mrb[0].mxu0
      %v2054 = vadd.f32 %v1717, %v2053
      %v2055 = vpop.f32.mrb[0].mxu0
      %v2056 = vpop.f32.mrb[0].mxu0
      %v2057 = vadd.f32 %v1720, %v2056
      %v2058 = vpop.f32.mrb[0].mxu0
      %2059 = vmatprep.mubr.bf16.mxu0 0
      %2060 = vmatmul.mubr.bf16.gmra.mrb[0].mxu0 %v764
      %v2061 = vpop.f32.mrb[0].mxu0
      %v2062 = vadd.f32 %v1725, %v2061
      %v2063 = vpop.f32.mrb[0].mxu0
      %v2064 = vpop.f32.mrb[0].mxu0
      %v2065 = vadd.f32 %v1728, %v2064
      %v2066 = vpop.f32.mrb[0].mxu0
      %2067 = vmatprep.mubr.bf16.mxu0 0
      %2068 = vmatmul.mubr.bf16.gmra.mrb[0].mxu0 %v765
      %v2069 = vpop.f32.mrb[0].mxu0
      %v2070 = vadd.f32 %v1733, %v2069
      %v2071 = vpop.f32.mrb[0].mxu0
      %v2072 = vpop.f32.mrb[0].mxu0
      %v2073 = vadd.f32 %v1736, %v2072
      %v2074 = vpop.f32.mrb[0].mxu0
      %2075 = vmatprep.mubr.bf16.mxu0 0
      %2076 = vmatmul.mubr.bf16.gmra.mrb[0].mxu0 %v766
      %v2077 = vpop.f32.mrb[0].mxu0
      %v2078 = vadd.f32 %v1741, %v2077
      %v2079 = vpop.f32.mrb[0].mxu0
      %v2080 = vpop.f32.mrb[0].mxu0
      %v2081 = vadd.f32 %v1744, %v2080
      %v2082 = vpop.f32.mrb[0].mxu0
      %2083 = vmatprep.mubr.bf16.mxu0 0
      %2084 = vmatmul.mubr.bf16.gmra.mrb[0].mxu0 %v767
      %v2085 = vpop.f32.mrb[0].mxu0
      %v2086 = vadd.f32 %v1749, %v2085
      %v2087 = vpop.f32.mrb[0].mxu0
      %v2088 = vpop.f32.mrb[0].mxu0
      %v2089 = vadd.f32 %v1752, %v2088
      %v2090 = vpop.f32.mrb[0].mxu0
      %2091 = vmatprep.mubr.bf16.mxu0 0
      %2092 = vmatmul.mubr.bf16.gmra.mrb[0].mxu0 %v768
      %v2093 = vpop.f32.mrb[0].mxu0
      %v2094 = vadd.f32 %v1757, %v2093
      %v2095 = vpop.f32.mrb[0].mxu0
      %v2096 = vpop.f32.mrb[0].mxu0
      %v2097 = vadd.f32 %v1760, %v2096
      %v2098 = vpop.f32.mrb[0].mxu0
      %2099 = vmatprep.mubr.bf16.mxu0 0
      %2100 = vmatmul.mubr.bf16.gmra.mrb[0].mxu0 %v769
      %v2101 = vpop.f32.mrb[0].mxu0
      %v2102 = vadd.f32 %v1765, %v2101
      %v2103 = vpop.f32.mrb[0].mxu0
      %v2104 = vpop.f32.mrb[0].mxu0
      %v2105 = vadd.f32 %v1768, %v2104
      %v2106 = vpop.f32.mrb[0].mxu0
      %2107 = vmatprep.mubr.bf16.mxu0 0
      %2108 = vmatmul.mubr.bf16.gmra.mrb[0].mxu0 %v770
      %v2109 = vpop.f32.mrb[0].mxu0
      %v2110 = vadd.f32 %v1773, %v2109
      %v2111 = vpop.f32.mrb[0].mxu0
      %v2112 = vpop.f32.mrb[0].mxu0
      %v2113 = vadd.f32 %v1776, %v2112
      %v2114 = vpop.f32.mrb[0].mxu0
      %2115 = vmatprep.mubr.bf16.mxu0 0
      %2116 = vmatmul.mubr.bf16.gmra.mrb[0].mxu0 %v771
      %v2117 = vpop.f32.mrb[0].mxu0
      %v2118 = vadd.f32 %v1781, %v2117
      %v2119 = vpop.f32.mrb[0].mxu0
      %v2120 = vpop.f32.mrb[0].mxu0
      %v2121 = vadd.f32 %v1784, %v2120
      %v2122 = vpop.f32.mrb[0].mxu0
      %2123 = vmatprep.mubr.bf16.mxu0 0
      %2124 = vmatmul.mubr.bf16.gmra.mrb[0].mxu0 %v772
      %v2125 = vpop.f32.mrb[0].mxu0
      %v2126 = vadd.f32 %v1789, %v2125
      %v2127 = vpop.f32.mrb[0].mxu0
      %v2128 = vpop.f32.mrb[0].mxu0
      %v2129 = vadd.f32 %v1792, %v2128
      %v2130 = vpop.f32.mrb[0].mxu0
      %2131 = vmatprep.mubr.bf16.mxu0 0
      %2132 = vmatmul.mubr.bf16.gmra.mrb[0].mxu0 %v773
      %v2133 = vpop.f32.mrb[0].mxu0
      %v2134 = vadd.f32 %v1797, %v2133
      %v2135 = vpop.f32.mrb[0].mxu0
      %v2136 = vpop.f32.mrb[0].mxu0
      %v2137 = vadd.f32 %v1800, %v2136
      %v2138 = vpop.f32.mrb[0].mxu0
      %2139 = vmatprep.mubr.bf16.mxu0 0
      %2140 = vmatmul.mubr.bf16.gmra.mrb[0].mxu0 %v774
      %v2141 = vpop.f32.mrb[0].mxu0
      %v2142 = vadd.f32 %v1805, %v2141
      %v2143 = vpop.f32.mrb[0].mxu0
      %v2144 = vpop.f32.mrb[0].mxu0
      %v2145 = vadd.f32 %v1808, %v2144
      %v2146 = vpop.f32.mrb[0].mxu0
      %2147 = vmatprep.mubr.bf16.mxu0 0
      %2148 = vmatmul.mubr.bf16.gmra.mrb[0].mxu0 %v775
      %v2149 = vpop.f32.mrb[0].mxu0
      %v2150 = vadd.f32 %v1813, %v2149
      %v2151 = vpop.f32.mrb[0].mxu0
      %v2152 = vpop.f32.mrb[0].mxu0
      %v2153 = vadd.f32 %v1816, %v2152
      %v2154 = vpop.f32.mrb[0].mxu0
      %2155 = vmatprep.mubr.bf16.mxu0 0
      %2156 = vmatmul.mubr.bf16.gmra.mrb[0].mxu0 %v776
      %v2157 = vpop.f32.mrb[0].mxu0
      %v2158 = vadd.f32 %v1821, %v2157
      %v2159 = vpop.f32.mrb[0].mxu0
      %v2160 = vpop.f32.mrb[0].mxu0
      %v2161 = vadd.f32 %v1824, %v2160
      %v2162 = vpop.f32.mrb[0].mxu0
      %2163 = vmatprep.mubr.bf16.mxu0 0
      %2164 = vmatmul.mubr.bf16.gmra.mrb[0].mxu0 %v777
      %v2165 = vpop.f32.mrb[0].mxu0
      %v2166 = vadd.f32 %v1829, %v2165
      %v2167 = vpop.f32.mrb[0].mxu0
      %v2168 = vpop.f32.mrb[0].mxu0
      %v2169 = vadd.f32 %v1832, %v2168
      %v2170 = vpop.f32.mrb[0].mxu0
      %2171 = vmatprep.mubr.bf16.mxu0 0
      %2172 = vmatmul.mubr.bf16.gmra.mrb[0].mxu0 %v778
      %v2173 = vpop.f32.mrb[0].mxu0
      %v2174 = vadd.f32 %v1837, %v2173
      %v2175 = vpop.f32.mrb[0].mxu0
      %v2176 = vpop.f32.mrb[0].mxu0
      %v2177 = vadd.f32 %v1840, %v2176
      %v2178 = vpop.f32.mrb[0].mxu0
      %2179 = vmatprep.mubr.bf16.mxu0 0
      %2180 = vmatmul.mubr.bf16.gmra.mrb[0].mxu0 %v779
      %v2181 = vpop.f32.mrb[0].mxu0
      %v2182 = vadd.f32 %v1845, %v2181
      %v2183 = vpop.f32.mrb[0].mxu0
      %v2184 = vpop.f32.mrb[0].mxu0
      %v2185 = vadd.f32 %v1848, %v2184
      %v2186 = vpop.f32.mrb[0].mxu0
      %2187 = vmatprep.mubr.bf16.mxu0 0
      %2188 = vmatmul.mubr.bf16.gmra.mrb[0].mxu0 %v780
      %v2189 = vpop.f32.mrb[0].mxu0
      %v2190 = vadd.f32 %v1853, %v2189
      %v2191 = vpop.f32.mrb[0].mxu0
      %v2192 = vpop.f32.mrb[0].mxu0
      %v2193 = vadd.f32 %v1856, %v2192
      %v2194 = vpop.f32.mrb[0].mxu0
      %2195 = vmatprep.mubr.bf16.mxu0 0
      %2196 = vmatmul.mubr.bf16.gmra.mrb[0].mxu0 %v781
      %v2197 = vpop.f32.mrb[0].mxu0
      %v2198 = vadd.f32 %v1861, %v2197
      %v2199 = vpop.f32.mrb[0].mxu0
      %v2200 = vpop.f32.mrb[0].mxu0
      %v2201 = vadd.f32 %v1864, %v2200
      %v2202 = vpop.f32.mrb[0].mxu0
      %2203 = vmatprep.mubr.bf16.mxu0 0
      %2204 = vmatmul.mubr.bf16.gmra.mrb[0].mxu0 %v782
      %v2205 = vpop.f32.mrb[0].mxu0
      %v2206 = vadd.f32 %v1869, %v2205
      %v2207 = vpop.f32.mrb[0].mxu0
      %v2208 = vpop.f32.mrb[0].mxu0
      %v2209 = vadd.f32 %v1872, %v2208
      %v2210 = vpop.f32.mrb[0].mxu0
      %2211 = vmatprep.mubr.bf16.mxu0 0
      %2212 = vmatmul.mubr.bf16.gmra.mrb[0].mxu0 %v783
      %v2213 = vpop.f32.mrb[0].mxu0
      %v2214 = vadd.f32 %v1877, %v2213
      %v2215 = vpop.f32.mrb[0].mxu0
      %v2216 = vpop.f32.mrb[0].mxu0
      %v2217 = vadd.f32 %v1880, %v2216
      %v2218 = vpop.f32.mrb[0].mxu0
      %2219 = vdwg.mxu0
      %s2220 = scalar_lea.vmem %s1, 320
      %v2221 = vld [vmem:[%s2220] sm:$0xf]
      %v2222 = vld [vmem:[%s2220 + $0x4] sm:$0xf]
      %v2223 = vld [vmem:[%s2220 + $0x8] sm:$0xf]
      %v2224 = vld [vmem:[%s2220 + $0xc] sm:$0xf]
      %v2225 = vld [vmem:[%s2220 + $0x10] sm:$0xf]
      %v2226 = vld [vmem:[%s2220 + $0x14] sm:$0xf]
      %v2227 = vld [vmem:[%s2220 + $0x18] sm:$0xf]
      %v2228 = vld [vmem:[%s2220 + $0x1c] sm:$0xf]
      %v2229 = vld [vmem:[%s2220 + $0x20] sm:$0xf]
      %v2230 = vld [vmem:[%s2220 + $0x24] sm:$0xf]
      %v2231 = vld [vmem:[%s2220 + $0x28] sm:$0xf]
      %v2232 = vld [vmem:[%s2220 + $0x2c] sm:$0xf]
      %v2233 = vld [vmem:[%s2220 + $0x30] sm:$0xf]
      %v2234 = vld [vmem:[%s2220 + $0x34] sm:$0xf]
      %v2235 = vld [vmem:[%s2220 + $0x38] sm:$0xf]
      %v2236 = vld [vmem:[%s2220 + $0x3c] sm:$0xf]
      %v2253 = vunpack.c.l.b16 %v2221
      %v2254 = vunpack.c.l.b16 %v2222
      %v2255 = vunpack.c.l.b16 %v2223
      %v2256 = vunpack.c.l.b16 %v2224
      %v2257 = vunpack.c.l.b16 %v2225
      %v2258 = vunpack.c.l.b16 %v2226
      %v2259 = vunpack.c.l.b16 %v2227
      %v2260 = vunpack.c.l.b16 %v2228
      %v2261 = vunpack.c.l.b16 %v2229
      %v2262 = vunpack.c.l.b16 %v2230
      %v2263 = vunpack.c.l.b16 %v2231
      %v2264 = vunpack.c.l.b16 %v2232
      %v2265 = vunpack.c.l.b16 %v2233
      %v2266 = vunpack.c.l.b16 %v2234
      %v2267 = vunpack.c.l.b16 %v2235
      %v2268 = vunpack.c.l.b16 %v2236
      %v2269 = vpack.c.b16 %v2254, %v2253
      %v2270 = vpack.c.b16 %v2256, %v2255
      %v2271 = vpack.c.b16 %v2258, %v2257
      %v2272 = vpack.c.b16 %v2260, %v2259
      %v2273 = vpack.c.b16 %v2262, %v2261
      %v2274 = vpack.c.b16 %v2264, %v2263
      %v2275 = vpack.c.b16 %v2266, %v2265
      %v2276 = vpack.c.b16 %v2268, %v2267
      %2285 = vmatprep.subr.bf16.mxu0 0
      %2286 = vmatpush1.bf16.msra.mxu0 %v2269
      %2287 = vmatprep.subr.bf16.mxu0 0
      %2288 = vmatpush1.bf16.msra.mxu0 %v2270
      %2289 = vmatprep.subr.bf16.mxu0 0
      %2290 = vmatpush1.bf16.msra.mxu0 %v2271
      %2291 = vmatprep.subr.bf16.mxu0 0
      %2292 = vmatpush1.bf16.msra.mxu0 %v2272
      %2293 = vmatprep.subr.bf16.mxu0 0
      %2294 = vmatpush1.bf16.msra.mxu0 %v2273
      %2295 = vmatprep.subr.bf16.mxu0 0
      %2296 = vmatpush1.bf16.msra.mxu0 %v2274
      %2297 = vmatprep.subr.bf16.mxu0 0
      %2298 = vmatpush1.bf16.msra.mxu0 %v2275
      %2299 = vmatprep.subr.bf16.mxu0 0
      %2300 = vmatpush1.bf16.msra.mxu0 %v2276
      %2301 = vmatprep.subr.bf16.mxu0 0
      %2302 = vmatpush1.bf16.msra.mxu0 0
      %2303 = vmatprep.subr.bf16.mxu0 0
      %2304 = vmatpush1.bf16.msra.mxu0 0
      %2305 = vmatprep.subr.bf16.mxu0 0
      %2306 = vmatpush1.bf16.msra.mxu0 0
      %2307 = vmatprep.subr.bf16.mxu0 0
      %2308 = vmatpush1.bf16.msra.mxu0 0
      %2309 = vmatprep.subr.bf16.mxu0 0
      %2310 = vmatpush1.bf16.msra.mxu0 0
      %2311 = vmatprep.subr.bf16.mxu0 0
      %2312 = vmatpush1.bf16.msra.mxu0 0
      %2313 = vmatprep.subr.bf16.mxu0 0
      %2314 = vmatpush1.bf16.msra.mxu0 0
      %2315 = vmatprep.subr.bf16.mxu0 0
      %2316 = vmatpush1.bf16.msra.mxu0 0
      %2317 = vmatprep.mubr.bf16.mxu0 0
      %2318 = vmatmul.mubr.bf16.gmra.mrb[0].mxu0 %v754
      %v2319 = vpop.f32.mrb[0].mxu0
      %v2320 = vadd.f32 0.0, %v2319
      %v2321 = vpop.f32.mrb[0].mxu0
      %v2322 = vpop.f32.mrb[0].mxu0
      %v2323 = vadd.f32 0.0, %v2322
      %v2324 = vpop.f32.mrb[0].mxu0
      %2325 = vmatprep.mubr.bf16.mxu0 0
      %2326 = vmatmul.mubr.bf16.gmra.mrb[0].mxu0 %v755
      %v2327 = vpop.f32.mrb[0].mxu0
      %v2328 = vadd.f32 0.0, %v2327
      %v2329 = vpop.f32.mrb[0].mxu0
      %v2330 = vpop.f32.mrb[0].mxu0
      %v2331 = vadd.f32 0.0, %v2330
      %v2332 = vpop.f32.mrb[0].mxu0
      %2333 = vmatprep.mubr.bf16.mxu0 0
      %2334 = vmatmul.mubr.bf16.gmra.mrb[0].mxu0 %v756
      %v2335 = vpop.f32.mrb[0].mxu0
      %v2336 = vadd.f32 0.0, %v2335
      %v2337 = vpop.f32.mrb[0].mxu0
      %v2338 = vpop.f32.mrb[0].mxu0
      %v2339 = vadd.f32 0.0, %v2338
      %v2340 = vpop.f32.mrb[0].mxu0
      %2341 = vmatprep.mubr.bf16.mxu0 0
      %2342 = vmatmul.mubr.bf16.gmra.mrb[0].mxu0 %v757
      %v2343 = vpop.f32.mrb[0].mxu0
      %v2344 = vadd.f32 0.0, %v2343
      %v2345 = vpop.f32.mrb[0].mxu0
      %v2346 = vpop.f32.mrb[0].mxu0
      %v2347 = vadd.f32 0.0, %v2346
      %v2348 = vpop.f32.mrb[0].mxu0
      %2349 = vmatprep.mubr.bf16.mxu0 0
      %2350 = vmatmul.mubr.bf16.gmra.mrb[0].mxu0 %v758
      %v2351 = vpop.f32.mrb[0].mxu0
      %v2352 = vadd.f32 0.0, %v2351
      %v2353 = vpop.f32.mrb[0].mxu0
      %v2354 = vpop.f32.mrb[0].mxu0
      %v2355 = vadd.f32 0.0, %v2354
      %v2356 = vpop.f32.mrb[0].mxu0
      %2357 = vmatprep.mubr.bf16.mxu0 0
      %2358 = vmatmul.mubr.bf16.gmra.mrb[0].mxu0 %v759
      %v2359 = vpop.f32.mrb[0].mxu0
      %v2360 = vadd.f32 0.0, %v2359
      %v2361 = vpop.f32.mrb[0].mxu0
      %v2362 = vpop.f32.mrb[0].mxu0
      %v2363 = vadd.f32 0.0, %v2362
      %v2364 = vpop.f32.mrb[0].mxu0
      %2365 = vmatprep.mubr.bf16.mxu0 0
      %2366 = vmatmul.mubr.bf16.gmra.mrb[0].mxu0 %v760
      %v2367 = vpop.f32.mrb[0].mxu0
      %v2368 = vadd.f32 0.0, %v2367
      %v2369 = vpop.f32.mrb[0].mxu0
      %v2370 = vpop.f32.mrb[0].mxu0
      %v2371 = vadd.f32 0.0, %v2370
      %v2372 = vpop.f32.mrb[0].mxu0
      %2373 = vmatprep.mubr.bf16.mxu0 0
      %2374 = vmatmul.mubr.bf16.gmra.mrb[0].mxu0 %v761
      %v2375 = vpop.f32.mrb[0].mxu0
      %v2376 = vadd.f32 0.0, %v2375
      %v2377 = vpop.f32.mrb[0].mxu0
      %v2378 = vpop.f32.mrb[0].mxu0
      %v2379 = vadd.f32 0.0, %v2378
      %v2380 = vpop.f32.mrb[0].mxu0
      %2381 = vmatprep.mubr.bf16.mxu0 0
      %2382 = vmatmul.mubr.bf16.gmra.mrb[0].mxu0 %v762
      %v2383 = vpop.f32.mrb[0].mxu0
      %v2384 = vadd.f32 0.0, %v2383
      %v2385 = vpop.f32.mrb[0].mxu0
      %v2386 = vpop.f32.mrb[0].mxu0
      %v2387 = vadd.f32 0.0, %v2386
      %v2388 = vpop.f32.mrb[0].mxu0
      %2389 = vmatprep.mubr.bf16.mxu0 0
      %2390 = vmatmul.mubr.bf16.gmra.mrb[0].mxu0 %v763
      %v2391 = vpop.f32.mrb[0].mxu0
      %v2392 = vadd.f32 0.0, %v2391
      %v2393 = vpop.f32.mrb[0].mxu0
      %v2394 = vpop.f32.mrb[0].mxu0
      %v2395 = vadd.f32 0.0, %v2394
      %v2396 = vpop.f32.mrb[0].mxu0
      %2397 = vmatprep.mubr.bf16.mxu0 0
      %2398 = vmatmul.mubr.bf16.gmra.mrb[0].mxu0 %v764
      %v2399 = vpop.f32.mrb[0].mxu0
      %v2400 = vadd.f32 0.0, %v2399
      %v2401 = vpop.f32.mrb[0].mxu0
      %v2402 = vpop.f32.mrb[0].mxu0
      %v2403 = vadd.f32 0.0, %v2402
      %v2404 = vpop.f32.mrb[0].mxu0
      %2405 = vmatprep.mubr.bf16.mxu0 0
      %2406 = vmatmul.mubr.bf16.gmra.mrb[0].mxu0 %v765
      %v2407 = vpop.f32.mrb[0].mxu0
      %v2408 = vadd.f32 0.0, %v2407
      %v2409 = vpop.f32.mrb[0].mxu0
      %v2410 = vpop.f32.mrb[0].mxu0
      %v2411 = vadd.f32 0.0, %v2410
      %v2412 = vpop.f32.mrb[0].mxu0
      %2413 = vmatprep.mubr.bf16.mxu0 0
      %2414 = vmatmul.mubr.bf16.gmra.mrb[0].mxu0 %v766
      %v2415 = vpop.f32.mrb[0].mxu0
      %v2416 = vadd.f32 0.0, %v2415
      %v2417 = vpop.f32.mrb[0].mxu0
      %v2418 = vpop.f32.mrb[0].mxu0
      %v2419 = vadd.f32 0.0, %v2418
      %v2420 = vpop.f32.mrb[0].mxu0
      %2421 = vmatprep.mubr.bf16.mxu0 0
      %2422 = vmatmul.mubr.bf16.gmra.mrb[0].mxu0 %v767
      %v2423 = vpop.f32.mrb[0].mxu0
      %v2424 = vadd.f32 0.0, %v2423
      %v2425 = vpop.f32.mrb[0].mxu0
      %v2426 = vpop.f32.mrb[0].mxu0
      %v2427 = vadd.f32 0.0, %v2426
      %v2428 = vpop.f32.mrb[0].mxu0
      %2429 = vmatprep.mubr.bf16.mxu0 0
      %2430 = vmatmul.mubr.bf16.gmra.mrb[0].mxu0 %v768
      %v2431 = vpop.f32.mrb[0].mxu0
      %v2432 = vadd.f32 0.0, %v2431
      %v2433 = vpop.f32.mrb[0].mxu0
      %v2434 = vpop.f32.mrb[0].mxu0
      %v2435 = vadd.f32 0.0, %v2434
      %v2436 = vpop.f32.mrb[0].mxu0
      %2437 = vmatprep.mubr.bf16.mxu0 0
      %2438 = vmatmul.mubr.bf16.gmra.mrb[0].mxu0 %v769
      %v2439 = vpop.f32.mrb[0].mxu0
      %v2440 = vadd.f32 0.0, %v2439
      %v2441 = vpop.f32.mrb[0].mxu0
      %v2442 = vpop.f32.mrb[0].mxu0
      %v2443 = vadd.f32 0.0, %v2442
      %v2444 = vpop.f32.mrb[0].mxu0
      %2445 = vmatprep.mubr.bf16.mxu0 0
      %2446 = vmatmul.mubr.bf16.gmra.mrb[0].mxu0 %v770
      %v2447 = vpop.f32.mrb[0].mxu0
      %v2448 = vadd.f32 0.0, %v2447
      %v2449 = vpop.f32.mrb[0].mxu0
      %v2450 = vpop.f32.mrb[0].mxu0
      %v2451 = vadd.f32 0.0, %v2450
      %v2452 = vpop.f32.mrb[0].mxu0
      %2453 = vmatprep.mubr.bf16.mxu0 0
      %2454 = vmatmul.mubr.bf16.gmra.mrb[0].mxu0 %v771
      %v2455 = vpop.f32.mrb[0].mxu0
      %v2456 = vadd.f32 0.0, %v2455
      %v2457 = vpop.f32.mrb[0].mxu0
      %v2458 = vpop.f32.mrb[0].mxu0
      %v2459 = vadd.f32 0.0, %v2458
      %v2460 = vpop.f32.mrb[0].mxu0
      %2461 = vmatprep.mubr.bf16.mxu0 0
      %2462 = vmatmul.mubr.bf16.gmra.mrb[0].mxu0 %v772
      %v2463 = vpop.f32.mrb[0].mxu0
      %v2464 = vadd.f32 0.0, %v2463
      %v2465 = vpop.f32.mrb[0].mxu0
      %v2466 = vpop.f32.mrb[0].mxu0
      %v2467 = vadd.f32 0.0, %v2466
      %v2468 = vpop.f32.mrb[0].mxu0
      %2469 = vmatprep.mubr.bf16.mxu0 0
      %2470 = vmatmul.mubr.bf16.gmra.mrb[0].mxu0 %v773
      %v2471 = vpop.f32.mrb[0].mxu0
      %v2472 = vadd.f32 0.0, %v2471
      %v2473 = vpop.f32.mrb[0].mxu0
      %v2474 = vpop.f32.mrb[0].mxu0
      %v2475 = vadd.f32 0.0, %v2474
      %v2476 = vpop.f32.mrb[0].mxu0
      %2477 = vmatprep.mubr.bf16.mxu0 0
      %2478 = vmatmul.mubr.bf16.gmra.mrb[0].mxu0 %v774
      %v2479 = vpop.f32.mrb[0].mxu0
      %v2480 = vadd.f32 0.0, %v2479
      %v2481 = vpop.f32.mrb[0].mxu0
      %v2482 = vpop.f32.mrb[0].mxu0
      %v2483 = vadd.f32 0.0, %v2482
      %v2484 = vpop.f32.mrb[0].mxu0
      %2485 = vmatprep.mubr.bf16.mxu0 0
      %2486 = vmatmul.mubr.bf16.gmra.mrb[0].mxu0 %v775
      %v2487 = vpop.f32.mrb[0].mxu0
      %v2488 = vadd.f32 0.0, %v2487
      %v2489 = vpop.f32.mrb[0].mxu0
      %v2490 = vpop.f32.mrb[0].mxu0
      %v2491 = vadd.f32 0.0, %v2490
      %v2492 = vpop.f32.mrb[0].mxu0
      %2493 = vmatprep.mubr.bf16.mxu0 0
      %2494 = vmatmul.mubr.bf16.gmra.mrb[0].mxu0 %v776
      %v2495 = vpop.f32.mrb[0].mxu0
      %v2496 = vadd.f32 0.0, %v2495
      %v2497 = vpop.f32.mrb[0].mxu0
      %v2498 = vpop.f32.mrb[0].mxu0
      %v2499 = vadd.f32 0.0, %v2498
      %v2500 = vpop.f32.mrb[0].mxu0
      %2501 = vmatprep.mubr.bf16.mxu0 0
      %2502 = vmatmul.mubr.bf16.gmra.mrb[0].mxu0 %v777
      %v2503 = vpop.f32.mrb[0].mxu0
      %v2504 = vadd.f32 0.0, %v2503
      %v2505 = vpop.f32.mrb[0].mxu0
      %v2506 = vpop.f32.mrb[0].mxu0
      %v2507 = vadd.f32 0.0, %v2506
      %v2508 = vpop.f32.mrb[0].mxu0
      %2509 = vmatprep.mubr.bf16.mxu0 0
      %2510 = vmatmul.mubr.bf16.gmra.mrb[0].mxu0 %v778
      %v2511 = vpop.f32.mrb[0].mxu0
      %v2512 = vadd.f32 0.0, %v2511
      %v2513 = vpop.f32.mrb[0].mxu0
      %v2514 = vpop.f32.mrb[0].mxu0
      %v2515 = vadd.f32 0.0, %v2514
      %v2516 = vpop.f32.mrb[0].mxu0
      %2517 = vmatprep.mubr.bf16.mxu0 0
      %2518 = vmatmul.mubr.bf16.gmra.mrb[0].mxu0 %v779
      %v2519 = vpop.f32.mrb[0].mxu0
      %v2520 = vadd.f32 0.0, %v2519
      %v2521 = vpop.f32.mrb[0].mxu0
      %v2522 = vpop.f32.mrb[0].mxu0
      %v2523 = vadd.f32 0.0, %v2522
      %v2524 = vpop.f32.mrb[0].mxu0
      %2525 = vmatprep.mubr.bf16.mxu0 0
      %2526 = vmatmul.mubr.bf16.gmra.mrb[0].mxu0 %v780
      %v2527 = vpop.f32.mrb[0].mxu0
      %v2528 = vadd.f32 0.0, %v2527
      %v2529 = vpop.f32.mrb[0].mxu0
      %v2530 = vpop.f32.mrb[0].mxu0
      %v2531 = vadd.f32 0.0, %v2530
      %v2532 = vpop.f32.mrb[0].mxu0
      %2533 = vmatprep.mubr.bf16.mxu0 0
      %2534 = vmatmul.mubr.bf16.gmra.mrb[0].mxu0 %v781
      %v2535 = vpop.f32.mrb[0].mxu0
      %v2536 = vadd.f32 0.0, %v2535
      %v2537 = vpop.f32.mrb[0].mxu0
      %v2538 = vpop.f32.mrb[0].mxu0
      %v2539 = vadd.f32 0.0, %v2538
      %v2540 = vpop.f32.mrb[0].mxu0
      %2541 = vmatprep.mubr.bf16.mxu0 0
      %2542 = vmatmul.mubr.bf16.gmra.mrb[0].mxu0 %v782
      %v2543 = vpop.f32.mrb[0].mxu0
      %v2544 = vadd.f32 0.0, %v2543
      %v2545 = vpop.f32.mrb[0].mxu0
      %v2546 = vpop.f32.mrb[0].mxu0
      %v2547 = vadd.f32 0.0, %v2546
      %v2548 = vpop.f32.mrb[0].mxu0
      %2549 = vmatprep.mubr.bf16.mxu0 0
      %2550 = vmatmul.mubr.bf16.gmra.mrb[0].mxu0 %v783
      %v2551 = vpop.f32.mrb[0].mxu0
      %v2552 = vadd.f32 0.0, %v2551
      %v2553 = vpop.f32.mrb[0].mxu0
      %v2554 = vpop.f32.mrb[0].mxu0
      %v2555 = vadd.f32 0.0, %v2554
      %v2556 = vpop.f32.mrb[0].mxu0
      %2557 = vmatprep.mubr.bf16.mxu0 0
      %2558 = vmatmul.mubr.bf16.gmra.mrb[0].mxu0 %v784
      %v2559 = vpop.f32.mrb[0].mxu0
      %v2560 = vadd.f32 0.0, %v2559
      %v2561 = vpop.f32.mrb[0].mxu0
      %v2562 = vpop.f32.mrb[0].mxu0
      %v2563 = vadd.f32 0.0, %v2562
      %v2564 = vpop.f32.mrb[0].mxu0
      %2565 = vmatprep.mubr.bf16.mxu0 0
      %2566 = vmatmul.mubr.bf16.gmra.mrb[0].mxu0 %v785
      %v2567 = vpop.f32.mrb[0].mxu0
      %v2568 = vadd.f32 0.0, %v2567
      %v2569 = vpop.f32.mrb[0].mxu0
      %v2570 = vpop.f32.mrb[0].mxu0
      %v2571 = vadd.f32 0.0, %v2570
      %v2572 = vpop.f32.mrb[0].mxu0
      %2573 = vdwg.mxu0
      %v2590 = vunpack.c.l.b16 %v822
      %v2591 = vunpack.c.l.b16 %v823
      %v2592 = vunpack.c.l.b16 %v824
      %v2593 = vunpack.c.l.b16 %v825
      %v2594 = vunpack.c.l.b16 %v826
      %v2595 = vunpack.c.l.b16 %v827
      %v2596 = vunpack.c.l.b16 %v828
      %v2597 = vunpack.c.l.b16 %v829
      %v2598 = vunpack.c.l.b16 %v830
      %v2599 = vunpack.c.l.b16 %v831
      %v2600 = vunpack.c.l.b16 %v832
      %v2601 = vunpack.c.l.b16 %v833
      %v2602 = vunpack.c.l.b16 %v834
      %v2603 = vunpack.c.l.b16 %v835
      %v2604 = vunpack.c.l.b16 %v836
      %v2605 = vunpack.c.l.b16 %v837
      %v2606 = vpack.c.b16 %v2591, %v2590
      %v2607 = vpack.c.b16 %v2593, %v2592
      %v2608 = vpack.c.b16 %v2595, %v2594
      %v2609 = vpack.c.b16 %v2597, %v2596
      %v2610 = vpack.c.b16 %v2599, %v2598
      %v2611 = vpack.c.b16 %v2601, %v2600
      %v2612 = vpack.c.b16 %v2603, %v2602
      %v2613 = vpack.c.b16 %v2605, %v2604
      %2622 = vmatprep.subr.bf16.mxu0 0
      %2623 = vmatpush1.bf16.msra.mxu0 %v2606
      %2624 = vmatprep.subr.bf16.mxu0 0
      %2625 = vmatpush1.bf16.msra.mxu0 %v2607
      %2626 = vmatprep.subr.bf16.mxu0 0
      %2627 = vmatpush1.bf16.msra.mxu0 %v2608
      %2628 = vmatprep.subr.bf16.mxu0 0
      %2629 = vmatpush1.bf16.msra.mxu0 %v2609
      %2630 = vmatprep.subr.bf16.mxu0 0
      %2631 = vmatpush1.bf16.msra.mxu0 %v2610
      %2632 = vmatprep.subr.bf16.mxu0 0
      %2633 = vmatpush1.bf16.msra.mxu0 %v2611
      %2634 = vmatprep.subr.bf16.mxu0 0
      %2635 = vmatpush1.bf16.msra.mxu0 %v2612
      %2636 = vmatprep.subr.bf16.mxu0 0
      %2637 = vmatpush1.bf16.msra.mxu0 %v2613
      %2638 = vmatprep.subr.bf16.mxu0 0
      %2639 = vmatpush1.bf16.msra.mxu0 0
      %2640 = vmatprep.subr.bf16.mxu0 0
      %2641 = vmatpush1.bf16.msra.mxu0 0
      %2642 = vmatprep.subr.bf16.mxu0 0
      %2643 = vmatpush1.bf16.msra.mxu0 0
      %2644 = vmatprep.subr.bf16.mxu0 0
      %2645 = vmatpush1.bf16.msra.mxu0 0
      %2646 = vmatprep.subr.bf16.mxu0 0
      %2647 = vmatpush1.bf16.msra.mxu0 0
      %2648 = vmatprep.subr.bf16.mxu0 0
      %2649 = vmatpush1.bf16.msra.mxu0 0
      %2650 = vmatprep.subr.bf16.mxu0 0
      %2651 = vmatpush1.bf16.msra.mxu0 0
      %2652 = vmatprep.subr.bf16.mxu0 0
      %2653 = vmatpush1.bf16.msra.mxu0 0
      %2654 = vmatprep.mubr.bf16.mxu0 0
      %2655 = vmatmul.mubr.bf16.gmra.mrb[0].mxu0 %v752
      %v2656 = vpop.f32.mrb[0].mxu0
      %v2657 = vadd.f32 %v2320, %v2656
      %v2658 = vpop.f32.mrb[0].mxu0
      %v2659 = vpop.f32.mrb[0].mxu0
      %v2660 = vadd.f32 %v2323, %v2659
      %v2661 = vpop.f32.mrb[0].mxu0
      %2662 = vmatprep.mubr.bf16.mxu0 0
      %2663 = vmatmul.mubr.bf16.gmra.mrb[0].mxu0 %v753
      %v2664 = vpop.f32.mrb[0].mxu0
      %v2665 = vadd.f32 %v2328, %v2664
      %v2666 = vpop.f32.mrb[0].mxu0
      %v2667 = vpop.f32.mrb[0].mxu0
      %v2668 = vadd.f32 %v2331, %v2667
      %v2669 = vpop.f32.mrb[0].mxu0
      %2670 = vmatprep.mubr.bf16.mxu0 0
      %2671 = vmatmul.mubr.bf16.gmra.mrb[0].mxu0 %v754
      %v2672 = vpop.f32.mrb[0].mxu0
      %v2673 = vadd.f32 %v2336, %v2672
      %v2674 = vpop.f32.mrb[0].mxu0
      %v2675 = vpop.f32.mrb[0].mxu0
      %v2676 = vadd.f32 %v2339, %v2675
      %v2677 = vpop.f32.mrb[0].mxu0
      %2678 = vmatprep.mubr.bf16.mxu0 0
      %2679 = vmatmul.mubr.bf16.gmra.mrb[0].mxu0 %v755
      %v2680 = vpop.f32.mrb[0].mxu0
      %v2681 = vadd.f32 %v2344, %v2680
      %v2682 = vpop.f32.mrb[0].mxu0
      %v2683 = vpop.f32.mrb[0].mxu0
      %v2684 = vadd.f32 %v2347, %v2683
      %v2685 = vpop.f32.mrb[0].mxu0
      %2686 = vmatprep.mubr.bf16.mxu0 0
      %2687 = vmatmul.mubr.bf16.gmra.mrb[0].mxu0 %v756
      %v2688 = vpop.f32.mrb[0].mxu0
      %v2689 = vadd.f32 %v2352, %v2688
      %v2690 = vpop.f32.mrb[0].mxu0
      %v2691 = vpop.f32.mrb[0].mxu0
      %v2692 = vadd.f32 %v2355, %v2691
      %v2693 = vpop.f32.mrb[0].mxu0
      %2694 = vmatprep.mubr.bf16.mxu0 0
      %2695 = vmatmul.mubr.bf16.gmra.mrb[0].mxu0 %v757
      %v2696 = vpop.f32.mrb[0].mxu0
      %v2697 = vadd.f32 %v2360, %v2696
      %v2698 = vpop.f32.mrb[0].mxu0
      %v2699 = vpop.f32.mrb[0].mxu0
      %v2700 = vadd.f32 %v2363, %v2699
      %v2701 = vpop.f32.mrb[0].mxu0
      %2702 = vmatprep.mubr.bf16.mxu0 0
      %2703 = vmatmul.mubr.bf16.gmra.mrb[0].mxu0 %v758
      %v2704 = vpop.f32.mrb[0].mxu0
      %v2705 = vadd.f32 %v2368, %v2704
      %v2706 = vpop.f32.mrb[0].mxu0
      %v2707 = vpop.f32.mrb[0].mxu0
      %v2708 = vadd.f32 %v2371, %v2707
      %v2709 = vpop.f32.mrb[0].mxu0
      %2710 = vmatprep.mubr.bf16.mxu0 0
      %2711 = vmatmul.mubr.bf16.gmra.mrb[0].mxu0 %v759
      %v2712 = vpop.f32.mrb[0].mxu0
      %v2713 = vadd.f32 %v2376, %v2712
      %v2714 = vpop.f32.mrb[0].mxu0
      %v2715 = vpop.f32.mrb[0].mxu0
      %v2716 = vadd.f32 %v2379, %v2715
      %v2717 = vpop.f32.mrb[0].mxu0
      %2718 = vmatprep.mubr.bf16.mxu0 0
      %2719 = vmatmul.mubr.bf16.gmra.mrb[0].mxu0 %v760
      %v2720 = vpop.f32.mrb[0].mxu0
      %v2721 = vadd.f32 %v2384, %v2720
      %v2722 = vpop.f32.mrb[0].mxu0
      %v2723 = vpop.f32.mrb[0].mxu0
      %v2724 = vadd.f32 %v2387, %v2723
      %v2725 = vpop.f32.mrb[0].mxu0
      %2726 = vmatprep.mubr.bf16.mxu0 0
      %2727 = vmatmul.mubr.bf16.gmra.mrb[0].mxu0 %v761
      %v2728 = vpop.f32.mrb[0].mxu0
      %v2729 = vadd.f32 %v2392, %v2728
      %v2730 = vpop.f32.mrb[0].mxu0
      %v2731 = vpop.f32.mrb[0].mxu0
      %v2732 = vadd.f32 %v2395, %v2731
      %v2733 = vpop.f32.mrb[0].mxu0
      %2734 = vmatprep.mubr.bf16.mxu0 0
      %2735 = vmatmul.mubr.bf16.gmra.mrb[0].mxu0 %v762
      %v2736 = vpop.f32.mrb[0].mxu0
      %v2737 = vadd.f32 %v2400, %v2736
      %v2738 = vpop.f32.mrb[0].mxu0
      %v2739 = vpop.f32.mrb[0].mxu0
      %v2740 = vadd.f32 %v2403, %v2739
      %v2741 = vpop.f32.mrb[0].mxu0
      %2742 = vmatprep.mubr.bf16.mxu0 0
      %2743 = vmatmul.mubr.bf16.gmra.mrb[0].mxu0 %v763
      %v2744 = vpop.f32.mrb[0].mxu0
      %v2745 = vadd.f32 %v2408, %v2744
      %v2746 = vpop.f32.mrb[0].mxu0
      %v2747 = vpop.f32.mrb[0].mxu0
      %v2748 = vadd.f32 %v2411, %v2747
      %v2749 = vpop.f32.mrb[0].mxu0
      %2750 = vmatprep.mubr.bf16.mxu0 0
      %2751 = vmatmul.mubr.bf16.gmra.mrb[0].mxu0 %v764
      %v2752 = vpop.f32.mrb[0].mxu0
      %v2753 = vadd.f32 %v2416, %v2752
      %v2754 = vpop.f32.mrb[0].mxu0
      %v2755 = vpop.f32.mrb[0].mxu0
      %v2756 = vadd.f32 %v2419, %v2755
      %v2757 = vpop.f32.mrb[0].mxu0
      %2758 = vmatprep.mubr.bf16.mxu0 0
      %2759 = vmatmul.mubr.bf16.gmra.mrb[0].mxu0 %v765
      %v2760 = vpop.f32.mrb[0].mxu0
      %v2761 = vadd.f32 %v2424, %v2760
      %v2762 = vpop.f32.mrb[0].mxu0
      %v2763 = vpop.f32.mrb[0].mxu0
      %v2764 = vadd.f32 %v2427, %v2763
      %v2765 = vpop.f32.mrb[0].mxu0
      %2766 = vmatprep.mubr.bf16.mxu0 0
      %2767 = vmatmul.mubr.bf16.gmra.mrb[0].mxu0 %v766
      %v2768 = vpop.f32.mrb[0].mxu0
      %v2769 = vadd.f32 %v2432, %v2768
      %v2770 = vpop.f32.mrb[0].mxu0
      %v2771 = vpop.f32.mrb[0].mxu0
      %v2772 = vadd.f32 %v2435, %v2771
      %v2773 = vpop.f32.mrb[0].mxu0
      %2774 = vmatprep.mubr.bf16.mxu0 0
      %2775 = vmatmul.mubr.bf16.gmra.mrb[0].mxu0 %v767
      %v2776 = vpop.f32.mrb[0].mxu0
      %v2777 = vadd.f32 %v2440, %v2776
      %v2778 = vpop.f32.mrb[0].mxu0
      %v2779 = vpop.f32.mrb[0].mxu0
      %v2780 = vadd.f32 %v2443, %v2779
      %v2781 = vpop.f32.mrb[0].mxu0
      %2782 = vmatprep.mubr.bf16.mxu0 0
      %2783 = vmatmul.mubr.bf16.gmra.mrb[0].mxu0 %v768
      %v2784 = vpop.f32.mrb[0].mxu0
      %v2785 = vadd.f32 %v2448, %v2784
      %v2786 = vpop.f32.mrb[0].mxu0
      %v2787 = vpop.f32.mrb[0].mxu0
      %v2788 = vadd.f32 %v2451, %v2787
      %v2789 = vpop.f32.mrb[0].mxu0
      %2790 = vmatprep.mubr.bf16.mxu0 0
      %2791 = vmatmul.mubr.bf16.gmra.mrb[0].mxu0 %v769
      %v2792 = vpop.f32.mrb[0].mxu0
      %v2793 = vadd.f32 %v2456, %v2792
      %v2794 = vpop.f32.mrb[0].mxu0
      %v2795 = vpop.f32.mrb[0].mxu0
      %v2796 = vadd.f32 %v2459, %v2795
      %v2797 = vpop.f32.mrb[0].mxu0
      %2798 = vmatprep.mubr.bf16.mxu0 0
      %2799 = vmatmul.mubr.bf16.gmra.mrb[0].mxu0 %v770
      %v2800 = vpop.f32.mrb[0].mxu0
      %v2801 = vadd.f32 %v2464, %v2800
      %v2802 = vpop.f32.mrb[0].mxu0
      %v2803 = vpop.f32.mrb[0].mxu0
      %v2804 = vadd.f32 %v2467, %v2803
      %v2805 = vpop.f32.mrb[0].mxu0
      %2806 = vmatprep.mubr.bf16.mxu0 0
      %2807 = vmatmul.mubr.bf16.gmra.mrb[0].mxu0 %v771
      %v2808 = vpop.f32.mrb[0].mxu0
      %v2809 = vadd.f32 %v2472, %v2808
      %v2810 = vpop.f32.mrb[0].mxu0
      %v2811 = vpop.f32.mrb[0].mxu0
      %v2812 = vadd.f32 %v2475, %v2811
      %v2813 = vpop.f32.mrb[0].mxu0
      %2814 = vmatprep.mubr.bf16.mxu0 0
      %2815 = vmatmul.mubr.bf16.gmra.mrb[0].mxu0 %v772
      %v2816 = vpop.f32.mrb[0].mxu0
      %v2817 = vadd.f32 %v2480, %v2816
      %v2818 = vpop.f32.mrb[0].mxu0
      %v2819 = vpop.f32.mrb[0].mxu0
      %v2820 = vadd.f32 %v2483, %v2819
      %v2821 = vpop.f32.mrb[0].mxu0
      %2822 = vmatprep.mubr.bf16.mxu0 0
      %2823 = vmatmul.mubr.bf16.gmra.mrb[0].mxu0 %v773
      %v2824 = vpop.f32.mrb[0].mxu0
      %v2825 = vadd.f32 %v2488, %v2824
      %v2826 = vpop.f32.mrb[0].mxu0
      %v2827 = vpop.f32.mrb[0].mxu0
      %v2828 = vadd.f32 %v2491, %v2827
      %v2829 = vpop.f32.mrb[0].mxu0
      %2830 = vmatprep.mubr.bf16.mxu0 0
      %2831 = vmatmul.mubr.bf16.gmra.mrb[0].mxu0 %v774
      %v2832 = vpop.f32.mrb[0].mxu0
      %v2833 = vadd.f32 %v2496, %v2832
      %v2834 = vpop.f32.mrb[0].mxu0
      %v2835 = vpop.f32.mrb[0].mxu0
      %v2836 = vadd.f32 %v2499, %v2835
      %v2837 = vpop.f32.mrb[0].mxu0
      %2838 = vmatprep.mubr.bf16.mxu0 0
      %2839 = vmatmul.mubr.bf16.gmra.mrb[0].mxu0 %v775
      %v2840 = vpop.f32.mrb[0].mxu0
      %v2841 = vadd.f32 %v2504, %v2840
      %v2842 = vpop.f32.mrb[0].mxu0
      %v2843 = vpop.f32.mrb[0].mxu0
      %v2844 = vadd.f32 %v2507, %v2843
      %v2845 = vpop.f32.mrb[0].mxu0
      %2846 = vmatprep.mubr.bf16.mxu0 0
      %2847 = vmatmul.mubr.bf16.gmra.mrb[0].mxu0 %v776
      %v2848 = vpop.f32.mrb[0].mxu0
      %v2849 = vadd.f32 %v2512, %v2848
      %v2850 = vpop.f32.mrb[0].mxu0
      %v2851 = vpop.f32.mrb[0].mxu0
      %v2852 = vadd.f32 %v2515, %v2851
      %v2853 = vpop.f32.mrb[0].mxu0
      %2854 = vmatprep.mubr.bf16.mxu0 0
      %2855 = vmatmul.mubr.bf16.gmra.mrb[0].mxu0 %v777
      %v2856 = vpop.f32.mrb[0].mxu0
      %v2857 = vadd.f32 %v2520, %v2856
      %v2858 = vpop.f32.mrb[0].mxu0
      %v2859 = vpop.f32.mrb[0].mxu0
      %v2860 = vadd.f32 %v2523, %v2859
      %v2861 = vpop.f32.mrb[0].mxu0
      %2862 = vmatprep.mubr.bf16.mxu0 0
      %2863 = vmatmul.mubr.bf16.gmra.mrb[0].mxu0 %v778
      %v2864 = vpop.f32.mrb[0].mxu0
      %v2865 = vadd.f32 %v2528, %v2864
      %v2866 = vpop.f32.mrb[0].mxu0
      %v2867 = vpop.f32.mrb[0].mxu0
      %v2868 = vadd.f32 %v2531, %v2867
      %v2869 = vpop.f32.mrb[0].mxu0
      %2870 = vmatprep.mubr.bf16.mxu0 0
      %2871 = vmatmul.mubr.bf16.gmra.mrb[0].mxu0 %v779
      %v2872 = vpop.f32.mrb[0].mxu0
      %v2873 = vadd.f32 %v2536, %v2872
      %v2874 = vpop.f32.mrb[0].mxu0
      %v2875 = vpop.f32.mrb[0].mxu0
      %v2876 = vadd.f32 %v2539, %v2875
      %v2877 = vpop.f32.mrb[0].mxu0
      %2878 = vmatprep.mubr.bf16.mxu0 0
      %2879 = vmatmul.mubr.bf16.gmra.mrb[0].mxu0 %v780
      %v2880 = vpop.f32.mrb[0].mxu0
      %v2881 = vadd.f32 %v2544, %v2880
      %v2882 = vpop.f32.mrb[0].mxu0
      %v2883 = vpop.f32.mrb[0].mxu0
      %v2884 = vadd.f32 %v2547, %v2883
      %v2885 = vpop.f32.mrb[0].mxu0
      %2886 = vmatprep.mubr.bf16.mxu0 0
      %2887 = vmatmul.mubr.bf16.gmra.mrb[0].mxu0 %v781
      %v2888 = vpop.f32.mrb[0].mxu0
      %v2889 = vadd.f32 %v2552, %v2888
      %v2890 = vpop.f32.mrb[0].mxu0
      %v2891 = vpop.f32.mrb[0].mxu0
      %v2892 = vadd.f32 %v2555, %v2891
      %v2893 = vpop.f32.mrb[0].mxu0
      %2894 = vmatprep.mubr.bf16.mxu0 0
      %2895 = vmatmul.mubr.bf16.gmra.mrb[0].mxu0 %v782
      %v2896 = vpop.f32.mrb[0].mxu0
      %v2897 = vadd.f32 %v2560, %v2896
      %v2898 = vpop.f32.mrb[0].mxu0
      %v2899 = vpop.f32.mrb[0].mxu0
      %v2900 = vadd.f32 %v2563, %v2899
      %v2901 = vpop.f32.mrb[0].mxu0
      %2902 = vmatprep.mubr.bf16.mxu0 0
      %2903 = vmatmul.mubr.bf16.gmra.mrb[0].mxu0 %v783
      %v2904 = vpop.f32.mrb[0].mxu0
      %v2905 = vadd.f32 %v2568, %v2904
      %v2906 = vpop.f32.mrb[0].mxu0
      %v2907 = vpop.f32.mrb[0].mxu0
      %v2908 = vadd.f32 %v2571, %v2907
      %v2909 = vpop.f32.mrb[0].mxu0
      %2910 = vdwg.mxu0
      %s2911 = scalar_lea.vmem %s1, 384
      %v2912 = vld [vmem:[%s2911] sm:$0xf]
      %v2913 = vld [vmem:[%s2911 + $0x4] sm:$0xf]
      %v2914 = vld [vmem:[%s2911 + $0x8] sm:$0xf]
      %v2915 = vld [vmem:[%s2911 + $0xc] sm:$0xf]
      %v2916 = vld [vmem:[%s2911 + $0x10] sm:$0xf]
      %v2917 = vld [vmem:[%s2911 + $0x14] sm:$0xf]
      %v2918 = vld [vmem:[%s2911 + $0x18] sm:$0xf]
      %v2919 = vld [vmem:[%s2911 + $0x1c] sm:$0xf]
      %v2920 = vld [vmem:[%s2911 + $0x20] sm:$0xf]
      %v2921 = vld [vmem:[%s2911 + $0x24] sm:$0xf]
      %v2922 = vld [vmem:[%s2911 + $0x28] sm:$0xf]
      %v2923 = vld [vmem:[%s2911 + $0x2c] sm:$0xf]
      %v2924 = vld [vmem:[%s2911 + $0x30] sm:$0xf]
      %v2925 = vld [vmem:[%s2911 + $0x34] sm:$0xf]
      %v2926 = vld [vmem:[%s2911 + $0x38] sm:$0xf]
      %v2927 = vld [vmem:[%s2911 + $0x3c] sm:$0xf]
      %v2944 = vunpack.c.l.b16 %v2912
      %v2945 = vunpack.c.l.b16 %v2913
      %v2946 = vunpack.c.l.b16 %v2914
      %v2947 = vunpack.c.l.b16 %v2915
      %v2948 = vunpack.c.l.b16 %v2916
      %v2949 = vunpack.c.l.b16 %v2917
      %v2950 = vunpack.c.l.b16 %v2918
      %v2951 = vunpack.c.l.b16 %v2919
      %v2952 = vunpack.c.l.b16 %v2920
      %v2953 = vunpack.c.l.b16 %v2921
      %v2954 = vunpack.c.l.b16 %v2922
      %v2955 = vunpack.c.l.b16 %v2923
      %v2956 = vunpack.c.l.b16 %v2924
      %v2957 = vunpack.c.l.b16 %v2925
      %v2958 = vunpack.c.l.b16 %v2926
      %v2959 = vunpack.c.l.b16 %v2927
      %v2960 = vpack.c.b16 %v2945, %v2944
      %v2961 = vpack.c.b16 %v2947, %v2946
      %v2962 = vpack.c.b16 %v2949, %v2948
      %v2963 = vpack.c.b16 %v2951, %v2950
      %v2964 = vpack.c.b16 %v2953, %v2952
      %v2965 = vpack.c.b16 %v2955, %v2954
      %v2966 = vpack.c.b16 %v2957, %v2956
      %v2967 = vpack.c.b16 %v2959, %v2958
      %2976 = vmatprep.subr.bf16.mxu0 0
      %2977 = vmatpush1.bf16.msra.mxu0 %v2960
      %2978 = vmatprep.subr.bf16.mxu0 0
      %2979 = vmatpush1.bf16.msra.mxu0 %v2961
      %2980 = vmatprep.subr.bf16.mxu0 0
      %2981 = vmatpush1.bf16.msra.mxu0 %v2962
      %2982 = vmatprep.subr.bf16.mxu0 0
      %2983 = vmatpush1.bf16.msra.mxu0 %v2963
      %2984 = vmatprep.subr.bf16.mxu0 0
      %2985 = vmatpush1.bf16.msra.mxu0 %v2964
      %2986 = vmatprep.subr.bf16.mxu0 0
      %2987 = vmatpush1.bf16.msra.mxu0 %v2965
      %2988 = vmatprep.subr.bf16.mxu0 0
      %2989 = vmatpush1.bf16.msra.mxu0 %v2966
      %2990 = vmatprep.subr.bf16.mxu0 0
      %2991 = vmatpush1.bf16.msra.mxu0 %v2967
      %2992 = vmatprep.subr.bf16.mxu0 0
      %2993 = vmatpush1.bf16.msra.mxu0 0
      %2994 = vmatprep.subr.bf16.mxu0 0
      %2995 = vmatpush1.bf16.msra.mxu0 0
      %2996 = vmatprep.subr.bf16.mxu0 0
      %2997 = vmatpush1.bf16.msra.mxu0 0
      %2998 = vmatprep.subr.bf16.mxu0 0
      %2999 = vmatpush1.bf16.msra.mxu0 0
      %3000 = vmatprep.subr.bf16.mxu0 0
      %3001 = vmatpush1.bf16.msra.mxu0 0
      %3002 = vmatprep.subr.bf16.mxu0 0
      %3003 = vmatpush1.bf16.msra.mxu0 0
      %3004 = vmatprep.subr.bf16.mxu0 0
      %3005 = vmatpush1.bf16.msra.mxu0 0
      %3006 = vmatprep.subr.bf16.mxu0 0
      %3007 = vmatpush1.bf16.msra.mxu0 0
      %3008 = vmatprep.mubr.bf16.mxu0 0
      %3009 = vmatmul.mubr.bf16.gmra.mrb[0].mxu0 %v756
      %v3010 = vpop.f32.mrb[0].mxu0
      %v3011 = vadd.f32 0.0, %v3010
      %v3012 = vpop.f32.mrb[0].mxu0
      %v3013 = vpop.f32.mrb[0].mxu0
      %v3014 = vadd.f32 0.0, %v3013
      %v3015 = vpop.f32.mrb[0].mxu0
      %3016 = vmatprep.mubr.bf16.mxu0 0
      %3017 = vmatmul.mubr.bf16.gmra.mrb[0].mxu0 %v757
      %v3018 = vpop.f32.mrb[0].mxu0
      %v3019 = vadd.f32 0.0, %v3018
      %v3020 = vpop.f32.mrb[0].mxu0
      %v3021 = vpop.f32.mrb[0].mxu0
      %v3022 = vadd.f32 0.0, %v3021
      %v3023 = vpop.f32.mrb[0].mxu0
      %3024 = vmatprep.mubr.bf16.mxu0 0
      %3025 = vmatmul.mubr.bf16.gmra.mrb[0].mxu0 %v758
      %v3026 = vpop.f32.mrb[0].mxu0
      %v3027 = vadd.f32 0.0, %v3026
      %v3028 = vpop.f32.mrb[0].mxu0
      %v3029 = vpop.f32.mrb[0].mxu0
      %v3030 = vadd.f32 0.0, %v3029
      %v3031 = vpop.f32.mrb[0].mxu0
      %3032 = vmatprep.mubr.bf16.mxu0 0
      %3033 = vmatmul.mubr.bf16.gmra.mrb[0].mxu0 %v759
      %v3034 = vpop.f32.mrb[0].mxu0
      %v3035 = vadd.f32 0.0, %v3034
      %v3036 = vpop.f32.mrb[0].mxu0
      %v3037 = vpop.f32.mrb[0].mxu0
      %v3038 = vadd.f32 0.0, %v3037
      %v3039 = vpop.f32.mrb[0].mxu0
      %3040 = vmatprep.mubr.bf16.mxu0 0
      %3041 = vmatmul.mubr.bf16.gmra.mrb[0].mxu0 %v760
      %v3042 = vpop.f32.mrb[0].mxu0
      %v3043 = vadd.f32 0.0, %v3042
      %v3044 = vpop.f32.mrb[0].mxu0
      %v3045 = vpop.f32.mrb[0].mxu0
      %v3046 = vadd.f32 0.0, %v3045
      %v3047 = vpop.f32.mrb[0].mxu0
      %3048 = vmatprep.mubr.bf16.mxu0 0
      %3049 = vmatmul.mubr.bf16.gmra.mrb[0].mxu0 %v761
      %v3050 = vpop.f32.mrb[0].mxu0
      %v3051 = vadd.f32 0.0, %v3050
      %v3052 = vpop.f32.mrb[0].mxu0
      %v3053 = vpop.f32.mrb[0].mxu0
      %v3054 = vadd.f32 0.0, %v3053
      %v3055 = vpop.f32.mrb[0].mxu0
      %3056 = vmatprep.mubr.bf16.mxu0 0
      %3057 = vmatmul.mubr.bf16.gmra.mrb[0].mxu0 %v762
      %v3058 = vpop.f32.mrb[0].mxu0
      %v3059 = vadd.f32 0.0, %v3058
      %v3060 = vpop.f32.mrb[0].mxu0
      %v3061 = vpop.f32.mrb[0].mxu0
      %v3062 = vadd.f32 0.0, %v3061
      %v3063 = vpop.f32.mrb[0].mxu0
      %3064 = vmatprep.mubr.bf16.mxu0 0
      %3065 = vmatmul.mubr.bf16.gmra.mrb[0].mxu0 %v763
      %v3066 = vpop.f32.mrb[0].mxu0
      %v3067 = vadd.f32 0.0, %v3066
      %v3068 = vpop.f32.mrb[0].mxu0
      %v3069 = vpop.f32.mrb[0].mxu0
      %v3070 = vadd.f32 0.0, %v3069
      %v3071 = vpop.f32.mrb[0].mxu0
      %3072 = vmatprep.mubr.bf16.mxu0 0
      %3073 = vmatmul.mubr.bf16.gmra.mrb[0].mxu0 %v764
      %v3074 = vpop.f32.mrb[0].mxu0
      %v3075 = vadd.f32 0.0, %v3074
      %v3076 = vpop.f32.mrb[0].mxu0
      %v3077 = vpop.f32.mrb[0].mxu0
      %v3078 = vadd.f32 0.0, %v3077
      %v3079 = vpop.f32.mrb[0].mxu0
      %3080 = vmatprep.mubr.bf16.mxu0 0
      %3081 = vmatmul.mubr.bf16.gmra.mrb[0].mxu0 %v765
      %v3082 = vpop.f32.mrb[0].mxu0
      %v3083 = vadd.f32 0.0, %v3082
      %v3084 = vpop.f32.mrb[0].mxu0
      %v3085 = vpop.f32.mrb[0].mxu0
      %v3086 = vadd.f32 0.0, %v3085
      %v3087 = vpop.f32.mrb[0].mxu0
      %3088 = vmatprep.mubr.bf16.mxu0 0
      %3089 = vmatmul.mubr.bf16.gmra.mrb[0].mxu0 %v766
      %v3090 = vpop.f32.mrb[0].mxu0
      %v3091 = vadd.f32 0.0, %v3090
      %v3092 = vpop.f32.mrb[0].mxu0
      %v3093 = vpop.f32.mrb[0].mxu0
      %v3094 = vadd.f32 0.0, %v3093
      %v3095 = vpop.f32.mrb[0].mxu0
      %3096 = vmatprep.mubr.bf16.mxu0 0
      %3097 = vmatmul.mubr.bf16.gmra.mrb[0].mxu0 %v767
      %v3098 = vpop.f32.mrb[0].mxu0
      %v3099 = vadd.f32 0.0, %v3098
      %v3100 = vpop.f32.mrb[0].mxu0
      %v3101 = vpop.f32.mrb[0].mxu0
      %v3102 = vadd.f32 0.0, %v3101
      %v3103 = vpop.f32.mrb[0].mxu0
      %3104 = vmatprep.mubr.bf16.mxu0 0
      %3105 = vmatmul.mubr.bf16.gmra.mrb[0].mxu0 %v768
      %v3106 = vpop.f32.mrb[0].mxu0
      %v3107 = vadd.f32 0.0, %v3106
      %v3108 = vpop.f32.mrb[0].mxu0
      %v3109 = vpop.f32.mrb[0].mxu0
      %v3110 = vadd.f32 0.0, %v3109
      %v3111 = vpop.f32.mrb[0].mxu0
      %3112 = vmatprep.mubr.bf16.mxu0 0
      %3113 = vmatmul.mubr.bf16.gmra.mrb[0].mxu0 %v769
      %v3114 = vpop.f32.mrb[0].mxu0
      %v3115 = vadd.f32 0.0, %v3114
      %v3116 = vpop.f32.mrb[0].mxu0
      %v3117 = vpop.f32.mrb[0].mxu0
      %v3118 = vadd.f32 0.0, %v3117
      %v3119 = vpop.f32.mrb[0].mxu0
      %3120 = vmatprep.mubr.bf16.mxu0 0
      %3121 = vmatmul.mubr.bf16.gmra.mrb[0].mxu0 %v770
      %v3122 = vpop.f32.mrb[0].mxu0
      %v3123 = vadd.f32 0.0, %v3122
      %v3124 = vpop.f32.mrb[0].mxu0
      %v3125 = vpop.f32.mrb[0].mxu0
      %v3126 = vadd.f32 0.0, %v3125
      %v3127 = vpop.f32.mrb[0].mxu0
      %3128 = vmatprep.mubr.bf16.mxu0 0
      %3129 = vmatmul.mubr.bf16.gmra.mrb[0].mxu0 %v771
      %v3130 = vpop.f32.mrb[0].mxu0
      %v3131 = vadd.f32 0.0, %v3130
      %v3132 = vpop.f32.mrb[0].mxu0
      %v3133 = vpop.f32.mrb[0].mxu0
      %v3134 = vadd.f32 0.0, %v3133
      %v3135 = vpop.f32.mrb[0].mxu0
      %3136 = vmatprep.mubr.bf16.mxu0 0
      %3137 = vmatmul.mubr.bf16.gmra.mrb[0].mxu0 %v772
      %v3138 = vpop.f32.mrb[0].mxu0
      %v3139 = vadd.f32 0.0, %v3138
      %v3140 = vpop.f32.mrb[0].mxu0
      %v3141 = vpop.f32.mrb[0].mxu0
      %v3142 = vadd.f32 0.0, %v3141
      %v3143 = vpop.f32.mrb[0].mxu0
      %3144 = vmatprep.mubr.bf16.mxu0 0
      %3145 = vmatmul.mubr.bf16.gmra.mrb[0].mxu0 %v773
      %v3146 = vpop.f32.mrb[0].mxu0
      %v3147 = vadd.f32 0.0, %v3146
      %v3148 = vpop.f32.mrb[0].mxu0
      %v3149 = vpop.f32.mrb[0].mxu0
      %v3150 = vadd.f32 0.0, %v3149
      %v3151 = vpop.f32.mrb[0].mxu0
      %3152 = vmatprep.mubr.bf16.mxu0 0
      %3153 = vmatmul.mubr.bf16.gmra.mrb[0].mxu0 %v774
      %v3154 = vpop.f32.mrb[0].mxu0
      %v3155 = vadd.f32 0.0, %v3154
      %v3156 = vpop.f32.mrb[0].mxu0
      %v3157 = vpop.f32.mrb[0].mxu0
      %v3158 = vadd.f32 0.0, %v3157
      %v3159 = vpop.f32.mrb[0].mxu0
      %3160 = vmatprep.mubr.bf16.mxu0 0
      %3161 = vmatmul.mubr.bf16.gmra.mrb[0].mxu0 %v775
      %v3162 = vpop.f32.mrb[0].mxu0
      %v3163 = vadd.f32 0.0, %v3162
      %v3164 = vpop.f32.mrb[0].mxu0
      %v3165 = vpop.f32.mrb[0].mxu0
      %v3166 = vadd.f32 0.0, %v3165
      %v3167 = vpop.f32.mrb[0].mxu0
      %3168 = vmatprep.mubr.bf16.mxu0 0
      %3169 = vmatmul.mubr.bf16.gmra.mrb[0].mxu0 %v776
      %v3170 = vpop.f32.mrb[0].mxu0
      %v3171 = vadd.f32 0.0, %v3170
      %v3172 = vpop.f32.mrb[0].mxu0
      %v3173 = vpop.f32.mrb[0].mxu0
      %v3174 = vadd.f32 0.0, %v3173
      %v3175 = vpop.f32.mrb[0].mxu0
      %3176 = vmatprep.mubr.bf16.mxu0 0
      %3177 = vmatmul.mubr.bf16.gmra.mrb[0].mxu0 %v777
      %v3178 = vpop.f32.mrb[0].mxu0
      %v3179 = vadd.f32 0.0, %v3178
      %v3180 = vpop.f32.mrb[0].mxu0
      %v3181 = vpop.f32.mrb[0].mxu0
      %v3182 = vadd.f32 0.0, %v3181
      %v3183 = vpop.f32.mrb[0].mxu0
      %3184 = vmatprep.mubr.bf16.mxu0 0
      %3185 = vmatmul.mubr.bf16.gmra.mrb[0].mxu0 %v778
      %v3186 = vpop.f32.mrb[0].mxu0
      %v3187 = vadd.f32 0.0, %v3186
      %v3188 = vpop.f32.mrb[0].mxu0
      %v3189 = vpop.f32.mrb[0].mxu0
      %v3190 = vadd.f32 0.0, %v3189
      %v3191 = vpop.f32.mrb[0].mxu0
      %3192 = vmatprep.mubr.bf16.mxu0 0
      %3193 = vmatmul.mubr.bf16.gmra.mrb[0].mxu0 %v779
      %v3194 = vpop.f32.mrb[0].mxu0
      %v3195 = vadd.f32 0.0, %v3194
      %v3196 = vpop.f32.mrb[0].mxu0
      %v3197 = vpop.f32.mrb[0].mxu0
      %v3198 = vadd.f32 0.0, %v3197
      %v3199 = vpop.f32.mrb[0].mxu0
      %3200 = vmatprep.mubr.bf16.mxu0 0
      %3201 = vmatmul.mubr.bf16.gmra.mrb[0].mxu0 %v780
      %v3202 = vpop.f32.mrb[0].mxu0
      %v3203 = vadd.f32 0.0, %v3202
      %v3204 = vpop.f32.mrb[0].mxu0
      %v3205 = vpop.f32.mrb[0].mxu0
      %v3206 = vadd.f32 0.0, %v3205
      %v3207 = vpop.f32.mrb[0].mxu0
      %3208 = vmatprep.mubr.bf16.mxu0 0
      %3209 = vmatmul.mubr.bf16.gmra.mrb[0].mxu0 %v781
      %v3210 = vpop.f32.mrb[0].mxu0
      %v3211 = vadd.f32 0.0, %v3210
      %v3212 = vpop.f32.mrb[0].mxu0
      %v3213 = vpop.f32.mrb[0].mxu0
      %v3214 = vadd.f32 0.0, %v3213
      %v3215 = vpop.f32.mrb[0].mxu0
      %3216 = vmatprep.mubr.bf16.mxu0 0
      %3217 = vmatmul.mubr.bf16.gmra.mrb[0].mxu0 %v782
      %v3218 = vpop.f32.mrb[0].mxu0
      %v3219 = vadd.f32 0.0, %v3218
      %v3220 = vpop.f32.mrb[0].mxu0
      %v3221 = vpop.f32.mrb[0].mxu0
      %v3222 = vadd.f32 0.0, %v3221
      %v3223 = vpop.f32.mrb[0].mxu0
      %3224 = vmatprep.mubr.bf16.mxu0 0
      %3225 = vmatmul.mubr.bf16.gmra.mrb[0].mxu0 %v783
      %v3226 = vpop.f32.mrb[0].mxu0
      %v3227 = vadd.f32 0.0, %v3226
      %v3228 = vpop.f32.mrb[0].mxu0
      %v3229 = vpop.f32.mrb[0].mxu0
      %v3230 = vadd.f32 0.0, %v3229
      %v3231 = vpop.f32.mrb[0].mxu0
      %3232 = vmatprep.mubr.bf16.mxu0 0
      %3233 = vmatmul.mubr.bf16.gmra.mrb[0].mxu0 %v784
      %v3234 = vpop.f32.mrb[0].mxu0
      %v3235 = vadd.f32 0.0, %v3234
      %v3236 = vpop.f32.mrb[0].mxu0
      %v3237 = vpop.f32.mrb[0].mxu0
      %v3238 = vadd.f32 0.0, %v3237
      %v3239 = vpop.f32.mrb[0].mxu0
      %3240 = vmatprep.mubr.bf16.mxu0 0
      %3241 = vmatmul.mubr.bf16.gmra.mrb[0].mxu0 %v785
      %v3242 = vpop.f32.mrb[0].mxu0
      %v3243 = vadd.f32 0.0, %v3242
      %v3244 = vpop.f32.mrb[0].mxu0
      %v3245 = vpop.f32.mrb[0].mxu0
      %v3246 = vadd.f32 0.0, %v3245
      %v3247 = vpop.f32.mrb[0].mxu0
      %3248 = vmatprep.mubr.bf16.mxu0 0
      %3249 = vmatmul.mubr.bf16.gmra.mrb[0].mxu0 %v786
      %v3250 = vpop.f32.mrb[0].mxu0
      %v3251 = vadd.f32 0.0, %v3250
      %v3252 = vpop.f32.mrb[0].mxu0
      %v3253 = vpop.f32.mrb[0].mxu0
      %v3254 = vadd.f32 0.0, %v3253
      %v3255 = vpop.f32.mrb[0].mxu0
      %3256 = vmatprep.mubr.bf16.mxu0 0
      %3257 = vmatmul.mubr.bf16.gmra.mrb[0].mxu0 %v787
      %v3258 = vpop.f32.mrb[0].mxu0
      %v3259 = vadd.f32 0.0, %v3258
      %v3260 = vpop.f32.mrb[0].mxu0
      %v3261 = vpop.f32.mrb[0].mxu0
      %v3262 = vadd.f32 0.0, %v3261
      %v3263 = vpop.f32.mrb[0].mxu0
      %3264 = vdwg.mxu0
      %v3265 = vadd.f32 %v1275, %v3011
      %v3266 = vadd.f32 %v1278, %v3014
      %v3267 = vadd.f32 %v1283, %v3019
      %v3268 = vadd.f32 %v1286, %v3022
      %v3269 = vadd.f32 %v1291, %v3027
      %v3270 = vadd.f32 %v1294, %v3030
      %v3271 = vadd.f32 %v1299, %v3035
      %v3272 = vadd.f32 %v1302, %v3038
      %v3273 = vadd.f32 %v1307, %v3043
      %v3274 = vadd.f32 %v1310, %v3046
      %v3275 = vadd.f32 %v1315, %v3051
      %v3276 = vadd.f32 %v1318, %v3054
      %v3277 = vadd.f32 %v1323, %v3059
      %v3278 = vadd.f32 %v1326, %v3062
      %v3279 = vadd.f32 %v1331, %v3067
      %v3280 = vadd.f32 %v1334, %v3070
      %v3281 = vadd.f32 %v1339, %v3075
      %v3282 = vadd.f32 %v1342, %v3078
      %v3283 = vadd.f32 %v1347, %v3083
      %v3284 = vadd.f32 %v1350, %v3086
      %v3285 = vadd.f32 %v1355, %v3091
      %v3286 = vadd.f32 %v1358, %v3094
      %v3287 = vadd.f32 %v1363, %v3099
      %v3288 = vadd.f32 %v1366, %v3102
      %v3289 = vadd.f32 %v1371, %v3107
      %v3290 = vadd.f32 %v1374, %v3110
      %v3291 = vadd.f32 %v1379, %v3115
      %v3292 = vadd.f32 %v1382, %v3118
      %v3293 = vadd.f32 %v1387, %v3123
      %v3294 = vadd.f32 %v1390, %v3126
      %v3295 = vadd.f32 %v1395, %v3131
      %v3296 = vadd.f32 %v1398, %v3134
      %v3297 = vadd.f32 %v1403, %v3139
      %v3298 = vadd.f32 %v1406, %v3142
      %v3299 = vadd.f32 %v1411, %v3147
      %v3300 = vadd.f32 %v1414, %v3150
      %v3301 = vadd.f32 %v1419, %v3155
      %v3302 = vadd.f32 %v1422, %v3158
      %v3303 = vadd.f32 %v1427, %v3163
      %v3304 = vadd.f32 %v1430, %v3166
      %v3305 = vadd.f32 %v1435, %v3171
      %v3306 = vadd.f32 %v1438, %v3174
      %v3307 = vadd.f32 %v1443, %v3179
      %v3308 = vadd.f32 %v1446, %v3182
      %v3309 = vadd.f32 %v1451, %v3187
      %v3310 = vadd.f32 %v1454, %v3190
      %v3311 = vadd.f32 %v1459, %v3195
      %v3312 = vadd.f32 %v1462, %v3198
      %v3313 = vadd.f32 %v1467, %v3203
      %v3314 = vadd.f32 %v1470, %v3206
      %v3315 = vadd.f32 %v1475, %v3211
      %v3316 = vadd.f32 %v1478, %v3214
      %v3317 = vadd.f32 %v1483, %v3219
      %v3318 = vadd.f32 %v1486, %v3222
      %v3319 = vadd.f32 %v1491, %v3227
      %v3320 = vadd.f32 %v1494, %v3230
      %v3321 = vadd.f32 %v1499, %v3235
      %v3322 = vadd.f32 %v1502, %v3238
      %v3323 = vadd.f32 %v1507, %v3243
      %v3324 = vadd.f32 %v1510, %v3246
      %v3325 = vadd.f32 %v1515, %v3251
      %v3326 = vadd.f32 %v1518, %v3254
      %v3327 = vadd.f32 %v1523, %v3259
      %v3328 = vadd.f32 %v1526, %v3262
      %s3329 = scalar_lea.vmem %s1, 448
      %v3330 = vld [vmem:[%s3329] sm:$0xf]
      %v3331 = vld [vmem:[%s3329 + $0x4] sm:$0xf]
      %v3332 = vld [vmem:[%s3329 + $0x8] sm:$0xf]
      %v3333 = vld [vmem:[%s3329 + $0xc] sm:$0xf]
      %v3334 = vld [vmem:[%s3329 + $0x10] sm:$0xf]
      %v3335 = vld [vmem:[%s3329 + $0x14] sm:$0xf]
      %v3336 = vld [vmem:[%s3329 + $0x18] sm:$0xf]
      %v3337 = vld [vmem:[%s3329 + $0x1c] sm:$0xf]
      %v3338 = vld [vmem:[%s3329 + $0x20] sm:$0xf]
      %v3339 = vld [vmem:[%s3329 + $0x24] sm:$0xf]
      %v3340 = vld [vmem:[%s3329 + $0x28] sm:$0xf]
      %v3341 = vld [vmem:[%s3329 + $0x2c] sm:$0xf]
      %v3342 = vld [vmem:[%s3329 + $0x30] sm:$0xf]
      %v3343 = vld [vmem:[%s3329 + $0x34] sm:$0xf]
      %v3344 = vld [vmem:[%s3329 + $0x38] sm:$0xf]
      %v3345 = vld [vmem:[%s3329 + $0x3c] sm:$0xf]
      %v3362 = vunpack.c.l.b16 %v3330
      %v3363 = vunpack.c.l.b16 %v3331
      %v3364 = vunpack.c.l.b16 %v3332
      %v3365 = vunpack.c.l.b16 %v3333
      %v3366 = vunpack.c.l.b16 %v3334
      %v3367 = vunpack.c.l.b16 %v3335
      %v3368 = vunpack.c.l.b16 %v3336
      %v3369 = vunpack.c.l.b16 %v3337
      %v3370 = vunpack.c.l.b16 %v3338
      %v3371 = vunpack.c.l.b16 %v3339
      %v3372 = vunpack.c.l.b16 %v3340
      %v3373 = vunpack.c.l.b16 %v3341
      %v3374 = vunpack.c.l.b16 %v3342
      %v3375 = vunpack.c.l.b16 %v3343
      %v3376 = vunpack.c.l.b16 %v3344
      %v3377 = vunpack.c.l.b16 %v3345
      %v3378 = vpack.c.b16 %v3363, %v3362
      %v3379 = vpack.c.b16 %v3365, %v3364
      %v3380 = vpack.c.b16 %v3367, %v3366
      %v3381 = vpack.c.b16 %v3369, %v3368
      %v3382 = vpack.c.b16 %v3371, %v3370
      %v3383 = vpack.c.b16 %v3373, %v3372
      %v3384 = vpack.c.b16 %v3375, %v3374
      %v3385 = vpack.c.b16 %v3377, %v3376
      %3394 = vmatprep.subr.bf16.mxu0 0
      %3395 = vmatpush1.bf16.msra.mxu0 %v3378
      %3396 = vmatprep.subr.bf16.mxu0 0
      %3397 = vmatpush1.bf16.msra.mxu0 %v3379
      %3398 = vmatprep.subr.bf16.mxu0 0
      %3399 = vmatpush1.bf16.msra.mxu0 %v3380
      %3400 = vmatprep.subr.bf16.mxu0 0
      %3401 = vmatpush1.bf16.msra.mxu0 %v3381
      %3402 = vmatprep.subr.bf16.mxu0 0
      %3403 = vmatpush1.bf16.msra.mxu0 %v3382
      %3404 = vmatprep.subr.bf16.mxu0 0
      %3405 = vmatpush1.bf16.msra.mxu0 %v3383
      %3406 = vmatprep.subr.bf16.mxu0 0
      %3407 = vmatpush1.bf16.msra.mxu0 %v3384
      %3408 = vmatprep.subr.bf16.mxu0 0
      %3409 = vmatpush1.bf16.msra.mxu0 %v3385
      %3410 = vmatprep.subr.bf16.mxu0 0
      %3411 = vmatpush1.bf16.msra.mxu0 0
      %3412 = vmatprep.subr.bf16.mxu0 0
      %3413 = vmatpush1.bf16.msra.mxu0 0
      %3414 = vmatprep.subr.bf16.mxu0 0
      %3415 = vmatpush1.bf16.msra.mxu0 0
      %3416 = vmatprep.subr.bf16.mxu0 0
      %3417 = vmatpush1.bf16.msra.mxu0 0
      %3418 = vmatprep.subr.bf16.mxu0 0
      %3419 = vmatpush1.bf16.msra.mxu0 0
      %3420 = vmatprep.subr.bf16.mxu0 0
      %3421 = vmatpush1.bf16.msra.mxu0 0
      %3422 = vmatprep.subr.bf16.mxu0 0
      %3423 = vmatpush1.bf16.msra.mxu0 0
      %3424 = vmatprep.subr.bf16.mxu0 0
      %3425 = vmatpush1.bf16.msra.mxu0 0
      %3426 = vmatprep.mubr.bf16.mxu0 0
      %3427 = vmatmul.mubr.bf16.gmra.mrb[0].mxu0 %v756
      %v3428 = vpop.f32.mrb[0].mxu0
      %v3429 = vadd.f32 0.0, %v3428
      %v3430 = vpop.f32.mrb[0].mxu0
      %v3431 = vpop.f32.mrb[0].mxu0
      %v3432 = vadd.f32 0.0, %v3431
      %v3433 = vpop.f32.mrb[0].mxu0
      %3434 = vmatprep.mubr.bf16.mxu0 0
      %3435 = vmatmul.mubr.bf16.gmra.mrb[0].mxu0 %v757
      %v3436 = vpop.f32.mrb[0].mxu0
      %v3437 = vadd.f32 0.0, %v3436
      %v3438 = vpop.f32.mrb[0].mxu0
      %v3439 = vpop.f32.mrb[0].mxu0
      %v3440 = vadd.f32 0.0, %v3439
      %v3441 = vpop.f32.mrb[0].mxu0
      %3442 = vmatprep.mubr.bf16.mxu0 0
      %3443 = vmatmul.mubr.bf16.gmra.mrb[0].mxu0 %v758
      %v3444 = vpop.f32.mrb[0].mxu0
      %v3445 = vadd.f32 0.0, %v3444
      %v3446 = vpop.f32.mrb[0].mxu0
      %v3447 = vpop.f32.mrb[0].mxu0
      %v3448 = vadd.f32 0.0, %v3447
      %v3449 = vpop.f32.mrb[0].mxu0
      %3450 = vmatprep.mubr.bf16.mxu0 0
      %3451 = vmatmul.mubr.bf16.gmra.mrb[0].mxu0 %v759
      %v3452 = vpop.f32.mrb[0].mxu0
      %v3453 = vadd.f32 0.0, %v3452
      %v3454 = vpop.f32.mrb[0].mxu0
      %v3455 = vpop.f32.mrb[0].mxu0
      %v3456 = vadd.f32 0.0, %v3455
      %v3457 = vpop.f32.mrb[0].mxu0
      %3458 = vmatprep.mubr.bf16.mxu0 0
      %3459 = vmatmul.mubr.bf16.gmra.mrb[0].mxu0 %v760
      %v3460 = vpop.f32.mrb[0].mxu0
      %v3461 = vadd.f32 0.0, %v3460
      %v3462 = vpop.f32.mrb[0].mxu0
      %v3463 = vpop.f32.mrb[0].mxu0
      %v3464 = vadd.f32 0.0, %v3463
      %v3465 = vpop.f32.mrb[0].mxu0
      %3466 = vmatprep.mubr.bf16.mxu0 0
      %3467 = vmatmul.mubr.bf16.gmra.mrb[0].mxu0 %v761
      %v3468 = vpop.f32.mrb[0].mxu0
      %v3469 = vadd.f32 0.0, %v3468
      %v3470 = vpop.f32.mrb[0].mxu0
      %v3471 = vpop.f32.mrb[0].mxu0
      %v3472 = vadd.f32 0.0, %v3471
      %v3473 = vpop.f32.mrb[0].mxu0
      %3474 = vmatprep.mubr.bf16.mxu0 0
      %3475 = vmatmul.mubr.bf16.gmra.mrb[0].mxu0 %v762
      %v3476 = vpop.f32.mrb[0].mxu0
      %v3477 = vadd.f32 0.0, %v3476
      %v3478 = vpop.f32.mrb[0].mxu0
      %v3479 = vpop.f32.mrb[0].mxu0
      %v3480 = vadd.f32 0.0, %v3479
      %v3481 = vpop.f32.mrb[0].mxu0
      %3482 = vmatprep.mubr.bf16.mxu0 0
      %3483 = vmatmul.mubr.bf16.gmra.mrb[0].mxu0 %v763
      %v3484 = vpop.f32.mrb[0].mxu0
      %v3485 = vadd.f32 0.0, %v3484
      %v3486 = vpop.f32.mrb[0].mxu0
      %v3487 = vpop.f32.mrb[0].mxu0
      %v3488 = vadd.f32 0.0, %v3487
      %v3489 = vpop.f32.mrb[0].mxu0
      %3490 = vmatprep.mubr.bf16.mxu0 0
      %3491 = vmatmul.mubr.bf16.gmra.mrb[0].mxu0 %v764
      %v3492 = vpop.f32.mrb[0].mxu0
      %v3493 = vadd.f32 0.0, %v3492
      %v3494 = vpop.f32.mrb[0].mxu0
      %v3495 = vpop.f32.mrb[0].mxu0
      %v3496 = vadd.f32 0.0, %v3495
      %v3497 = vpop.f32.mrb[0].mxu0
      %3498 = vmatprep.mubr.bf16.mxu0 0
      %3499 = vmatmul.mubr.bf16.gmra.mrb[0].mxu0 %v765
      %v3500 = vpop.f32.mrb[0].mxu0
      %v3501 = vadd.f32 0.0, %v3500
      %v3502 = vpop.f32.mrb[0].mxu0
      %v3503 = vpop.f32.mrb[0].mxu0
      %v3504 = vadd.f32 0.0, %v3503
      %v3505 = vpop.f32.mrb[0].mxu0
      %3506 = vmatprep.mubr.bf16.mxu0 0
      %3507 = vmatmul.mubr.bf16.gmra.mrb[0].mxu0 %v766
      %v3508 = vpop.f32.mrb[0].mxu0
      %v3509 = vadd.f32 0.0, %v3508
      %v3510 = vpop.f32.mrb[0].mxu0
      %v3511 = vpop.f32.mrb[0].mxu0
      %v3512 = vadd.f32 0.0, %v3511
      %v3513 = vpop.f32.mrb[0].mxu0
      %3514 = vmatprep.mubr.bf16.mxu0 0
      %3515 = vmatmul.mubr.bf16.gmra.mrb[0].mxu0 %v767
      %v3516 = vpop.f32.mrb[0].mxu0
      %v3517 = vadd.f32 0.0, %v3516
      %v3518 = vpop.f32.mrb[0].mxu0
      %v3519 = vpop.f32.mrb[0].mxu0
      %v3520 = vadd.f32 0.0, %v3519
      %v3521 = vpop.f32.mrb[0].mxu0
      %3522 = vmatprep.mubr.bf16.mxu0 0
      %3523 = vmatmul.mubr.bf16.gmra.mrb[0].mxu0 %v768
      %v3524 = vpop.f32.mrb[0].mxu0
      %v3525 = vadd.f32 0.0, %v3524
      %v3526 = vpop.f32.mrb[0].mxu0
      %v3527 = vpop.f32.mrb[0].mxu0
      %v3528 = vadd.f32 0.0, %v3527
      %v3529 = vpop.f32.mrb[0].mxu0
      %3530 = vmatprep.mubr.bf16.mxu0 0
      %3531 = vmatmul.mubr.bf16.gmra.mrb[0].mxu0 %v769
      %v3532 = vpop.f32.mrb[0].mxu0
      %v3533 = vadd.f32 0.0, %v3532
      %v3534 = vpop.f32.mrb[0].mxu0
      %v3535 = vpop.f32.mrb[0].mxu0
      %v3536 = vadd.f32 0.0, %v3535
      %v3537 = vpop.f32.mrb[0].mxu0
      %3538 = vmatprep.mubr.bf16.mxu0 0
      %3539 = vmatmul.mubr.bf16.gmra.mrb[0].mxu0 %v770
      %v3540 = vpop.f32.mrb[0].mxu0
      %v3541 = vadd.f32 0.0, %v3540
      %v3542 = vpop.f32.mrb[0].mxu0
      %v3543 = vpop.f32.mrb[0].mxu0
      %v3544 = vadd.f32 0.0, %v3543
      %v3545 = vpop.f32.mrb[0].mxu0
      %3546 = vmatprep.mubr.bf16.mxu0 0
      %3547 = vmatmul.mubr.bf16.gmra.mrb[0].mxu0 %v771
      %v3548 = vpop.f32.mrb[0].mxu0
      %v3549 = vadd.f32 0.0, %v3548
      %v3550 = vpop.f32.mrb[0].mxu0
      %v3551 = vpop.f32.mrb[0].mxu0
      %v3552 = vadd.f32 0.0, %v3551
      %v3553 = vpop.f32.mrb[0].mxu0
      %3554 = vmatprep.mubr.bf16.mxu0 0
      %3555 = vmatmul.mubr.bf16.gmra.mrb[0].mxu0 %v772
      %v3556 = vpop.f32.mrb[0].mxu0
      %v3557 = vadd.f32 0.0, %v3556
      %v3558 = vpop.f32.mrb[0].mxu0
      %v3559 = vpop.f32.mrb[0].mxu0
      %v3560 = vadd.f32 0.0, %v3559
      %v3561 = vpop.f32.mrb[0].mxu0
      %3562 = vmatprep.mubr.bf16.mxu0 0
      %3563 = vmatmul.mubr.bf16.gmra.mrb[0].mxu0 %v773
      %v3564 = vpop.f32.mrb[0].mxu0
      %v3565 = vadd.f32 0.0, %v3564
      %v3566 = vpop.f32.mrb[0].mxu0
      %v3567 = vpop.f32.mrb[0].mxu0
      %v3568 = vadd.f32 0.0, %v3567
      %v3569 = vpop.f32.mrb[0].mxu0
      %3570 = vmatprep.mubr.bf16.mxu0 0
      %3571 = vmatmul.mubr.bf16.gmra.mrb[0].mxu0 %v774
      %v3572 = vpop.f32.mrb[0].mxu0
      %v3573 = vadd.f32 0.0, %v3572
      %v3574 = vpop.f32.mrb[0].mxu0
      %v3575 = vpop.f32.mrb[0].mxu0
      %v3576 = vadd.f32 0.0, %v3575
      %v3577 = vpop.f32.mrb[0].mxu0
      %3578 = vmatprep.mubr.bf16.mxu0 0
      %3579 = vmatmul.mubr.bf16.gmra.mrb[0].mxu0 %v775
      %v3580 = vpop.f32.mrb[0].mxu0
      %v3581 = vadd.f32 0.0, %v3580
      %v3582 = vpop.f32.mrb[0].mxu0
      %v3583 = vpop.f32.mrb[0].mxu0
      %v3584 = vadd.f32 0.0, %v3583
      %v3585 = vpop.f32.mrb[0].mxu0
      %3586 = vmatprep.mubr.bf16.mxu0 0
      %3587 = vmatmul.mubr.bf16.gmra.mrb[0].mxu0 %v776
      %v3588 = vpop.f32.mrb[0].mxu0
      %v3589 = vadd.f32 0.0, %v3588
      %v3590 = vpop.f32.mrb[0].mxu0
      %v3591 = vpop.f32.mrb[0].mxu0
      %v3592 = vadd.f32 0.0, %v3591
      %v3593 = vpop.f32.mrb[0].mxu0
      %3594 = vmatprep.mubr.bf16.mxu0 0
      %3595 = vmatmul.mubr.bf16.gmra.mrb[0].mxu0 %v777
      %v3596 = vpop.f32.mrb[0].mxu0
      %v3597 = vadd.f32 0.0, %v3596
      %v3598 = vpop.f32.mrb[0].mxu0
      %v3599 = vpop.f32.mrb[0].mxu0
      %v3600 = vadd.f32 0.0, %v3599
      %v3601 = vpop.f32.mrb[0].mxu0
      %3602 = vmatprep.mubr.bf16.mxu0 0
      %3603 = vmatmul.mubr.bf16.gmra.mrb[0].mxu0 %v778
      %v3604 = vpop.f32.mrb[0].mxu0
      %v3605 = vadd.f32 0.0, %v3604
      %v3606 = vpop.f32.mrb[0].mxu0
      %v3607 = vpop.f32.mrb[0].mxu0
      %v3608 = vadd.f32 0.0, %v3607
      %v3609 = vpop.f32.mrb[0].mxu0
      %3610 = vmatprep.mubr.bf16.mxu0 0
      %3611 = vmatmul.mubr.bf16.gmra.mrb[0].mxu0 %v779
      %v3612 = vpop.f32.mrb[0].mxu0
      %v3613 = vadd.f32 0.0, %v3612
      %v3614 = vpop.f32.mrb[0].mxu0
      %v3615 = vpop.f32.mrb[0].mxu0
      %v3616 = vadd.f32 0.0, %v3615
      %v3617 = vpop.f32.mrb[0].mxu0
      %3618 = vmatprep.mubr.bf16.mxu0 0
      %3619 = vmatmul.mubr.bf16.gmra.mrb[0].mxu0 %v780
      %v3620 = vpop.f32.mrb[0].mxu0
      %v3621 = vadd.f32 0.0, %v3620
      %v3622 = vpop.f32.mrb[0].mxu0
      %v3623 = vpop.f32.mrb[0].mxu0
      %v3624 = vadd.f32 0.0, %v3623
      %v3625 = vpop.f32.mrb[0].mxu0
      %3626 = vmatprep.mubr.bf16.mxu0 0
      %3627 = vmatmul.mubr.bf16.gmra.mrb[0].mxu0 %v781
      %v3628 = vpop.f32.mrb[0].mxu0
      %v3629 = vadd.f32 0.0, %v3628
      %v3630 = vpop.f32.mrb[0].mxu0
      %v3631 = vpop.f32.mrb[0].mxu0
      %v3632 = vadd.f32 0.0, %v3631
      %v3633 = vpop.f32.mrb[0].mxu0
      %3634 = vmatprep.mubr.bf16.mxu0 0
      %3635 = vmatmul.mubr.bf16.gmra.mrb[0].mxu0 %v782
      %v3636 = vpop.f32.mrb[0].mxu0
      %v3637 = vadd.f32 0.0, %v3636
      %v3638 = vpop.f32.mrb[0].mxu0
      %v3639 = vpop.f32.mrb[0].mxu0
      %v3640 = vadd.f32 0.0, %v3639
      %v3641 = vpop.f32.mrb[0].mxu0
      %3642 = vmatprep.mubr.bf16.mxu0 0
      %3643 = vmatmul.mubr.bf16.gmra.mrb[0].mxu0 %v783
      %v3644 = vpop.f32.mrb[0].mxu0
      %v3645 = vadd.f32 0.0, %v3644
      %v3646 = vpop.f32.mrb[0].mxu0
      %v3647 = vpop.f32.mrb[0].mxu0
      %v3648 = vadd.f32 0.0, %v3647
      %v3649 = vpop.f32.mrb[0].mxu0
      %3650 = vmatprep.mubr.bf16.mxu0 0
      %3651 = vmatmul.mubr.bf16.gmra.mrb[0].mxu0 %v784
      %v3652 = vpop.f32.mrb[0].mxu0
      %v3653 = vadd.f32 0.0, %v3652
      %v3654 = vpop.f32.mrb[0].mxu0
      %v3655 = vpop.f32.mrb[0].mxu0
      %v3656 = vadd.f32 0.0, %v3655
      %v3657 = vpop.f32.mrb[0].mxu0
      %3658 = vmatprep.mubr.bf16.mxu0 0
      %3659 = vmatmul.mubr.bf16.gmra.mrb[0].mxu0 %v785
      %v3660 = vpop.f32.mrb[0].mxu0
      %v3661 = vadd.f32 0.0, %v3660
      %v3662 = vpop.f32.mrb[0].mxu0
      %v3663 = vpop.f32.mrb[0].mxu0
      %v3664 = vadd.f32 0.0, %v3663
      %v3665 = vpop.f32.mrb[0].mxu0
      %3666 = vmatprep.mubr.bf16.mxu0 0
      %3667 = vmatmul.mubr.bf16.gmra.mrb[0].mxu0 %v786
      %v3668 = vpop.f32.mrb[0].mxu0
      %v3669 = vadd.f32 0.0, %v3668
      %v3670 = vpop.f32.mrb[0].mxu0
      %v3671 = vpop.f32.mrb[0].mxu0
      %v3672 = vadd.f32 0.0, %v3671
      %v3673 = vpop.f32.mrb[0].mxu0
      %3674 = vmatprep.mubr.bf16.mxu0 0
      %3675 = vmatmul.mubr.bf16.gmra.mrb[0].mxu0 %v787
      %v3676 = vpop.f32.mrb[0].mxu0
      %v3677 = vadd.f32 0.0, %v3676
      %v3678 = vpop.f32.mrb[0].mxu0
      %v3679 = vpop.f32.mrb[0].mxu0
      %v3680 = vadd.f32 0.0, %v3679
      %v3681 = vpop.f32.mrb[0].mxu0
      %3682 = vdwg.mxu0
      %v3683 = vadd.f32 %v1966, %v3429
      %v3684 = vadd.f32 %v1969, %v3432
      %v3685 = vadd.f32 %v1974, %v3437
      %v3686 = vadd.f32 %v1977, %v3440
      %v3687 = vadd.f32 %v1982, %v3445
      %v3688 = vadd.f32 %v1985, %v3448
      %v3689 = vadd.f32 %v1990, %v3453
      %v3690 = vadd.f32 %v1993, %v3456
      %v3691 = vadd.f32 %v1998, %v3461
      %v3692 = vadd.f32 %v2001, %v3464
      %v3693 = vadd.f32 %v2006, %v3469
      %v3694 = vadd.f32 %v2009, %v3472
      %v3695 = vadd.f32 %v2014, %v3477
      %v3696 = vadd.f32 %v2017, %v3480
      %v3697 = vadd.f32 %v2022, %v3485
      %v3698 = vadd.f32 %v2025, %v3488
      %v3699 = vadd.f32 %v2030, %v3493
      %v3700 = vadd.f32 %v2033, %v3496
      %v3701 = vadd.f32 %v2038, %v3501
      %v3702 = vadd.f32 %v2041, %v3504
      %v3703 = vadd.f32 %v2046, %v3509
      %v3704 = vadd.f32 %v2049, %v3512
      %v3705 = vadd.f32 %v2054, %v3517
      %v3706 = vadd.f32 %v2057, %v3520
      %v3707 = vadd.f32 %v2062, %v3525
      %v3708 = vadd.f32 %v2065, %v3528
      %v3709 = vadd.f32 %v2070, %v3533
      %v3710 = vadd.f32 %v2073, %v3536
      %v3711 = vadd.f32 %v2078, %v3541
      %v3712 = vadd.f32 %v2081, %v3544
      %v3713 = vadd.f32 %v2086, %v3549
      %v3714 = vadd.f32 %v2089, %v3552
      %v3715 = vadd.f32 %v2094, %v3557
      %v3716 = vadd.f32 %v2097, %v3560
      %v3717 = vadd.f32 %v2102, %v3565
      %v3718 = vadd.f32 %v2105, %v3568
      %v3719 = vadd.f32 %v2110, %v3573
      %v3720 = vadd.f32 %v2113, %v3576
      %v3721 = vadd.f32 %v2118, %v3581
      %v3722 = vadd.f32 %v2121, %v3584
      %v3723 = vadd.f32 %v2126, %v3589
      %v3724 = vadd.f32 %v2129, %v3592
      %v3725 = vadd.f32 %v2134, %v3597
      %v3726 = vadd.f32 %v2137, %v3600
      %v3727 = vadd.f32 %v2142, %v3605
      %v3728 = vadd.f32 %v2145, %v3608
      %v3729 = vadd.f32 %v2150, %v3613
      %v3730 = vadd.f32 %v2153, %v3616
      %v3731 = vadd.f32 %v2158, %v3621
      %v3732 = vadd.f32 %v2161, %v3624
      %v3733 = vadd.f32 %v2166, %v3629
      %v3734 = vadd.f32 %v2169, %v3632
      %v3735 = vadd.f32 %v2174, %v3637
      %v3736 = vadd.f32 %v2177, %v3640
      %v3737 = vadd.f32 %v2182, %v3645
      %v3738 = vadd.f32 %v2185, %v3648
      %v3739 = vadd.f32 %v2190, %v3653
      %v3740 = vadd.f32 %v2193, %v3656
      %v3741 = vadd.f32 %v2198, %v3661
      %v3742 = vadd.f32 %v2201, %v3664
      %v3743 = vadd.f32 %v2206, %v3669
      %v3744 = vadd.f32 %v2209, %v3672
      %v3745 = vadd.f32 %v2214, %v3677
      %v3746 = vadd.f32 %v2217, %v3680
      %s3747 = scalar_lea.vmem %s1, 512
      %v3748 = vld [vmem:[%s3747] sm:$0xf]
      %v3749 = vld [vmem:[%s3747 + $0x4] sm:$0xf]
      %v3750 = vld [vmem:[%s3747 + $0x8] sm:$0xf]
      %v3751 = vld [vmem:[%s3747 + $0xc] sm:$0xf]
      %v3752 = vld [vmem:[%s3747 + $0x10] sm:$0xf]
      %v3753 = vld [vmem:[%s3747 + $0x14] sm:$0xf]
      %v3754 = vld [vmem:[%s3747 + $0x18] sm:$0xf]
      %v3755 = vld [vmem:[%s3747 + $0x1c] sm:$0xf]
      %v3756 = vld [vmem:[%s3747 + $0x20] sm:$0xf]
      %v3757 = vld [vmem:[%s3747 + $0x24] sm:$0xf]
      %v3758 = vld [vmem:[%s3747 + $0x28] sm:$0xf]
      %v3759 = vld [vmem:[%s3747 + $0x2c] sm:$0xf]
      %v3760 = vld [vmem:[%s3747 + $0x30] sm:$0xf]
      %v3761 = vld [vmem:[%s3747 + $0x34] sm:$0xf]
      %v3762 = vld [vmem:[%s3747 + $0x38] sm:$0xf]
      %v3763 = vld [vmem:[%s3747 + $0x3c] sm:$0xf]
      %v3780 = vunpack.c.l.b16 %v3748
      %v3781 = vunpack.c.l.b16 %v3749
      %v3782 = vunpack.c.l.b16 %v3750
      %v3783 = vunpack.c.l.b16 %v3751
      %v3784 = vunpack.c.l.b16 %v3752
      %v3785 = vunpack.c.l.b16 %v3753
      %v3786 = vunpack.c.l.b16 %v3754
      %v3787 = vunpack.c.l.b16 %v3755
      %v3788 = vunpack.c.l.b16 %v3756
      %v3789 = vunpack.c.l.b16 %v3757
      %v3790 = vunpack.c.l.b16 %v3758
      %v3791 = vunpack.c.l.b16 %v3759
      %v3792 = vunpack.c.l.b16 %v3760
      %v3793 = vunpack.c.l.b16 %v3761
      %v3794 = vunpack.c.l.b16 %v3762
      %v3795 = vunpack.c.l.b16 %v3763
      %v3796 = vpack.c.b16 %v3781, %v3780
      %v3797 = vpack.c.b16 %v3783, %v3782
      %v3798 = vpack.c.b16 %v3785, %v3784
      %v3799 = vpack.c.b16 %v3787, %v3786
      %v3800 = vpack.c.b16 %v3789, %v3788
      %v3801 = vpack.c.b16 %v3791, %v3790
      %v3802 = vpack.c.b16 %v3793, %v3792
      %v3803 = vpack.c.b16 %v3795, %v3794
      %3812 = vmatprep.subr.bf16.mxu0 0
      %3813 = vmatpush1.bf16.msra.mxu0 %v3796
      %3814 = vmatprep.subr.bf16.mxu0 0
      %3815 = vmatpush1.bf16.msra.mxu0 %v3797
      %3816 = vmatprep.subr.bf16.mxu0 0
      %3817 = vmatpush1.bf16.msra.mxu0 %v3798
      %3818 = vmatprep.subr.bf16.mxu0 0
      %3819 = vmatpush1.bf16.msra.mxu0 %v3799
      %3820 = vmatprep.subr.bf16.mxu0 0
      %3821 = vmatpush1.bf16.msra.mxu0 %v3800
      %3822 = vmatprep.subr.bf16.mxu0 0
      %3823 = vmatpush1.bf16.msra.mxu0 %v3801
      %3824 = vmatprep.subr.bf16.mxu0 0
      %3825 = vmatpush1.bf16.msra.mxu0 %v3802
      %3826 = vmatprep.subr.bf16.mxu0 0
      %3827 = vmatpush1.bf16.msra.mxu0 %v3803
      %3828 = vmatprep.subr.bf16.mxu0 0
      %3829 = vmatpush1.bf16.msra.mxu0 0
      %3830 = vmatprep.subr.bf16.mxu0 0
      %3831 = vmatpush1.bf16.msra.mxu0 0
      %3832 = vmatprep.subr.bf16.mxu0 0
      %3833 = vmatpush1.bf16.msra.mxu0 0
      %3834 = vmatprep.subr.bf16.mxu0 0
      %3835 = vmatpush1.bf16.msra.mxu0 0
      %3836 = vmatprep.subr.bf16.mxu0 0
      %3837 = vmatpush1.bf16.msra.mxu0 0
      %3838 = vmatprep.subr.bf16.mxu0 0
      %3839 = vmatpush1.bf16.msra.mxu0 0
      %3840 = vmatprep.subr.bf16.mxu0 0
      %3841 = vmatpush1.bf16.msra.mxu0 0
      %3842 = vmatprep.subr.bf16.mxu0 0
      %3843 = vmatpush1.bf16.msra.mxu0 0
      %3844 = vmatprep.mubr.bf16.mxu0 0
      %3845 = vmatmul.mubr.bf16.gmra.mrb[0].mxu0 %v756
      %v3846 = vpop.f32.mrb[0].mxu0
      %v3847 = vadd.f32 0.0, %v3846
      %v3848 = vpop.f32.mrb[0].mxu0
      %v3849 = vpop.f32.mrb[0].mxu0
      %v3850 = vadd.f32 0.0, %v3849
      %v3851 = vpop.f32.mrb[0].mxu0
      %3852 = vmatprep.mubr.bf16.mxu0 0
      %3853 = vmatmul.mubr.bf16.gmra.mrb[0].mxu0 %v757
      %v3854 = vpop.f32.mrb[0].mxu0
      %v3855 = vadd.f32 0.0, %v3854
      %v3856 = vpop.f32.mrb[0].mxu0
      %v3857 = vpop.f32.mrb[0].mxu0
      %v3858 = vadd.f32 0.0, %v3857
      %v3859 = vpop.f32.mrb[0].mxu0
      %3860 = vmatprep.mubr.bf16.mxu0 0
      %3861 = vmatmul.mubr.bf16.gmra.mrb[0].mxu0 %v758
      %v3862 = vpop.f32.mrb[0].mxu0
      %v3863 = vadd.f32 0.0, %v3862
      %v3864 = vpop.f32.mrb[0].mxu0
      %v3865 = vpop.f32.mrb[0].mxu0
      %v3866 = vadd.f32 0.0, %v3865
      %v3867 = vpop.f32.mrb[0].mxu0
      %3868 = vmatprep.mubr.bf16.mxu0 0
      %3869 = vmatmul.mubr.bf16.gmra.mrb[0].mxu0 %v759
      %v3870 = vpop.f32.mrb[0].mxu0
      %v3871 = vadd.f32 0.0, %v3870
      %v3872 = vpop.f32.mrb[0].mxu0
      %v3873 = vpop.f32.mrb[0].mxu0
      %v3874 = vadd.f32 0.0, %v3873
      %v3875 = vpop.f32.mrb[0].mxu0
      %3876 = vmatprep.mubr.bf16.mxu0 0
      %3877 = vmatmul.mubr.bf16.gmra.mrb[0].mxu0 %v760
      %v3878 = vpop.f32.mrb[0].mxu0
      %v3879 = vadd.f32 0.0, %v3878
      %v3880 = vpop.f32.mrb[0].mxu0
      %v3881 = vpop.f32.mrb[0].mxu0
      %v3882 = vadd.f32 0.0, %v3881
      %v3883 = vpop.f32.mrb[0].mxu0
      %3884 = vmatprep.mubr.bf16.mxu0 0
      %3885 = vmatmul.mubr.bf16.gmra.mrb[0].mxu0 %v761
      %v3886 = vpop.f32.mrb[0].mxu0
      %v3887 = vadd.f32 0.0, %v3886
      %v3888 = vpop.f32.mrb[0].mxu0
      %v3889 = vpop.f32.mrb[0].mxu0
      %v3890 = vadd.f32 0.0, %v3889
      %v3891 = vpop.f32.mrb[0].mxu0
      %3892 = vmatprep.mubr.bf16.mxu0 0
      %3893 = vmatmul.mubr.bf16.gmra.mrb[0].mxu0 %v762
      %v3894 = vpop.f32.mrb[0].mxu0
      %v3895 = vadd.f32 0.0, %v3894
      %v3896 = vpop.f32.mrb[0].mxu0
      %v3897 = vpop.f32.mrb[0].mxu0
      %v3898 = vadd.f32 0.0, %v3897
      %v3899 = vpop.f32.mrb[0].mxu0
      %3900 = vmatprep.mubr.bf16.mxu0 0
      %3901 = vmatmul.mubr.bf16.gmra.mrb[0].mxu0 %v763
      %v3902 = vpop.f32.mrb[0].mxu0
      %v3903 = vadd.f32 0.0, %v3902
      %v3904 = vpop.f32.mrb[0].mxu0
      %v3905 = vpop.f32.mrb[0].mxu0
      %v3906 = vadd.f32 0.0, %v3905
      %v3907 = vpop.f32.mrb[0].mxu0
      %3908 = vmatprep.mubr.bf16.mxu0 0
      %3909 = vmatmul.mubr.bf16.gmra.mrb[0].mxu0 %v764
      %v3910 = vpop.f32.mrb[0].mxu0
      %v3911 = vadd.f32 0.0, %v3910
      %v3912 = vpop.f32.mrb[0].mxu0
      %v3913 = vpop.f32.mrb[0].mxu0
      %v3914 = vadd.f32 0.0, %v3913
      %v3915 = vpop.f32.mrb[0].mxu0
      %3916 = vmatprep.mubr.bf16.mxu0 0
      %3917 = vmatmul.mubr.bf16.gmra.mrb[0].mxu0 %v765
      %v3918 = vpop.f32.mrb[0].mxu0
      %v3919 = vadd.f32 0.0, %v3918
      %v3920 = vpop.f32.mrb[0].mxu0
      %v3921 = vpop.f32.mrb[0].mxu0
      %v3922 = vadd.f32 0.0, %v3921
      %v3923 = vpop.f32.mrb[0].mxu0
      %3924 = vmatprep.mubr.bf16.mxu0 0
      %3925 = vmatmul.mubr.bf16.gmra.mrb[0].mxu0 %v766
      %v3926 = vpop.f32.mrb[0].mxu0
      %v3927 = vadd.f32 0.0, %v3926
      %v3928 = vpop.f32.mrb[0].mxu0
      %v3929 = vpop.f32.mrb[0].mxu0
      %v3930 = vadd.f32 0.0, %v3929
      %v3931 = vpop.f32.mrb[0].mxu0
      %3932 = vmatprep.mubr.bf16.mxu0 0
      %3933 = vmatmul.mubr.bf16.gmra.mrb[0].mxu0 %v767
      %v3934 = vpop.f32.mrb[0].mxu0
      %v3935 = vadd.f32 0.0, %v3934
      %v3936 = vpop.f32.mrb[0].mxu0
      %v3937 = vpop.f32.mrb[0].mxu0
      %v3938 = vadd.f32 0.0, %v3937
      %v3939 = vpop.f32.mrb[0].mxu0
      %3940 = vmatprep.mubr.bf16.mxu0 0
      %3941 = vmatmul.mubr.bf16.gmra.mrb[0].mxu0 %v768
      %v3942 = vpop.f32.mrb[0].mxu0
      %v3943 = vadd.f32 0.0, %v3942
      %v3944 = vpop.f32.mrb[0].mxu0
      %v3945 = vpop.f32.mrb[0].mxu0
      %v3946 = vadd.f32 0.0, %v3945
      %v3947 = vpop.f32.mrb[0].mxu0
      %3948 = vmatprep.mubr.bf16.mxu0 0
      %3949 = vmatmul.mubr.bf16.gmra.mrb[0].mxu0 %v769
      %v3950 = vpop.f32.mrb[0].mxu0
      %v3951 = vadd.f32 0.0, %v3950
      %v3952 = vpop.f32.mrb[0].mxu0
      %v3953 = vpop.f32.mrb[0].mxu0
      %v3954 = vadd.f32 0.0, %v3953
      %v3955 = vpop.f32.mrb[0].mxu0
      %3956 = vmatprep.mubr.bf16.mxu0 0
      %3957 = vmatmul.mubr.bf16.gmra.mrb[0].mxu0 %v770
      %v3958 = vpop.f32.mrb[0].mxu0
      %v3959 = vadd.f32 0.0, %v3958
      %v3960 = vpop.f32.mrb[0].mxu0
      %v3961 = vpop.f32.mrb[0].mxu0
      %v3962 = vadd.f32 0.0, %v3961
      %v3963 = vpop.f32.mrb[0].mxu0
      %3964 = vmatprep.mubr.bf16.mxu0 0
      %3965 = vmatmul.mubr.bf16.gmra.mrb[0].mxu0 %v771
      %v3966 = vpop.f32.mrb[0].mxu0
      %v3967 = vadd.f32 0.0, %v3966
      %v3968 = vpop.f32.mrb[0].mxu0
      %v3969 = vpop.f32.mrb[0].mxu0
      %v3970 = vadd.f32 0.0, %v3969
      %v3971 = vpop.f32.mrb[0].mxu0
      %3972 = vmatprep.mubr.bf16.mxu0 0
      %3973 = vmatmul.mubr.bf16.gmra.mrb[0].mxu0 %v772
      %v3974 = vpop.f32.mrb[0].mxu0
      %v3975 = vadd.f32 0.0, %v3974
      %v3976 = vpop.f32.mrb[0].mxu0
      %v3977 = vpop.f32.mrb[0].mxu0
      %v3978 = vadd.f32 0.0, %v3977
      %v3979 = vpop.f32.mrb[0].mxu0
      %3980 = vmatprep.mubr.bf16.mxu0 0
      %3981 = vmatmul.mubr.bf16.gmra.mrb[0].mxu0 %v773
      %v3982 = vpop.f32.mrb[0].mxu0
      %v3983 = vadd.f32 0.0, %v3982
      %v3984 = vpop.f32.mrb[0].mxu0
      %v3985 = vpop.f32.mrb[0].mxu0
      %v3986 = vadd.f32 0.0, %v3985
      %v3987 = vpop.f32.mrb[0].mxu0
      %3988 = vmatprep.mubr.bf16.mxu0 0
      %3989 = vmatmul.mubr.bf16.gmra.mrb[0].mxu0 %v774
      %v3990 = vpop.f32.mrb[0].mxu0
      %v3991 = vadd.f32 0.0, %v3990
      %v3992 = vpop.f32.mrb[0].mxu0
      %v3993 = vpop.f32.mrb[0].mxu0
      %v3994 = vadd.f32 0.0, %v3993
      %v3995 = vpop.f32.mrb[0].mxu0
      %3996 = vmatprep.mubr.bf16.mxu0 0
      %3997 = vmatmul.mubr.bf16.gmra.mrb[0].mxu0 %v775
      %v3998 = vpop.f32.mrb[0].mxu0
      %v3999 = vadd.f32 0.0, %v3998
      %v4000 = vpop.f32.mrb[0].mxu0
      %v4001 = vpop.f32.mrb[0].mxu0
      %v4002 = vadd.f32 0.0, %v4001
      %v4003 = vpop.f32.mrb[0].mxu0
      %4004 = vmatprep.mubr.bf16.mxu0 0
      %4005 = vmatmul.mubr.bf16.gmra.mrb[0].mxu0 %v776
      %v4006 = vpop.f32.mrb[0].mxu0
      %v4007 = vadd.f32 0.0, %v4006
      %v4008 = vpop.f32.mrb[0].mxu0
      %v4009 = vpop.f32.mrb[0].mxu0
      %v4010 = vadd.f32 0.0, %v4009
      %v4011 = vpop.f32.mrb[0].mxu0
      %4012 = vmatprep.mubr.bf16.mxu0 0
      %4013 = vmatmul.mubr.bf16.gmra.mrb[0].mxu0 %v777
      %v4014 = vpop.f32.mrb[0].mxu0
      %v4015 = vadd.f32 0.0, %v4014
      %v4016 = vpop.f32.mrb[0].mxu0
      %v4017 = vpop.f32.mrb[0].mxu0
      %v4018 = vadd.f32 0.0, %v4017
      %v4019 = vpop.f32.mrb[0].mxu0
      %4020 = vmatprep.mubr.bf16.mxu0 0
      %4021 = vmatmul.mubr.bf16.gmra.mrb[0].mxu0 %v778
      %v4022 = vpop.f32.mrb[0].mxu0
      %v4023 = vadd.f32 0.0, %v4022
      %v4024 = vpop.f32.mrb[0].mxu0
      %v4025 = vpop.f32.mrb[0].mxu0
      %v4026 = vadd.f32 0.0, %v4025
      %v4027 = vpop.f32.mrb[0].mxu0
      %4028 = vmatprep.mubr.bf16.mxu0 0
      %4029 = vmatmul.mubr.bf16.gmra.mrb[0].mxu0 %v779
      %v4030 = vpop.f32.mrb[0].mxu0
      %v4031 = vadd.f32 0.0, %v4030
      %v4032 = vpop.f32.mrb[0].mxu0
      %v4033 = vpop.f32.mrb[0].mxu0
      %v4034 = vadd.f32 0.0, %v4033
      %v4035 = vpop.f32.mrb[0].mxu0
      %4036 = vmatprep.mubr.bf16.mxu0 0
      %4037 = vmatmul.mubr.bf16.gmra.mrb[0].mxu0 %v780
      %v4038 = vpop.f32.mrb[0].mxu0
      %v4039 = vadd.f32 0.0, %v4038
      %v4040 = vpop.f32.mrb[0].mxu0
      %v4041 = vpop.f32.mrb[0].mxu0
      %v4042 = vadd.f32 0.0, %v4041
      %v4043 = vpop.f32.mrb[0].mxu0
      %4044 = vmatprep.mubr.bf16.mxu0 0
      %4045 = vmatmul.mubr.bf16.gmra.mrb[0].mxu0 %v781
      %v4046 = vpop.f32.mrb[0].mxu0
      %v4047 = vadd.f32 0.0, %v4046
      %v4048 = vpop.f32.mrb[0].mxu0
      %v4049 = vpop.f32.mrb[0].mxu0
      %v4050 = vadd.f32 0.0, %v4049
      %v4051 = vpop.f32.mrb[0].mxu0
      %4052 = vmatprep.mubr.bf16.mxu0 0
      %4053 = vmatmul.mubr.bf16.gmra.mrb[0].mxu0 %v782
      %v4054 = vpop.f32.mrb[0].mxu0
      %v4055 = vadd.f32 0.0, %v4054
      %v4056 = vpop.f32.mrb[0].mxu0
      %v4057 = vpop.f32.mrb[0].mxu0
      %v4058 = vadd.f32 0.0, %v4057
      %v4059 = vpop.f32.mrb[0].mxu0
      %4060 = vmatprep.mubr.bf16.mxu0 0
      %4061 = vmatmul.mubr.bf16.gmra.mrb[0].mxu0 %v783
      %v4062 = vpop.f32.mrb[0].mxu0
      %v4063 = vadd.f32 0.0, %v4062
      %v4064 = vpop.f32.mrb[0].mxu0
      %v4065 = vpop.f32.mrb[0].mxu0
      %v4066 = vadd.f32 0.0, %v4065
      %v4067 = vpop.f32.mrb[0].mxu0
      %4068 = vmatprep.mubr.bf16.mxu0 0
      %4069 = vmatmul.mubr.bf16.gmra.mrb[0].mxu0 %v784
      %v4070 = vpop.f32.mrb[0].mxu0
      %v4071 = vadd.f32 0.0, %v4070
      %v4072 = vpop.f32.mrb[0].mxu0
      %v4073 = vpop.f32.mrb[0].mxu0
      %v4074 = vadd.f32 0.0, %v4073
      %v4075 = vpop.f32.mrb[0].mxu0
      %4076 = vmatprep.mubr.bf16.mxu0 0
      %4077 = vmatmul.mubr.bf16.gmra.mrb[0].mxu0 %v785
      %v4078 = vpop.f32.mrb[0].mxu0
      %v4079 = vadd.f32 0.0, %v4078
      %v4080 = vpop.f32.mrb[0].mxu0
      %v4081 = vpop.f32.mrb[0].mxu0
      %v4082 = vadd.f32 0.0, %v4081
      %v4083 = vpop.f32.mrb[0].mxu0
      %4084 = vmatprep.mubr.bf16.mxu0 0
      %4085 = vmatmul.mubr.bf16.gmra.mrb[0].mxu0 %v786
      %v4086 = vpop.f32.mrb[0].mxu0
      %v4087 = vadd.f32 0.0, %v4086
      %v4088 = vpop.f32.mrb[0].mxu0
      %v4089 = vpop.f32.mrb[0].mxu0
      %v4090 = vadd.f32 0.0, %v4089
      %v4091 = vpop.f32.mrb[0].mxu0
      %4092 = vmatprep.mubr.bf16.mxu0 0
      %4093 = vmatmul.mubr.bf16.gmra.mrb[0].mxu0 %v787
      %v4094 = vpop.f32.mrb[0].mxu0
      %v4095 = vadd.f32 0.0, %v4094
      %v4096 = vpop.f32.mrb[0].mxu0
      %v4097 = vpop.f32.mrb[0].mxu0
      %v4098 = vadd.f32 0.0, %v4097
      %v4099 = vpop.f32.mrb[0].mxu0
      %4100 = vdwg.mxu0
      %v4101 = vadd.f32 %v2657, %v3847
      %v4102 = vadd.f32 %v2660, %v3850
      %v4103 = vadd.f32 %v2665, %v3855
      %v4104 = vadd.f32 %v2668, %v3858
      %v4105 = vadd.f32 %v2673, %v3863
      %v4106 = vadd.f32 %v2676, %v3866
      %v4107 = vadd.f32 %v2681, %v3871
      %v4108 = vadd.f32 %v2684, %v3874
      %v4109 = vadd.f32 %v2689, %v3879
      %v4110 = vadd.f32 %v2692, %v3882
      %v4111 = vadd.f32 %v2697, %v3887
      %v4112 = vadd.f32 %v2700, %v3890
      %v4113 = vadd.f32 %v2705, %v3895
      %v4114 = vadd.f32 %v2708, %v3898
      %v4115 = vadd.f32 %v2713, %v3903
      %v4116 = vadd.f32 %v2716, %v3906
      %v4117 = vadd.f32 %v2721, %v3911
      %v4118 = vadd.f32 %v2724, %v3914
      %v4119 = vadd.f32 %v2729, %v3919
      %v4120 = vadd.f32 %v2732, %v3922
      %v4121 = vadd.f32 %v2737, %v3927
      %v4122 = vadd.f32 %v2740, %v3930
      %v4123 = vadd.f32 %v2745, %v3935
      %v4124 = vadd.f32 %v2748, %v3938
      %v4125 = vadd.f32 %v2753, %v3943
      %v4126 = vadd.f32 %v2756, %v3946
      %v4127 = vadd.f32 %v2761, %v3951
      %v4128 = vadd.f32 %v2764, %v3954
      %v4129 = vadd.f32 %v2769, %v3959
      %v4130 = vadd.f32 %v2772, %v3962
      %v4131 = vadd.f32 %v2777, %v3967
      %v4132 = vadd.f32 %v2780, %v3970
      %v4133 = vadd.f32 %v2785, %v3975
      %v4134 = vadd.f32 %v2788, %v3978
      %v4135 = vadd.f32 %v2793, %v3983
      %v4136 = vadd.f32 %v2796, %v3986
      %v4137 = vadd.f32 %v2801, %v3991
      %v4138 = vadd.f32 %v2804, %v3994
      %v4139 = vadd.f32 %v2809, %v3999
      %v4140 = vadd.f32 %v2812, %v4002
      %v4141 = vadd.f32 %v2817, %v4007
      %v4142 = vadd.f32 %v2820, %v4010
      %v4143 = vadd.f32 %v2825, %v4015
      %v4144 = vadd.f32 %v2828, %v4018
      %v4145 = vadd.f32 %v2833, %v4023
      %v4146 = vadd.f32 %v2836, %v4026
      %v4147 = vadd.f32 %v2841, %v4031
      %v4148 = vadd.f32 %v2844, %v4034
      %v4149 = vadd.f32 %v2849, %v4039
      %v4150 = vadd.f32 %v2852, %v4042
      %v4151 = vadd.f32 %v2857, %v4047
      %v4152 = vadd.f32 %v2860, %v4050
      %v4153 = vadd.f32 %v2865, %v4055
      %v4154 = vadd.f32 %v2868, %v4058
      %v4155 = vadd.f32 %v2873, %v4063
      %v4156 = vadd.f32 %v2876, %v4066
      %v4157 = vadd.f32 %v2881, %v4071
      %v4158 = vadd.f32 %v2884, %v4074
      %v4159 = vadd.f32 %v2889, %v4079
      %v4160 = vadd.f32 %v2892, %v4082
      %v4161 = vadd.f32 %v2897, %v4087
      %v4162 = vadd.f32 %v2900, %v4090
      %v4163 = vadd.f32 %v2905, %v4095
      %v4164 = vadd.f32 %v2908, %v4098
      %v4165 = vrot.slane %v3683, 1
      %v4166 = vrot.slane %v3684, 1
      %v4167 = vrot.slane %v3685, 1
      %v4168 = vrot.slane %v3686, 1
      %v4169 = vrot.slane %v3687, 1
      %v4170 = vrot.slane %v3688, 1
      %v4171 = vrot.slane %v3689, 1
      %v4172 = vrot.slane %v3690, 1
      %v4173 = vrot.slane %v3691, 1
      %v4174 = vrot.slane %v3692, 1
      %v4175 = vrot.slane %v3693, 1
      %v4176 = vrot.slane %v3694, 1
      %v4177 = vrot.slane %v3695, 1
      %v4178 = vrot.slane %v3696, 1
      %v4179 = vrot.slane %v3697, 1
      %v4180 = vrot.slane %v3698, 1
      %v4181 = vrot.slane %v3699, 1
      %v4182 = vrot.slane %v3700, 1
      %v4183 = vrot.slane %v3701, 1
      %v4184 = vrot.slane %v3702, 1
      %v4185 = vrot.slane %v3703, 1
      %v4186 = vrot.slane %v3704, 1
      %v4187 = vrot.slane %v3705, 1
      %v4188 = vrot.slane %v3706, 1
      %v4189 = vrot.slane %v3707, 1
      %v4190 = vrot.slane %v3708, 1
      %v4191 = vrot.slane %v3709, 1
      %v4192 = vrot.slane %v3710, 1
      %v4193 = vrot.slane %v3711, 1
      %v4194 = vrot.slane %v3712, 1
      %v4195 = vrot.slane %v3713, 1
      %v4196 = vrot.slane %v3714, 1
      %v4197 = vrot.slane %v3715, 1
      %v4198 = vrot.slane %v3716, 1
      %v4199 = vrot.slane %v3717, 1
      %v4200 = vrot.slane %v3718, 1
      %v4201 = vrot.slane %v3719, 1
      %v4202 = vrot.slane %v3720, 1
      %v4203 = vrot.slane %v3721, 1
      %v4204 = vrot.slane %v3722, 1
      %v4205 = vrot.slane %v3723, 1
      %v4206 = vrot.slane %v3724, 1
      %v4207 = vrot.slane %v3725, 1
      %v4208 = vrot.slane %v3726, 1
      %v4209 = vrot.slane %v3727, 1
      %v4210 = vrot.slane %v3728, 1
      %v4211 = vrot.slane %v3729, 1
      %v4212 = vrot.slane %v3730, 1
      %v4213 = vrot.slane %v3731, 1
      %v4214 = vrot.slane %v3732, 1
      %v4215 = vrot.slane %v3733, 1
      %v4216 = vrot.slane %v3734, 1
      %v4217 = vrot.slane %v3735, 1
      %v4218 = vrot.slane %v3736, 1
      %v4219 = vrot.slane %v3737, 1
      %v4220 = vrot.slane %v3738, 1
      %v4221 = vrot.slane %v3739, 1
      %v4222 = vrot.slane %v3740, 1
      %v4223 = vrot.slane %v3741, 1
      %v4224 = vrot.slane %v3742, 1
      %v4225 = vrot.slane %v3743, 1
      %v4226 = vrot.slane %v3744, 1
      %v4227 = vrot.slane %v3745, 1
      %v4228 = vrot.slane %v3746, 1
      %vm4229 = vcmp.lt.s32.totalorder %v408, 7
      %v4230 = vsel %vm4229, %v4227, %v4228
      %v4231 = vsel %vm4229, %v4226, %v4227
      %v4232 = vsel %vm4229, %v4225, %v4226
      %v4233 = vsel %vm4229, %v4224, %v4225
      %v4234 = vsel %vm4229, %v4223, %v4224
      %v4235 = vsel %vm4229, %v4222, %v4223
      %v4236 = vsel %vm4229, %v4221, %v4222
      %v4237 = vsel %vm4229, %v4220, %v4221
      %v4238 = vsel %vm4229, %v4219, %v4220
      %v4239 = vsel %vm4229, %v4218, %v4219
      %v4240 = vsel %vm4229, %v4217, %v4218
      %v4241 = vsel %vm4229, %v4216, %v4217
      %v4242 = vsel %vm4229, %v4215, %v4216
      %v4243 = vsel %vm4229, %v4214, %v4215
      %v4244 = vsel %vm4229, %v4213, %v4214
      %v4245 = vsel %vm4229, %v4212, %v4213
      %v4246 = vsel %vm4229, %v4211, %v4212
      %v4247 = vsel %vm4229, %v4210, %v4211
      %v4248 = vsel %vm4229, %v4209, %v4210
      %v4249 = vsel %vm4229, %v4208, %v4209
      %v4250 = vsel %vm4229, %v4207, %v4208
      %v4251 = vsel %vm4229, %v4206, %v4207
      %v4252 = vsel %vm4229, %v4205, %v4206
      %v4253 = vsel %vm4229, %v4204, %v4205
      %v4254 = vsel %vm4229, %v4203, %v4204
      %v4255 = vsel %vm4229, %v4202, %v4203
      %v4256 = vsel %vm4229, %v4201, %v4202
      %v4257 = vsel %vm4229, %v4200, %v4201
      %v4258 = vsel %vm4229, %v4199, %v4200
      %v4259 = vsel %vm4229, %v4198, %v4199
      %v4260 = vsel %vm4229, %v4197, %v4198
      %v4261 = vsel %vm4229, %v4196, %v4197
      %v4262 = vsel %vm4229, %v4195, %v4196
      %v4263 = vsel %vm4229, %v4194, %v4195
      %v4264 = vsel %vm4229, %v4193, %v4194
      %v4265 = vsel %vm4229, %v4192, %v4193
      %v4266 = vsel %vm4229, %v4191, %v4192
      %v4267 = vsel %vm4229, %v4190, %v4191
      %v4268 = vsel %vm4229, %v4189, %v4190
      %v4269 = vsel %vm4229, %v4188, %v4189
      %v4270 = vsel %vm4229, %v4187, %v4188
      %v4271 = vsel %vm4229, %v4186, %v4187
      %v4272 = vsel %vm4229, %v4185, %v4186
      %v4273 = vsel %vm4229, %v4184, %v4185
      %v4274 = vsel %vm4229, %v4183, %v4184
      %v4275 = vsel %vm4229, %v4182, %v4183
      %v4276 = vsel %vm4229, %v4181, %v4182
      %v4277 = vsel %vm4229, %v4180, %v4181
      %v4278 = vsel %vm4229, %v4179, %v4180
      %v4279 = vsel %vm4229, %v4178, %v4179
      %v4280 = vsel %vm4229, %v4177, %v4178
      %v4281 = vsel %vm4229, %v4176, %v4177
      %v4282 = vsel %vm4229, %v4175, %v4176
      %v4283 = vsel %vm4229, %v4174, %v4175
      %v4284 = vsel %vm4229, %v4173, %v4174
      %v4285 = vsel %vm4229, %v4172, %v4173
      %v4286 = vsel %vm4229, %v4171, %v4172
      %v4287 = vsel %vm4229, %v4170, %v4171
      %v4288 = vsel %vm4229, %v4169, %v4170
      %v4289 = vsel %vm4229, %v4168, %v4169
      %v4290 = vsel %vm4229, %v4167, %v4168
      %v4291 = vsel %vm4229, %v4166, %v4167
      %v4292 = vsel %vm4229, %v4165, %v4166
      %v4293 = vsel %vm4229, %v4228, %v4165
      %v4294 = vadd.f32 %v3265, %v4292
      %v4295 = vadd.f32 %v3266, %v4291
      %v4296 = vadd.f32 %v3267, %v4290
      %v4297 = vadd.f32 %v3268, %v4289
      %v4298 = vadd.f32 %v3269, %v4288
      %v4299 = vadd.f32 %v3270, %v4287
      %v4300 = vadd.f32 %v3271, %v4286
      %v4301 = vadd.f32 %v3272, %v4285
      %v4302 = vadd.f32 %v3273, %v4284
      %v4303 = vadd.f32 %v3274, %v4283
      %v4304 = vadd.f32 %v3275, %v4282
      %v4305 = vadd.f32 %v3276, %v4281
      %v4306 = vadd.f32 %v3277, %v4280
      %v4307 = vadd.f32 %v3278, %v4279
      %v4308 = vadd.f32 %v3279, %v4278
      %v4309 = vadd.f32 %v3280, %v4277
      %v4310 = vadd.f32 %v3281, %v4276
      %v4311 = vadd.f32 %v3282, %v4275
      %v4312 = vadd.f32 %v3283, %v4274
      %v4313 = vadd.f32 %v3284, %v4273
      %v4314 = vadd.f32 %v3285, %v4272
      %v4315 = vadd.f32 %v3286, %v4271
      %v4316 = vadd.f32 %v3287, %v4270
      %v4317 = vadd.f32 %v3288, %v4269
      %v4318 = vadd.f32 %v3289, %v4268
      %v4319 = vadd.f32 %v3290, %v4267
      %v4320 = vadd.f32 %v3291, %v4266
      %v4321 = vadd.f32 %v3292, %v4265
      %v4322 = vadd.f32 %v3293, %v4264
      %v4323 = vadd.f32 %v3294, %v4263
      %v4324 = vadd.f32 %v3295, %v4262
      %v4325 = vadd.f32 %v3296, %v4261
      %v4326 = vadd.f32 %v3297, %v4260
      %v4327 = vadd.f32 %v3298, %v4259
      %v4328 = vadd.f32 %v3299, %v4258
      %v4329 = vadd.f32 %v3300, %v4257
      %v4330 = vadd.f32 %v3301, %v4256
      %v4331 = vadd.f32 %v3302, %v4255
      %v4332 = vadd.f32 %v3303, %v4254
      %v4333 = vadd.f32 %v3304, %v4253
      %v4334 = vadd.f32 %v3305, %v4252
      %v4335 = vadd.f32 %v3306, %v4251
      %v4336 = vadd.f32 %v3307, %v4250
      %v4337 = vadd.f32 %v3308, %v4249
      %v4338 = vadd.f32 %v3309, %v4248
      %v4339 = vadd.f32 %v3310, %v4247
      %v4340 = vadd.f32 %v3311, %v4246
      %v4341 = vadd.f32 %v3312, %v4245
      %v4342 = vadd.f32 %v3313, %v4244
      %v4343 = vadd.f32 %v3314, %v4243
      %v4344 = vadd.f32 %v3315, %v4242
      %v4345 = vadd.f32 %v3316, %v4241
      %v4346 = vadd.f32 %v3317, %v4240
      %v4347 = vadd.f32 %v3318, %v4239
      %v4348 = vadd.f32 %v3319, %v4238
      %v4349 = vadd.f32 %v3320, %v4237
      %v4350 = vadd.f32 %v3321, %v4236
      %v4351 = vadd.f32 %v3322, %v4235
      %v4352 = vadd.f32 %v3323, %v4234
      %v4353 = vadd.f32 %v3324, %v4233
      %v4354 = vadd.f32 %v3325, %v4232
      %v4355 = vadd.f32 %v3326, %v4231
      %v4356 = vadd.f32 %v3327, %v4230
      %v4357 = vadd.f32 %v3328, %v4293
      %v4358 = vrot.slane %v4101, 2
      %v4359 = vrot.slane %v4102, 2
      %v4360 = vrot.slane %v4103, 2
      %v4361 = vrot.slane %v4104, 2
      %v4362 = vrot.slane %v4105, 2
      %v4363 = vrot.slane %v4106, 2
      %v4364 = vrot.slane %v4107, 2
      %v4365 = vrot.slane %v4108, 2
      %v4366 = vrot.slane %v4109, 2
      %v4367 = vrot.slane %v4110, 2
      %v4368 = vrot.slane %v4111, 2
      %v4369 = vrot.slane %v4112, 2
      %v4370 = vrot.slane %v4113, 2
      %v4371 = vrot.slane %v4114, 2
      %v4372 = vrot.slane %v4115, 2
      %v4373 = vrot.slane %v4116, 2
      %v4374 = vrot.slane %v4117, 2
      %v4375 = vrot.slane %v4118, 2
      %v4376 = vrot.slane %v4119, 2
      %v4377 = vrot.slane %v4120, 2
      %v4378 = vrot.slane %v4121, 2
      %v4379 = vrot.slane %v4122, 2
      %v4380 = vrot.slane %v4123, 2
      %v4381 = vrot.slane %v4124, 2
      %v4382 = vrot.slane %v4125, 2
      %v4383 = vrot.slane %v4126, 2
      %v4384 = vrot.slane %v4127, 2
      %v4385 = vrot.slane %v4128, 2
      %v4386 = vrot.slane %v4129, 2
      %v4387 = vrot.slane %v4130, 2
      %v4388 = vrot.slane %v4131, 2
      %v4389 = vrot.slane %v4132, 2
      %v4390 = vrot.slane %v4133, 2
      %v4391 = vrot.slane %v4134, 2
      %v4392 = vrot.slane %v4135, 2
      %v4393 = vrot.slane %v4136, 2
      %v4394 = vrot.slane %v4137, 2
      %v4395 = vrot.slane %v4138, 2
      %v4396 = vrot.slane %v4139, 2
      %v4397 = vrot.slane %v4140, 2
      %v4398 = vrot.slane %v4141, 2
      %v4399 = vrot.slane %v4142, 2
      %v4400 = vrot.slane %v4143, 2
      %v4401 = vrot.slane %v4144, 2
      %v4402 = vrot.slane %v4145, 2
      %v4403 = vrot.slane %v4146, 2
      %v4404 = vrot.slane %v4147, 2
      %v4405 = vrot.slane %v4148, 2
      %v4406 = vrot.slane %v4149, 2
      %v4407 = vrot.slane %v4150, 2
      %v4408 = vrot.slane %v4151, 2
      %v4409 = vrot.slane %v4152, 2
      %v4410 = vrot.slane %v4153, 2
      %v4411 = vrot.slane %v4154, 2
      %v4412 = vrot.slane %v4155, 2
      %v4413 = vrot.slane %v4156, 2
      %v4414 = vrot.slane %v4157, 2
      %v4415 = vrot.slane %v4158, 2
      %v4416 = vrot.slane %v4159, 2
      %v4417 = vrot.slane %v4160, 2
      %v4418 = vrot.slane %v4161, 2
      %v4419 = vrot.slane %v4162, 2
      %v4420 = vrot.slane %v4163, 2
      %v4421 = vrot.slane %v4164, 2
      %vm4422 = vcmp.lt.s32.totalorder %v408, 6
      %v4423 = vsel %vm4422, %v4420, %v4421
      %v4424 = vsel %vm4422, %v4419, %v4420
      %v4425 = vsel %vm4422, %v4418, %v4419
      %v4426 = vsel %vm4422, %v4417, %v4418
      %v4427 = vsel %vm4422, %v4416, %v4417
      %v4428 = vsel %vm4422, %v4415, %v4416
      %v4429 = vsel %vm4422, %v4414, %v4415
      %v4430 = vsel %vm4422, %v4413, %v4414
      %v4431 = vsel %vm4422, %v4412, %v4413
      %v4432 = vsel %vm4422, %v4411, %v4412
      %v4433 = vsel %vm4422, %v4410, %v4411
      %v4434 = vsel %vm4422, %v4409, %v4410
      %v4435 = vsel %vm4422, %v4408, %v4409
      %v4436 = vsel %vm4422, %v4407, %v4408
      %v4437 = vsel %vm4422, %v4406, %v4407
      %v4438 = vsel %vm4422, %v4405, %v4406
      %v4439 = vsel %vm4422, %v4404, %v4405
      %v4440 = vsel %vm4422, %v4403, %v4404
      %v4441 = vsel %vm4422, %v4402, %v4403
      %v4442 = vsel %vm4422, %v4401, %v4402
      %v4443 = vsel %vm4422, %v4400, %v4401
      %v4444 = vsel %vm4422, %v4399, %v4400
      %v4445 = vsel %vm4422, %v4398, %v4399
      %v4446 = vsel %vm4422, %v4397, %v4398
      %v4447 = vsel %vm4422, %v4396, %v4397
      %v4448 = vsel %vm4422, %v4395, %v4396
      %v4449 = vsel %vm4422, %v4394, %v4395
      %v4450 = vsel %vm4422, %v4393, %v4394
      %v4451 = vsel %vm4422, %v4392, %v4393
      %v4452 = vsel %vm4422, %v4391, %v4392
      %v4453 = vsel %vm4422, %v4390, %v4391
      %v4454 = vsel %vm4422, %v4389, %v4390
      %v4455 = vsel %vm4422, %v4388, %v4389
      %v4456 = vsel %vm4422, %v4387, %v4388
      %v4457 = vsel %vm4422, %v4386, %v4387
      %v4458 = vsel %vm4422, %v4385, %v4386
      %v4459 = vsel %vm4422, %v4384, %v4385
      %v4460 = vsel %vm4422, %v4383, %v4384
      %v4461 = vsel %vm4422, %v4382, %v4383
      %v4462 = vsel %vm4422, %v4381, %v4382
      %v4463 = vsel %vm4422, %v4380, %v4381
      %v4464 = vsel %vm4422, %v4379, %v4380
      %v4465 = vsel %vm4422, %v4378, %v4379
      %v4466 = vsel %vm4422, %v4377, %v4378
      %v4467 = vsel %vm4422, %v4376, %v4377
      %v4468 = vsel %vm4422, %v4375, %v4376
      %v4469 = vsel %vm4422, %v4374, %v4375
      %v4470 = vsel %vm4422, %v4373, %v4374
      %v4471 = vsel %vm4422, %v4372, %v4373
      %v4472 = vsel %vm4422, %v4371, %v4372
      %v4473 = vsel %vm4422, %v4370, %v4371
      %v4474 = vsel %vm4422, %v4369, %v4370
      %v4475 = vsel %vm4422, %v4368, %v4369
      %v4476 = vsel %vm4422, %v4367, %v4368
      %v4477 = vsel %vm4422, %v4366, %v4367
      %v4478 = vsel %vm4422, %v4365, %v4366
      %v4479 = vsel %vm4422, %v4364, %v4365
      %v4480 = vsel %vm4422, %v4363, %v4364
      %v4481 = vsel %vm4422, %v4362, %v4363
      %v4482 = vsel %vm4422, %v4361, %v4362
      %v4483 = vsel %vm4422, %v4360, %v4361
      %v4484 = vsel %vm4422, %v4359, %v4360
      %v4485 = vsel %vm4422, %v4358, %v4359
      %v4486 = vsel %vm4422, %v4421, %v4358
      %v4487 = vadd.f32 %v4294, %v4485
      %v4488 = vadd.f32 %v4295, %v4484
      %v4489 = vadd.f32 %v4296, %v4483
      %v4490 = vadd.f32 %v4297, %v4482
      %v4491 = vadd.f32 %v4298, %v4481
      %v4492 = vadd.f32 %v4299, %v4480
      %v4493 = vadd.f32 %v4300, %v4479
      %v4494 = vadd.f32 %v4301, %v4478
      %v4495 = vadd.f32 %v4302, %v4477
      %v4496 = vadd.f32 %v4303, %v4476
      %v4497 = vadd.f32 %v4304, %v4475
      %v4498 = vadd.f32 %v4305, %v4474
      %v4499 = vadd.f32 %v4306, %v4473
      %v4500 = vadd.f32 %v4307, %v4472
      %v4501 = vadd.f32 %v4308, %v4471
      %v4502 = vadd.f32 %v4309, %v4470
      %v4503 = vadd.f32 %v4310, %v4469
      %v4504 = vadd.f32 %v4311, %v4468
      %v4505 = vadd.f32 %v4312, %v4467
      %v4506 = vadd.f32 %v4313, %v4466
      %v4507 = vadd.f32 %v4314, %v4465
      %v4508 = vadd.f32 %v4315, %v4464
      %v4509 = vadd.f32 %v4316, %v4463
      %v4510 = vadd.f32 %v4317, %v4462
      %v4511 = vadd.f32 %v4318, %v4461
      %v4512 = vadd.f32 %v4319, %v4460
      %v4513 = vadd.f32 %v4320, %v4459
      %v4514 = vadd.f32 %v4321, %v4458
      %v4515 = vadd.f32 %v4322, %v4457
      %v4516 = vadd.f32 %v4323, %v4456
      %v4517 = vadd.f32 %v4324, %v4455
      %v4518 = vadd.f32 %v4325, %v4454
      %v4519 = vadd.f32 %v4326, %v4453
      %v4520 = vadd.f32 %v4327, %v4452
      %v4521 = vadd.f32 %v4328, %v4451
      %v4522 = vadd.f32 %v4329, %v4450
      %v4523 = vadd.f32 %v4330, %v4449
      %v4524 = vadd.f32 %v4331, %v4448
      %v4525 = vadd.f32 %v4332, %v4447
      %v4526 = vadd.f32 %v4333, %v4446
      %v4527 = vadd.f32 %v4334, %v4445
      %v4528 = vadd.f32 %v4335, %v4444
      %v4529 = vadd.f32 %v4336, %v4443
      %v4530 = vadd.f32 %v4337, %v4442
      %v4531 = vadd.f32 %v4338, %v4441
      %v4532 = vadd.f32 %v4339, %v4440
      %v4533 = vadd.f32 %v4340, %v4439
      %v4534 = vadd.f32 %v4341, %v4438
      %v4535 = vadd.f32 %v4342, %v4437
      %v4536 = vadd.f32 %v4343, %v4436
      %v4537 = vadd.f32 %v4344, %v4435
      %v4538 = vadd.f32 %v4345, %v4434
      %v4539 = vadd.f32 %v4346, %v4433
      %v4540 = vadd.f32 %v4347, %v4432
      %v4541 = vadd.f32 %v4348, %v4431
      %v4542 = vadd.f32 %v4349, %v4430
      %v4543 = vadd.f32 %v4350, %v4429
      %v4544 = vadd.f32 %v4351, %v4428
      %v4545 = vadd.f32 %v4352, %v4427
      %v4546 = vadd.f32 %v4353, %v4426
      %v4547 = vadd.f32 %v4354, %v4425
      %v4548 = vadd.f32 %v4355, %v4424
      %v4549 = vadd.f32 %v4356, %v4423
      %v4550 = vadd.f32 %v4357, %v4486
      %vm4551 = vcmp.ge.s32.totalorder %v408, 0
      %vm4552 = vcmp.ge.s32.totalorder %v409, 0
      %vm4553 = vcmp.ge.s32.totalorder %v410, 0
      %vm4554 = vcmp.ge.s32.totalorder %v411, 0
      %vm4555 = vcmp.le.s32.totalorder %v408, 15
      %vm4556 = vcmp.le.s32.totalorder %v409, 15
      %vm4557 = vcmp.le.s32.totalorder %v410, 15
      %vm4558 = vcmp.le.s32.totalorder %v411, 15
      %vm4559 = vmand %vm4551, %vm4555
      %vm4560 = vmand %vm4552, %vm4556
      %vm4561 = vmand %vm4553, %vm4557
      %vm4562 = vmand %vm4554, %vm4558
      %v4563 = vsel %vm4559, 1, 0
      %v4564 = vsel %vm4560, 1, 0
      %v4565 = vsel %vm4561, 1, 0
      %v4566 = vsel %vm4562, 1, 0
      %vm4567 = vcmp.eq.s32.totalorder %v4563, 1
      %vm4568 = vcmp.eq.s32.totalorder %v4564, 1
      %vm4569 = vcmp.eq.s32.totalorder %v4565, 1
      %vm4570 = vcmp.eq.s32.totalorder %v4566, 1
      %v4571 = vsel %vm4567, %v4487, 0.0
      %v4572 = vsel %vm4568, %v4488, 0.0
      %v4573 = vsel %vm4569, %v4489, 0.0
      %v4574 = vsel %vm4570, %v4490, 0.0
      %v4575 = vsel %vm4567, %v4491, 0.0
      %v4576 = vsel %vm4568, %v4492, 0.0
      %v4577 = vsel %vm4569, %v4493, 0.0
      %v4578 = vsel %vm4570, %v4494, 0.0
      %v4579 = vsel %vm4567, %v4495, 0.0
      %v4580 = vsel %vm4568, %v4496, 0.0
      %v4581 = vsel %vm4569, %v4497, 0.0
      %v4582 = vsel %vm4570, %v4498, 0.0
      %v4583 = vsel %vm4567, %v4499, 0.0
      %v4584 = vsel %vm4568, %v4500, 0.0
      %v4585 = vsel %vm4569, %v4501, 0.0
      %v4586 = vsel %vm4570, %v4502, 0.0
      %v4587 = vsel %vm4567, %v4503, 0.0
      %v4588 = vsel %vm4568, %v4504, 0.0
      %v4589 = vsel %vm4569, %v4505, 0.0
      %v4590 = vsel %vm4570, %v4506, 0.0
      %v4591 = vsel %vm4567, %v4507, 0.0
      %v4592 = vsel %vm4568, %v4508, 0.0
      %v4593 = vsel %vm4569, %v4509, 0.0
      %v4594 = vsel %vm4570, %v4510, 0.0
      %v4595 = vsel %vm4567, %v4511, 0.0
      %v4596 = vsel %vm4568, %v4512, 0.0
      %v4597 = vsel %vm4569, %v4513, 0.0
      %v4598 = vsel %vm4570, %v4514, 0.0
      %v4599 = vsel %vm4567, %v4515, 0.0
      %v4600 = vsel %vm4568, %v4516, 0.0
      %v4601 = vsel %vm4569, %v4517, 0.0
      %v4602 = vsel %vm4570, %v4518, 0.0
      %v4603 = vsel %vm4567, %v4519, 0.0
      %v4604 = vsel %vm4568, %v4520, 0.0
      %v4605 = vsel %vm4569, %v4521, 0.0
      %v4606 = vsel %vm4570, %v4522, 0.0
      %v4607 = vsel %vm4567, %v4523, 0.0
      %v4608 = vsel %vm4568, %v4524, 0.0
      %v4609 = vsel %vm4569, %v4525, 0.0
      %v4610 = vsel %vm4570, %v4526, 0.0
      %v4611 = vsel %vm4567, %v4527, 0.0
      %v4612 = vsel %vm4568, %v4528, 0.0
      %v4613 = vsel %vm4569, %v4529, 0.0
      %v4614 = vsel %vm4570, %v4530, 0.0
      %v4615 = vsel %vm4567, %v4531, 0.0
      %v4616 = vsel %vm4568, %v4532, 0.0
      %v4617 = vsel %vm4569, %v4533, 0.0
      %v4618 = vsel %vm4570, %v4534, 0.0
      %v4619 = vsel %vm4567, %v4535, 0.0
      %v4620 = vsel %vm4568, %v4536, 0.0
      %v4621 = vsel %vm4569, %v4537, 0.0
      %v4622 = vsel %vm4570, %v4538, 0.0
      %v4623 = vsel %vm4567, %v4539, 0.0
      %v4624 = vsel %vm4568, %v4540, 0.0
      %v4625 = vsel %vm4569, %v4541, 0.0
      %v4626 = vsel %vm4570, %v4542, 0.0
      %v4627 = vsel %vm4567, %v4543, 0.0
      %v4628 = vsel %vm4568, %v4544, 0.0
      %v4629 = vsel %vm4569, %v4545, 0.0
      %v4630 = vsel %vm4570, %v4546, 0.0
      %v4631 = vsel %vm4567, %v4547, 0.0
      %v4632 = vsel %vm4568, %v4548, 0.0
      %v4633 = vsel %vm4569, %v4549, 0.0
      %v4634 = vsel %vm4570, %v4550, 0.0
      %v4635 = vadd.f32 %v4571, %v4572
      %v4636 = vadd.f32 %v4635, %v4573
      %v4637 = vadd.f32 %v4636, %v4574
      %v4638 = vadd.f32 %v4637, %v4575
      %v4639 = vadd.f32 %v4638, %v4576
      %v4640 = vadd.f32 %v4639, %v4577
      %v4641 = vadd.f32 %v4640, %v4578
      %v4642 = vadd.f32 %v4641, %v4579
      %v4643 = vadd.f32 %v4642, %v4580
      %v4644 = vadd.f32 %v4643, %v4581
      %v4645 = vadd.f32 %v4644, %v4582
      %v4646 = vadd.f32 %v4645, %v4583
      %v4647 = vadd.f32 %v4646, %v4584
      %v4648 = vadd.f32 %v4647, %v4585
      %v4649 = vadd.f32 %v4648, %v4586
      %v4650 = vadd.f32 %v4649, %v4587
      %v4651 = vadd.f32 %v4650, %v4588
      %v4652 = vadd.f32 %v4651, %v4589
      %v4653 = vadd.f32 %v4652, %v4590
      %v4654 = vadd.f32 %v4653, %v4591
      %v4655 = vadd.f32 %v4654, %v4592
      %v4656 = vadd.f32 %v4655, %v4593
      %v4657 = vadd.f32 %v4656, %v4594
      %v4658 = vadd.f32 %v4657, %v4595
      %v4659 = vadd.f32 %v4658, %v4596
      %v4660 = vadd.f32 %v4659, %v4597
      %v4661 = vadd.f32 %v4660, %v4598
      %v4662 = vadd.f32 %v4661, %v4599
      %v4663 = vadd.f32 %v4662, %v4600
      %v4664 = vadd.f32 %v4663, %v4601
      %v4665 = vadd.f32 %v4664, %v4602
      %v4666 = vadd.f32 %v4665, %v4603
      %v4667 = vadd.f32 %v4666, %v4604
      %v4668 = vadd.f32 %v4667, %v4605
      %v4669 = vadd.f32 %v4668, %v4606
      %v4670 = vadd.f32 %v4669, %v4607
      %v4671 = vadd.f32 %v4670, %v4608
      %v4672 = vadd.f32 %v4671, %v4609
      %v4673 = vadd.f32 %v4672, %v4610
      %v4674 = vadd.f32 %v4673, %v4611
      %v4675 = vadd.f32 %v4674, %v4612
      %v4676 = vadd.f32 %v4675, %v4613
      %v4677 = vadd.f32 %v4676, %v4614
      %v4678 = vadd.f32 %v4677, %v4615
      %v4679 = vadd.f32 %v4678, %v4616
      %v4680 = vadd.f32 %v4679, %v4617
      %v4681 = vadd.f32 %v4680, %v4618
      %v4682 = vadd.f32 %v4681, %v4619
      %v4683 = vadd.f32 %v4682, %v4620
      %v4684 = vadd.f32 %v4683, %v4621
      %v4685 = vadd.f32 %v4684, %v4622
      %v4686 = vadd.f32 %v4685, %v4623
      %v4687 = vadd.f32 %v4686, %v4624
      %v4688 = vadd.f32 %v4687, %v4625
      %v4689 = vadd.f32 %v4688, %v4626
      %v4690 = vadd.f32 %v4689, %v4627
      %v4691 = vadd.f32 %v4690, %v4628
      %v4692 = vadd.f32 %v4691, %v4629
      %v4693 = vadd.f32 %v4692, %v4630
      %v4694 = vadd.f32 %v4693, %v4631
      %v4695 = vadd.f32 %v4694, %v4632
      %v4696 = vadd.f32 %v4695, %v4633
      %v4697 = vadd.f32 %v4696, %v4634
      %v4698 = vrot.slane %v4697, 4
      %v4699 = vadd.f32 %v4697, %v4698
      %v4700 = vrot.slane %v4699, 2
      %v4701 = vadd.f32 %v4699, %v4700
      %v4702 = vrot.slane %v4701, 1
      %v4703 = vadd.f32 %v4701, %v4702
      %v4704 = vmul.f32 %v4571, %v4571
      %v4705 = vmul.f32 %v4572, %v4572
      %v4706 = vmul.f32 %v4573, %v4573
      %v4707 = vmul.f32 %v4574, %v4574
      %v4708 = vmul.f32 %v4575, %v4575
      %v4709 = vmul.f32 %v4576, %v4576
      %v4710 = vmul.f32 %v4577, %v4577
      %v4711 = vmul.f32 %v4578, %v4578
      %v4712 = vmul.f32 %v4579, %v4579
      %v4713 = vmul.f32 %v4580, %v4580
      %v4714 = vmul.f32 %v4581, %v4581
      %v4715 = vmul.f32 %v4582, %v4582
      %v4716 = vmul.f32 %v4583, %v4583
      %v4717 = vmul.f32 %v4584, %v4584
      %v4718 = vmul.f32 %v4585, %v4585
      %v4719 = vmul.f32 %v4586, %v4586
      %v4720 = vmul.f32 %v4587, %v4587
      %v4721 = vmul.f32 %v4588, %v4588
      %v4722 = vmul.f32 %v4589, %v4589
      %v4723 = vmul.f32 %v4590, %v4590
      %v4724 = vmul.f32 %v4591, %v4591
      %v4725 = vmul.f32 %v4592, %v4592
      %v4726 = vmul.f32 %v4593, %v4593
      %v4727 = vmul.f32 %v4594, %v4594
      %v4728 = vmul.f32 %v4595, %v4595
      %v4729 = vmul.f32 %v4596, %v4596
      %v4730 = vmul.f32 %v4597, %v4597
      %v4731 = vmul.f32 %v4598, %v4598
      %v4732 = vmul.f32 %v4599, %v4599
      %v4733 = vmul.f32 %v4600, %v4600
      %v4734 = vmul.f32 %v4601, %v4601
      %v4735 = vmul.f32 %v4602, %v4602
      %v4736 = vmul.f32 %v4603, %v4603
      %v4737 = vmul.f32 %v4604, %v4604
      %v4738 = vmul.f32 %v4605, %v4605
      %v4739 = vmul.f32 %v4606, %v4606
      %v4740 = vmul.f32 %v4607, %v4607
      %v4741 = vmul.f32 %v4608, %v4608
      %v4742 = vmul.f32 %v4609, %v4609
      %v4743 = vmul.f32 %v4610, %v4610
      %v4744 = vmul.f32 %v4611, %v4611
      %v4745 = vmul.f32 %v4612, %v4612
      %v4746 = vmul.f32 %v4613, %v4613
      %v4747 = vmul.f32 %v4614, %v4614
      %v4748 = vmul.f32 %v4615, %v4615
      %v4749 = vmul.f32 %v4616, %v4616
      %v4750 = vmul.f32 %v4617, %v4617
      %v4751 = vmul.f32 %v4618, %v4618
      %v4752 = vmul.f32 %v4619, %v4619
      %v4753 = vmul.f32 %v4620, %v4620
      %v4754 = vmul.f32 %v4621, %v4621
      %v4755 = vmul.f32 %v4622, %v4622
      %v4756 = vmul.f32 %v4623, %v4623
      %v4757 = vmul.f32 %v4624, %v4624
      %v4758 = vmul.f32 %v4625, %v4625
      %v4759 = vmul.f32 %v4626, %v4626
      %v4760 = vmul.f32 %v4627, %v4627
      %v4761 = vmul.f32 %v4628, %v4628
      %v4762 = vmul.f32 %v4629, %v4629
      %v4763 = vmul.f32 %v4630, %v4630
      %v4764 = vmul.f32 %v4631, %v4631
      %v4765 = vmul.f32 %v4632, %v4632
      %v4766 = vmul.f32 %v4633, %v4633
      %v4767 = vmul.f32 %v4634, %v4634
      %v4768 = vadd.f32 %v4704, %v4705
      %v4769 = vadd.f32 %v4768, %v4706
      %v4770 = vadd.f32 %v4769, %v4707
      %v4771 = vadd.f32 %v4770, %v4708
      %v4772 = vadd.f32 %v4771, %v4709
      %v4773 = vadd.f32 %v4772, %v4710
      %v4774 = vadd.f32 %v4773, %v4711
      %v4775 = vadd.f32 %v4774, %v4712
      %v4776 = vadd.f32 %v4775, %v4713
      %v4777 = vadd.f32 %v4776, %v4714
      %v4778 = vadd.f32 %v4777, %v4715
      %v4779 = vadd.f32 %v4778, %v4716
      %v4780 = vadd.f32 %v4779, %v4717
      %v4781 = vadd.f32 %v4780, %v4718
      %v4782 = vadd.f32 %v4781, %v4719
      %v4783 = vadd.f32 %v4782, %v4720
      %v4784 = vadd.f32 %v4783, %v4721
      %v4785 = vadd.f32 %v4784, %v4722
      %v4786 = vadd.f32 %v4785, %v4723
      %v4787 = vadd.f32 %v4786, %v4724
      %v4788 = vadd.f32 %v4787, %v4725
      %v4789 = vadd.f32 %v4788, %v4726
      %v4790 = vadd.f32 %v4789, %v4727
      %v4791 = vadd.f32 %v4790, %v4728
      %v4792 = vadd.f32 %v4791, %v4729
      %v4793 = vadd.f32 %v4792, %v4730
      %v4794 = vadd.f32 %v4793, %v4731
      %v4795 = vadd.f32 %v4794, %v4732
      %v4796 = vadd.f32 %v4795, %v4733
      %v4797 = vadd.f32 %v4796, %v4734
      %v4798 = vadd.f32 %v4797, %v4735
      %v4799 = vadd.f32 %v4798, %v4736
      %v4800 = vadd.f32 %v4799, %v4737
      %v4801 = vadd.f32 %v4800, %v4738
      %v4802 = vadd.f32 %v4801, %v4739
      %v4803 = vadd.f32 %v4802, %v4740
      %v4804 = vadd.f32 %v4803, %v4741
      %v4805 = vadd.f32 %v4804, %v4742
      %v4806 = vadd.f32 %v4805, %v4743
      %v4807 = vadd.f32 %v4806, %v4744
      %v4808 = vadd.f32 %v4807, %v4745
      %v4809 = vadd.f32 %v4808, %v4746
      %v4810 = vadd.f32 %v4809, %v4747
      %v4811 = vadd.f32 %v4810, %v4748
      %v4812 = vadd.f32 %v4811, %v4749
      %v4813 = vadd.f32 %v4812, %v4750
      %v4814 = vadd.f32 %v4813, %v4751
      %v4815 = vadd.f32 %v4814, %v4752
      %v4816 = vadd.f32 %v4815, %v4753
      %v4817 = vadd.f32 %v4816, %v4754
      %v4818 = vadd.f32 %v4817, %v4755
      %v4819 = vadd.f32 %v4818, %v4756
      %v4820 = vadd.f32 %v4819, %v4757
      %v4821 = vadd.f32 %v4820, %v4758
      %v4822 = vadd.f32 %v4821, %v4759
      %v4823 = vadd.f32 %v4822, %v4760
      %v4824 = vadd.f32 %v4823, %v4761
      %v4825 = vadd.f32 %v4824, %v4762
      %v4826 = vadd.f32 %v4825, %v4763
      %v4827 = vadd.f32 %v4826, %v4764
      %v4828 = vadd.f32 %v4827, %v4765
      %v4829 = vadd.f32 %v4828, %v4766
      %v4830 = vadd.f32 %v4829, %v4767
      %v4831 = vrot.slane %v4830, 4
      %v4832 = vadd.f32 %v4830, %v4831
      %v4833 = vrot.slane %v4832, 2
      %v4834 = vadd.f32 %v4832, %v4833
      %v4835 = vrot.slane %v4834, 1
      %v4836 = vadd.f32 %v4834, %v4835
      %p4837 = scmp.eq.s32.totalorder %s22, 0
      // Predicated region
      $region37: #{unet_encoder_forward.3} parent=35 // pred_check
        %p4838 = pneg %p4837
      $region38: #{unet_encoder_forward.3} parent=35 // pred_check_branch
        %4840 = sbr.rel (%p4838) target = $region40
      $region39: #{unet_encoder_forward.3} parent=35 // pred_region
        %4841 = vst [vmem:[%s259] sm:$0x3] 0.0
      $region40: #{unet_encoder_forward.3} parent=35 // pred_fallthru
        _
      %v4842 = vld [vmem:[%s259] sm:$0x3]
      %vm4843 = vcmask 1040384
      %v4844 = vsel %vm4843, %v4703, %v4836
      %v4845 = vadd.f32 %v4842, %v4844
      %4846 = vst [vmem:[%s259] sm:$0x3] %v4845
      %4847 = vst [vmem:[%s254] sm:$0xff] %v4571
      %4848 = vst [vmem:[%s254 + $0x8] sm:$0xff] %v4572
      %4849 = vst [vmem:[%s254 + $0x10] sm:$0xff] %v4575
      %4850 = vst [vmem:[%s254 + $0x18] sm:$0xff] %v4576
      %4851 = vst [vmem:[%s254 + $0x20] sm:$0xff] %v4579
      %4852 = vst [vmem:[%s254 + $0x28] sm:$0xff] %v4580
      %4853 = vst [vmem:[%s254 + $0x30] sm:$0xff] %v4583
      %4854 = vst [vmem:[%s254 + $0x38] sm:$0xff] %v4584
      %4855 = vst [vmem:[%s254 + $0x40] sm:$0xff] %v4587
      %4856 = vst [vmem:[%s254 + $0x48] sm:$0xff] %v4588
      %4857 = vst [vmem:[%s254 + $0x50] sm:$0xff] %v4591
      %4858 = vst [vmem:[%s254 + $0x58] sm:$0xff] %v4592
      %4859 = vst [vmem:[%s254 + $0x60] sm:$0xff] %v4595
      %4860 = vst [vmem:[%s254 + $0x68] sm:$0xff] %v4596
      %4861 = vst [vmem:[%s254 + $0x70] sm:$0xff] %v4599
      %4862 = vst [vmem:[%s254 + $0x78] sm:$0xff] %v4600
      %4863 = vst [vmem:[%s254 + $0x80] sm:$0xff] %v4603
      %4864 = vst [vmem:[%s254 + $0x88] sm:$0xff] %v4604
      %4865 = vst [vmem:[%s254 + $0x90] sm:$0xff] %v4607
      %4866 = vst [vmem:[%s254 + $0x98] sm:$0xff] %v4608
      %4867 = vst [vmem:[%s254 + $0xa0] sm:$0xff] %v4611
      %4868 = vst [vmem:[%s254 + $0xa8] sm:$0xff] %v4612
      %4869 = vst [vmem:[%s254 + $0xb0] sm:$0xff] %v4615
      %4870 = vst [vmem:[%s254 + $0xb8] sm:$0xff] %v4616
      %4871 = vst [vmem:[%s254 + $0xc0] sm:$0xff] %v4619
      %4872 = vst [vmem:[%s254 + $0xc8] sm:$0xff] %v4620
      %4873 = vst [vmem:[%s254 + $0xd0] sm:$0xff] %v4623
      %4874 = vst [vmem:[%s254 + $0xd8] sm:$0xff] %v4624
      %4875 = vst [vmem:[%s254 + $0xe0] sm:$0xff] %v4627
      %4876 = vst [vmem:[%s254 + $0xe8] sm:$0xff] %v4628
      %4877 = vst [vmem:[%s254 + $0xf0] sm:$0xff] %v4631
      %4878 = vst [vmem:[%s254 + $0xf8] sm:$0xff] %v4632
      %s4879 = sadd.s32 %s21, %s22
      %p4880 = scmp.lt.s32.totalorder %s4879, 1
      %s4881 = scalar_select %p4880, %s4879, 1
      %s4882 = smul.addr %s4881, 32
      %s4883 = smul.addr %s4882, 8
      %s4884 = scalar_lea.vmem %s4, %s4883
      %p4885 = scmp.lt.s32.totalorder %s21, 1
      %s4886 = scalar_select %p4885, %s21, 1
      %s4887 = smul.addr %s4886, 2
      %s4888 = scalar_lea.vmem %s5, %s4887
      // Predicated region
      $region41: #{unet_encoder_forward.3} parent=35 // pred_check
        %p4889 = pneg %p140
      $region42: #{unet_encoder_forward.3} parent=35 // pred_check_branch
        %4891 = sbr.rel (%p4889) target = $region44
      $region43: #{unet_encoder_forward.3} parent=35 // pred_region
        %s4892 = sadd.s32 %s21, %s22
      $region44: #{unet_encoder_forward.3} parent=35 // pred_fallthru
        _
      // Predicated region
      $region45: #{unet_encoder_forward.3} parent=35 // pred_check
        %p4893 = pneg %p166
      $region46: #{unet_encoder_forward.3} parent=35 // pred_check_branch
        %4895 = sbr.rel (%p4893) target = $region48
      $region47: #{unet_encoder_forward.3} parent=35 // pred_region
        _
      $region48: #{unet_encoder_forward.3} parent=35 // pred_fallthru
        _
    $region36: #{unet_encoder_forward.3} parent=5 // pred_fallthru
      _
    %p4896 = scmp.le.s32.totalorder 2, %s12
    // Predicated region
    $region49: #{unet_encoder_forward.3} parent=5 // pred_check
      %p4897 = pneg %p4896
    $region50: #{unet_encoder_forward.3} parent=5 // pred_check_branch
      %4899 = sbr.rel (%p4897) target = $region52
    $region51: #{unet_encoder_forward.3} parent=5 // pred_region
      %s4900 = ssub.s32 %s12, 2
      // Predicated region
      $region53: #{unet_encoder_forward.3} parent=51 // pred_check
        %p4901 = pneg %p146
      $region54: #{unet_encoder_forward.3} parent=51 // pred_check_branch
        %4903 = sbr.rel (%p4901) target = $region56
      $region55: #{unet_encoder_forward.3} parent=51 // pred_region
        %s4904 = sadd.s32 %s23, %s24
        %p4905 = scmp.lt.s32.totalorder %s4904, 1
        %s4906 = scalar_select %p4905, %s4904, 1
        %s4907 = smul.addr %s4906, 32
        %s4908 = smul.addr %s4907, 8
        %s4909 = scalar_lea.vmem %s4, %s4908
      $region56: #{unet_encoder_forward.3} parent=51 // pred_fallthru
        _
      // Predicated region
      $region57: #{unet_encoder_forward.3} parent=51 // pred_check
        %p4910 = pneg %p172
      $region58: #{unet_encoder_forward.3} parent=51 // pred_check_branch
        %4912 = sbr.rel (%p4910) target = $region60
      $region59: #{unet_encoder_forward.3} parent=51 // pred_region
        %p4913 = scmp.lt.s32.totalorder %s23, 1
        %s4914 = scalar_select %p4913, %s23, 1
        %s4915 = smul.addr %s4914, 2
        %s4916 = scalar_lea.vmem %s5, %s4915
      $region60: #{unet_encoder_forward.3} parent=51 // pred_fallthru
        _
    $region52: #{unet_encoder_forward.3} parent=5 // pred_fallthru
      _
  $region6: #{unet_encoder_forward.3} parent=0 // loop_footer
    %s16 = sadd.s32 1, %s12
  $region7: #{unet_encoder_forward.3} parent=0 // loop_footer_branch
    %11 = sbr.rel target = $region3
  $region8: #{unet_encoder_forward.3} parent=0 // loop_exit
    _

// kernel: unet_encoder_forward.2
$region0: #{unet_encoder_forward.2}
  #allocation0 [shape = 'u32[]', space=smem, size = 0x4, offset = 0x4, fixed_abs, tag = 'smem constant byte address 0x4 - core index']
  #allocation1 [shape = 'u32[144,128]{1,0:T(1,128)}', space=vmem, size = 0x12000, scoped, tag = 'internal scratch']
  %s0 = inlined_call_operand.vmem [shape: bf16[2,18,32,128], index: 0, kind: input, shape index: {}]
  %s1 = inlined_call_operand.vmem [shape: bf16[9,128,128], index: 1, kind: input, shape index: {}]
  %s2 = inlined_call_operand.vmem [shape: bf16[2,18,32,128], index: 2, kind: output, shape index: {0}]
  %s3 = inlined_call_operand.vmem [shape: f32[2,2,128], index: 3, kind: output, shape index: {1}]
  %4 = xla_tuple %s2, %s3
  %s5 = sld [smem:[#allocation0]]
  $region53: #{unet_encoder_forward.2} parent=0
    _
  %s7 = ssub.s32 1, %s5
  %s8 = scalar_select 0, %s7, %s5
  loop: start=0, step=1, limit=4
  $region2: #{unet_encoder_forward.2} parent=0 // loop_pre_header
    _
  $region3: #{unet_encoder_forward.2} parent=0 // loop_header
    %s10 = sphi 0, %s14
    %p11 = scmp.ge.s32.totalorder %s10, 4
    %s17 = sphi 0, %s29
    %s18 = sphi 0, %s25
    %s19 = sphi 0, %s17
    %s20 = sphi 0, %s18
    %s21 = sphi 0, %s19
    %s22 = sphi 0, %s20
    %s34 = sphi 0, %s36
    %s37 = sphi 0, %s34
    %s38 = sphi 0, %s37
    %s54 = sphi 0, %s38
    %s58 = sphi 0, %s58
    %s60 = sphi 0, %s58
    %s61 = sphi 0, %s60
    %s75 = sphi 0, %s61
    %s83 = sphi 0, %s85
    %s86 = sphi 0, %s83
    %s87 = sphi 0, %s86
    %s103 = sphi 0, %s87
    %s109 = sphi 0, %s111
    %s112 = sphi 0, %s109
    %s113 = sphi 0, %s112
    %s129 = sphi 0, %s113
  $region4: #{unet_encoder_forward.2} parent=0 // loop_header_branch
    %13 = sbr.rel (%p11) target = $region8
  $region5: #{unet_encoder_forward.2} parent=0 // loop_body
    %s15 = ssub.s32 %s10, 1
    %s16 = ssub.s32 %s10, 2
    %s23 = sadd.s32 1, %s18
    %p24 = scmp.ge.s32.totalorder %s23, 1
    %s25 = scalar_select %p24, 0, %s23
    %s26 = sadd.s32 1, %s17
    %s27 = scalar_select %p24, %s26, %s17
    %p28 = scmp.ge.s32.totalorder %s27, 2
    %s29 = scalar_select %p28, 0, %s27
    %s30 = sadd.s32 %s17, %s18
    %s31 = sadd.s32 %s29, %s25
    %s32 = ssub.s32 %s30, %s31
    %p33 = scmp.eq.s32.totalorder %s32, 0
    %s35 = sadd.s32 %s34, 1
    %s36 = scalar_select %p33, %s34, %s35
    %p39 = pneg %p33
    %p40 = scmp.eq.s32.totalorder %s10, 1
    %p41 = por %p39, %p40
    %p42 = scmp.ne.s32.totalorder %s34, %s37
    %p43 = scmp.eq.s32.totalorder %s10, 0
    %p44 = por %p42, %p43
    %p45 = scmp.ne.s32.totalorder %s34, %s37
    %p46 = scmp.eq.s32.totalorder %s15, 1
    %p47 = por %p45, %p46
    %p48 = scmp.ne.s32.totalorder %s37, %s38
    %p49 = scmp.eq.s32.totalorder %s15, 0
    %p50 = por %p48, %p49
    %p51 = scmp.ne.s32.totalorder %s37, %s38
    %p52 = scmp.eq.s32.totalorder %s16, 1
    %p53 = por %p51, %p52
    %p55 = scmp.ne.s32.totalorder %s38, %s54
    %p56 = scmp.eq.s32.totalorder %s16, 0
    %p57 = por %p55, %p56
    %s59 = sadd.s32 %s58, 1
    %p62 = scmp.eq.s32.totalorder %s10, 1
    %p63 = scmp.ne.s32.totalorder %s58, %s60
    %p64 = scmp.eq.s32.totalorder %s10, 0
    %p65 = por %p63, %p64
    %p66 = scmp.ne.s32.totalorder %s58, %s60
    %p67 = scmp.eq.s32.totalorder %s15, 1
    %p68 = por %p66, %p67
    %p69 = scmp.ne.s32.totalorder %s60, %s61
    %p70 = scmp.eq.s32.totalorder %s15, 0
    %p71 = por %p69, %p70
    %p72 = scmp.ne.s32.totalorder %s60, %s61
    %p73 = scmp.eq.s32.totalorder %s16, 1
    %p74 = por %p72, %p73
    %p76 = scmp.ne.s32.totalorder %s61, %s75
    %p77 = scmp.eq.s32.totalorder %s16, 0
    %p78 = por %p76, %p77
    %s79 = sadd.s32 %s17, %s18
    %s80 = sadd.s32 %s29, %s25
    %s81 = ssub.s32 %s79, %s80
    %p82 = scmp.eq.s32.totalorder %s81, 0
    %s84 = sadd.s32 %s83, 1
    %s85 = scalar_select %p82, %s83, %s84
    %p88 = pneg %p82
    %p89 = scmp.eq.s32.totalorder %s10, 1
    %p90 = por %p88, %p89
    %p91 = scmp.ne.s32.totalorder %s83, %s86
    %p92 = scmp.eq.s32.totalorder %s10, 0
    %p93 = por %p91, %p92
    %p94 = scmp.ne.s32.totalorder %s83, %s86
    %p95 = scmp.eq.s32.totalorder %s15, 1
    %p96 = por %p94, %p95
    %p97 = scmp.ne.s32.totalorder %s86, %s87
    %p98 = scmp.eq.s32.totalorder %s15, 0
    %p99 = por %p97, %p98
    %p100 = scmp.ne.s32.totalorder %s86, %s87
    %p101 = scmp.eq.s32.totalorder %s16, 1
    %p102 = por %p100, %p101
    %p104 = scmp.ne.s32.totalorder %s87, %s103
    %p105 = scmp.eq.s32.totalorder %s16, 0
    %p106 = por %p104, %p105
    %s107 = ssub.s32 %s17, %s29
    %p108 = scmp.eq.s32.totalorder %s107, 0
    %s110 = sadd.s32 %s109, 1
    %s111 = scalar_select %p108, %s109, %s110
    %p114 = pneg %p108
    %p115 = scmp.eq.s32.totalorder %s10, 1
    %p116 = por %p114, %p115
    %p117 = scmp.ne.s32.totalorder %s109, %s112
    %p118 = scmp.eq.s32.totalorder %s10, 0
    %p119 = por %p117, %p118
    %p120 = scmp.ne.s32.totalorder %s109, %s112
    %p121 = scmp.eq.s32.totalorder %s15, 1
    %p122 = por %p120, %p121
    %p123 = scmp.ne.s32.totalorder %s112, %s113
    %p124 = scmp.eq.s32.totalorder %s15, 0
    %p125 = por %p123, %p124
    %p126 = scmp.ne.s32.totalorder %s112, %s113
    %p127 = scmp.eq.s32.totalorder %s16, 1
    %p128 = por %p126, %p127
    %p130 = scmp.ne.s32.totalorder %s113, %s129
    %p131 = scmp.eq.s32.totalorder %s16, 0
    %p132 = por %p130, %p131
    %p133 = scmp.le.s32.totalorder 1, %s10
    %p134 = scmp.lt.s32.totalorder %s10, 3
    %p135 = pnand %p133, %p134
    %p136 = pneg %p135
    // Predicated region
    $region9: #{unet_encoder_forward.2} parent=5 // pred_check
      _
    $region10: #{unet_encoder_forward.2} parent=5 // pred_check_branch
      %138 = sbr.rel (%p135) target = $region12
    $region11: #{unet_encoder_forward.2} parent=5 // pred_region
      %s139 = ssub.s32 %s10, 1
      // Predicated region
      $region13: #{unet_encoder_forward.2} parent=11 // pred_check
        %p140 = pneg %p71
      $region14: #{unet_encoder_forward.2} parent=11 // pred_check_branch
        %142 = sbr.rel (%p140) target = $region16
      $region15: #{unet_encoder_forward.2} parent=11 // pred_region
        _
      $region16: #{unet_encoder_forward.2} parent=11 // pred_fallthru
        _
    $region12: #{unet_encoder_forward.2} parent=5 // pred_fallthru
      _
    %p143 = scmp.lt.s32.totalorder %s10, 2
    // Predicated region
    $region17: #{unet_encoder_forward.2} parent=5 // pred_check
      %p144 = pneg %p143
    $region18: #{unet_encoder_forward.2} parent=5 // pred_check_branch
      %146 = sbr.rel (%p144) target = $region20
    $region19: #{unet_encoder_forward.2} parent=5 // pred_region
      // Predicated region
      $region21: #{unet_encoder_forward.2} parent=19 // pred_check
        %p147 = pneg %p44
      $region22: #{unet_encoder_forward.2} parent=19 // pred_check_branch
        %149 = sbr.rel (%p147) target = $region24
      $region23: #{unet_encoder_forward.2} parent=19 // pred_region
        %s150 = sadd.s32 %s17, %s18
        %p151 = scmp.lt.s32.totalorder %s150, 1
        %s152 = scalar_select %p151, %s150, 1
        %s153 = smul.addr %s152, 72
        %s154 = smul.addr %s153, 4
        %s155 = scalar_lea.vmem %s0, %s154
        %s156 = sadd.s32 %s17, %s18
      $region24: #{unet_encoder_forward.2} parent=19 // pred_fallthru
        _
    $region20: #{unet_encoder_forward.2} parent=5 // pred_fallthru
      _
    %p157 = scmp.le.s32.totalorder 1, %s10
    %p158 = scmp.lt.s32.totalorder %s10, 3
    %p159 = pnand %p157, %p158
    %p160 = pneg %p159
    // Predicated region
    $region25: #{unet_encoder_forward.2} parent=5 // pred_check
      _
    $region26: #{unet_encoder_forward.2} parent=5 // pred_check_branch
      %162 = sbr.rel (%p159) target = $region28
    $region27: #{unet_encoder_forward.2} parent=5 // pred_region
      %s163 = ssub.s32 %s10, 1
      %s164 = sadd.s32 %s19, %s20
      %p165 = scmp.lt.s32.totalorder %s164, 1
      %s166 = scalar_select %p165, %s164, 1
      %s167 = smul.addr %s166, 72
      %s168 = smul.addr %s167, 4
      %s169 = scalar_lea.vmem %s0, %s168
      %p170 = pneg %p50
      %p171 = pneg %p47
      %p172 = pneg %p71
      %p173 = pneg %p68
      %p174 = pneg %p99
      %p175 = pneg %p96
      %s176 = sadd.s32 %s19, %s20
      %p177 = scmp.lt.s32.totalorder %s176, 1
      %s178 = scalar_select %p177, %s176, 1
      %s179 = smul.addr %s178, 72
      %s180 = smul.addr %s179, 4
      %s181 = scalar_lea.vmem %s2, %s180
      %p182 = pneg %p125
      %p183 = pneg %p122
      %p184 = scmp.lt.s32.totalorder %s19, 1
      %s185 = scalar_select %p184, %s19, 1
      %s186 = smul.addr %s185, 2
      %s187 = scalar_lea.vmem %s3, %s186
      %s188 = sadd.s32 %s19, %s20
      %p189 = scmp.lt.s32.totalorder %s188, 1
      %s190 = scalar_select %p189, %s188, 1
      %s191 = smul.addr %s190, 72
      %s192 = smul.addr %s191, 4
      %s193 = scalar_lea.vmem %s0, %s192
      %s194 = sadd.s32 %s19, %s20
      %s195 = sadd.s32 %s19, %s20
      %p196 = scmp.lt.s32.totalorder %s195, 1
      %s197 = scalar_select %p196, %s195, 1
      %s198 = smul.addr %s197, 72
      %s199 = smul.addr %s198, 4
      %s200 = scalar_lea.vmem %s2, %s199
      %s201 = sadd.s32 %s19, %s20
      %p202 = scmp.lt.s32.totalorder %s19, 1
      %s203 = scalar_select %p202, %s19, 1
      %s204 = smul.addr %s203, 2
      %s205 = scalar_lea.vmem %s3, %s204
      %v207 = vld [vmem:[%s193] sm:$0xf]
      %v208 = vld [vmem:[%s193 + $0x4] sm:$0xf]
      %v209 = vld [vmem:[%s193 + $0x8] sm:$0xf]
      %v210 = vld [vmem:[%s193 + $0xc] sm:$0xf]
      %v211 = vld [vmem:[%s193 + $0x10] sm:$0xf]
      %v212 = vld [vmem:[%s193 + $0x14] sm:$0xf]
      %v213 = vld [vmem:[%s193 + $0x18] sm:$0xf]
      %v214 = vld [vmem:[%s193 + $0x1c] sm:$0xf]
      %v215 = vld [vmem:[%s193 + $0x20] sm:$0xf]
      %v216 = vld [vmem:[%s193 + $0x24] sm:$0xf]
      %v217 = vld [vmem:[%s193 + $0x28] sm:$0xf]
      %v218 = vld [vmem:[%s193 + $0x2c] sm:$0xf]
      %v219 = vld [vmem:[%s193 + $0x30] sm:$0xf]
      %v220 = vld [vmem:[%s193 + $0x34] sm:$0xf]
      %v221 = vld [vmem:[%s193 + $0x38] sm:$0xf]
      %v222 = vld [vmem:[%s193 + $0x3c] sm:$0xf]
      %v223 = vld [vmem:[%s193 + $0x40] sm:$0xf]
      %v224 = vld [vmem:[%s193 + $0x44] sm:$0xf]
      %v225 = vld [vmem:[%s193 + $0x48] sm:$0xf]
      %v226 = vld [vmem:[%s193 + $0x4c] sm:$0xf]
      %v227 = vld [vmem:[%s193 + $0x50] sm:$0xf]
      %v228 = vld [vmem:[%s193 + $0x54] sm:$0xf]
      %v229 = vld [vmem:[%s193 + $0x58] sm:$0xf]
      %v230 = vld [vmem:[%s193 + $0x5c] sm:$0xf]
      %v231 = vld [vmem:[%s193 + $0x60] sm:$0xf]
      %v232 = vld [vmem:[%s193 + $0x64] sm:$0xf]
      %v233 = vld [vmem:[%s193 + $0x68] sm:$0xf]
      %v234 = vld [vmem:[%s193 + $0x6c] sm:$0xf]
      %v235 = vld [vmem:[%s193 + $0x70] sm:$0xf]
      %v236 = vld [vmem:[%s193 + $0x74] sm:$0xf]
      %v237 = vld [vmem:[%s193 + $0x78] sm:$0xf]
      %v238 = vld [vmem:[%s193 + $0x7c] sm:$0xf]
      %v239 = vld [vmem:[%s193 + $0x80] sm:$0xf]
      %v240 = vld [vmem:[%s193 + $0x84] sm:$0xf]
      %v241 = vld [vmem:[%s193 + $0x88] sm:$0xf]
      %v242 = vld [vmem:[%s193 + $0x8c] sm:$0xf]
      %v243 = vld [vmem:[%s193 + $0x90] sm:$0xf]
      %v244 = vld [vmem:[%s193 + $0x94] sm:$0xf]
      %v245 = vld [vmem:[%s193 + $0x98] sm:$0xf]
      %v246 = vld [vmem:[%s193 + $0x9c] sm:$0xf]
      %v247 = vld [vmem:[%s193 + $0xa0] sm:$0xf]
      %v248 = vld [vmem:[%s193 + $0xa4] sm:$0xf]
      %v249 = vld [vmem:[%s193 + $0xa8] sm:$0xf]
      %v250 = vld [vmem:[%s193 + $0xac] sm:$0xf]
      %v251 = vld [vmem:[%s193 + $0xb0] sm:$0xf]
      %v252 = vld [vmem:[%s193 + $0xb4] sm:$0xf]
      %v253 = vld [vmem:[%s193 + $0xb8] sm:$0xf]
      %v254 = vld [vmem:[%s193 + $0xbc] sm:$0xf]
      %v255 = vld [vmem:[%s193 + $0xc0] sm:$0xf]
      %v256 = vld [vmem:[%s193 + $0xc4] sm:$0xf]
      %v257 = vld [vmem:[%s193 + $0xc8] sm:$0xf]
      %v258 = vld [vmem:[%s193 + $0xcc] sm:$0xf]
      %v259 = vld [vmem:[%s193 + $0xd0] sm:$0xf]
      %v260 = vld [vmem:[%s193 + $0xd4] sm:$0xf]
      %v261 = vld [vmem:[%s193 + $0xd8] sm:$0xf]
      %v262 = vld [vmem:[%s193 + $0xdc] sm:$0xf]
      %v263 = vld [vmem:[%s193 + $0xe0] sm:$0xf]
      %v264 = vld [vmem:[%s193 + $0xe4] sm:$0xf]
      %v265 = vld [vmem:[%s193 + $0xe8] sm:$0xf]
      %v266 = vld [vmem:[%s193 + $0xec] sm:$0xf]
      %v267 = vld [vmem:[%s193 + $0xf0] sm:$0xf]
      %v268 = vld [vmem:[%s193 + $0xf4] sm:$0xf]
      %v269 = vld [vmem:[%s193 + $0xf8] sm:$0xf]
      %v270 = vld [vmem:[%s193 + $0xfc] sm:$0xf]
      %v271 = vld [vmem:[%s193 + $0x100] sm:$0xf]
      %v272 = vld [vmem:[%s193 + $0x104] sm:$0xf]
      %v273 = vld [vmem:[%s193 + $0x108] sm:$0xf]
      %v274 = vld [vmem:[%s193 + $0x10c] sm:$0xf]
      %v275 = vld [vmem:[%s193 + $0x110] sm:$0xf]
      %v276 = vld [vmem:[%s193 + $0x114] sm:$0xf]
      %v277 = vld [vmem:[%s193 + $0x118] sm:$0xf]
      %v278 = vld [vmem:[%s193 + $0x11c] sm:$0xf]
      %v279 = vld [vmem:[%s1] sm:$0xf]
      %v280 = vld [vmem:[%s1 + $0x4] sm:$0xf]
      %v281 = vld [vmem:[%s1 + $0x8] sm:$0xf]
      %v282 = vld [vmem:[%s1 + $0xc] sm:$0xf]
      %v283 = vld [vmem:[%s1 + $0x10] sm:$0xf]
      %v284 = vld [vmem:[%s1 + $0x14] sm:$0xf]
      %v285 = vld [vmem:[%s1 + $0x18] sm:$0xf]
      %v286 = vld [vmem:[%s1 + $0x1c] sm:$0xf]
      %v287 = vld [vmem:[%s1 + $0x20] sm:$0xf]
      %v288 = vld [vmem:[%s1 + $0x24] sm:$0xf]
      %v289 = vld [vmem:[%s1 + $0x28] sm:$0xf]
      %v290 = vld [vmem:[%s1 + $0x2c] sm:$0xf]
      %v291 = vld [vmem:[%s1 + $0x30] sm:$0xf]
      %v292 = vld [vmem:[%s1 + $0x34] sm:$0xf]
      %v293 = vld [vmem:[%s1 + $0x38] sm:$0xf]
      %v294 = vld [vmem:[%s1 + $0x3c] sm:$0xf]
      %s295 = scalar_lea.vmem %s1, 64
      %v296 = vld [vmem:[%s295] sm:$0xf]
      %v297 = vld [vmem:[%s295 + $0x4] sm:$0xf]
      %v298 = vld [vmem:[%s295 + $0x8] sm:$0xf]
      %v299 = vld [vmem:[%s295 + $0xc] sm:$0xf]
      %v300 = vld [vmem:[%s295 + $0x10] sm:$0xf]
      %v301 = vld [vmem:[%s295 + $0x14] sm:$0xf]
      %v302 = vld [vmem:[%s295 + $0x18] sm:$0xf]
      %v303 = vld [vmem:[%s295 + $0x1c] sm:$0xf]
      %v304 = vld [vmem:[%s295 + $0x20] sm:$0xf]
      %v305 = vld [vmem:[%s295 + $0x24] sm:$0xf]
      %v306 = vld [vmem:[%s295 + $0x28] sm:$0xf]
      %v307 = vld [vmem:[%s295 + $0x2c] sm:$0xf]
      %v308 = vld [vmem:[%s295 + $0x30] sm:$0xf]
      %v309 = vld [vmem:[%s295 + $0x34] sm:$0xf]
      %v310 = vld [vmem:[%s295 + $0x38] sm:$0xf]
      %v311 = vld [vmem:[%s295 + $0x3c] sm:$0xf]
      %s312 = scalar_lea.vmem %s1, 128
      %v313 = vld [vmem:[%s312] sm:$0xf]
      %v314 = vld [vmem:[%s312 + $0x4] sm:$0xf]
      %v315 = vld [vmem:[%s312 + $0x8] sm:$0xf]
      %v316 = vld [vmem:[%s312 + $0xc] sm:$0xf]
      %v317 = vld [vmem:[%s312 + $0x10] sm:$0xf]
      %v318 = vld [vmem:[%s312 + $0x14] sm:$0xf]
      %v319 = vld [vmem:[%s312 + $0x18] sm:$0xf]
      %v320 = vld [vmem:[%s312 + $0x1c] sm:$0xf]
      %v321 = vld [vmem:[%s312 + $0x20] sm:$0xf]
      %v322 = vld [vmem:[%s312 + $0x24] sm:$0xf]
      %v323 = vld [vmem:[%s312 + $0x28] sm:$0xf]
      %v324 = vld [vmem:[%s312 + $0x2c] sm:$0xf]
      %v325 = vld [vmem:[%s312 + $0x30] sm:$0xf]
      %v326 = vld [vmem:[%s312 + $0x34] sm:$0xf]
      %v327 = vld [vmem:[%s312 + $0x38] sm:$0xf]
      %v328 = vld [vmem:[%s312 + $0x3c] sm:$0xf]
      %s329 = scalar_lea.vmem %s1, 192
      %v330 = vld [vmem:[%s329] sm:$0xf]
      %v331 = vld [vmem:[%s329 + $0x4] sm:$0xf]
      %v332 = vld [vmem:[%s329 + $0x8] sm:$0xf]
      %v333 = vld [vmem:[%s329 + $0xc] sm:$0xf]
      %v334 = vld [vmem:[%s329 + $0x10] sm:$0xf]
      %v335 = vld [vmem:[%s329 + $0x14] sm:$0xf]
      %v336 = vld [vmem:[%s329 + $0x18] sm:$0xf]
      %v337 = vld [vmem:[%s329 + $0x1c] sm:$0xf]
      %v338 = vld [vmem:[%s329 + $0x20] sm:$0xf]
      %v339 = vld [vmem:[%s329 + $0x24] sm:$0xf]
      %v340 = vld [vmem:[%s329 + $0x28] sm:$0xf]
      %v341 = vld [vmem:[%s329 + $0x2c] sm:$0xf]
      %v342 = vld [vmem:[%s329 + $0x30] sm:$0xf]
      %v343 = vld [vmem:[%s329 + $0x34] sm:$0xf]
      %v344 = vld [vmem:[%s329 + $0x38] sm:$0xf]
      %v345 = vld [vmem:[%s329 + $0x3c] sm:$0xf]
      %v410 = vunpack.c.l.b16 %v211
      %v411 = vunpack.c.l.b16 %v212
      %v412 = vunpack.c.l.b16 %v213
      %v413 = vunpack.c.l.b16 %v214
      %v414 = vunpack.c.l.b16 %v215
      %v415 = vunpack.c.l.b16 %v216
      %v416 = vunpack.c.l.b16 %v217
      %v417 = vunpack.c.l.b16 %v218
      %v418 = vunpack.c.l.b16 %v219
      %v419 = vunpack.c.l.b16 %v220
      %v420 = vunpack.c.l.b16 %v221
      %v421 = vunpack.c.l.b16 %v222
      %v422 = vunpack.c.l.b16 %v223
      %v423 = vunpack.c.l.b16 %v224
      %v424 = vunpack.c.l.b16 %v225
      %v425 = vunpack.c.l.b16 %v226
      %v426 = vunpack.c.l.b16 %v227
      %v427 = vunpack.c.l.b16 %v228
      %v428 = vunpack.c.l.b16 %v229
      %v429 = vunpack.c.l.b16 %v230
      %v430 = vunpack.c.l.b16 %v231
      %v431 = vunpack.c.l.b16 %v232
      %v432 = vunpack.c.l.b16 %v233
      %v433 = vunpack.c.l.b16 %v234
      %v434 = vunpack.c.l.b16 %v235
      %v435 = vunpack.c.l.b16 %v236
      %v436 = vunpack.c.l.b16 %v237
      %v437 = vunpack.c.l.b16 %v238
      %v438 = vunpack.c.l.b16 %v239
      %v439 = vunpack.c.l.b16 %v240
      %v440 = vunpack.c.l.b16 %v241
      %v441 = vunpack.c.l.b16 %v242
      %v442 = vunpack.c.l.b16 %v243
      %v443 = vunpack.c.l.b16 %v244
      %v444 = vunpack.c.l.b16 %v245
      %v445 = vunpack.c.l.b16 %v246
      %v446 = vunpack.c.l.b16 %v247
      %v447 = vunpack.c.l.b16 %v248
      %v448 = vunpack.c.l.b16 %v249
      %v449 = vunpack.c.l.b16 %v250
      %v450 = vunpack.c.l.b16 %v251
      %v451 = vunpack.c.l.b16 %v252
      %v452 = vunpack.c.l.b16 %v253
      %v453 = vunpack.c.l.b16 %v254
      %v454 = vunpack.c.l.b16 %v255
      %v455 = vunpack.c.l.b16 %v256
      %v456 = vunpack.c.l.b16 %v257
      %v457 = vunpack.c.l.b16 %v258
      %v458 = vunpack.c.l.b16 %v259
      %v459 = vunpack.c.l.b16 %v260
      %v460 = vunpack.c.l.b16 %v261
      %v461 = vunpack.c.l.b16 %v262
      %v462 = vunpack.c.l.b16 %v263
      %v463 = vunpack.c.l.b16 %v264
      %v464 = vunpack.c.l.b16 %v265
      %v465 = vunpack.c.l.b16 %v266
      %v466 = vunpack.c.l.b16 %v267
      %v467 = vunpack.c.l.b16 %v268
      %v468 = vunpack.c.l.b16 %v269
      %v469 = vunpack.c.l.b16 %v270
      %v470 = vunpack.c.l.b16 %v271
      %v471 = vunpack.c.l.b16 %v272
      %v472 = vunpack.c.l.b16 %v273
      %v473 = vunpack.c.l.b16 %v274
      %v474 = vpack.c.b16 %v411, %v410
      %v475 = vpack.c.b16 %v413, %v412
      %v476 = vpack.c.b16 %v415, %v414
      %v477 = vpack.c.b16 %v417, %v416
      %v478 = vpack.c.b16 %v419, %v418
      %v479 = vpack.c.b16 %v421, %v420
      %v480 = vpack.c.b16 %v423, %v422
      %v481 = vpack.c.b16 %v425, %v424
      %v482 = vpack.c.b16 %v427, %v426
      %v483 = vpack.c.b16 %v429, %v428
      %v484 = vpack.c.b16 %v431, %v430
      %v485 = vpack.c.b16 %v433, %v432
      %v486 = vpack.c.b16 %v435, %v434
      %v487 = vpack.c.b16 %v437, %v436
      %v488 = vpack.c.b16 %v439, %v438
      %v489 = vpack.c.b16 %v441, %v440
      %v490 = vpack.c.b16 %v443, %v442
      %v491 = vpack.c.b16 %v445, %v444
      %v492 = vpack.c.b16 %v447, %v446
      %v493 = vpack.c.b16 %v449, %v448
      %v494 = vpack.c.b16 %v451, %v450
      %v495 = vpack.c.b16 %v453, %v452
      %v496 = vpack.c.b16 %v455, %v454
      %v497 = vpack.c.b16 %v457, %v456
      %v498 = vpack.c.b16 %v459, %v458
      %v499 = vpack.c.b16 %v461, %v460
      %v500 = vpack.c.b16 %v463, %v462
      %v501 = vpack.c.b16 %v465, %v464
      %v502 = vpack.c.b16 %v467, %v466
      %v503 = vpack.c.b16 %v469, %v468
      %v504 = vpack.c.b16 %v471, %v470
      %v505 = vpack.c.b16 %v473, %v472
      %v554 = vunpack.c.l.b16 %v330
      %v555 = vunpack.c.l.b16 %v331
      %v556 = vunpack.c.l.b16 %v332
      %v557 = vunpack.c.l.b16 %v333
      %v558 = vunpack.c.l.b16 %v334
      %v559 = vunpack.c.l.b16 %v335
      %v560 = vunpack.c.l.b16 %v336
      %v561 = vunpack.c.l.b16 %v337
      %v562 = vunpack.c.l.b16 %v338
      %v563 = vunpack.c.l.b16 %v339
      %v564 = vunpack.c.l.b16 %v340
      %v565 = vunpack.c.l.b16 %v341
      %v566 = vunpack.c.l.b16 %v342
      %v567 = vunpack.c.l.b16 %v343
      %v568 = vunpack.c.l.b16 %v344
      %v569 = vunpack.c.l.b16 %v345
      %v570 = vpack.c.b16 %v555, %v554
      %v571 = vpack.c.b16 %v557, %v556
      %v572 = vpack.c.b16 %v559, %v558
      %v573 = vpack.c.b16 %v561, %v560
      %v574 = vpack.c.b16 %v563, %v562
      %v575 = vpack.c.b16 %v565, %v564
      %v576 = vpack.c.b16 %v567, %v566
      %v577 = vpack.c.b16 %v569, %v568
      %586 = vmatprep.subr.bf16.mxu0 0
      %587 = vmatpush1.bf16.msra.mxu0 %v570
      %588 = vmatprep.subr.bf16.mxu0 0
      %589 = vmatpush1.bf16.msra.mxu0 %v571
      %590 = vmatprep.subr.bf16.mxu0 0
      %591 = vmatpush1.bf16.msra.mxu0 %v572
      %592 = vmatprep.subr.bf16.mxu0 0
      %593 = vmatpush1.bf16.msra.mxu0 %v573
      %594 = vmatprep.subr.bf16.mxu0 0
      %595 = vmatpush1.bf16.msra.mxu0 %v574
      %596 = vmatprep.subr.bf16.mxu0 0
      %597 = vmatpush1.bf16.msra.mxu0 %v575
      %598 = vmatprep.subr.bf16.mxu0 0
      %599 = vmatpush1.bf16.msra.mxu0 %v576
      %600 = vmatprep.subr.bf16.mxu0 0
      %601 = vmatpush1.bf16.msra.mxu0 %v577
      %602 = vmatprep.subr.bf16.mxu0 0
      %603 = vmatpush1.bf16.msra.mxu0 0
      %604 = vmatprep.subr.bf16.mxu0 0
      %605 = vmatpush1.bf16.msra.mxu0 0
      %606 = vmatprep.subr.bf16.mxu0 0
      %607 = vmatpush1.bf16.msra.mxu0 0
      %608 = vmatprep.subr.bf16.mxu0 0
      %609 = vmatpush1.bf16.msra.mxu0 0
      %610 = vmatprep.subr.bf16.mxu0 0
      %611 = vmatpush1.bf16.msra.mxu0 0
      %612 = vmatprep.subr.bf16.mxu0 0
      %613 = vmatpush1.bf16.msra.mxu0 0
      %614 = vmatprep.subr.bf16.mxu0 0
      %615 = vmatpush1.bf16.msra.mxu0 0
      %616 = vmatprep.subr.bf16.mxu0 0
      %617 = vmatpush1.bf16.msra.mxu0 0
      %618 = vmatprep.mubr.bf16.mxu0 0
      %619 = vmatmul.mubr.bf16.gmra.mrb[0].mxu0 %v474
      %v620 = vpop.f32.mrb[0].mxu0
      %v621 = vadd.f32 0.0, %v620
      %v622 = vpop.f32.mrb[0].mxu0
      %v623 = vpop.f32.mrb[0].mxu0
      %v624 = vadd.f32 0.0, %v623
      %v625 = vpop.f32.mrb[0].mxu0
      %626 = vmatprep.mubr.bf16.mxu0 0
      %627 = vmatmul.mubr.bf16.gmra.mrb[0].mxu0 %v475
      %v628 = vpop.f32.mrb[0].mxu0
      %v629 = vadd.f32 0.0, %v628
      %v630 = vpop.f32.mrb[0].mxu0
      %v631 = vpop.f32.mrb[0].mxu0
      %v632 = vadd.f32 0.0, %v631
      %v633 = vpop.f32.mrb[0].mxu0
      %634 = vmatprep.mubr.bf16.mxu0 0
      %635 = vmatmul.mubr.bf16.gmra.mrb[0].mxu0 %v476
      %v636 = vpop.f32.mrb[0].mxu0
      %v637 = vadd.f32 0.0, %v636
      %v638 = vpop.f32.mrb[0].mxu0
      %v639 = vpop.f32.mrb[0].mxu0
      %v640 = vadd.f32 0.0, %v639
      %v641 = vpop.f32.mrb[0].mxu0
      %642 = vmatprep.mubr.bf16.mxu0 0
      %643 = vmatmul.mubr.bf16.gmra.mrb[0].mxu0 %v477
      %v644 = vpop.f32.mrb[0].mxu0
      %v645 = vadd.f32 0.0, %v644
      %v646 = vpop.f32.mrb[0].mxu0
      %v647 = vpop.f32.mrb[0].mxu0
      %v648 = vadd.f32 0.0, %v647
      %v649 = vpop.f32.mrb[0].mxu0
      %650 = vmatprep.mubr.bf16.mxu0 0
      %651 = vmatmul.mubr.bf16.gmra.mrb[0].mxu0 %v478
      %v652 = vpop.f32.mrb[0].mxu0
      %v653 = vadd.f32 0.0, %v652
      %v654 = vpop.f32.mrb[0].mxu0
      %v655 = vpop.f32.mrb[0].mxu0
      %v656 = vadd.f32 0.0, %v655
      %v657 = vpop.f32.mrb[0].mxu0
      %658 = vmatprep.mubr.bf16.mxu0 0
      %659 = vmatmul.mubr.bf16.gmra.mrb[0].mxu0 %v479
      %v660 = vpop.f32.mrb[0].mxu0
      %v661 = vadd.f32 0.0, %v660
      %v662 = vpop.f32.mrb[0].mxu0
      %v663 = vpop.f32.mrb[0].mxu0
      %v664 = vadd.f32 0.0, %v663
      %v665 = vpop.f32.mrb[0].mxu0
      %666 = vmatprep.mubr.bf16.mxu0 0
      %667 = vmatmul.mubr.bf16.gmra.mrb[0].mxu0 %v480
      %v668 = vpop.f32.mrb[0].mxu0
      %v669 = vadd.f32 0.0, %v668
      %v670 = vpop.f32.mrb[0].mxu0
      %v671 = vpop.f32.mrb[0].mxu0
      %v672 = vadd.f32 0.0, %v671
      %v673 = vpop.f32.mrb[0].mxu0
      %674 = vmatprep.mubr.bf16.mxu0 0
      %675 = vmatmul.mubr.bf16.gmra.mrb[0].mxu0 %v481
      %v676 = vpop.f32.mrb[0].mxu0
      %v677 = vadd.f32 0.0, %v676
      %v678 = vpop.f32.mrb[0].mxu0
      %v679 = vpop.f32.mrb[0].mxu0
      %v680 = vadd.f32 0.0, %v679
      %v681 = vpop.f32.mrb[0].mxu0
      %682 = vmatprep.mubr.bf16.mxu0 0
      %683 = vmatmul.mubr.bf16.gmra.mrb[0].mxu0 %v482
      %v684 = vpop.f32.mrb[0].mxu0
      %v685 = vadd.f32 0.0, %v684
      %v686 = vpop.f32.mrb[0].mxu0
      %v687 = vpop.f32.mrb[0].mxu0
      %v688 = vadd.f32 0.0, %v687
      %v689 = vpop.f32.mrb[0].mxu0
      %690 = vmatprep.mubr.bf16.mxu0 0
      %691 = vmatmul.mubr.bf16.gmra.mrb[0].mxu0 %v483
      %v692 = vpop.f32.mrb[0].mxu0
      %v693 = vadd.f32 0.0, %v692
      %v694 = vpop.f32.mrb[0].mxu0
      %v695 = vpop.f32.mrb[0].mxu0
      %v696 = vadd.f32 0.0, %v695
      %v697 = vpop.f32.mrb[0].mxu0
      %698 = vmatprep.mubr.bf16.mxu0 0
      %699 = vmatmul.mubr.bf16.gmra.mrb[0].mxu0 %v484
      %v700 = vpop.f32.mrb[0].mxu0
      %v701 = vadd.f32 0.0, %v700
      %v702 = vpop.f32.mrb[0].mxu0
      %v703 = vpop.f32.mrb[0].mxu0
      %v704 = vadd.f32 0.0, %v703
      %v705 = vpop.f32.mrb[0].mxu0
      %706 = vmatprep.mubr.bf16.mxu0 0
      %707 = vmatmul.mubr.bf16.gmra.mrb[0].mxu0 %v485
      %v708 = vpop.f32.mrb[0].mxu0
      %v709 = vadd.f32 0.0, %v708
      %v710 = vpop.f32.mrb[0].mxu0
      %v711 = vpop.f32.mrb[0].mxu0
      %v712 = vadd.f32 0.0, %v711
      %v713 = vpop.f32.mrb[0].mxu0
      %714 = vmatprep.mubr.bf16.mxu0 0
      %715 = vmatmul.mubr.bf16.gmra.mrb[0].mxu0 %v486
      %v716 = vpop.f32.mrb[0].mxu0
      %v717 = vadd.f32 0.0, %v716
      %v718 = vpop.f32.mrb[0].mxu0
      %v719 = vpop.f32.mrb[0].mxu0
      %v720 = vadd.f32 0.0, %v719
      %v721 = vpop.f32.mrb[0].mxu0
      %722 = vmatprep.mubr.bf16.mxu0 0
      %723 = vmatmul.mubr.bf16.gmra.mrb[0].mxu0 %v487
      %v724 = vpop.f32.mrb[0].mxu0
      %v725 = vadd.f32 0.0, %v724
      %v726 = vpop.f32.mrb[0].mxu0
      %v727 = vpop.f32.mrb[0].mxu0
      %v728 = vadd.f32 0.0, %v727
      %v729 = vpop.f32.mrb[0].mxu0
      %730 = vmatprep.mubr.bf16.mxu0 0
      %731 = vmatmul.mubr.bf16.gmra.mrb[0].mxu0 %v488
      %v732 = vpop.f32.mrb[0].mxu0
      %v733 = vadd.f32 0.0, %v732
      %v734 = vpop.f32.mrb[0].mxu0
      %v735 = vpop.f32.mrb[0].mxu0
      %v736 = vadd.f32 0.0, %v735
      %v737 = vpop.f32.mrb[0].mxu0
      %738 = vmatprep.mubr.bf16.mxu0 0
      %739 = vmatmul.mubr.bf16.gmra.mrb[0].mxu0 %v489
      %v740 = vpop.f32.mrb[0].mxu0
      %v741 = vadd.f32 0.0, %v740
      %v742 = vpop.f32.mrb[0].mxu0
      %v743 = vpop.f32.mrb[0].mxu0
      %v744 = vadd.f32 0.0, %v743
      %v745 = vpop.f32.mrb[0].mxu0
      %746 = vmatprep.mubr.bf16.mxu0 0
      %747 = vmatmul.mubr.bf16.gmra.mrb[0].mxu0 %v490
      %v748 = vpop.f32.mrb[0].mxu0
      %v749 = vadd.f32 0.0, %v748
      %v750 = vpop.f32.mrb[0].mxu0
      %v751 = vpop.f32.mrb[0].mxu0
      %v752 = vadd.f32 0.0, %v751
      %v753 = vpop.f32.mrb[0].mxu0
      %754 = vmatprep.mubr.bf16.mxu0 0
      %755 = vmatmul.mubr.bf16.gmra.mrb[0].mxu0 %v491
      %v756 = vpop.f32.mrb[0].mxu0
      %v757 = vadd.f32 0.0, %v756
      %v758 = vpop.f32.mrb[0].mxu0
      %v759 = vpop.f32.mrb[0].mxu0
      %v760 = vadd.f32 0.0, %v759
      %v761 = vpop.f32.mrb[0].mxu0
      %762 = vmatprep.mubr.bf16.mxu0 0
      %763 = vmatmul.mubr.bf16.gmra.mrb[0].mxu0 %v492
      %v764 = vpop.f32.mrb[0].mxu0
      %v765 = vadd.f32 0.0, %v764
      %v766 = vpop.f32.mrb[0].mxu0
      %v767 = vpop.f32.mrb[0].mxu0
      %v768 = vadd.f32 0.0, %v767
      %v769 = vpop.f32.mrb[0].mxu0
      %770 = vmatprep.mubr.bf16.mxu0 0
      %771 = vmatmul.mubr.bf16.gmra.mrb[0].mxu0 %v493
      %v772 = vpop.f32.mrb[0].mxu0
      %v773 = vadd.f32 0.0, %v772
      %v774 = vpop.f32.mrb[0].mxu0
      %v775 = vpop.f32.mrb[0].mxu0
      %v776 = vadd.f32 0.0, %v775
      %v777 = vpop.f32.mrb[0].mxu0
      %778 = vmatprep.mubr.bf16.mxu0 0
      %779 = vmatmul.mubr.bf16.gmra.mrb[0].mxu0 %v494
      %v780 = vpop.f32.mrb[0].mxu0
      %v781 = vadd.f32 0.0, %v780
      %v782 = vpop.f32.mrb[0].mxu0
      %v783 = vpop.f32.mrb[0].mxu0
      %v784 = vadd.f32 0.0, %v783
      %v785 = vpop.f32.mrb[0].mxu0
      %786 = vmatprep.mubr.bf16.mxu0 0
      %787 = vmatmul.mubr.bf16.gmra.mrb[0].mxu0 %v495
      %v788 = vpop.f32.mrb[0].mxu0
      %v789 = vadd.f32 0.0, %v788
      %v790 = vpop.f32.mrb[0].mxu0
      %v791 = vpop.f32.mrb[0].mxu0
      %v792 = vadd.f32 0.0, %v791
      %v793 = vpop.f32.mrb[0].mxu0
      %794 = vmatprep.mubr.bf16.mxu0 0
      %795 = vmatmul.mubr.bf16.gmra.mrb[0].mxu0 %v496
      %v796 = vpop.f32.mrb[0].mxu0
      %v797 = vadd.f32 0.0, %v796
      %v798 = vpop.f32.mrb[0].mxu0
      %v799 = vpop.f32.mrb[0].mxu0
      %v800 = vadd.f32 0.0, %v799
      %v801 = vpop.f32.mrb[0].mxu0
      %802 = vmatprep.mubr.bf16.mxu0 0
      %803 = vmatmul.mubr.bf16.gmra.mrb[0].mxu0 %v497
      %v804 = vpop.f32.mrb[0].mxu0
      %v805 = vadd.f32 0.0, %v804
      %v806 = vpop.f32.mrb[0].mxu0
      %v807 = vpop.f32.mrb[0].mxu0
      %v808 = vadd.f32 0.0, %v807
      %v809 = vpop.f32.mrb[0].mxu0
      %810 = vmatprep.mubr.bf16.mxu0 0
      %811 = vmatmul.mubr.bf16.gmra.mrb[0].mxu0 %v498
      %v812 = vpop.f32.mrb[0].mxu0
      %v813 = vadd.f32 0.0, %v812
      %v814 = vpop.f32.mrb[0].mxu0
      %v815 = vpop.f32.mrb[0].mxu0
      %v816 = vadd.f32 0.0, %v815
      %v817 = vpop.f32.mrb[0].mxu0
      %818 = vmatprep.mubr.bf16.mxu0 0
      %819 = vmatmul.mubr.bf16.gmra.mrb[0].mxu0 %v499
      %v820 = vpop.f32.mrb[0].mxu0
      %v821 = vadd.f32 0.0, %v820
      %v822 = vpop.f32.mrb[0].mxu0
      %v823 = vpop.f32.mrb[0].mxu0
      %v824 = vadd.f32 0.0, %v823
      %v825 = vpop.f32.mrb[0].mxu0
      %826 = vmatprep.mubr.bf16.mxu0 0
      %827 = vmatmul.mubr.bf16.gmra.mrb[0].mxu0 %v500
      %v828 = vpop.f32.mrb[0].mxu0
      %v829 = vadd.f32 0.0, %v828
      %v830 = vpop.f32.mrb[0].mxu0
      %v831 = vpop.f32.mrb[0].mxu0
      %v832 = vadd.f32 0.0, %v831
      %v833 = vpop.f32.mrb[0].mxu0
      %834 = vmatprep.mubr.bf16.mxu0 0
      %835 = vmatmul.mubr.bf16.gmra.mrb[0].mxu0 %v501
      %v836 = vpop.f32.mrb[0].mxu0
      %v837 = vadd.f32 0.0, %v836
      %v838 = vpop.f32.mrb[0].mxu0
      %v839 = vpop.f32.mrb[0].mxu0
      %v840 = vadd.f32 0.0, %v839
      %v841 = vpop.f32.mrb[0].mxu0
      %842 = vmatprep.mubr.bf16.mxu0 0
      %843 = vmatmul.mubr.bf16.gmra.mrb[0].mxu0 %v502
      %v844 = vpop.f32.mrb[0].mxu0
      %v845 = vadd.f32 0.0, %v844
      %v846 = vpop.f32.mrb[0].mxu0
      %v847 = vpop.f32.mrb[0].mxu0
      %v848 = vadd.f32 0.0, %v847
      %v849 = vpop.f32.mrb[0].mxu0
      %850 = vmatprep.mubr.bf16.mxu0 0
      %851 = vmatmul.mubr.bf16.gmra.mrb[0].mxu0 %v503
      %v852 = vpop.f32.mrb[0].mxu0
      %v853 = vadd.f32 0.0, %v852
      %v854 = vpop.f32.mrb[0].mxu0
      %v855 = vpop.f32.mrb[0].mxu0
      %v856 = vadd.f32 0.0, %v855
      %v857 = vpop.f32.mrb[0].mxu0
      %858 = vmatprep.mubr.bf16.mxu0 0
      %859 = vmatmul.mubr.bf16.gmra.mrb[0].mxu0 %v504
      %v860 = vpop.f32.mrb[0].mxu0
      %v861 = vadd.f32 0.0, %v860
      %v862 = vpop.f32.mrb[0].mxu0
      %v863 = vpop.f32.mrb[0].mxu0
      %v864 = vadd.f32 0.0, %v863
      %v865 = vpop.f32.mrb[0].mxu0
      %866 = vmatprep.mubr.bf16.mxu0 0
      %867 = vmatmul.mubr.bf16.gmra.mrb[0].mxu0 %v505
      %v868 = vpop.f32.mrb[0].mxu0
      %v869 = vadd.f32 0.0, %v868
      %v870 = vpop.f32.mrb[0].mxu0
      %v871 = vpop.f32.mrb[0].mxu0
      %v872 = vadd.f32 0.0, %v871
      %v873 = vpop.f32.mrb[0].mxu0
      %874 = vdwg.mxu0
      %v879 = vunpack.c.l.b16 %v207
      %v880 = vunpack.c.l.b16 %v208
      %v881 = vunpack.c.l.b16 %v209
      %v882 = vunpack.c.l.b16 %v210
      %v883 = vpack.c.b16 %v880, %v879
      %v884 = vpack.c.b16 %v882, %v881
      %v903 = vunpack.c.l.b16 %v279
      %v904 = vunpack.c.l.b16 %v280
      %v905 = vunpack.c.l.b16 %v281
      %v906 = vunpack.c.l.b16 %v282
      %v907 = vunpack.c.l.b16 %v283
      %v908 = vunpack.c.l.b16 %v284
      %v909 = vunpack.c.l.b16 %v285
      %v910 = vunpack.c.l.b16 %v286
      %v911 = vunpack.c.l.b16 %v287
      %v912 = vunpack.c.l.b16 %v288
      %v913 = vunpack.c.l.b16 %v289
      %v914 = vunpack.c.l.b16 %v290
      %v915 = vunpack.c.l.b16 %v291
      %v916 = vunpack.c.l.b16 %v292
      %v917 = vunpack.c.l.b16 %v293
      %v918 = vunpack.c.l.b16 %v294
      %v919 = vpack.c.b16 %v904, %v903
      %v920 = vpack.c.b16 %v906, %v905
      %v921 = vpack.c.b16 %v908, %v907
      %v922 = vpack.c.b16 %v910, %v909
      %v923 = vpack.c.b16 %v912, %v911
      %v924 = vpack.c.b16 %v914, %v913
      %v925 = vpack.c.b16 %v916, %v915
      %v926 = vpack.c.b16 %v918, %v917
      %935 = vmatprep.subr.bf16.mxu0 0
      %936 = vmatpush1.bf16.msra.mxu0 %v919
      %937 = vmatprep.subr.bf16.mxu0 0
      %938 = vmatpush1.bf16.msra.mxu0 %v920
      %939 = vmatprep.subr.bf16.mxu0 0
      %940 = vmatpush1.bf16.msra.mxu0 %v921
      %941 = vmatprep.subr.bf16.mxu0 0
      %942 = vmatpush1.bf16.msra.mxu0 %v922
      %943 = vmatprep.subr.bf16.mxu0 0
      %944 = vmatpush1.bf16.msra.mxu0 %v923
      %945 = vmatprep.subr.bf16.mxu0 0
      %946 = vmatpush1.bf16.msra.mxu0 %v924
      %947 = vmatprep.subr.bf16.mxu0 0
      %948 = vmatpush1.bf16.msra.mxu0 %v925
      %949 = vmatprep.subr.bf16.mxu0 0
      %950 = vmatpush1.bf16.msra.mxu0 %v926
      %951 = vmatprep.subr.bf16.mxu0 0
      %952 = vmatpush1.bf16.msra.mxu0 0
      %953 = vmatprep.subr.bf16.mxu0 0
      %954 = vmatpush1.bf16.msra.mxu0 0
      %955 = vmatprep.subr.bf16.mxu0 0
      %956 = vmatpush1.bf16.msra.mxu0 0
      %957 = vmatprep.subr.bf16.mxu0 0
      %958 = vmatpush1.bf16.msra.mxu0 0
      %959 = vmatprep.subr.bf16.mxu0 0
      %960 = vmatpush1.bf16.msra.mxu0 0
      %961 = vmatprep.subr.bf16.mxu0 0
      %962 = vmatpush1.bf16.msra.mxu0 0
      %963 = vmatprep.subr.bf16.mxu0 0
      %964 = vmatpush1.bf16.msra.mxu0 0
      %965 = vmatprep.subr.bf16.mxu0 0
      %966 = vmatpush1.bf16.msra.mxu0 0
      %967 = vmatprep.mubr.bf16.mxu0 0
      %968 = vmatmul.mubr.bf16.gmra.mrb[0].mxu0 %v883
      %v969 = vpop.f32.mrb[0].mxu0
      %v970 = vadd.f32 %v621, %v969
      %v971 = vpop.f32.mrb[0].mxu0
      %v972 = vpop.f32.mrb[0].mxu0
      %v973 = vadd.f32 %v624, %v972
      %v974 = vpop.f32.mrb[0].mxu0
      %975 = vmatprep.mubr.bf16.mxu0 0
      %976 = vmatmul.mubr.bf16.gmra.mrb[0].mxu0 %v884
      %v977 = vpop.f32.mrb[0].mxu0
      %v978 = vadd.f32 %v629, %v977
      %v979 = vpop.f32.mrb[0].mxu0
      %v980 = vpop.f32.mrb[0].mxu0
      %v981 = vadd.f32 %v632, %v980
      %v982 = vpop.f32.mrb[0].mxu0
      %983 = vmatprep.mubr.bf16.mxu0 0
      %984 = vmatmul.mubr.bf16.gmra.mrb[0].mxu0 %v474
      %v985 = vpop.f32.mrb[0].mxu0
      %v986 = vadd.f32 %v637, %v985
      %v987 = vpop.f32.mrb[0].mxu0
      %v988 = vpop.f32.mrb[0].mxu0
      %v989 = vadd.f32 %v640, %v988
      %v990 = vpop.f32.mrb[0].mxu0
      %991 = vmatprep.mubr.bf16.mxu0 0
      %992 = vmatmul.mubr.bf16.gmra.mrb[0].mxu0 %v475
      %v993 = vpop.f32.mrb[0].mxu0
      %v994 = vadd.f32 %v645, %v993
      %v995 = vpop.f32.mrb[0].mxu0
      %v996 = vpop.f32.mrb[0].mxu0
      %v997 = vadd.f32 %v648, %v996
      %v998 = vpop.f32.mrb[0].mxu0
      %999 = vmatprep.mubr.bf16.mxu0 0
      %1000 = vmatmul.mubr.bf16.gmra.mrb[0].mxu0 %v476
      %v1001 = vpop.f32.mrb[0].mxu0
      %v1002 = vadd.f32 %v653, %v1001
      %v1003 = vpop.f32.mrb[0].mxu0
      %v1004 = vpop.f32.mrb[0].mxu0
      %v1005 = vadd.f32 %v656, %v1004
      %v1006 = vpop.f32.mrb[0].mxu0
      %1007 = vmatprep.mubr.bf16.mxu0 0
      %1008 = vmatmul.mubr.bf16.gmra.mrb[0].mxu0 %v477
      %v1009 = vpop.f32.mrb[0].mxu0
      %v1010 = vadd.f32 %v661, %v1009
      %v1011 = vpop.f32.mrb[0].mxu0
      %v1012 = vpop.f32.mrb[0].mxu0
      %v1013 = vadd.f32 %v664, %v1012
      %v1014 = vpop.f32.mrb[0].mxu0
      %1015 = vmatprep.mubr.bf16.mxu0 0
      %1016 = vmatmul.mubr.bf16.gmra.mrb[0].mxu0 %v478
      %v1017 = vpop.f32.mrb[0].mxu0
      %v1018 = vadd.f32 %v669, %v1017
      %v1019 = vpop.f32.mrb[0].mxu0
      %v1020 = vpop.f32.mrb[0].mxu0
      %v1021 = vadd.f32 %v672, %v1020
      %v1022 = vpop.f32.mrb[0].mxu0
      %1023 = vmatprep.mubr.bf16.mxu0 0
      %1024 = vmatmul.mubr.bf16.gmra.mrb[0].mxu0 %v479
      %v1025 = vpop.f32.mrb[0].mxu0
      %v1026 = vadd.f32 %v677, %v1025
      %v1027 = vpop.f32.mrb[0].mxu0
      %v1028 = vpop.f32.mrb[0].mxu0
      %v1029 = vadd.f32 %v680, %v1028
      %v1030 = vpop.f32.mrb[0].mxu0
      %1031 = vmatprep.mubr.bf16.mxu0 0
      %1032 = vmatmul.mubr.bf16.gmra.mrb[0].mxu0 %v480
      %v1033 = vpop.f32.mrb[0].mxu0
      %v1034 = vadd.f32 %v685, %v1033
      %v1035 = vpop.f32.mrb[0].mxu0
      %v1036 = vpop.f32.mrb[0].mxu0
      %v1037 = vadd.f32 %v688, %v1036
      %v1038 = vpop.f32.mrb[0].mxu0
      %1039 = vmatprep.mubr.bf16.mxu0 0
      %1040 = vmatmul.mubr.bf16.gmra.mrb[0].mxu0 %v481
      %v1041 = vpop.f32.mrb[0].mxu0
      %v1042 = vadd.f32 %v693, %v1041
      %v1043 = vpop.f32.mrb[0].mxu0
      %v1044 = vpop.f32.mrb[0].mxu0
      %v1045 = vadd.f32 %v696, %v1044
      %v1046 = vpop.f32.mrb[0].mxu0
      %1047 = vmatprep.mubr.bf16.mxu0 0
      %1048 = vmatmul.mubr.bf16.gmra.mrb[0].mxu0 %v482
      %v1049 = vpop.f32.mrb[0].mxu0
      %v1050 = vadd.f32 %v701, %v1049
      %v1051 = vpop.f32.mrb[0].mxu0
      %v1052 = vpop.f32.mrb[0].mxu0
      %v1053 = vadd.f32 %v704, %v1052
      %v1054 = vpop.f32.mrb[0].mxu0
      %1055 = vmatprep.mubr.bf16.mxu0 0
      %1056 = vmatmul.mubr.bf16.gmra.mrb[0].mxu0 %v483
      %v1057 = vpop.f32.mrb[0].mxu0
      %v1058 = vadd.f32 %v709, %v1057
      %v1059 = vpop.f32.mrb[0].mxu0
      %v1060 = vpop.f32.mrb[0].mxu0
      %v1061 = vadd.f32 %v712, %v1060
      %v1062 = vpop.f32.mrb[0].mxu0
      %1063 = vmatprep.mubr.bf16.mxu0 0
      %1064 = vmatmul.mubr.bf16.gmra.mrb[0].mxu0 %v484
      %v1065 = vpop.f32.mrb[0].mxu0
      %v1066 = vadd.f32 %v717, %v1065
      %v1067 = vpop.f32.mrb[0].mxu0
      %v1068 = vpop.f32.mrb[0].mxu0
      %v1069 = vadd.f32 %v720, %v1068
      %v1070 = vpop.f32.mrb[0].mxu0
      %1071 = vmatprep.mubr.bf16.mxu0 0
      %1072 = vmatmul.mubr.bf16.gmra.mrb[0].mxu0 %v485
      %v1073 = vpop.f32.mrb[0].mxu0
      %v1074 = vadd.f32 %v725, %v1073
      %v1075 = vpop.f32.mrb[0].mxu0
      %v1076 = vpop.f32.mrb[0].mxu0
      %v1077 = vadd.f32 %v728, %v1076
      %v1078 = vpop.f32.mrb[0].mxu0
      %1079 = vmatprep.mubr.bf16.mxu0 0
      %1080 = vmatmul.mubr.bf16.gmra.mrb[0].mxu0 %v486
      %v1081 = vpop.f32.mrb[0].mxu0
      %v1082 = vadd.f32 %v733, %v1081
      %v1083 = vpop.f32.mrb[0].mxu0
      %v1084 = vpop.f32.mrb[0].mxu0
      %v1085 = vadd.f32 %v736, %v1084
      %v1086 = vpop.f32.mrb[0].mxu0
      %1087 = vmatprep.mubr.bf16.mxu0 0
      %1088 = vmatmul.mubr.bf16.gmra.mrb[0].mxu0 %v487
      %v1089 = vpop.f32.mrb[0].mxu0
      %v1090 = vadd.f32 %v741, %v1089
      %v1091 = vpop.f32.mrb[0].mxu0
      %v1092 = vpop.f32.mrb[0].mxu0
      %v1093 = vadd.f32 %v744, %v1092
      %v1094 = vpop.f32.mrb[0].mxu0
      %1095 = vmatprep.mubr.bf16.mxu0 0
      %1096 = vmatmul.mubr.bf16.gmra.mrb[0].mxu0 %v488
      %v1097 = vpop.f32.mrb[0].mxu0
      %v1098 = vadd.f32 %v749, %v1097
      %v1099 = vpop.f32.mrb[0].mxu0
      %v1100 = vpop.f32.mrb[0].mxu0
      %v1101 = vadd.f32 %v752, %v1100
      %v1102 = vpop.f32.mrb[0].mxu0
      %1103 = vmatprep.mubr.bf16.mxu0 0
      %1104 = vmatmul.mubr.bf16.gmra.mrb[0].mxu0 %v489
      %v1105 = vpop.f32.mrb[0].mxu0
      %v1106 = vadd.f32 %v757, %v1105
      %v1107 = vpop.f32.mrb[0].mxu0
      %v1108 = vpop.f32.mrb[0].mxu0
      %v1109 = vadd.f32 %v760, %v1108
      %v1110 = vpop.f32.mrb[0].mxu0
      %1111 = vmatprep.mubr.bf16.mxu0 0
      %1112 = vmatmul.mubr.bf16.gmra.mrb[0].mxu0 %v490
      %v1113 = vpop.f32.mrb[0].mxu0
      %v1114 = vadd.f32 %v765, %v1113
      %v1115 = vpop.f32.mrb[0].mxu0
      %v1116 = vpop.f32.mrb[0].mxu0
      %v1117 = vadd.f32 %v768, %v1116
      %v1118 = vpop.f32.mrb[0].mxu0
      %1119 = vmatprep.mubr.bf16.mxu0 0
      %1120 = vmatmul.mubr.bf16.gmra.mrb[0].mxu0 %v491
      %v1121 = vpop.f32.mrb[0].mxu0
      %v1122 = vadd.f32 %v773, %v1121
      %v1123 = vpop.f32.mrb[0].mxu0
      %v1124 = vpop.f32.mrb[0].mxu0
      %v1125 = vadd.f32 %v776, %v1124
      %v1126 = vpop.f32.mrb[0].mxu0
      %1127 = vmatprep.mubr.bf16.mxu0 0
      %1128 = vmatmul.mubr.bf16.gmra.mrb[0].mxu0 %v492
      %v1129 = vpop.f32.mrb[0].mxu0
      %v1130 = vadd.f32 %v781, %v1129
      %v1131 = vpop.f32.mrb[0].mxu0
      %v1132 = vpop.f32.mrb[0].mxu0
      %v1133 = vadd.f32 %v784, %v1132
      %v1134 = vpop.f32.mrb[0].mxu0
      %1135 = vmatprep.mubr.bf16.mxu0 0
      %1136 = vmatmul.mubr.bf16.gmra.mrb[0].mxu0 %v493
      %v1137 = vpop.f32.mrb[0].mxu0
      %v1138 = vadd.f32 %v789, %v1137
      %v1139 = vpop.f32.mrb[0].mxu0
      %v1140 = vpop.f32.mrb[0].mxu0
      %v1141 = vadd.f32 %v792, %v1140
      %v1142 = vpop.f32.mrb[0].mxu0
      %1143 = vmatprep.mubr.bf16.mxu0 0
      %1144 = vmatmul.mubr.bf16.gmra.mrb[0].mxu0 %v494
      %v1145 = vpop.f32.mrb[0].mxu0
      %v1146 = vadd.f32 %v797, %v1145
      %v1147 = vpop.f32.mrb[0].mxu0
      %v1148 = vpop.f32.mrb[0].mxu0
      %v1149 = vadd.f32 %v800, %v1148
      %v1150 = vpop.f32.mrb[0].mxu0
      %1151 = vmatprep.mubr.bf16.mxu0 0
      %1152 = vmatmul.mubr.bf16.gmra.mrb[0].mxu0 %v495
      %v1153 = vpop.f32.mrb[0].mxu0
      %v1154 = vadd.f32 %v805, %v1153
      %v1155 = vpop.f32.mrb[0].mxu0
      %v1156 = vpop.f32.mrb[0].mxu0
      %v1157 = vadd.f32 %v808, %v1156
      %v1158 = vpop.f32.mrb[0].mxu0
      %1159 = vmatprep.mubr.bf16.mxu0 0
      %1160 = vmatmul.mubr.bf16.gmra.mrb[0].mxu0 %v496
      %v1161 = vpop.f32.mrb[0].mxu0
      %v1162 = vadd.f32 %v813, %v1161
      %v1163 = vpop.f32.mrb[0].mxu0
      %v1164 = vpop.f32.mrb[0].mxu0
      %v1165 = vadd.f32 %v816, %v1164
      %v1166 = vpop.f32.mrb[0].mxu0
      %1167 = vmatprep.mubr.bf16.mxu0 0
      %1168 = vmatmul.mubr.bf16.gmra.mrb[0].mxu0 %v497
      %v1169 = vpop.f32.mrb[0].mxu0
      %v1170 = vadd.f32 %v821, %v1169
      %v1171 = vpop.f32.mrb[0].mxu0
      %v1172 = vpop.f32.mrb[0].mxu0
      %v1173 = vadd.f32 %v824, %v1172
      %v1174 = vpop.f32.mrb[0].mxu0
      %1175 = vmatprep.mubr.bf16.mxu0 0
      %1176 = vmatmul.mubr.bf16.gmra.mrb[0].mxu0 %v498
      %v1177 = vpop.f32.mrb[0].mxu0
      %v1178 = vadd.f32 %v829, %v1177
      %v1179 = vpop.f32.mrb[0].mxu0
      %v1180 = vpop.f32.mrb[0].mxu0
      %v1181 = vadd.f32 %v832, %v1180
      %v1182 = vpop.f32.mrb[0].mxu0
      %1183 = vmatprep.mubr.bf16.mxu0 0
      %1184 = vmatmul.mubr.bf16.gmra.mrb[0].mxu0 %v499
      %v1185 = vpop.f32.mrb[0].mxu0
      %v1186 = vadd.f32 %v837, %v1185
      %v1187 = vpop.f32.mrb[0].mxu0
      %v1188 = vpop.f32.mrb[0].mxu0
      %v1189 = vadd.f32 %v840, %v1188
      %v1190 = vpop.f32.mrb[0].mxu0
      %1191 = vmatprep.mubr.bf16.mxu0 0
      %1192 = vmatmul.mubr.bf16.gmra.mrb[0].mxu0 %v500
      %v1193 = vpop.f32.mrb[0].mxu0
      %v1194 = vadd.f32 %v845, %v1193
      %v1195 = vpop.f32.mrb[0].mxu0
      %v1196 = vpop.f32.mrb[0].mxu0
      %v1197 = vadd.f32 %v848, %v1196
      %v1198 = vpop.f32.mrb[0].mxu0
      %1199 = vmatprep.mubr.bf16.mxu0 0
      %1200 = vmatmul.mubr.bf16.gmra.mrb[0].mxu0 %v501
      %v1201 = vpop.f32.mrb[0].mxu0
      %v1202 = vadd.f32 %v853, %v1201
      %v1203 = vpop.f32.mrb[0].mxu0
      %v1204 = vpop.f32.mrb[0].mxu0
      %v1205 = vadd.f32 %v856, %v1204
      %v1206 = vpop.f32.mrb[0].mxu0
      %1207 = vmatprep.mubr.bf16.mxu0 0
      %1208 = vmatmul.mubr.bf16.gmra.mrb[0].mxu0 %v502
      %v1209 = vpop.f32.mrb[0].mxu0
      %v1210 = vadd.f32 %v861, %v1209
      %v1211 = vpop.f32.mrb[0].mxu0
      %v1212 = vpop.f32.mrb[0].mxu0
      %v1213 = vadd.f32 %v864, %v1212
      %v1214 = vpop.f32.mrb[0].mxu0
      %1215 = vmatprep.mubr.bf16.mxu0 0
      %1216 = vmatmul.mubr.bf16.gmra.mrb[0].mxu0 %v503
      %v1217 = vpop.f32.mrb[0].mxu0
      %v1218 = vadd.f32 %v869, %v1217
      %v1219 = vpop.f32.mrb[0].mxu0
      %v1220 = vpop.f32.mrb[0].mxu0
      %v1221 = vadd.f32 %v872, %v1220
      %v1222 = vpop.f32.mrb[0].mxu0
      %1223 = vdwg.mxu0
      %s1224 = scalar_lea.vmem %s1, 256
      %v1225 = vld [vmem:[%s1224] sm:$0xf]
      %v1226 = vld [vmem:[%s1224 + $0x4] sm:$0xf]
      %v1227 = vld [vmem:[%s1224 + $0x8] sm:$0xf]
      %v1228 = vld [vmem:[%s1224 + $0xc] sm:$0xf]
      %v1229 = vld [vmem:[%s1224 + $0x10] sm:$0xf]
      %v1230 = vld [vmem:[%s1224 + $0x14] sm:$0xf]
      %v1231 = vld [vmem:[%s1224 + $0x18] sm:$0xf]
      %v1232 = vld [vmem:[%s1224 + $0x1c] sm:$0xf]
      %v1233 = vld [vmem:[%s1224 + $0x20] sm:$0xf]
      %v1234 = vld [vmem:[%s1224 + $0x24] sm:$0xf]
      %v1235 = vld [vmem:[%s1224 + $0x28] sm:$0xf]
      %v1236 = vld [vmem:[%s1224 + $0x2c] sm:$0xf]
      %v1237 = vld [vmem:[%s1224 + $0x30] sm:$0xf]
      %v1238 = vld [vmem:[%s1224 + $0x34] sm:$0xf]
      %v1239 = vld [vmem:[%s1224 + $0x38] sm:$0xf]
      %v1240 = vld [vmem:[%s1224 + $0x3c] sm:$0xf]
      %v1257 = vunpack.c.l.b16 %v1225
      %v1258 = vunpack.c.l.b16 %v1226
      %v1259 = vunpack.c.l.b16 %v1227
      %v1260 = vunpack.c.l.b16 %v1228
      %v1261 = vunpack.c.l.b16 %v1229
      %v1262 = vunpack.c.l.b16 %v1230
      %v1263 = vunpack.c.l.b16 %v1231
      %v1264 = vunpack.c.l.b16 %v1232
      %v1265 = vunpack.c.l.b16 %v1233
      %v1266 = vunpack.c.l.b16 %v1234
      %v1267 = vunpack.c.l.b16 %v1235
      %v1268 = vunpack.c.l.b16 %v1236
      %v1269 = vunpack.c.l.b16 %v1237
      %v1270 = vunpack.c.l.b16 %v1238
      %v1271 = vunpack.c.l.b16 %v1239
      %v1272 = vunpack.c.l.b16 %v1240
      %v1273 = vpack.c.b16 %v1258, %v1257
      %v1274 = vpack.c.b16 %v1260, %v1259
      %v1275 = vpack.c.b16 %v1262, %v1261
      %v1276 = vpack.c.b16 %v1264, %v1263
      %v1277 = vpack.c.b16 %v1266, %v1265
      %v1278 = vpack.c.b16 %v1268, %v1267
      %v1279 = vpack.c.b16 %v1270, %v1269
      %v1280 = vpack.c.b16 %v1272, %v1271
      %1289 = vmatprep.subr.bf16.mxu0 0
      %1290 = vmatpush1.bf16.msra.mxu0 %v1273
      %1291 = vmatprep.subr.bf16.mxu0 0
      %1292 = vmatpush1.bf16.msra.mxu0 %v1274
      %1293 = vmatprep.subr.bf16.mxu0 0
      %1294 = vmatpush1.bf16.msra.mxu0 %v1275
      %1295 = vmatprep.subr.bf16.mxu0 0
      %1296 = vmatpush1.bf16.msra.mxu0 %v1276
      %1297 = vmatprep.subr.bf16.mxu0 0
      %1298 = vmatpush1.bf16.msra.mxu0 %v1277
      %1299 = vmatprep.subr.bf16.mxu0 0
      %1300 = vmatpush1.bf16.msra.mxu0 %v1278
      %1301 = vmatprep.subr.bf16.mxu0 0
      %1302 = vmatpush1.bf16.msra.mxu0 %v1279
      %1303 = vmatprep.subr.bf16.mxu0 0
      %1304 = vmatpush1.bf16.msra.mxu0 %v1280
      %1305 = vmatprep.subr.bf16.mxu0 0
      %1306 = vmatpush1.bf16.msra.mxu0 0
      %1307 = vmatprep.subr.bf16.mxu0 0
      %1308 = vmatpush1.bf16.msra.mxu0 0
      %1309 = vmatprep.subr.bf16.mxu0 0
      %1310 = vmatpush1.bf16.msra.mxu0 0
      %1311 = vmatprep.subr.bf16.mxu0 0
      %1312 = vmatpush1.bf16.msra.mxu0 0
      %1313 = vmatprep.subr.bf16.mxu0 0
      %1314 = vmatpush1.bf16.msra.mxu0 0
      %1315 = vmatprep.subr.bf16.mxu0 0
      %1316 = vmatpush1.bf16.msra.mxu0 0
      %1317 = vmatprep.subr.bf16.mxu0 0
      %1318 = vmatpush1.bf16.msra.mxu0 0
      %1319 = vmatprep.subr.bf16.mxu0 0
      %1320 = vmatpush1.bf16.msra.mxu0 0
      %1321 = vmatprep.mubr.bf16.mxu0 0
      %1322 = vmatmul.mubr.bf16.gmra.mrb[0].mxu0 %v474
      %v1323 = vpop.f32.mrb[0].mxu0
      %v1324 = vadd.f32 0.0, %v1323
      %v1325 = vpop.f32.mrb[0].mxu0
      %v1326 = vpop.f32.mrb[0].mxu0
      %v1327 = vadd.f32 0.0, %v1326
      %v1328 = vpop.f32.mrb[0].mxu0
      %1329 = vmatprep.mubr.bf16.mxu0 0
      %1330 = vmatmul.mubr.bf16.gmra.mrb[0].mxu0 %v475
      %v1331 = vpop.f32.mrb[0].mxu0
      %v1332 = vadd.f32 0.0, %v1331
      %v1333 = vpop.f32.mrb[0].mxu0
      %v1334 = vpop.f32.mrb[0].mxu0
      %v1335 = vadd.f32 0.0, %v1334
      %v1336 = vpop.f32.mrb[0].mxu0
      %1337 = vmatprep.mubr.bf16.mxu0 0
      %1338 = vmatmul.mubr.bf16.gmra.mrb[0].mxu0 %v476
      %v1339 = vpop.f32.mrb[0].mxu0
      %v1340 = vadd.f32 0.0, %v1339
      %v1341 = vpop.f32.mrb[0].mxu0
      %v1342 = vpop.f32.mrb[0].mxu0
      %v1343 = vadd.f32 0.0, %v1342
      %v1344 = vpop.f32.mrb[0].mxu0
      %1345 = vmatprep.mubr.bf16.mxu0 0
      %1346 = vmatmul.mubr.bf16.gmra.mrb[0].mxu0 %v477
      %v1347 = vpop.f32.mrb[0].mxu0
      %v1348 = vadd.f32 0.0, %v1347
      %v1349 = vpop.f32.mrb[0].mxu0
      %v1350 = vpop.f32.mrb[0].mxu0
      %v1351 = vadd.f32 0.0, %v1350
      %v1352 = vpop.f32.mrb[0].mxu0
      %1353 = vmatprep.mubr.bf16.mxu0 0
      %1354 = vmatmul.mubr.bf16.gmra.mrb[0].mxu0 %v478
      %v1355 = vpop.f32.mrb[0].mxu0
      %v1356 = vadd.f32 0.0, %v1355
      %v1357 = vpop.f32.mrb[0].mxu0
      %v1358 = vpop.f32.mrb[0].mxu0
      %v1359 = vadd.f32 0.0, %v1358
      %v1360 = vpop.f32.mrb[0].mxu0
      %1361 = vmatprep.mubr.bf16.mxu0 0
      %1362 = vmatmul.mubr.bf16.gmra.mrb[0].mxu0 %v479
      %v1363 = vpop.f32.mrb[0].mxu0
      %v1364 = vadd.f32 0.0, %v1363
      %v1365 = vpop.f32.mrb[0].mxu0
      %v1366 = vpop.f32.mrb[0].mxu0
      %v1367 = vadd.f32 0.0, %v1366
      %v1368 = vpop.f32.mrb[0].mxu0
      %1369 = vmatprep.mubr.bf16.mxu0 0
      %1370 = vmatmul.mubr.bf16.gmra.mrb[0].mxu0 %v480
      %v1371 = vpop.f32.mrb[0].mxu0
      %v1372 = vadd.f32 0.0, %v1371
      %v1373 = vpop.f32.mrb[0].mxu0
      %v1374 = vpop.f32.mrb[0].mxu0
      %v1375 = vadd.f32 0.0, %v1374
      %v1376 = vpop.f32.mrb[0].mxu0
      %1377 = vmatprep.mubr.bf16.mxu0 0
      %1378 = vmatmul.mubr.bf16.gmra.mrb[0].mxu0 %v481
      %v1379 = vpop.f32.mrb[0].mxu0
      %v1380 = vadd.f32 0.0, %v1379
      %v1381 = vpop.f32.mrb[0].mxu0
      %v1382 = vpop.f32.mrb[0].mxu0
      %v1383 = vadd.f32 0.0, %v1382
      %v1384 = vpop.f32.mrb[0].mxu0
      %1385 = vmatprep.mubr.bf16.mxu0 0
      %1386 = vmatmul.mubr.bf16.gmra.mrb[0].mxu0 %v482
      %v1387 = vpop.f32.mrb[0].mxu0
      %v1388 = vadd.f32 0.0, %v1387
      %v1389 = vpop.f32.mrb[0].mxu0
      %v1390 = vpop.f32.mrb[0].mxu0
      %v1391 = vadd.f32 0.0, %v1390
      %v1392 = vpop.f32.mrb[0].mxu0
      %1393 = vmatprep.mubr.bf16.mxu0 0
      %1394 = vmatmul.mubr.bf16.gmra.mrb[0].mxu0 %v483
      %v1395 = vpop.f32.mrb[0].mxu0
      %v1396 = vadd.f32 0.0, %v1395
      %v1397 = vpop.f32.mrb[0].mxu0
      %v1398 = vpop.f32.mrb[0].mxu0
      %v1399 = vadd.f32 0.0, %v1398
      %v1400 = vpop.f32.mrb[0].mxu0
      %1401 = vmatprep.mubr.bf16.mxu0 0
      %1402 = vmatmul.mubr.bf16.gmra.mrb[0].mxu0 %v484
      %v1403 = vpop.f32.mrb[0].mxu0
      %v1404 = vadd.f32 0.0, %v1403
      %v1405 = vpop.f32.mrb[0].mxu0
      %v1406 = vpop.f32.mrb[0].mxu0
      %v1407 = vadd.f32 0.0, %v1406
      %v1408 = vpop.f32.mrb[0].mxu0
      %1409 = vmatprep.mubr.bf16.mxu0 0
      %1410 = vmatmul.mubr.bf16.gmra.mrb[0].mxu0 %v485
      %v1411 = vpop.f32.mrb[0].mxu0
      %v1412 = vadd.f32 0.0, %v1411
      %v1413 = vpop.f32.mrb[0].mxu0
      %v1414 = vpop.f32.mrb[0].mxu0
      %v1415 = vadd.f32 0.0, %v1414
      %v1416 = vpop.f32.mrb[0].mxu0
      %1417 = vmatprep.mubr.bf16.mxu0 0
      %1418 = vmatmul.mubr.bf16.gmra.mrb[0].mxu0 %v486
      %v1419 = vpop.f32.mrb[0].mxu0
      %v1420 = vadd.f32 0.0, %v1419
      %v1421 = vpop.f32.mrb[0].mxu0
      %v1422 = vpop.f32.mrb[0].mxu0
      %v1423 = vadd.f32 0.0, %v1422
      %v1424 = vpop.f32.mrb[0].mxu0
      %1425 = vmatprep.mubr.bf16.mxu0 0
      %1426 = vmatmul.mubr.bf16.gmra.mrb[0].mxu0 %v487
      %v1427 = vpop.f32.mrb[0].mxu0
      %v1428 = vadd.f32 0.0, %v1427
      %v1429 = vpop.f32.mrb[0].mxu0
      %v1430 = vpop.f32.mrb[0].mxu0
      %v1431 = vadd.f32 0.0, %v1430
      %v1432 = vpop.f32.mrb[0].mxu0
      %1433 = vmatprep.mubr.bf16.mxu0 0
      %1434 = vmatmul.mubr.bf16.gmra.mrb[0].mxu0 %v488
      %v1435 = vpop.f32.mrb[0].mxu0
      %v1436 = vadd.f32 0.0, %v1435
      %v1437 = vpop.f32.mrb[0].mxu0
      %v1438 = vpop.f32.mrb[0].mxu0
      %v1439 = vadd.f32 0.0, %v1438
      %v1440 = vpop.f32.mrb[0].mxu0
      %1441 = vmatprep.mubr.bf16.mxu0 0
      %1442 = vmatmul.mubr.bf16.gmra.mrb[0].mxu0 %v489
      %v1443 = vpop.f32.mrb[0].mxu0
      %v1444 = vadd.f32 0.0, %v1443
      %v1445 = vpop.f32.mrb[0].mxu0
      %v1446 = vpop.f32.mrb[0].mxu0
      %v1447 = vadd.f32 0.0, %v1446
      %v1448 = vpop.f32.mrb[0].mxu0
      %1449 = vmatprep.mubr.bf16.mxu0 0
      %1450 = vmatmul.mubr.bf16.gmra.mrb[0].mxu0 %v490
      %v1451 = vpop.f32.mrb[0].mxu0
      %v1452 = vadd.f32 0.0, %v1451
      %v1453 = vpop.f32.mrb[0].mxu0
      %v1454 = vpop.f32.mrb[0].mxu0
      %v1455 = vadd.f32 0.0, %v1454
      %v1456 = vpop.f32.mrb[0].mxu0
      %1457 = vmatprep.mubr.bf16.mxu0 0
      %1458 = vmatmul.mubr.bf16.gmra.mrb[0].mxu0 %v491
      %v1459 = vpop.f32.mrb[0].mxu0
      %v1460 = vadd.f32 0.0, %v1459
      %v1461 = vpop.f32.mrb[0].mxu0
      %v1462 = vpop.f32.mrb[0].mxu0
      %v1463 = vadd.f32 0.0, %v1462
      %v1464 = vpop.f32.mrb[0].mxu0
      %1465 = vmatprep.mubr.bf16.mxu0 0
      %1466 = vmatmul.mubr.bf16.gmra.mrb[0].mxu0 %v492
      %v1467 = vpop.f32.mrb[0].mxu0
      %v1468 = vadd.f32 0.0, %v1467
      %v1469 = vpop.f32.mrb[0].mxu0
      %v1470 = vpop.f32.mrb[0].mxu0
      %v1471 = vadd.f32 0.0, %v1470
      %v1472 = vpop.f32.mrb[0].mxu0
      %1473 = vmatprep.mubr.bf16.mxu0 0
      %1474 = vmatmul.mubr.bf16.gmra.mrb[0].mxu0 %v493
      %v1475 = vpop.f32.mrb[0].mxu0
      %v1476 = vadd.f32 0.0, %v1475
      %v1477 = vpop.f32.mrb[0].mxu0
      %v1478 = vpop.f32.mrb[0].mxu0
      %v1479 = vadd.f32 0.0, %v1478
      %v1480 = vpop.f32.mrb[0].mxu0
      %1481 = vmatprep.mubr.bf16.mxu0 0
      %1482 = vmatmul.mubr.bf16.gmra.mrb[0].mxu0 %v494
      %v1483 = vpop.f32.mrb[0].mxu0
      %v1484 = vadd.f32 0.0, %v1483
      %v1485 = vpop.f32.mrb[0].mxu0
      %v1486 = vpop.f32.mrb[0].mxu0
      %v1487 = vadd.f32 0.0, %v1486
      %v1488 = vpop.f32.mrb[0].mxu0
      %1489 = vmatprep.mubr.bf16.mxu0 0
      %1490 = vmatmul.mubr.bf16.gmra.mrb[0].mxu0 %v495
      %v1491 = vpop.f32.mrb[0].mxu0
      %v1492 = vadd.f32 0.0, %v1491
      %v1493 = vpop.f32.mrb[0].mxu0
      %v1494 = vpop.f32.mrb[0].mxu0
      %v1495 = vadd.f32 0.0, %v1494
      %v1496 = vpop.f32.mrb[0].mxu0
      %1497 = vmatprep.mubr.bf16.mxu0 0
      %1498 = vmatmul.mubr.bf16.gmra.mrb[0].mxu0 %v496
      %v1499 = vpop.f32.mrb[0].mxu0
      %v1500 = vadd.f32 0.0, %v1499
      %v1501 = vpop.f32.mrb[0].mxu0
      %v1502 = vpop.f32.mrb[0].mxu0
      %v1503 = vadd.f32 0.0, %v1502
      %v1504 = vpop.f32.mrb[0].mxu0
      %1505 = vmatprep.mubr.bf16.mxu0 0
      %1506 = vmatmul.mubr.bf16.gmra.mrb[0].mxu0 %v497
      %v1507 = vpop.f32.mrb[0].mxu0
      %v1508 = vadd.f32 0.0, %v1507
      %v1509 = vpop.f32.mrb[0].mxu0
      %v1510 = vpop.f32.mrb[0].mxu0
      %v1511 = vadd.f32 0.0, %v1510
      %v1512 = vpop.f32.mrb[0].mxu0
      %1513 = vmatprep.mubr.bf16.mxu0 0
      %1514 = vmatmul.mubr.bf16.gmra.mrb[0].mxu0 %v498
      %v1515 = vpop.f32.mrb[0].mxu0
      %v1516 = vadd.f32 0.0, %v1515
      %v1517 = vpop.f32.mrb[0].mxu0
      %v1518 = vpop.f32.mrb[0].mxu0
      %v1519 = vadd.f32 0.0, %v1518
      %v1520 = vpop.f32.mrb[0].mxu0
      %1521 = vmatprep.mubr.bf16.mxu0 0
      %1522 = vmatmul.mubr.bf16.gmra.mrb[0].mxu0 %v499
      %v1523 = vpop.f32.mrb[0].mxu0
      %v1524 = vadd.f32 0.0, %v1523
      %v1525 = vpop.f32.mrb[0].mxu0
      %v1526 = vpop.f32.mrb[0].mxu0
      %v1527 = vadd.f32 0.0, %v1526
      %v1528 = vpop.f32.mrb[0].mxu0
      %1529 = vmatprep.mubr.bf16.mxu0 0
      %1530 = vmatmul.mubr.bf16.gmra.mrb[0].mxu0 %v500
      %v1531 = vpop.f32.mrb[0].mxu0
      %v1532 = vadd.f32 0.0, %v1531
      %v1533 = vpop.f32.mrb[0].mxu0
      %v1534 = vpop.f32.mrb[0].mxu0
      %v1535 = vadd.f32 0.0, %v1534
      %v1536 = vpop.f32.mrb[0].mxu0
      %1537 = vmatprep.mubr.bf16.mxu0 0
      %1538 = vmatmul.mubr.bf16.gmra.mrb[0].mxu0 %v501
      %v1539 = vpop.f32.mrb[0].mxu0
      %v1540 = vadd.f32 0.0, %v1539
      %v1541 = vpop.f32.mrb[0].mxu0
      %v1542 = vpop.f32.mrb[0].mxu0
      %v1543 = vadd.f32 0.0, %v1542
      %v1544 = vpop.f32.mrb[0].mxu0
      %1545 = vmatprep.mubr.bf16.mxu0 0
      %1546 = vmatmul.mubr.bf16.gmra.mrb[0].mxu0 %v502
      %v1547 = vpop.f32.mrb[0].mxu0
      %v1548 = vadd.f32 0.0, %v1547
      %v1549 = vpop.f32.mrb[0].mxu0
      %v1550 = vpop.f32.mrb[0].mxu0
      %v1551 = vadd.f32 0.0, %v1550
      %v1552 = vpop.f32.mrb[0].mxu0
      %1553 = vmatprep.mubr.bf16.mxu0 0
      %1554 = vmatmul.mubr.bf16.gmra.mrb[0].mxu0 %v503
      %v1555 = vpop.f32.mrb[0].mxu0
      %v1556 = vadd.f32 0.0, %v1555
      %v1557 = vpop.f32.mrb[0].mxu0
      %v1558 = vpop.f32.mrb[0].mxu0
      %v1559 = vadd.f32 0.0, %v1558
      %v1560 = vpop.f32.mrb[0].mxu0
      %1561 = vmatprep.mubr.bf16.mxu0 0
      %1562 = vmatmul.mubr.bf16.gmra.mrb[0].mxu0 %v504
      %v1563 = vpop.f32.mrb[0].mxu0
      %v1564 = vadd.f32 0.0, %v1563
      %v1565 = vpop.f32.mrb[0].mxu0
      %v1566 = vpop.f32.mrb[0].mxu0
      %v1567 = vadd.f32 0.0, %v1566
      %v1568 = vpop.f32.mrb[0].mxu0
      %1569 = vmatprep.mubr.bf16.mxu0 0
      %1570 = vmatmul.mubr.bf16.gmra.mrb[0].mxu0 %v505
      %v1571 = vpop.f32.mrb[0].mxu0
      %v1572 = vadd.f32 0.0, %v1571
      %v1573 = vpop.f32.mrb[0].mxu0
      %v1574 = vpop.f32.mrb[0].mxu0
      %v1575 = vadd.f32 0.0, %v1574
      %v1576 = vpop.f32.mrb[0].mxu0
      %1577 = vdwg.mxu0
      %v1594 = vunpack.c.l.b16 %v296
      %v1595 = vunpack.c.l.b16 %v297
      %v1596 = vunpack.c.l.b16 %v298
      %v1597 = vunpack.c.l.b16 %v299
      %v1598 = vunpack.c.l.b16 %v300
      %v1599 = vunpack.c.l.b16 %v301
      %v1600 = vunpack.c.l.b16 %v302
      %v1601 = vunpack.c.l.b16 %v303
      %v1602 = vunpack.c.l.b16 %v304
      %v1603 = vunpack.c.l.b16 %v305
      %v1604 = vunpack.c.l.b16 %v306
      %v1605 = vunpack.c.l.b16 %v307
      %v1606 = vunpack.c.l.b16 %v308
      %v1607 = vunpack.c.l.b16 %v309
      %v1608 = vunpack.c.l.b16 %v310
      %v1609 = vunpack.c.l.b16 %v311
      %v1610 = vpack.c.b16 %v1595, %v1594
      %v1611 = vpack.c.b16 %v1597, %v1596
      %v1612 = vpack.c.b16 %v1599, %v1598
      %v1613 = vpack.c.b16 %v1601, %v1600
      %v1614 = vpack.c.b16 %v1603, %v1602
      %v1615 = vpack.c.b16 %v1605, %v1604
      %v1616 = vpack.c.b16 %v1607, %v1606
      %v1617 = vpack.c.b16 %v1609, %v1608
      %1626 = vmatprep.subr.bf16.mxu0 0
      %1627 = vmatpush1.bf16.msra.mxu0 %v1610
      %1628 = vmatprep.subr.bf16.mxu0 0
      %1629 = vmatpush1.bf16.msra.mxu0 %v1611
      %1630 = vmatprep.subr.bf16.mxu0 0
      %1631 = vmatpush1.bf16.msra.mxu0 %v1612
      %1632 = vmatprep.subr.bf16.mxu0 0
      %1633 = vmatpush1.bf16.msra.mxu0 %v1613
      %1634 = vmatprep.subr.bf16.mxu0 0
      %1635 = vmatpush1.bf16.msra.mxu0 %v1614
      %1636 = vmatprep.subr.bf16.mxu0 0
      %1637 = vmatpush1.bf16.msra.mxu0 %v1615
      %1638 = vmatprep.subr.bf16.mxu0 0
      %1639 = vmatpush1.bf16.msra.mxu0 %v1616
      %1640 = vmatprep.subr.bf16.mxu0 0
      %1641 = vmatpush1.bf16.msra.mxu0 %v1617
      %1642 = vmatprep.subr.bf16.mxu0 0
      %1643 = vmatpush1.bf16.msra.mxu0 0
      %1644 = vmatprep.subr.bf16.mxu0 0
      %1645 = vmatpush1.bf16.msra.mxu0 0
      %1646 = vmatprep.subr.bf16.mxu0 0
      %1647 = vmatpush1.bf16.msra.mxu0 0
      %1648 = vmatprep.subr.bf16.mxu0 0
      %1649 = vmatpush1.bf16.msra.mxu0 0
      %1650 = vmatprep.subr.bf16.mxu0 0
      %1651 = vmatpush1.bf16.msra.mxu0 0
      %1652 = vmatprep.subr.bf16.mxu0 0
      %1653 = vmatpush1.bf16.msra.mxu0 0
      %1654 = vmatprep.subr.bf16.mxu0 0
      %1655 = vmatpush1.bf16.msra.mxu0 0
      %1656 = vmatprep.subr.bf16.mxu0 0
      %1657 = vmatpush1.bf16.msra.mxu0 0
      %1658 = vmatprep.mubr.bf16.mxu0 0
      %1659 = vmatmul.mubr.bf16.gmra.mrb[0].mxu0 %v883
      %v1660 = vpop.f32.mrb[0].mxu0
      %v1661 = vadd.f32 %v1324, %v1660
      %v1662 = vpop.f32.mrb[0].mxu0
      %v1663 = vpop.f32.mrb[0].mxu0
      %v1664 = vadd.f32 %v1327, %v1663
      %v1665 = vpop.f32.mrb[0].mxu0
      %1666 = vmatprep.mubr.bf16.mxu0 0
      %1667 = vmatmul.mubr.bf16.gmra.mrb[0].mxu0 %v884
      %v1668 = vpop.f32.mrb[0].mxu0
      %v1669 = vadd.f32 %v1332, %v1668
      %v1670 = vpop.f32.mrb[0].mxu0
      %v1671 = vpop.f32.mrb[0].mxu0
      %v1672 = vadd.f32 %v1335, %v1671
      %v1673 = vpop.f32.mrb[0].mxu0
      %1674 = vmatprep.mubr.bf16.mxu0 0
      %1675 = vmatmul.mubr.bf16.gmra.mrb[0].mxu0 %v474
      %v1676 = vpop.f32.mrb[0].mxu0
      %v1677 = vadd.f32 %v1340, %v1676
      %v1678 = vpop.f32.mrb[0].mxu0
      %v1679 = vpop.f32.mrb[0].mxu0
      %v1680 = vadd.f32 %v1343, %v1679
      %v1681 = vpop.f32.mrb[0].mxu0
      %1682 = vmatprep.mubr.bf16.mxu0 0
      %1683 = vmatmul.mubr.bf16.gmra.mrb[0].mxu0 %v475
      %v1684 = vpop.f32.mrb[0].mxu0
      %v1685 = vadd.f32 %v1348, %v1684
      %v1686 = vpop.f32.mrb[0].mxu0
      %v1687 = vpop.f32.mrb[0].mxu0
      %v1688 = vadd.f32 %v1351, %v1687
      %v1689 = vpop.f32.mrb[0].mxu0
      %1690 = vmatprep.mubr.bf16.mxu0 0
      %1691 = vmatmul.mubr.bf16.gmra.mrb[0].mxu0 %v476
      %v1692 = vpop.f32.mrb[0].mxu0
      %v1693 = vadd.f32 %v1356, %v1692
      %v1694 = vpop.f32.mrb[0].mxu0
      %v1695 = vpop.f32.mrb[0].mxu0
      %v1696 = vadd.f32 %v1359, %v1695
      %v1697 = vpop.f32.mrb[0].mxu0
      %1698 = vmatprep.mubr.bf16.mxu0 0
      %1699 = vmatmul.mubr.bf16.gmra.mrb[0].mxu0 %v477
      %v1700 = vpop.f32.mrb[0].mxu0
      %v1701 = vadd.f32 %v1364, %v1700
      %v1702 = vpop.f32.mrb[0].mxu0
      %v1703 = vpop.f32.mrb[0].mxu0
      %v1704 = vadd.f32 %v1367, %v1703
      %v1705 = vpop.f32.mrb[0].mxu0
      %1706 = vmatprep.mubr.bf16.mxu0 0
      %1707 = vmatmul.mubr.bf16.gmra.mrb[0].mxu0 %v478
      %v1708 = vpop.f32.mrb[0].mxu0
      %v1709 = vadd.f32 %v1372, %v1708
      %v1710 = vpop.f32.mrb[0].mxu0
      %v1711 = vpop.f32.mrb[0].mxu0
      %v1712 = vadd.f32 %v1375, %v1711
      %v1713 = vpop.f32.mrb[0].mxu0
      %1714 = vmatprep.mubr.bf16.mxu0 0
      %1715 = vmatmul.mubr.bf16.gmra.mrb[0].mxu0 %v479
      %v1716 = vpop.f32.mrb[0].mxu0
      %v1717 = vadd.f32 %v1380, %v1716
      %v1718 = vpop.f32.mrb[0].mxu0
      %v1719 = vpop.f32.mrb[0].mxu0
      %v1720 = vadd.f32 %v1383, %v1719
      %v1721 = vpop.f32.mrb[0].mxu0
      %1722 = vmatprep.mubr.bf16.mxu0 0
      %1723 = vmatmul.mubr.bf16.gmra.mrb[0].mxu0 %v480
      %v1724 = vpop.f32.mrb[0].mxu0
      %v1725 = vadd.f32 %v1388, %v1724
      %v1726 = vpop.f32.mrb[0].mxu0
      %v1727 = vpop.f32.mrb[0].mxu0
      %v1728 = vadd.f32 %v1391, %v1727
      %v1729 = vpop.f32.mrb[0].mxu0
      %1730 = vmatprep.mubr.bf16.mxu0 0
      %1731 = vmatmul.mubr.bf16.gmra.mrb[0].mxu0 %v481
      %v1732 = vpop.f32.mrb[0].mxu0
      %v1733 = vadd.f32 %v1396, %v1732
      %v1734 = vpop.f32.mrb[0].mxu0
      %v1735 = vpop.f32.mrb[0].mxu0
      %v1736 = vadd.f32 %v1399, %v1735
      %v1737 = vpop.f32.mrb[0].mxu0
      %1738 = vmatprep.mubr.bf16.mxu0 0
      %1739 = vmatmul.mubr.bf16.gmra.mrb[0].mxu0 %v482
      %v1740 = vpop.f32.mrb[0].mxu0
      %v1741 = vadd.f32 %v1404, %v1740
      %v1742 = vpop.f32.mrb[0].mxu0
      %v1743 = vpop.f32.mrb[0].mxu0
      %v1744 = vadd.f32 %v1407, %v1743
      %v1745 = vpop.f32.mrb[0].mxu0
      %1746 = vmatprep.mubr.bf16.mxu0 0
      %1747 = vmatmul.mubr.bf16.gmra.mrb[0].mxu0 %v483
      %v1748 = vpop.f32.mrb[0].mxu0
      %v1749 = vadd.f32 %v1412, %v1748
      %v1750 = vpop.f32.mrb[0].mxu0
      %v1751 = vpop.f32.mrb[0].mxu0
      %v1752 = vadd.f32 %v1415, %v1751
      %v1753 = vpop.f32.mrb[0].mxu0
      %1754 = vmatprep.mubr.bf16.mxu0 0
      %1755 = vmatmul.mubr.bf16.gmra.mrb[0].mxu0 %v484
      %v1756 = vpop.f32.mrb[0].mxu0
      %v1757 = vadd.f32 %v1420, %v1756
      %v1758 = vpop.f32.mrb[0].mxu0
      %v1759 = vpop.f32.mrb[0].mxu0
      %v1760 = vadd.f32 %v1423, %v1759
      %v1761 = vpop.f32.mrb[0].mxu0
      %1762 = vmatprep.mubr.bf16.mxu0 0
      %1763 = vmatmul.mubr.bf16.gmra.mrb[0].mxu0 %v485
      %v1764 = vpop.f32.mrb[0].mxu0
      %v1765 = vadd.f32 %v1428, %v1764
      %v1766 = vpop.f32.mrb[0].mxu0
      %v1767 = vpop.f32.mrb[0].mxu0
      %v1768 = vadd.f32 %v1431, %v1767
      %v1769 = vpop.f32.mrb[0].mxu0
      %1770 = vmatprep.mubr.bf16.mxu0 0
      %1771 = vmatmul.mubr.bf16.gmra.mrb[0].mxu0 %v486
      %v1772 = vpop.f32.mrb[0].mxu0
      %v1773 = vadd.f32 %v1436, %v1772
      %v1774 = vpop.f32.mrb[0].mxu0
      %v1775 = vpop.f32.mrb[0].mxu0
      %v1776 = vadd.f32 %v1439, %v1775
      %v1777 = vpop.f32.mrb[0].mxu0
      %1778 = vmatprep.mubr.bf16.mxu0 0
      %1779 = vmatmul.mubr.bf16.gmra.mrb[0].mxu0 %v487
      %v1780 = vpop.f32.mrb[0].mxu0
      %v1781 = vadd.f32 %v1444, %v1780
      %v1782 = vpop.f32.mrb[0].mxu0
      %v1783 = vpop.f32.mrb[0].mxu0
      %v1784 = vadd.f32 %v1447, %v1783
      %v1785 = vpop.f32.mrb[0].mxu0
      %1786 = vmatprep.mubr.bf16.mxu0 0
      %1787 = vmatmul.mubr.bf16.gmra.mrb[0].mxu0 %v488
      %v1788 = vpop.f32.mrb[0].mxu0
      %v1789 = vadd.f32 %v1452, %v1788
      %v1790 = vpop.f32.mrb[0].mxu0
      %v1791 = vpop.f32.mrb[0].mxu0
      %v1792 = vadd.f32 %v1455, %v1791
      %v1793 = vpop.f32.mrb[0].mxu0
      %1794 = vmatprep.mubr.bf16.mxu0 0
      %1795 = vmatmul.mubr.bf16.gmra.mrb[0].mxu0 %v489
      %v1796 = vpop.f32.mrb[0].mxu0
      %v1797 = vadd.f32 %v1460, %v1796
      %v1798 = vpop.f32.mrb[0].mxu0
      %v1799 = vpop.f32.mrb[0].mxu0
      %v1800 = vadd.f32 %v1463, %v1799
      %v1801 = vpop.f32.mrb[0].mxu0
      %1802 = vmatprep.mubr.bf16.mxu0 0
      %1803 = vmatmul.mubr.bf16.gmra.mrb[0].mxu0 %v490
      %v1804 = vpop.f32.mrb[0].mxu0
      %v1805 = vadd.f32 %v1468, %v1804
      %v1806 = vpop.f32.mrb[0].mxu0
      %v1807 = vpop.f32.mrb[0].mxu0
      %v1808 = vadd.f32 %v1471, %v1807
      %v1809 = vpop.f32.mrb[0].mxu0
      %1810 = vmatprep.mubr.bf16.mxu0 0
      %1811 = vmatmul.mubr.bf16.gmra.mrb[0].mxu0 %v491
      %v1812 = vpop.f32.mrb[0].mxu0
      %v1813 = vadd.f32 %v1476, %v1812
      %v1814 = vpop.f32.mrb[0].mxu0
      %v1815 = vpop.f32.mrb[0].mxu0
      %v1816 = vadd.f32 %v1479, %v1815
      %v1817 = vpop.f32.mrb[0].mxu0
      %1818 = vmatprep.mubr.bf16.mxu0 0
      %1819 = vmatmul.mubr.bf16.gmra.mrb[0].mxu0 %v492
      %v1820 = vpop.f32.mrb[0].mxu0
      %v1821 = vadd.f32 %v1484, %v1820
      %v1822 = vpop.f32.mrb[0].mxu0
      %v1823 = vpop.f32.mrb[0].mxu0
      %v1824 = vadd.f32 %v1487, %v1823
      %v1825 = vpop.f32.mrb[0].mxu0
      %1826 = vmatprep.mubr.bf16.mxu0 0
      %1827 = vmatmul.mubr.bf16.gmra.mrb[0].mxu0 %v493
      %v1828 = vpop.f32.mrb[0].mxu0
      %v1829 = vadd.f32 %v1492, %v1828
      %v1830 = vpop.f32.mrb[0].mxu0
      %v1831 = vpop.f32.mrb[0].mxu0
      %v1832 = vadd.f32 %v1495, %v1831
      %v1833 = vpop.f32.mrb[0].mxu0
      %1834 = vmatprep.mubr.bf16.mxu0 0
      %1835 = vmatmul.mubr.bf16.gmra.mrb[0].mxu0 %v494
      %v1836 = vpop.f32.mrb[0].mxu0
      %v1837 = vadd.f32 %v1500, %v1836
      %v1838 = vpop.f32.mrb[0].mxu0
      %v1839 = vpop.f32.mrb[0].mxu0
      %v1840 = vadd.f32 %v1503, %v1839
      %v1841 = vpop.f32.mrb[0].mxu0
      %1842 = vmatprep.mubr.bf16.mxu0 0
      %1843 = vmatmul.mubr.bf16.gmra.mrb[0].mxu0 %v495
      %v1844 = vpop.f32.mrb[0].mxu0
      %v1845 = vadd.f32 %v1508, %v1844
      %v1846 = vpop.f32.mrb[0].mxu0
      %v1847 = vpop.f32.mrb[0].mxu0
      %v1848 = vadd.f32 %v1511, %v1847
      %v1849 = vpop.f32.mrb[0].mxu0
      %1850 = vmatprep.mubr.bf16.mxu0 0
      %1851 = vmatmul.mubr.bf16.gmra.mrb[0].mxu0 %v496
      %v1852 = vpop.f32.mrb[0].mxu0
      %v1853 = vadd.f32 %v1516, %v1852
      %v1854 = vpop.f32.mrb[0].mxu0
      %v1855 = vpop.f32.mrb[0].mxu0
      %v1856 = vadd.f32 %v1519, %v1855
      %v1857 = vpop.f32.mrb[0].mxu0
      %1858 = vmatprep.mubr.bf16.mxu0 0
      %1859 = vmatmul.mubr.bf16.gmra.mrb[0].mxu0 %v497
      %v1860 = vpop.f32.mrb[0].mxu0
      %v1861 = vadd.f32 %v1524, %v1860
      %v1862 = vpop.f32.mrb[0].mxu0
      %v1863 = vpop.f32.mrb[0].mxu0
      %v1864 = vadd.f32 %v1527, %v1863
      %v1865 = vpop.f32.mrb[0].mxu0
      %1866 = vmatprep.mubr.bf16.mxu0 0
      %1867 = vmatmul.mubr.bf16.gmra.mrb[0].mxu0 %v498
      %v1868 = vpop.f32.mrb[0].mxu0
      %v1869 = vadd.f32 %v1532, %v1868
      %v1870 = vpop.f32.mrb[0].mxu0
      %v1871 = vpop.f32.mrb[0].mxu0
      %v1872 = vadd.f32 %v1535, %v1871
      %v1873 = vpop.f32.mrb[0].mxu0
      %1874 = vmatprep.mubr.bf16.mxu0 0
      %1875 = vmatmul.mubr.bf16.gmra.mrb[0].mxu0 %v499
      %v1876 = vpop.f32.mrb[0].mxu0
      %v1877 = vadd.f32 %v1540, %v1876
      %v1878 = vpop.f32.mrb[0].mxu0
      %v1879 = vpop.f32.mrb[0].mxu0
      %v1880 = vadd.f32 %v1543, %v1879
      %v1881 = vpop.f32.mrb[0].mxu0
      %1882 = vmatprep.mubr.bf16.mxu0 0
      %1883 = vmatmul.mubr.bf16.gmra.mrb[0].mxu0 %v500
      %v1884 = vpop.f32.mrb[0].mxu0
      %v1885 = vadd.f32 %v1548, %v1884
      %v1886 = vpop.f32.mrb[0].mxu0
      %v1887 = vpop.f32.mrb[0].mxu0
      %v1888 = vadd.f32 %v1551, %v1887
      %v1889 = vpop.f32.mrb[0].mxu0
      %1890 = vmatprep.mubr.bf16.mxu0 0
      %1891 = vmatmul.mubr.bf16.gmra.mrb[0].mxu0 %v501
      %v1892 = vpop.f32.mrb[0].mxu0
      %v1893 = vadd.f32 %v1556, %v1892
      %v1894 = vpop.f32.mrb[0].mxu0
      %v1895 = vpop.f32.mrb[0].mxu0
      %v1896 = vadd.f32 %v1559, %v1895
      %v1897 = vpop.f32.mrb[0].mxu0
      %1898 = vmatprep.mubr.bf16.mxu0 0
      %1899 = vmatmul.mubr.bf16.gmra.mrb[0].mxu0 %v502
      %v1900 = vpop.f32.mrb[0].mxu0
      %v1901 = vadd.f32 %v1564, %v1900
      %v1902 = vpop.f32.mrb[0].mxu0
      %v1903 = vpop.f32.mrb[0].mxu0
      %v1904 = vadd.f32 %v1567, %v1903
      %v1905 = vpop.f32.mrb[0].mxu0
      %1906 = vmatprep.mubr.bf16.mxu0 0
      %1907 = vmatmul.mubr.bf16.gmra.mrb[0].mxu0 %v503
      %v1908 = vpop.f32.mrb[0].mxu0
      %v1909 = vadd.f32 %v1572, %v1908
      %v1910 = vpop.f32.mrb[0].mxu0
      %v1911 = vpop.f32.mrb[0].mxu0
      %v1912 = vadd.f32 %v1575, %v1911
      %v1913 = vpop.f32.mrb[0].mxu0
      %1914 = vdwg.mxu0
      %s1915 = scalar_lea.vmem %s1, 320
      %v1916 = vld [vmem:[%s1915] sm:$0xf]
      %v1917 = vld [vmem:[%s1915 + $0x4] sm:$0xf]
      %v1918 = vld [vmem:[%s1915 + $0x8] sm:$0xf]
      %v1919 = vld [vmem:[%s1915 + $0xc] sm:$0xf]
      %v1920 = vld [vmem:[%s1915 + $0x10] sm:$0xf]
      %v1921 = vld [vmem:[%s1915 + $0x14] sm:$0xf]
      %v1922 = vld [vmem:[%s1915 + $0x18] sm:$0xf]
      %v1923 = vld [vmem:[%s1915 + $0x1c] sm:$0xf]
      %v1924 = vld [vmem:[%s1915 + $0x20] sm:$0xf]
      %v1925 = vld [vmem:[%s1915 + $0x24] sm:$0xf]
      %v1926 = vld [vmem:[%s1915 + $0x28] sm:$0xf]
      %v1927 = vld [vmem:[%s1915 + $0x2c] sm:$0xf]
      %v1928 = vld [vmem:[%s1915 + $0x30] sm:$0xf]
      %v1929 = vld [vmem:[%s1915 + $0x34] sm:$0xf]
      %v1930 = vld [vmem:[%s1915 + $0x38] sm:$0xf]
      %v1931 = vld [vmem:[%s1915 + $0x3c] sm:$0xf]
      %v1948 = vunpack.c.l.b16 %v1916
      %v1949 = vunpack.c.l.b16 %v1917
      %v1950 = vunpack.c.l.b16 %v1918
      %v1951 = vunpack.c.l.b16 %v1919
      %v1952 = vunpack.c.l.b16 %v1920
      %v1953 = vunpack.c.l.b16 %v1921
      %v1954 = vunpack.c.l.b16 %v1922
      %v1955 = vunpack.c.l.b16 %v1923
      %v1956 = vunpack.c.l.b16 %v1924
      %v1957 = vunpack.c.l.b16 %v1925
      %v1958 = vunpack.c.l.b16 %v1926
      %v1959 = vunpack.c.l.b16 %v1927
      %v1960 = vunpack.c.l.b16 %v1928
      %v1961 = vunpack.c.l.b16 %v1929
      %v1962 = vunpack.c.l.b16 %v1930
      %v1963 = vunpack.c.l.b16 %v1931
      %v1964 = vpack.c.b16 %v1949, %v1948
      %v1965 = vpack.c.b16 %v1951, %v1950
      %v1966 = vpack.c.b16 %v1953, %v1952
      %v1967 = vpack.c.b16 %v1955, %v1954
      %v1968 = vpack.c.b16 %v1957, %v1956
      %v1969 = vpack.c.b16 %v1959, %v1958
      %v1970 = vpack.c.b16 %v1961, %v1960
      %v1971 = vpack.c.b16 %v1963, %v1962
      %1980 = vmatprep.subr.bf16.mxu0 0
      %1981 = vmatpush1.bf16.msra.mxu0 %v1964
      %1982 = vmatprep.subr.bf16.mxu0 0
      %1983 = vmatpush1.bf16.msra.mxu0 %v1965
      %1984 = vmatprep.subr.bf16.mxu0 0
      %1985 = vmatpush1.bf16.msra.mxu0 %v1966
      %1986 = vmatprep.subr.bf16.mxu0 0
      %1987 = vmatpush1.bf16.msra.mxu0 %v1967
      %1988 = vmatprep.subr.bf16.mxu0 0
      %1989 = vmatpush1.bf16.msra.mxu0 %v1968
      %1990 = vmatprep.subr.bf16.mxu0 0
      %1991 = vmatpush1.bf16.msra.mxu0 %v1969
      %1992 = vmatprep.subr.bf16.mxu0 0
      %1993 = vmatpush1.bf16.msra.mxu0 %v1970
      %1994 = vmatprep.subr.bf16.mxu0 0
      %1995 = vmatpush1.bf16.msra.mxu0 %v1971
      %1996 = vmatprep.subr.bf16.mxu0 0
      %1997 = vmatpush1.bf16.msra.mxu0 0
      %1998 = vmatprep.subr.bf16.mxu0 0
      %1999 = vmatpush1.bf16.msra.mxu0 0
      %2000 = vmatprep.subr.bf16.mxu0 0
      %2001 = vmatpush1.bf16.msra.mxu0 0
      %2002 = vmatprep.subr.bf16.mxu0 0
      %2003 = vmatpush1.bf16.msra.mxu0 0
      %2004 = vmatprep.subr.bf16.mxu0 0
      %2005 = vmatpush1.bf16.msra.mxu0 0
      %2006 = vmatprep.subr.bf16.mxu0 0
      %2007 = vmatpush1.bf16.msra.mxu0 0
      %2008 = vmatprep.subr.bf16.mxu0 0
      %2009 = vmatpush1.bf16.msra.mxu0 0
      %2010 = vmatprep.subr.bf16.mxu0 0
      %2011 = vmatpush1.bf16.msra.mxu0 0
      %2012 = vmatprep.mubr.bf16.mxu0 0
      %2013 = vmatmul.mubr.bf16.gmra.mrb[0].mxu0 %v474
      %v2014 = vpop.f32.mrb[0].mxu0
      %v2015 = vadd.f32 0.0, %v2014
      %v2016 = vpop.f32.mrb[0].mxu0
      %v2017 = vpop.f32.mrb[0].mxu0
      %v2018 = vadd.f32 0.0, %v2017
      %v2019 = vpop.f32.mrb[0].mxu0
      %2020 = vmatprep.mubr.bf16.mxu0 0
      %2021 = vmatmul.mubr.bf16.gmra.mrb[0].mxu0 %v475
      %v2022 = vpop.f32.mrb[0].mxu0
      %v2023 = vadd.f32 0.0, %v2022
      %v2024 = vpop.f32.mrb[0].mxu0
      %v2025 = vpop.f32.mrb[0].mxu0
      %v2026 = vadd.f32 0.0, %v2025
      %v2027 = vpop.f32.mrb[0].mxu0
      %2028 = vmatprep.mubr.bf16.mxu0 0
      %2029 = vmatmul.mubr.bf16.gmra.mrb[0].mxu0 %v476
      %v2030 = vpop.f32.mrb[0].mxu0
      %v2031 = vadd.f32 0.0, %v2030
      %v2032 = vpop.f32.mrb[0].mxu0
      %v2033 = vpop.f32.mrb[0].mxu0
      %v2034 = vadd.f32 0.0, %v2033
      %v2035 = vpop.f32.mrb[0].mxu0
      %2036 = vmatprep.mubr.bf16.mxu0 0
      %2037 = vmatmul.mubr.bf16.gmra.mrb[0].mxu0 %v477
      %v2038 = vpop.f32.mrb[0].mxu0
      %v2039 = vadd.f32 0.0, %v2038
      %v2040 = vpop.f32.mrb[0].mxu0
      %v2041 = vpop.f32.mrb[0].mxu0
      %v2042 = vadd.f32 0.0, %v2041
      %v2043 = vpop.f32.mrb[0].mxu0
      %2044 = vmatprep.mubr.bf16.mxu0 0
      %2045 = vmatmul.mubr.bf16.gmra.mrb[0].mxu0 %v478
      %v2046 = vpop.f32.mrb[0].mxu0
      %v2047 = vadd.f32 0.0, %v2046
      %v2048 = vpop.f32.mrb[0].mxu0
      %v2049 = vpop.f32.mrb[0].mxu0
      %v2050 = vadd.f32 0.0, %v2049
      %v2051 = vpop.f32.mrb[0].mxu0
      %2052 = vmatprep.mubr.bf16.mxu0 0
      %2053 = vmatmul.mubr.bf16.gmra.mrb[0].mxu0 %v479
      %v2054 = vpop.f32.mrb[0].mxu0
      %v2055 = vadd.f32 0.0, %v2054
      %v2056 = vpop.f32.mrb[0].mxu0
      %v2057 = vpop.f32.mrb[0].mxu0
      %v2058 = vadd.f32 0.0, %v2057
      %v2059 = vpop.f32.mrb[0].mxu0
      %2060 = vmatprep.mubr.bf16.mxu0 0
      %2061 = vmatmul.mubr.bf16.gmra.mrb[0].mxu0 %v480
      %v2062 = vpop.f32.mrb[0].mxu0
      %v2063 = vadd.f32 0.0, %v2062
      %v2064 = vpop.f32.mrb[0].mxu0
      %v2065 = vpop.f32.mrb[0].mxu0
      %v2066 = vadd.f32 0.0, %v2065
      %v2067 = vpop.f32.mrb[0].mxu0
      %2068 = vmatprep.mubr.bf16.mxu0 0
      %2069 = vmatmul.mubr.bf16.gmra.mrb[0].mxu0 %v481
      %v2070 = vpop.f32.mrb[0].mxu0
      %v2071 = vadd.f32 0.0, %v2070
      %v2072 = vpop.f32.mrb[0].mxu0
      %v2073 = vpop.f32.mrb[0].mxu0
      %v2074 = vadd.f32 0.0, %v2073
      %v2075 = vpop.f32.mrb[0].mxu0
      %2076 = vmatprep.mubr.bf16.mxu0 0
      %2077 = vmatmul.mubr.bf16.gmra.mrb[0].mxu0 %v482
      %v2078 = vpop.f32.mrb[0].mxu0
      %v2079 = vadd.f32 0.0, %v2078
      %v2080 = vpop.f32.mrb[0].mxu0
      %v2081 = vpop.f32.mrb[0].mxu0
      %v2082 = vadd.f32 0.0, %v2081
      %v2083 = vpop.f32.mrb[0].mxu0
      %2084 = vmatprep.mubr.bf16.mxu0 0
      %2085 = vmatmul.mubr.bf16.gmra.mrb[0].mxu0 %v483
      %v2086 = vpop.f32.mrb[0].mxu0
      %v2087 = vadd.f32 0.0, %v2086
      %v2088 = vpop.f32.mrb[0].mxu0
      %v2089 = vpop.f32.mrb[0].mxu0
      %v2090 = vadd.f32 0.0, %v2089
      %v2091 = vpop.f32.mrb[0].mxu0
      %2092 = vmatprep.mubr.bf16.mxu0 0
      %2093 = vmatmul.mubr.bf16.gmra.mrb[0].mxu0 %v484
      %v2094 = vpop.f32.mrb[0].mxu0
      %v2095 = vadd.f32 0.0, %v2094
      %v2096 = vpop.f32.mrb[0].mxu0
      %v2097 = vpop.f32.mrb[0].mxu0
      %v2098 = vadd.f32 0.0, %v2097
      %v2099 = vpop.f32.mrb[0].mxu0
      %2100 = vmatprep.mubr.bf16.mxu0 0
      %2101 = vmatmul.mubr.bf16.gmra.mrb[0].mxu0 %v485
      %v2102 = vpop.f32.mrb[0].mxu0
      %v2103 = vadd.f32 0.0, %v2102
      %v2104 = vpop.f32.mrb[0].mxu0
      %v2105 = vpop.f32.mrb[0].mxu0
      %v2106 = vadd.f32 0.0, %v2105
      %v2107 = vpop.f32.mrb[0].mxu0
      %2108 = vmatprep.mubr.bf16.mxu0 0
      %2109 = vmatmul.mubr.bf16.gmra.mrb[0].mxu0 %v486
      %v2110 = vpop.f32.mrb[0].mxu0
      %v2111 = vadd.f32 0.0, %v2110
      %v2112 = vpop.f32.mrb[0].mxu0
      %v2113 = vpop.f32.mrb[0].mxu0
      %v2114 = vadd.f32 0.0, %v2113
      %v2115 = vpop.f32.mrb[0].mxu0
      %2116 = vmatprep.mubr.bf16.mxu0 0
      %2117 = vmatmul.mubr.bf16.gmra.mrb[0].mxu0 %v487
      %v2118 = vpop.f32.mrb[0].mxu0
      %v2119 = vadd.f32 0.0, %v2118
      %v2120 = vpop.f32.mrb[0].mxu0
      %v2121 = vpop.f32.mrb[0].mxu0
      %v2122 = vadd.f32 0.0, %v2121
      %v2123 = vpop.f32.mrb[0].mxu0
      %2124 = vmatprep.mubr.bf16.mxu0 0
      %2125 = vmatmul.mubr.bf16.gmra.mrb[0].mxu0 %v488
      %v2126 = vpop.f32.mrb[0].mxu0
      %v2127 = vadd.f32 0.0, %v2126
      %v2128 = vpop.f32.mrb[0].mxu0
      %v2129 = vpop.f32.mrb[0].mxu0
      %v2130 = vadd.f32 0.0, %v2129
      %v2131 = vpop.f32.mrb[0].mxu0
      %2132 = vmatprep.mubr.bf16.mxu0 0
      %2133 = vmatmul.mubr.bf16.gmra.mrb[0].mxu0 %v489
      %v2134 = vpop.f32.mrb[0].mxu0
      %v2135 = vadd.f32 0.0, %v2134
      %v2136 = vpop.f32.mrb[0].mxu0
      %v2137 = vpop.f32.mrb[0].mxu0
      %v2138 = vadd.f32 0.0, %v2137
      %v2139 = vpop.f32.mrb[0].mxu0
      %2140 = vmatprep.mubr.bf16.mxu0 0
      %2141 = vmatmul.mubr.bf16.gmra.mrb[0].mxu0 %v490
      %v2142 = vpop.f32.mrb[0].mxu0
      %v2143 = vadd.f32 0.0, %v2142
      %v2144 = vpop.f32.mrb[0].mxu0
      %v2145 = vpop.f32.mrb[0].mxu0
      %v2146 = vadd.f32 0.0, %v2145
      %v2147 = vpop.f32.mrb[0].mxu0
      %2148 = vmatprep.mubr.bf16.mxu0 0
      %2149 = vmatmul.mubr.bf16.gmra.mrb[0].mxu0 %v491
      %v2150 = vpop.f32.mrb[0].mxu0
      %v2151 = vadd.f32 0.0, %v2150
      %v2152 = vpop.f32.mrb[0].mxu0
      %v2153 = vpop.f32.mrb[0].mxu0
      %v2154 = vadd.f32 0.0, %v2153
      %v2155 = vpop.f32.mrb[0].mxu0
      %2156 = vmatprep.mubr.bf16.mxu0 0
      %2157 = vmatmul.mubr.bf16.gmra.mrb[0].mxu0 %v492
      %v2158 = vpop.f32.mrb[0].mxu0
      %v2159 = vadd.f32 0.0, %v2158
      %v2160 = vpop.f32.mrb[0].mxu0
      %v2161 = vpop.f32.mrb[0].mxu0
      %v2162 = vadd.f32 0.0, %v2161
      %v2163 = vpop.f32.mrb[0].mxu0
      %2164 = vmatprep.mubr.bf16.mxu0 0
      %2165 = vmatmul.mubr.bf16.gmra.mrb[0].mxu0 %v493
      %v2166 = vpop.f32.mrb[0].mxu0
      %v2167 = vadd.f32 0.0, %v2166
      %v2168 = vpop.f32.mrb[0].mxu0
      %v2169 = vpop.f32.mrb[0].mxu0
      %v2170 = vadd.f32 0.0, %v2169
      %v2171 = vpop.f32.mrb[0].mxu0
      %2172 = vmatprep.mubr.bf16.mxu0 0
      %2173 = vmatmul.mubr.bf16.gmra.mrb[0].mxu0 %v494
      %v2174 = vpop.f32.mrb[0].mxu0
      %v2175 = vadd.f32 0.0, %v2174
      %v2176 = vpop.f32.mrb[0].mxu0
      %v2177 = vpop.f32.mrb[0].mxu0
      %v2178 = vadd.f32 0.0, %v2177
      %v2179 = vpop.f32.mrb[0].mxu0
      %2180 = vmatprep.mubr.bf16.mxu0 0
      %2181 = vmatmul.mubr.bf16.gmra.mrb[0].mxu0 %v495
      %v2182 = vpop.f32.mrb[0].mxu0
      %v2183 = vadd.f32 0.0, %v2182
      %v2184 = vpop.f32.mrb[0].mxu0
      %v2185 = vpop.f32.mrb[0].mxu0
      %v2186 = vadd.f32 0.0, %v2185
      %v2187 = vpop.f32.mrb[0].mxu0
      %2188 = vmatprep.mubr.bf16.mxu0 0
      %2189 = vmatmul.mubr.bf16.gmra.mrb[0].mxu0 %v496
      %v2190 = vpop.f32.mrb[0].mxu0
      %v2191 = vadd.f32 0.0, %v2190
      %v2192 = vpop.f32.mrb[0].mxu0
      %v2193 = vpop.f32.mrb[0].mxu0
      %v2194 = vadd.f32 0.0, %v2193
      %v2195 = vpop.f32.mrb[0].mxu0
      %2196 = vmatprep.mubr.bf16.mxu0 0
      %2197 = vmatmul.mubr.bf16.gmra.mrb[0].mxu0 %v497
      %v2198 = vpop.f32.mrb[0].mxu0
      %v2199 = vadd.f32 0.0, %v2198
      %v2200 = vpop.f32.mrb[0].mxu0
      %v2201 = vpop.f32.mrb[0].mxu0
      %v2202 = vadd.f32 0.0, %v2201
      %v2203 = vpop.f32.mrb[0].mxu0
      %2204 = vmatprep.mubr.bf16.mxu0 0
      %2205 = vmatmul.mubr.bf16.gmra.mrb[0].mxu0 %v498
      %v2206 = vpop.f32.mrb[0].mxu0
      %v2207 = vadd.f32 0.0, %v2206
      %v2208 = vpop.f32.mrb[0].mxu0
      %v2209 = vpop.f32.mrb[0].mxu0
      %v2210 = vadd.f32 0.0, %v2209
      %v2211 = vpop.f32.mrb[0].mxu0
      %2212 = vmatprep.mubr.bf16.mxu0 0
      %2213 = vmatmul.mubr.bf16.gmra.mrb[0].mxu0 %v499
      %v2214 = vpop.f32.mrb[0].mxu0
      %v2215 = vadd.f32 0.0, %v2214
      %v2216 = vpop.f32.mrb[0].mxu0
      %v2217 = vpop.f32.mrb[0].mxu0
      %v2218 = vadd.f32 0.0, %v2217
      %v2219 = vpop.f32.mrb[0].mxu0
      %2220 = vmatprep.mubr.bf16.mxu0 0
      %2221 = vmatmul.mubr.bf16.gmra.mrb[0].mxu0 %v500
      %v2222 = vpop.f32.mrb[0].mxu0
      %v2223 = vadd.f32 0.0, %v2222
      %v2224 = vpop.f32.mrb[0].mxu0
      %v2225 = vpop.f32.mrb[0].mxu0
      %v2226 = vadd.f32 0.0, %v2225
      %v2227 = vpop.f32.mrb[0].mxu0
      %2228 = vmatprep.mubr.bf16.mxu0 0
      %2229 = vmatmul.mubr.bf16.gmra.mrb[0].mxu0 %v501
      %v2230 = vpop.f32.mrb[0].mxu0
      %v2231 = vadd.f32 0.0, %v2230
      %v2232 = vpop.f32.mrb[0].mxu0
      %v2233 = vpop.f32.mrb[0].mxu0
      %v2234 = vadd.f32 0.0, %v2233
      %v2235 = vpop.f32.mrb[0].mxu0
      %2236 = vmatprep.mubr.bf16.mxu0 0
      %2237 = vmatmul.mubr.bf16.gmra.mrb[0].mxu0 %v502
      %v2238 = vpop.f32.mrb[0].mxu0
      %v2239 = vadd.f32 0.0, %v2238
      %v2240 = vpop.f32.mrb[0].mxu0
      %v2241 = vpop.f32.mrb[0].mxu0
      %v2242 = vadd.f32 0.0, %v2241
      %v2243 = vpop.f32.mrb[0].mxu0
      %2244 = vmatprep.mubr.bf16.mxu0 0
      %2245 = vmatmul.mubr.bf16.gmra.mrb[0].mxu0 %v503
      %v2246 = vpop.f32.mrb[0].mxu0
      %v2247 = vadd.f32 0.0, %v2246
      %v2248 = vpop.f32.mrb[0].mxu0
      %v2249 = vpop.f32.mrb[0].mxu0
      %v2250 = vadd.f32 0.0, %v2249
      %v2251 = vpop.f32.mrb[0].mxu0
      %2252 = vmatprep.mubr.bf16.mxu0 0
      %2253 = vmatmul.mubr.bf16.gmra.mrb[0].mxu0 %v504
      %v2254 = vpop.f32.mrb[0].mxu0
      %v2255 = vadd.f32 0.0, %v2254
      %v2256 = vpop.f32.mrb[0].mxu0
      %v2257 = vpop.f32.mrb[0].mxu0
      %v2258 = vadd.f32 0.0, %v2257
      %v2259 = vpop.f32.mrb[0].mxu0
      %2260 = vmatprep.mubr.bf16.mxu0 0
      %2261 = vmatmul.mubr.bf16.gmra.mrb[0].mxu0 %v505
      %v2262 = vpop.f32.mrb[0].mxu0
      %v2263 = vadd.f32 0.0, %v2262
      %v2264 = vpop.f32.mrb[0].mxu0
      %v2265 = vpop.f32.mrb[0].mxu0
      %v2266 = vadd.f32 0.0, %v2265
      %v2267 = vpop.f32.mrb[0].mxu0
      %2268 = vdwg.mxu0
      %v2285 = vunpack.c.l.b16 %v313
      %v2286 = vunpack.c.l.b16 %v314
      %v2287 = vunpack.c.l.b16 %v315
      %v2288 = vunpack.c.l.b16 %v316
      %v2289 = vunpack.c.l.b16 %v317
      %v2290 = vunpack.c.l.b16 %v318
      %v2291 = vunpack.c.l.b16 %v319
      %v2292 = vunpack.c.l.b16 %v320
      %v2293 = vunpack.c.l.b16 %v321
      %v2294 = vunpack.c.l.b16 %v322
      %v2295 = vunpack.c.l.b16 %v323
      %v2296 = vunpack.c.l.b16 %v324
      %v2297 = vunpack.c.l.b16 %v325
      %v2298 = vunpack.c.l.b16 %v326
      %v2299 = vunpack.c.l.b16 %v327
      %v2300 = vunpack.c.l.b16 %v328
      %v2301 = vpack.c.b16 %v2286, %v2285
      %v2302 = vpack.c.b16 %v2288, %v2287
      %v2303 = vpack.c.b16 %v2290, %v2289
      %v2304 = vpack.c.b16 %v2292, %v2291
      %v2305 = vpack.c.b16 %v2294, %v2293
      %v2306 = vpack.c.b16 %v2296, %v2295
      %v2307 = vpack.c.b16 %v2298, %v2297
      %v2308 = vpack.c.b16 %v2300, %v2299
      %2317 = vmatprep.subr.bf16.mxu0 0
      %2318 = vmatpush1.bf16.msra.mxu0 %v2301
      %2319 = vmatprep.subr.bf16.mxu0 0
      %2320 = vmatpush1.bf16.msra.mxu0 %v2302
      %2321 = vmatprep.subr.bf16.mxu0 0
      %2322 = vmatpush1.bf16.msra.mxu0 %v2303
      %2323 = vmatprep.subr.bf16.mxu0 0
      %2324 = vmatpush1.bf16.msra.mxu0 %v2304
      %2325 = vmatprep.subr.bf16.mxu0 0
      %2326 = vmatpush1.bf16.msra.mxu0 %v2305
      %2327 = vmatprep.subr.bf16.mxu0 0
      %2328 = vmatpush1.bf16.msra.mxu0 %v2306
      %2329 = vmatprep.subr.bf16.mxu0 0
      %2330 = vmatpush1.bf16.msra.mxu0 %v2307
      %2331 = vmatprep.subr.bf16.mxu0 0
      %2332 = vmatpush1.bf16.msra.mxu0 %v2308
      %2333 = vmatprep.subr.bf16.mxu0 0
      %2334 = vmatpush1.bf16.msra.mxu0 0
      %2335 = vmatprep.subr.bf16.mxu0 0
      %2336 = vmatpush1.bf16.msra.mxu0 0
      %2337 = vmatprep.subr.bf16.mxu0 0
      %2338 = vmatpush1.bf16.msra.mxu0 0
      %2339 = vmatprep.subr.bf16.mxu0 0
      %2340 = vmatpush1.bf16.msra.mxu0 0
      %2341 = vmatprep.subr.bf16.mxu0 0
      %2342 = vmatpush1.bf16.msra.mxu0 0
      %2343 = vmatprep.subr.bf16.mxu0 0
      %2344 = vmatpush1.bf16.msra.mxu0 0
      %2345 = vmatprep.subr.bf16.mxu0 0
      %2346 = vmatpush1.bf16.msra.mxu0 0
      %2347 = vmatprep.subr.bf16.mxu0 0
      %2348 = vmatpush1.bf16.msra.mxu0 0
      %2349 = vmatprep.mubr.bf16.mxu0 0
      %2350 = vmatmul.mubr.bf16.gmra.mrb[0].mxu0 %v883
      %v2351 = vpop.f32.mrb[0].mxu0
      %v2352 = vadd.f32 %v2015, %v2351
      %v2353 = vpop.f32.mrb[0].mxu0
      %v2354 = vpop.f32.mrb[0].mxu0
      %v2355 = vadd.f32 %v2018, %v2354
      %v2356 = vpop.f32.mrb[0].mxu0
      %2357 = vmatprep.mubr.bf16.mxu0 0
      %2358 = vmatmul.mubr.bf16.gmra.mrb[0].mxu0 %v884
      %v2359 = vpop.f32.mrb[0].mxu0
      %v2360 = vadd.f32 %v2023, %v2359
      %v2361 = vpop.f32.mrb[0].mxu0
      %v2362 = vpop.f32.mrb[0].mxu0
      %v2363 = vadd.f32 %v2026, %v2362
      %v2364 = vpop.f32.mrb[0].mxu0
      %2365 = vmatprep.mubr.bf16.mxu0 0
      %2366 = vmatmul.mubr.bf16.gmra.mrb[0].mxu0 %v474
      %v2367 = vpop.f32.mrb[0].mxu0
      %v2368 = vadd.f32 %v2031, %v2367
      %v2369 = vpop.f32.mrb[0].mxu0
      %v2370 = vpop.f32.mrb[0].mxu0
      %v2371 = vadd.f32 %v2034, %v2370
      %v2372 = vpop.f32.mrb[0].mxu0
      %2373 = vmatprep.mubr.bf16.mxu0 0
      %2374 = vmatmul.mubr.bf16.gmra.mrb[0].mxu0 %v475
      %v2375 = vpop.f32.mrb[0].mxu0
      %v2376 = vadd.f32 %v2039, %v2375
      %v2377 = vpop.f32.mrb[0].mxu0
      %v2378 = vpop.f32.mrb[0].mxu0
      %v2379 = vadd.f32 %v2042, %v2378
      %v2380 = vpop.f32.mrb[0].mxu0
      %2381 = vmatprep.mubr.bf16.mxu0 0
      %2382 = vmatmul.mubr.bf16.gmra.mrb[0].mxu0 %v476
      %v2383 = vpop.f32.mrb[0].mxu0
      %v2384 = vadd.f32 %v2047, %v2383
      %v2385 = vpop.f32.mrb[0].mxu0
      %v2386 = vpop.f32.mrb[0].mxu0
      %v2387 = vadd.f32 %v2050, %v2386
      %v2388 = vpop.f32.mrb[0].mxu0
      %2389 = vmatprep.mubr.bf16.mxu0 0
      %2390 = vmatmul.mubr.bf16.gmra.mrb[0].mxu0 %v477
      %v2391 = vpop.f32.mrb[0].mxu0
      %v2392 = vadd.f32 %v2055, %v2391
      %v2393 = vpop.f32.mrb[0].mxu0
      %v2394 = vpop.f32.mrb[0].mxu0
      %v2395 = vadd.f32 %v2058, %v2394
      %v2396 = vpop.f32.mrb[0].mxu0
      %2397 = vmatprep.mubr.bf16.mxu0 0
      %2398 = vmatmul.mubr.bf16.gmra.mrb[0].mxu0 %v478
      %v2399 = vpop.f32.mrb[0].mxu0
      %v2400 = vadd.f32 %v2063, %v2399
      %v2401 = vpop.f32.mrb[0].mxu0
      %v2402 = vpop.f32.mrb[0].mxu0
      %v2403 = vadd.f32 %v2066, %v2402
      %v2404 = vpop.f32.mrb[0].mxu0
      %2405 = vmatprep.mubr.bf16.mxu0 0
      %2406 = vmatmul.mubr.bf16.gmra.mrb[0].mxu0 %v479
      %v2407 = vpop.f32.mrb[0].mxu0
      %v2408 = vadd.f32 %v2071, %v2407
      %v2409 = vpop.f32.mrb[0].mxu0
      %v2410 = vpop.f32.mrb[0].mxu0
      %v2411 = vadd.f32 %v2074, %v2410
      %v2412 = vpop.f32.mrb[0].mxu0
      %2413 = vmatprep.mubr.bf16.mxu0 0
      %2414 = vmatmul.mubr.bf16.gmra.mrb[0].mxu0 %v480
      %v2415 = vpop.f32.mrb[0].mxu0
      %v2416 = vadd.f32 %v2079, %v2415
      %v2417 = vpop.f32.mrb[0].mxu0
      %v2418 = vpop.f32.mrb[0].mxu0
      %v2419 = vadd.f32 %v2082, %v2418
      %v2420 = vpop.f32.mrb[0].mxu0
      %2421 = vmatprep.mubr.bf16.mxu0 0
      %2422 = vmatmul.mubr.bf16.gmra.mrb[0].mxu0 %v481
      %v2423 = vpop.f32.mrb[0].mxu0
      %v2424 = vadd.f32 %v2087, %v2423
      %v2425 = vpop.f32.mrb[0].mxu0
      %v2426 = vpop.f32.mrb[0].mxu0
      %v2427 = vadd.f32 %v2090, %v2426
      %v2428 = vpop.f32.mrb[0].mxu0
      %2429 = vmatprep.mubr.bf16.mxu0 0
      %2430 = vmatmul.mubr.bf16.gmra.mrb[0].mxu0 %v482
      %v2431 = vpop.f32.mrb[0].mxu0
      %v2432 = vadd.f32 %v2095, %v2431
      %v2433 = vpop.f32.mrb[0].mxu0
      %v2434 = vpop.f32.mrb[0].mxu0
      %v2435 = vadd.f32 %v2098, %v2434
      %v2436 = vpop.f32.mrb[0].mxu0
      %2437 = vmatprep.mubr.bf16.mxu0 0
      %2438 = vmatmul.mubr.bf16.gmra.mrb[0].mxu0 %v483
      %v2439 = vpop.f32.mrb[0].mxu0
      %v2440 = vadd.f32 %v2103, %v2439
      %v2441 = vpop.f32.mrb[0].mxu0
      %v2442 = vpop.f32.mrb[0].mxu0
      %v2443 = vadd.f32 %v2106, %v2442
      %v2444 = vpop.f32.mrb[0].mxu0
      %2445 = vmatprep.mubr.bf16.mxu0 0
      %2446 = vmatmul.mubr.bf16.gmra.mrb[0].mxu0 %v484
      %v2447 = vpop.f32.mrb[0].mxu0
      %v2448 = vadd.f32 %v2111, %v2447
      %v2449 = vpop.f32.mrb[0].mxu0
      %v2450 = vpop.f32.mrb[0].mxu0
      %v2451 = vadd.f32 %v2114, %v2450
      %v2452 = vpop.f32.mrb[0].mxu0
      %2453 = vmatprep.mubr.bf16.mxu0 0
      %2454 = vmatmul.mubr.bf16.gmra.mrb[0].mxu0 %v485
      %v2455 = vpop.f32.mrb[0].mxu0
      %v2456 = vadd.f32 %v2119, %v2455
      %v2457 = vpop.f32.mrb[0].mxu0
      %v2458 = vpop.f32.mrb[0].mxu0
      %v2459 = vadd.f32 %v2122, %v2458
      %v2460 = vpop.f32.mrb[0].mxu0
      %2461 = vmatprep.mubr.bf16.mxu0 0
      %2462 = vmatmul.mubr.bf16.gmra.mrb[0].mxu0 %v486
      %v2463 = vpop.f32.mrb[0].mxu0
      %v2464 = vadd.f32 %v2127, %v2463
      %v2465 = vpop.f32.mrb[0].mxu0
      %v2466 = vpop.f32.mrb[0].mxu0
      %v2467 = vadd.f32 %v2130, %v2466
      %v2468 = vpop.f32.mrb[0].mxu0
      %2469 = vmatprep.mubr.bf16.mxu0 0
      %2470 = vmatmul.mubr.bf16.gmra.mrb[0].mxu0 %v487
      %v2471 = vpop.f32.mrb[0].mxu0
      %v2472 = vadd.f32 %v2135, %v2471
      %v2473 = vpop.f32.mrb[0].mxu0
      %v2474 = vpop.f32.mrb[0].mxu0
      %v2475 = vadd.f32 %v2138, %v2474
      %v2476 = vpop.f32.mrb[0].mxu0
      %2477 = vmatprep.mubr.bf16.mxu0 0
      %2478 = vmatmul.mubr.bf16.gmra.mrb[0].mxu0 %v488
      %v2479 = vpop.f32.mrb[0].mxu0
      %v2480 = vadd.f32 %v2143, %v2479
      %v2481 = vpop.f32.mrb[0].mxu0
      %v2482 = vpop.f32.mrb[0].mxu0
      %v2483 = vadd.f32 %v2146, %v2482
      %v2484 = vpop.f32.mrb[0].mxu0
      %2485 = vmatprep.mubr.bf16.mxu0 0
      %2486 = vmatmul.mubr.bf16.gmra.mrb[0].mxu0 %v489
      %v2487 = vpop.f32.mrb[0].mxu0
      %v2488 = vadd.f32 %v2151, %v2487
      %v2489 = vpop.f32.mrb[0].mxu0
      %v2490 = vpop.f32.mrb[0].mxu0
      %v2491 = vadd.f32 %v2154, %v2490
      %v2492 = vpop.f32.mrb[0].mxu0
      %2493 = vmatprep.mubr.bf16.mxu0 0
      %2494 = vmatmul.mubr.bf16.gmra.mrb[0].mxu0 %v490
      %v2495 = vpop.f32.mrb[0].mxu0
      %v2496 = vadd.f32 %v2159, %v2495
      %v2497 = vpop.f32.mrb[0].mxu0
      %v2498 = vpop.f32.mrb[0].mxu0
      %v2499 = vadd.f32 %v2162, %v2498
      %v2500 = vpop.f32.mrb[0].mxu0
      %2501 = vmatprep.mubr.bf16.mxu0 0
      %2502 = vmatmul.mubr.bf16.gmra.mrb[0].mxu0 %v491
      %v2503 = vpop.f32.mrb[0].mxu0
      %v2504 = vadd.f32 %v2167, %v2503
      %v2505 = vpop.f32.mrb[0].mxu0
      %v2506 = vpop.f32.mrb[0].mxu0
      %v2507 = vadd.f32 %v2170, %v2506
      %v2508 = vpop.f32.mrb[0].mxu0
      %2509 = vmatprep.mubr.bf16.mxu0 0
      %2510 = vmatmul.mubr.bf16.gmra.mrb[0].mxu0 %v492
      %v2511 = vpop.f32.mrb[0].mxu0
      %v2512 = vadd.f32 %v2175, %v2511
      %v2513 = vpop.f32.mrb[0].mxu0
      %v2514 = vpop.f32.mrb[0].mxu0
      %v2515 = vadd.f32 %v2178, %v2514
      %v2516 = vpop.f32.mrb[0].mxu0
      %2517 = vmatprep.mubr.bf16.mxu0 0
      %2518 = vmatmul.mubr.bf16.gmra.mrb[0].mxu0 %v493
      %v2519 = vpop.f32.mrb[0].mxu0
      %v2520 = vadd.f32 %v2183, %v2519
      %v2521 = vpop.f32.mrb[0].mxu0
      %v2522 = vpop.f32.mrb[0].mxu0
      %v2523 = vadd.f32 %v2186, %v2522
      %v2524 = vpop.f32.mrb[0].mxu0
      %2525 = vmatprep.mubr.bf16.mxu0 0
      %2526 = vmatmul.mubr.bf16.gmra.mrb[0].mxu0 %v494
      %v2527 = vpop.f32.mrb[0].mxu0
      %v2528 = vadd.f32 %v2191, %v2527
      %v2529 = vpop.f32.mrb[0].mxu0
      %v2530 = vpop.f32.mrb[0].mxu0
      %v2531 = vadd.f32 %v2194, %v2530
      %v2532 = vpop.f32.mrb[0].mxu0
      %2533 = vmatprep.mubr.bf16.mxu0 0
      %2534 = vmatmul.mubr.bf16.gmra.mrb[0].mxu0 %v495
      %v2535 = vpop.f32.mrb[0].mxu0
      %v2536 = vadd.f32 %v2199, %v2535
      %v2537 = vpop.f32.mrb[0].mxu0
      %v2538 = vpop.f32.mrb[0].mxu0
      %v2539 = vadd.f32 %v2202, %v2538
      %v2540 = vpop.f32.mrb[0].mxu0
      %2541 = vmatprep.mubr.bf16.mxu0 0
      %2542 = vmatmul.mubr.bf16.gmra.mrb[0].mxu0 %v496
      %v2543 = vpop.f32.mrb[0].mxu0
      %v2544 = vadd.f32 %v2207, %v2543
      %v2545 = vpop.f32.mrb[0].mxu0
      %v2546 = vpop.f32.mrb[0].mxu0
      %v2547 = vadd.f32 %v2210, %v2546
      %v2548 = vpop.f32.mrb[0].mxu0
      %2549 = vmatprep.mubr.bf16.mxu0 0
      %2550 = vmatmul.mubr.bf16.gmra.mrb[0].mxu0 %v497
      %v2551 = vpop.f32.mrb[0].mxu0
      %v2552 = vadd.f32 %v2215, %v2551
      %v2553 = vpop.f32.mrb[0].mxu0
      %v2554 = vpop.f32.mrb[0].mxu0
      %v2555 = vadd.f32 %v2218, %v2554
      %v2556 = vpop.f32.mrb[0].mxu0
      %2557 = vmatprep.mubr.bf16.mxu0 0
      %2558 = vmatmul.mubr.bf16.gmra.mrb[0].mxu0 %v498
      %v2559 = vpop.f32.mrb[0].mxu0
      %v2560 = vadd.f32 %v2223, %v2559
      %v2561 = vpop.f32.mrb[0].mxu0
      %v2562 = vpop.f32.mrb[0].mxu0
      %v2563 = vadd.f32 %v2226, %v2562
      %v2564 = vpop.f32.mrb[0].mxu0
      %2565 = vmatprep.mubr.bf16.mxu0 0
      %2566 = vmatmul.mubr.bf16.gmra.mrb[0].mxu0 %v499
      %v2567 = vpop.f32.mrb[0].mxu0
      %v2568 = vadd.f32 %v2231, %v2567
      %v2569 = vpop.f32.mrb[0].mxu0
      %v2570 = vpop.f32.mrb[0].mxu0
      %v2571 = vadd.f32 %v2234, %v2570
      %v2572 = vpop.f32.mrb[0].mxu0
      %2573 = vmatprep.mubr.bf16.mxu0 0
      %2574 = vmatmul.mubr.bf16.gmra.mrb[0].mxu0 %v500
      %v2575 = vpop.f32.mrb[0].mxu0
      %v2576 = vadd.f32 %v2239, %v2575
      %v2577 = vpop.f32.mrb[0].mxu0
      %v2578 = vpop.f32.mrb[0].mxu0
      %v2579 = vadd.f32 %v2242, %v2578
      %v2580 = vpop.f32.mrb[0].mxu0
      %2581 = vmatprep.mubr.bf16.mxu0 0
      %2582 = vmatmul.mubr.bf16.gmra.mrb[0].mxu0 %v501
      %v2583 = vpop.f32.mrb[0].mxu0
      %v2584 = vadd.f32 %v2247, %v2583
      %v2585 = vpop.f32.mrb[0].mxu0
      %v2586 = vpop.f32.mrb[0].mxu0
      %v2587 = vadd.f32 %v2250, %v2586
      %v2588 = vpop.f32.mrb[0].mxu0
      %2589 = vmatprep.mubr.bf16.mxu0 0
      %2590 = vmatmul.mubr.bf16.gmra.mrb[0].mxu0 %v502
      %v2591 = vpop.f32.mrb[0].mxu0
      %v2592 = vadd.f32 %v2255, %v2591
      %v2593 = vpop.f32.mrb[0].mxu0
      %v2594 = vpop.f32.mrb[0].mxu0
      %v2595 = vadd.f32 %v2258, %v2594
      %v2596 = vpop.f32.mrb[0].mxu0
      %2597 = vmatprep.mubr.bf16.mxu0 0
      %2598 = vmatmul.mubr.bf16.gmra.mrb[0].mxu0 %v503
      %v2599 = vpop.f32.mrb[0].mxu0
      %v2600 = vadd.f32 %v2263, %v2599
      %v2601 = vpop.f32.mrb[0].mxu0
      %v2602 = vpop.f32.mrb[0].mxu0
      %v2603 = vadd.f32 %v2266, %v2602
      %v2604 = vpop.f32.mrb[0].mxu0
      %2605 = vdwg.mxu0
      %s2606 = scalar_lea.vmem %s1, 384
      %v2607 = vld [vmem:[%s2606] sm:$0xf]
      %v2608 = vld [vmem:[%s2606 + $0x4] sm:$0xf]
      %v2609 = vld [vmem:[%s2606 + $0x8] sm:$0xf]
      %v2610 = vld [vmem:[%s2606 + $0xc] sm:$0xf]
      %v2611 = vld [vmem:[%s2606 + $0x10] sm:$0xf]
      %v2612 = vld [vmem:[%s2606 + $0x14] sm:$0xf]
      %v2613 = vld [vmem:[%s2606 + $0x18] sm:$0xf]
      %v2614 = vld [vmem:[%s2606 + $0x1c] sm:$0xf]
      %v2615 = vld [vmem:[%s2606 + $0x20] sm:$0xf]
      %v2616 = vld [vmem:[%s2606 + $0x24] sm:$0xf]
      %v2617 = vld [vmem:[%s2606 + $0x28] sm:$0xf]
      %v2618 = vld [vmem:[%s2606 + $0x2c] sm:$0xf]
      %v2619 = vld [vmem:[%s2606 + $0x30] sm:$0xf]
      %v2620 = vld [vmem:[%s2606 + $0x34] sm:$0xf]
      %v2621 = vld [vmem:[%s2606 + $0x38] sm:$0xf]
      %v2622 = vld [vmem:[%s2606 + $0x3c] sm:$0xf]
      %v2627 = vunpack.c.l.b16 %v275
      %v2628 = vunpack.c.l.b16 %v276
      %v2629 = vunpack.c.l.b16 %v277
      %v2630 = vunpack.c.l.b16 %v278
      %v2631 = vpack.c.b16 %v2628, %v2627
      %v2632 = vpack.c.b16 %v2630, %v2629
      %v2651 = vunpack.c.l.b16 %v2607
      %v2652 = vunpack.c.l.b16 %v2608
      %v2653 = vunpack.c.l.b16 %v2609
      %v2654 = vunpack.c.l.b16 %v2610
      %v2655 = vunpack.c.l.b16 %v2611
      %v2656 = vunpack.c.l.b16 %v2612
      %v2657 = vunpack.c.l.b16 %v2613
      %v2658 = vunpack.c.l.b16 %v2614
      %v2659 = vunpack.c.l.b16 %v2615
      %v2660 = vunpack.c.l.b16 %v2616
      %v2661 = vunpack.c.l.b16 %v2617
      %v2662 = vunpack.c.l.b16 %v2618
      %v2663 = vunpack.c.l.b16 %v2619
      %v2664 = vunpack.c.l.b16 %v2620
      %v2665 = vunpack.c.l.b16 %v2621
      %v2666 = vunpack.c.l.b16 %v2622
      %v2667 = vpack.c.b16 %v2652, %v2651
      %v2668 = vpack.c.b16 %v2654, %v2653
      %v2669 = vpack.c.b16 %v2656, %v2655
      %v2670 = vpack.c.b16 %v2658, %v2657
      %v2671 = vpack.c.b16 %v2660, %v2659
      %v2672 = vpack.c.b16 %v2662, %v2661
      %v2673 = vpack.c.b16 %v2664, %v2663
      %v2674 = vpack.c.b16 %v2666, %v2665
      %2683 = vmatprep.subr.bf16.mxu0 0
      %2684 = vmatpush1.bf16.msra.mxu0 %v2667
      %2685 = vmatprep.subr.bf16.mxu0 0
      %2686 = vmatpush1.bf16.msra.mxu0 %v2668
      %2687 = vmatprep.subr.bf16.mxu0 0
      %2688 = vmatpush1.bf16.msra.mxu0 %v2669
      %2689 = vmatprep.subr.bf16.mxu0 0
      %2690 = vmatpush1.bf16.msra.mxu0 %v2670
      %2691 = vmatprep.subr.bf16.mxu0 0
      %2692 = vmatpush1.bf16.msra.mxu0 %v2671
      %2693 = vmatprep.subr.bf16.mxu0 0
      %2694 = vmatpush1.bf16.msra.mxu0 %v2672
      %2695 = vmatprep.subr.bf16.mxu0 0
      %2696 = vmatpush1.bf16.msra.mxu0 %v2673
      %2697 = vmatprep.subr.bf16.mxu0 0
      %2698 = vmatpush1.bf16.msra.mxu0 %v2674
      %2699 = vmatprep.subr.bf16.mxu0 0
      %2700 = vmatpush1.bf16.msra.mxu0 0
      %2701 = vmatprep.subr.bf16.mxu0 0
      %2702 = vmatpush1.bf16.msra.mxu0 0
      %2703 = vmatprep.subr.bf16.mxu0 0
      %2704 = vmatpush1.bf16.msra.mxu0 0
      %2705 = vmatprep.subr.bf16.mxu0 0
      %2706 = vmatpush1.bf16.msra.mxu0 0
      %2707 = vmatprep.subr.bf16.mxu0 0
      %2708 = vmatpush1.bf16.msra.mxu0 0
      %2709 = vmatprep.subr.bf16.mxu0 0
      %2710 = vmatpush1.bf16.msra.mxu0 0
      %2711 = vmatprep.subr.bf16.mxu0 0
      %2712 = vmatpush1.bf16.msra.mxu0 0
      %2713 = vmatprep.subr.bf16.mxu0 0
      %2714 = vmatpush1.bf16.msra.mxu0 0
      %2715 = vmatprep.mubr.bf16.mxu0 0
      %2716 = vmatmul.mubr.bf16.gmra.mrb[0].mxu0 %v476
      %v2717 = vpop.f32.mrb[0].mxu0
      %v2718 = vadd.f32 0.0, %v2717
      %v2719 = vpop.f32.mrb[0].mxu0
      %v2720 = vpop.f32.mrb[0].mxu0
      %v2721 = vadd.f32 0.0, %v2720
      %v2722 = vpop.f32.mrb[0].mxu0
      %2723 = vmatprep.mubr.bf16.mxu0 0
      %2724 = vmatmul.mubr.bf16.gmra.mrb[0].mxu0 %v477
      %v2725 = vpop.f32.mrb[0].mxu0
      %v2726 = vadd.f32 0.0, %v2725
      %v2727 = vpop.f32.mrb[0].mxu0
      %v2728 = vpop.f32.mrb[0].mxu0
      %v2729 = vadd.f32 0.0, %v2728
      %v2730 = vpop.f32.mrb[0].mxu0
      %2731 = vmatprep.mubr.bf16.mxu0 0
      %2732 = vmatmul.mubr.bf16.gmra.mrb[0].mxu0 %v478
      %v2733 = vpop.f32.mrb[0].mxu0
      %v2734 = vadd.f32 0.0, %v2733
      %v2735 = vpop.f32.mrb[0].mxu0
      %v2736 = vpop.f32.mrb[0].mxu0
      %v2737 = vadd.f32 0.0, %v2736
      %v2738 = vpop.f32.mrb[0].mxu0
      %2739 = vmatprep.mubr.bf16.mxu0 0
      %2740 = vmatmul.mubr.bf16.gmra.mrb[0].mxu0 %v479
      %v2741 = vpop.f32.mrb[0].mxu0
      %v2742 = vadd.f32 0.0, %v2741
      %v2743 = vpop.f32.mrb[0].mxu0
      %v2744 = vpop.f32.mrb[0].mxu0
      %v2745 = vadd.f32 0.0, %v2744
      %v2746 = vpop.f32.mrb[0].mxu0
      %2747 = vmatprep.mubr.bf16.mxu0 0
      %2748 = vmatmul.mubr.bf16.gmra.mrb[0].mxu0 %v480
      %v2749 = vpop.f32.mrb[0].mxu0
      %v2750 = vadd.f32 0.0, %v2749
      %v2751 = vpop.f32.mrb[0].mxu0
      %v2752 = vpop.f32.mrb[0].mxu0
      %v2753 = vadd.f32 0.0, %v2752
      %v2754 = vpop.f32.mrb[0].mxu0
      %2755 = vmatprep.mubr.bf16.mxu0 0
      %2756 = vmatmul.mubr.bf16.gmra.mrb[0].mxu0 %v481
      %v2757 = vpop.f32.mrb[0].mxu0
      %v2758 = vadd.f32 0.0, %v2757
      %v2759 = vpop.f32.mrb[0].mxu0
      %v2760 = vpop.f32.mrb[0].mxu0
      %v2761 = vadd.f32 0.0, %v2760
      %v2762 = vpop.f32.mrb[0].mxu0
      %2763 = vmatprep.mubr.bf16.mxu0 0
      %2764 = vmatmul.mubr.bf16.gmra.mrb[0].mxu0 %v482
      %v2765 = vpop.f32.mrb[0].mxu0
      %v2766 = vadd.f32 0.0, %v2765
      %v2767 = vpop.f32.mrb[0].mxu0
      %v2768 = vpop.f32.mrb[0].mxu0
      %v2769 = vadd.f32 0.0, %v2768
      %v2770 = vpop.f32.mrb[0].mxu0
      %2771 = vmatprep.mubr.bf16.mxu0 0
      %2772 = vmatmul.mubr.bf16.gmra.mrb[0].mxu0 %v483
      %v2773 = vpop.f32.mrb[0].mxu0
      %v2774 = vadd.f32 0.0, %v2773
      %v2775 = vpop.f32.mrb[0].mxu0
      %v2776 = vpop.f32.mrb[0].mxu0
      %v2777 = vadd.f32 0.0, %v2776
      %v2778 = vpop.f32.mrb[0].mxu0
      %2779 = vmatprep.mubr.bf16.mxu0 0
      %2780 = vmatmul.mubr.bf16.gmra.mrb[0].mxu0 %v484
      %v2781 = vpop.f32.mrb[0].mxu0
      %v2782 = vadd.f32 0.0, %v2781
      %v2783 = vpop.f32.mrb[0].mxu0
      %v2784 = vpop.f32.mrb[0].mxu0
      %v2785 = vadd.f32 0.0, %v2784
      %v2786 = vpop.f32.mrb[0].mxu0
      %2787 = vmatprep.mubr.bf16.mxu0 0
      %2788 = vmatmul.mubr.bf16.gmra.mrb[0].mxu0 %v485
      %v2789 = vpop.f32.mrb[0].mxu0
      %v2790 = vadd.f32 0.0, %v2789
      %v2791 = vpop.f32.mrb[0].mxu0
      %v2792 = vpop.f32.mrb[0].mxu0
      %v2793 = vadd.f32 0.0, %v2792
      %v2794 = vpop.f32.mrb[0].mxu0
      %2795 = vmatprep.mubr.bf16.mxu0 0
      %2796 = vmatmul.mubr.bf16.gmra.mrb[0].mxu0 %v486
      %v2797 = vpop.f32.mrb[0].mxu0
      %v2798 = vadd.f32 0.0, %v2797
      %v2799 = vpop.f32.mrb[0].mxu0
      %v2800 = vpop.f32.mrb[0].mxu0
      %v2801 = vadd.f32 0.0, %v2800
      %v2802 = vpop.f32.mrb[0].mxu0
      %2803 = vmatprep.mubr.bf16.mxu0 0
      %2804 = vmatmul.mubr.bf16.gmra.mrb[0].mxu0 %v487
      %v2805 = vpop.f32.mrb[0].mxu0
      %v2806 = vadd.f32 0.0, %v2805
      %v2807 = vpop.f32.mrb[0].mxu0
      %v2808 = vpop.f32.mrb[0].mxu0
      %v2809 = vadd.f32 0.0, %v2808
      %v2810 = vpop.f32.mrb[0].mxu0
      %2811 = vmatprep.mubr.bf16.mxu0 0
      %2812 = vmatmul.mubr.bf16.gmra.mrb[0].mxu0 %v488
      %v2813 = vpop.f32.mrb[0].mxu0
      %v2814 = vadd.f32 0.0, %v2813
      %v2815 = vpop.f32.mrb[0].mxu0
      %v2816 = vpop.f32.mrb[0].mxu0
      %v2817 = vadd.f32 0.0, %v2816
      %v2818 = vpop.f32.mrb[0].mxu0
      %2819 = vmatprep.mubr.bf16.mxu0 0
      %2820 = vmatmul.mubr.bf16.gmra.mrb[0].mxu0 %v489
      %v2821 = vpop.f32.mrb[0].mxu0
      %v2822 = vadd.f32 0.0, %v2821
      %v2823 = vpop.f32.mrb[0].mxu0
      %v2824 = vpop.f32.mrb[0].mxu0
      %v2825 = vadd.f32 0.0, %v2824
      %v2826 = vpop.f32.mrb[0].mxu0
      %2827 = vmatprep.mubr.bf16.mxu0 0
      %2828 = vmatmul.mubr.bf16.gmra.mrb[0].mxu0 %v490
      %v2829 = vpop.f32.mrb[0].mxu0
      %v2830 = vadd.f32 0.0, %v2829
      %v2831 = vpop.f32.mrb[0].mxu0
      %v2832 = vpop.f32.mrb[0].mxu0
      %v2833 = vadd.f32 0.0, %v2832
      %v2834 = vpop.f32.mrb[0].mxu0
      %2835 = vmatprep.mubr.bf16.mxu0 0
      %2836 = vmatmul.mubr.bf16.gmra.mrb[0].mxu0 %v491
      %v2837 = vpop.f32.mrb[0].mxu0
      %v2838 = vadd.f32 0.0, %v2837
      %v2839 = vpop.f32.mrb[0].mxu0
      %v2840 = vpop.f32.mrb[0].mxu0
      %v2841 = vadd.f32 0.0, %v2840
      %v2842 = vpop.f32.mrb[0].mxu0
      %2843 = vmatprep.mubr.bf16.mxu0 0
      %2844 = vmatmul.mubr.bf16.gmra.mrb[0].mxu0 %v492
      %v2845 = vpop.f32.mrb[0].mxu0
      %v2846 = vadd.f32 0.0, %v2845
      %v2847 = vpop.f32.mrb[0].mxu0
      %v2848 = vpop.f32.mrb[0].mxu0
      %v2849 = vadd.f32 0.0, %v2848
      %v2850 = vpop.f32.mrb[0].mxu0
      %2851 = vmatprep.mubr.bf16.mxu0 0
      %2852 = vmatmul.mubr.bf16.gmra.mrb[0].mxu0 %v493
      %v2853 = vpop.f32.mrb[0].mxu0
      %v2854 = vadd.f32 0.0, %v2853
      %v2855 = vpop.f32.mrb[0].mxu0
      %v2856 = vpop.f32.mrb[0].mxu0
      %v2857 = vadd.f32 0.0, %v2856
      %v2858 = vpop.f32.mrb[0].mxu0
      %2859 = vmatprep.mubr.bf16.mxu0 0
      %2860 = vmatmul.mubr.bf16.gmra.mrb[0].mxu0 %v494
      %v2861 = vpop.f32.mrb[0].mxu0
      %v2862 = vadd.f32 0.0, %v2861
      %v2863 = vpop.f32.mrb[0].mxu0
      %v2864 = vpop.f32.mrb[0].mxu0
      %v2865 = vadd.f32 0.0, %v2864
      %v2866 = vpop.f32.mrb[0].mxu0
      %2867 = vmatprep.mubr.bf16.mxu0 0
      %2868 = vmatmul.mubr.bf16.gmra.mrb[0].mxu0 %v495
      %v2869 = vpop.f32.mrb[0].mxu0
      %v2870 = vadd.f32 0.0, %v2869
      %v2871 = vpop.f32.mrb[0].mxu0
      %v2872 = vpop.f32.mrb[0].mxu0
      %v2873 = vadd.f32 0.0, %v2872
      %v2874 = vpop.f32.mrb[0].mxu0
      %2875 = vmatprep.mubr.bf16.mxu0 0
      %2876 = vmatmul.mubr.bf16.gmra.mrb[0].mxu0 %v496
      %v2877 = vpop.f32.mrb[0].mxu0
      %v2878 = vadd.f32 0.0, %v2877
      %v2879 = vpop.f32.mrb[0].mxu0
      %v2880 = vpop.f32.mrb[0].mxu0
      %v2881 = vadd.f32 0.0, %v2880
      %v2882 = vpop.f32.mrb[0].mxu0
      %2883 = vmatprep.mubr.bf16.mxu0 0
      %2884 = vmatmul.mubr.bf16.gmra.mrb[0].mxu0 %v497
      %v2885 = vpop.f32.mrb[0].mxu0
      %v2886 = vadd.f32 0.0, %v2885
      %v2887 = vpop.f32.mrb[0].mxu0
      %v2888 = vpop.f32.mrb[0].mxu0
      %v2889 = vadd.f32 0.0, %v2888
      %v2890 = vpop.f32.mrb[0].mxu0
      %2891 = vmatprep.mubr.bf16.mxu0 0
      %2892 = vmatmul.mubr.bf16.gmra.mrb[0].mxu0 %v498
      %v2893 = vpop.f32.mrb[0].mxu0
      %v2894 = vadd.f32 0.0, %v2893
      %v2895 = vpop.f32.mrb[0].mxu0
      %v2896 = vpop.f32.mrb[0].mxu0
      %v2897 = vadd.f32 0.0, %v2896
      %v2898 = vpop.f32.mrb[0].mxu0
      %2899 = vmatprep.mubr.bf16.mxu0 0
      %2900 = vmatmul.mubr.bf16.gmra.mrb[0].mxu0 %v499
      %v2901 = vpop.f32.mrb[0].mxu0
      %v2902 = vadd.f32 0.0, %v2901
      %v2903 = vpop.f32.mrb[0].mxu0
      %v2904 = vpop.f32.mrb[0].mxu0
      %v2905 = vadd.f32 0.0, %v2904
      %v2906 = vpop.f32.mrb[0].mxu0
      %2907 = vmatprep.mubr.bf16.mxu0 0
      %2908 = vmatmul.mubr.bf16.gmra.mrb[0].mxu0 %v500
      %v2909 = vpop.f32.mrb[0].mxu0
      %v2910 = vadd.f32 0.0, %v2909
      %v2911 = vpop.f32.mrb[0].mxu0
      %v2912 = vpop.f32.mrb[0].mxu0
      %v2913 = vadd.f32 0.0, %v2912
      %v2914 = vpop.f32.mrb[0].mxu0
      %2915 = vmatprep.mubr.bf16.mxu0 0
      %2916 = vmatmul.mubr.bf16.gmra.mrb[0].mxu0 %v501
      %v2917 = vpop.f32.mrb[0].mxu0
      %v2918 = vadd.f32 0.0, %v2917
      %v2919 = vpop.f32.mrb[0].mxu0
      %v2920 = vpop.f32.mrb[0].mxu0
      %v2921 = vadd.f32 0.0, %v2920
      %v2922 = vpop.f32.mrb[0].mxu0
      %2923 = vmatprep.mubr.bf16.mxu0 0
      %2924 = vmatmul.mubr.bf16.gmra.mrb[0].mxu0 %v502
      %v2925 = vpop.f32.mrb[0].mxu0
      %v2926 = vadd.f32 0.0, %v2925
      %v2927 = vpop.f32.mrb[0].mxu0
      %v2928 = vpop.f32.mrb[0].mxu0
      %v2929 = vadd.f32 0.0, %v2928
      %v2930 = vpop.f32.mrb[0].mxu0
      %2931 = vmatprep.mubr.bf16.mxu0 0
      %2932 = vmatmul.mubr.bf16.gmra.mrb[0].mxu0 %v503
      %v2933 = vpop.f32.mrb[0].mxu0
      %v2934 = vadd.f32 0.0, %v2933
      %v2935 = vpop.f32.mrb[0].mxu0
      %v2936 = vpop.f32.mrb[0].mxu0
      %v2937 = vadd.f32 0.0, %v2936
      %v2938 = vpop.f32.mrb[0].mxu0
      %2939 = vmatprep.mubr.bf16.mxu0 0
      %2940 = vmatmul.mubr.bf16.gmra.mrb[0].mxu0 %v504
      %v2941 = vpop.f32.mrb[0].mxu0
      %v2942 = vadd.f32 0.0, %v2941
      %v2943 = vpop.f32.mrb[0].mxu0
      %v2944 = vpop.f32.mrb[0].mxu0
      %v2945 = vadd.f32 0.0, %v2944
      %v2946 = vpop.f32.mrb[0].mxu0
      %2947 = vmatprep.mubr.bf16.mxu0 0
      %2948 = vmatmul.mubr.bf16.gmra.mrb[0].mxu0 %v505
      %v2949 = vpop.f32.mrb[0].mxu0
      %v2950 = vadd.f32 0.0, %v2949
      %v2951 = vpop.f32.mrb[0].mxu0
      %v2952 = vpop.f32.mrb[0].mxu0
      %v2953 = vadd.f32 0.0, %v2952
      %v2954 = vpop.f32.mrb[0].mxu0
      %2955 = vmatprep.mubr.bf16.mxu0 0
      %2956 = vmatmul.mubr.bf16.gmra.mrb[0].mxu0 %v2631
      %v2957 = vpop.f32.mrb[0].mxu0
      %v2958 = vadd.f32 0.0, %v2957
      %v2959 = vpop.f32.mrb[0].mxu0
      %v2960 = vpop.f32.mrb[0].mxu0
      %v2961 = vadd.f32 0.0, %v2960
      %v2962 = vpop.f32.mrb[0].mxu0
      %2963 = vmatprep.mubr.bf16.mxu0 0
      %2964 = vmatmul.mubr.bf16.gmra.mrb[0].mxu0 %v2632
      %v2965 = vpop.f32.mrb[0].mxu0
      %v2966 = vadd.f32 0.0, %v2965
      %v2967 = vpop.f32.mrb[0].mxu0
      %v2968 = vpop.f32.mrb[0].mxu0
      %v2969 = vadd.f32 0.0, %v2968
      %v2970 = vpop.f32.mrb[0].mxu0
      %2971 = vdwg.mxu0
      %v2972 = vadd.f32 %v970, %v2718
      %v2973 = vadd.f32 %v973, %v2721
      %v2974 = vadd.f32 %v978, %v2726
      %v2975 = vadd.f32 %v981, %v2729
      %v2976 = vadd.f32 %v986, %v2734
      %v2977 = vadd.f32 %v989, %v2737
      %v2978 = vadd.f32 %v994, %v2742
      %v2979 = vadd.f32 %v997, %v2745
      %v2980 = vadd.f32 %v1002, %v2750
      %v2981 = vadd.f32 %v1005, %v2753
      %v2982 = vadd.f32 %v1010, %v2758
      %v2983 = vadd.f32 %v1013, %v2761
      %v2984 = vadd.f32 %v1018, %v2766
      %v2985 = vadd.f32 %v1021, %v2769
      %v2986 = vadd.f32 %v1026, %v2774
      %v2987 = vadd.f32 %v1029, %v2777
      %v2988 = vadd.f32 %v1034, %v2782
      %v2989 = vadd.f32 %v1037, %v2785
      %v2990 = vadd.f32 %v1042, %v2790
      %v2991 = vadd.f32 %v1045, %v2793
      %v2992 = vadd.f32 %v1050, %v2798
      %v2993 = vadd.f32 %v1053, %v2801
      %v2994 = vadd.f32 %v1058, %v2806
      %v2995 = vadd.f32 %v1061, %v2809
      %v2996 = vadd.f32 %v1066, %v2814
      %v2997 = vadd.f32 %v1069, %v2817
      %v2998 = vadd.f32 %v1074, %v2822
      %v2999 = vadd.f32 %v1077, %v2825
      %v3000 = vadd.f32 %v1082, %v2830
      %v3001 = vadd.f32 %v1085, %v2833
      %v3002 = vadd.f32 %v1090, %v2838
      %v3003 = vadd.f32 %v1093, %v2841
      %v3004 = vadd.f32 %v1098, %v2846
      %v3005 = vadd.f32 %v1101, %v2849
      %v3006 = vadd.f32 %v1106, %v2854
      %v3007 = vadd.f32 %v1109, %v2857
      %v3008 = vadd.f32 %v1114, %v2862
      %v3009 = vadd.f32 %v1117, %v2865
      %v3010 = vadd.f32 %v1122, %v2870
      %v3011 = vadd.f32 %v1125, %v2873
      %v3012 = vadd.f32 %v1130, %v2878
      %v3013 = vadd.f32 %v1133, %v2881
      %v3014 = vadd.f32 %v1138, %v2886
      %v3015 = vadd.f32 %v1141, %v2889
      %v3016 = vadd.f32 %v1146, %v2894
      %v3017 = vadd.f32 %v1149, %v2897
      %v3018 = vadd.f32 %v1154, %v2902
      %v3019 = vadd.f32 %v1157, %v2905
      %v3020 = vadd.f32 %v1162, %v2910
      %v3021 = vadd.f32 %v1165, %v2913
      %v3022 = vadd.f32 %v1170, %v2918
      %v3023 = vadd.f32 %v1173, %v2921
      %v3024 = vadd.f32 %v1178, %v2926
      %v3025 = vadd.f32 %v1181, %v2929
      %v3026 = vadd.f32 %v1186, %v2934
      %v3027 = vadd.f32 %v1189, %v2937
      %v3028 = vadd.f32 %v1194, %v2942
      %v3029 = vadd.f32 %v1197, %v2945
      %v3030 = vadd.f32 %v1202, %v2950
      %v3031 = vadd.f32 %v1205, %v2953
      %v3032 = vadd.f32 %v1210, %v2958
      %v3033 = vadd.f32 %v1213, %v2961
      %v3034 = vadd.f32 %v1218, %v2966
      %v3035 = vadd.f32 %v1221, %v2969
      %s3036 = scalar_lea.vmem %s1, 448
      %v3037 = vld [vmem:[%s3036] sm:$0xf]
      %v3038 = vld [vmem:[%s3036 + $0x4] sm:$0xf]
      %v3039 = vld [vmem:[%s3036 + $0x8] sm:$0xf]
      %v3040 = vld [vmem:[%s3036 + $0xc] sm:$0xf]
      %v3041 = vld [vmem:[%s3036 + $0x10] sm:$0xf]
      %v3042 = vld [vmem:[%s3036 + $0x14] sm:$0xf]
      %v3043 = vld [vmem:[%s3036 + $0x18] sm:$0xf]
      %v3044 = vld [vmem:[%s3036 + $0x1c] sm:$0xf]
      %v3045 = vld [vmem:[%s3036 + $0x20] sm:$0xf]
      %v3046 = vld [vmem:[%s3036 + $0x24] sm:$0xf]
      %v3047 = vld [vmem:[%s3036 + $0x28] sm:$0xf]
      %v3048 = vld [vmem:[%s3036 + $0x2c] sm:$0xf]
      %v3049 = vld [vmem:[%s3036 + $0x30] sm:$0xf]
      %v3050 = vld [vmem:[%s3036 + $0x34] sm:$0xf]
      %v3051 = vld [vmem:[%s3036 + $0x38] sm:$0xf]
      %v3052 = vld [vmem:[%s3036 + $0x3c] sm:$0xf]
      %v3069 = vunpack.c.l.b16 %v3037
      %v3070 = vunpack.c.l.b16 %v3038
      %v3071 = vunpack.c.l.b16 %v3039
      %v3072 = vunpack.c.l.b16 %v3040
      %v3073 = vunpack.c.l.b16 %v3041
      %v3074 = vunpack.c.l.b16 %v3042
      %v3075 = vunpack.c.l.b16 %v3043
      %v3076 = vunpack.c.l.b16 %v3044
      %v3077 = vunpack.c.l.b16 %v3045
      %v3078 = vunpack.c.l.b16 %v3046
      %v3079 = vunpack.c.l.b16 %v3047
      %v3080 = vunpack.c.l.b16 %v3048
      %v3081 = vunpack.c.l.b16 %v3049
      %v3082 = vunpack.c.l.b16 %v3050
      %v3083 = vunpack.c.l.b16 %v3051
      %v3084 = vunpack.c.l.b16 %v3052
      %v3085 = vpack.c.b16 %v3070, %v3069
      %v3086 = vpack.c.b16 %v3072, %v3071
      %v3087 = vpack.c.b16 %v3074, %v3073
      %v3088 = vpack.c.b16 %v3076, %v3075
      %v3089 = vpack.c.b16 %v3078, %v3077
      %v3090 = vpack.c.b16 %v3080, %v3079
      %v3091 = vpack.c.b16 %v3082, %v3081
      %v3092 = vpack.c.b16 %v3084, %v3083
      %3101 = vmatprep.subr.bf16.mxu0 0
      %3102 = vmatpush1.bf16.msra.mxu0 %v3085
      %3103 = vmatprep.subr.bf16.mxu0 0
      %3104 = vmatpush1.bf16.msra.mxu0 %v3086
      %3105 = vmatprep.subr.bf16.mxu0 0
      %3106 = vmatpush1.bf16.msra.mxu0 %v3087
      %3107 = vmatprep.subr.bf16.mxu0 0
      %3108 = vmatpush1.bf16.msra.mxu0 %v3088
      %3109 = vmatprep.subr.bf16.mxu0 0
      %3110 = vmatpush1.bf16.msra.mxu0 %v3089
      %3111 = vmatprep.subr.bf16.mxu0 0
      %3112 = vmatpush1.bf16.msra.mxu0 %v3090
      %3113 = vmatprep.subr.bf16.mxu0 0
      %3114 = vmatpush1.bf16.msra.mxu0 %v3091
      %3115 = vmatprep.subr.bf16.mxu0 0
      %3116 = vmatpush1.bf16.msra.mxu0 %v3092
      %3117 = vmatprep.subr.bf16.mxu0 0
      %3118 = vmatpush1.bf16.msra.mxu0 0
      %3119 = vmatprep.subr.bf16.mxu0 0
      %3120 = vmatpush1.bf16.msra.mxu0 0
      %3121 = vmatprep.subr.bf16.mxu0 0
      %3122 = vmatpush1.bf16.msra.mxu0 0
      %3123 = vmatprep.subr.bf16.mxu0 0
      %3124 = vmatpush1.bf16.msra.mxu0 0
      %3125 = vmatprep.subr.bf16.mxu0 0
      %3126 = vmatpush1.bf16.msra.mxu0 0
      %3127 = vmatprep.subr.bf16.mxu0 0
      %3128 = vmatpush1.bf16.msra.mxu0 0
      %3129 = vmatprep.subr.bf16.mxu0 0
      %3130 = vmatpush1.bf16.msra.mxu0 0
      %3131 = vmatprep.subr.bf16.mxu0 0
      %3132 = vmatpush1.bf16.msra.mxu0 0
      %3133 = vmatprep.mubr.bf16.mxu0 0
      %3134 = vmatmul.mubr.bf16.gmra.mrb[0].mxu0 %v476
      %v3135 = vpop.f32.mrb[0].mxu0
      %v3136 = vadd.f32 0.0, %v3135
      %v3137 = vpop.f32.mrb[0].mxu0
      %v3138 = vpop.f32.mrb[0].mxu0
      %v3139 = vadd.f32 0.0, %v3138
      %v3140 = vpop.f32.mrb[0].mxu0
      %3141 = vmatprep.mubr.bf16.mxu0 0
      %3142 = vmatmul.mubr.bf16.gmra.mrb[0].mxu0 %v477
      %v3143 = vpop.f32.mrb[0].mxu0
      %v3144 = vadd.f32 0.0, %v3143
      %v3145 = vpop.f32.mrb[0].mxu0
      %v3146 = vpop.f32.mrb[0].mxu0
      %v3147 = vadd.f32 0.0, %v3146
      %v3148 = vpop.f32.mrb[0].mxu0
      %3149 = vmatprep.mubr.bf16.mxu0 0
      %3150 = vmatmul.mubr.bf16.gmra.mrb[0].mxu0 %v478
      %v3151 = vpop.f32.mrb[0].mxu0
      %v3152 = vadd.f32 0.0, %v3151
      %v3153 = vpop.f32.mrb[0].mxu0
      %v3154 = vpop.f32.mrb[0].mxu0
      %v3155 = vadd.f32 0.0, %v3154
      %v3156 = vpop.f32.mrb[0].mxu0
      %3157 = vmatprep.mubr.bf16.mxu0 0
      %3158 = vmatmul.mubr.bf16.gmra.mrb[0].mxu0 %v479
      %v3159 = vpop.f32.mrb[0].mxu0
      %v3160 = vadd.f32 0.0, %v3159
      %v3161 = vpop.f32.mrb[0].mxu0
      %v3162 = vpop.f32.mrb[0].mxu0
      %v3163 = vadd.f32 0.0, %v3162
      %v3164 = vpop.f32.mrb[0].mxu0
      %3165 = vmatprep.mubr.bf16.mxu0 0
      %3166 = vmatmul.mubr.bf16.gmra.mrb[0].mxu0 %v480
      %v3167 = vpop.f32.mrb[0].mxu0
      %v3168 = vadd.f32 0.0, %v3167
      %v3169 = vpop.f32.mrb[0].mxu0
      %v3170 = vpop.f32.mrb[0].mxu0
      %v3171 = vadd.f32 0.0, %v3170
      %v3172 = vpop.f32.mrb[0].mxu0
      %3173 = vmatprep.mubr.bf16.mxu0 0
      %3174 = vmatmul.mubr.bf16.gmra.mrb[0].mxu0 %v481
      %v3175 = vpop.f32.mrb[0].mxu0
      %v3176 = vadd.f32 0.0, %v3175
      %v3177 = vpop.f32.mrb[0].mxu0
      %v3178 = vpop.f32.mrb[0].mxu0
      %v3179 = vadd.f32 0.0, %v3178
      %v3180 = vpop.f32.mrb[0].mxu0
      %3181 = vmatprep.mubr.bf16.mxu0 0
      %3182 = vmatmul.mubr.bf16.gmra.mrb[0].mxu0 %v482
      %v3183 = vpop.f32.mrb[0].mxu0
      %v3184 = vadd.f32 0.0, %v3183
      %v3185 = vpop.f32.mrb[0].mxu0
      %v3186 = vpop.f32.mrb[0].mxu0
      %v3187 = vadd.f32 0.0, %v3186
      %v3188 = vpop.f32.mrb[0].mxu0
      %3189 = vmatprep.mubr.bf16.mxu0 0
      %3190 = vmatmul.mubr.bf16.gmra.mrb[0].mxu0 %v483
      %v3191 = vpop.f32.mrb[0].mxu0
      %v3192 = vadd.f32 0.0, %v3191
      %v3193 = vpop.f32.mrb[0].mxu0
      %v3194 = vpop.f32.mrb[0].mxu0
      %v3195 = vadd.f32 0.0, %v3194
      %v3196 = vpop.f32.mrb[0].mxu0
      %3197 = vmatprep.mubr.bf16.mxu0 0
      %3198 = vmatmul.mubr.bf16.gmra.mrb[0].mxu0 %v484
      %v3199 = vpop.f32.mrb[0].mxu0
      %v3200 = vadd.f32 0.0, %v3199
      %v3201 = vpop.f32.mrb[0].mxu0
      %v3202 = vpop.f32.mrb[0].mxu0
      %v3203 = vadd.f32 0.0, %v3202
      %v3204 = vpop.f32.mrb[0].mxu0
      %3205 = vmatprep.mubr.bf16.mxu0 0
      %3206 = vmatmul.mubr.bf16.gmra.mrb[0].mxu0 %v485
      %v3207 = vpop.f32.mrb[0].mxu0
      %v3208 = vadd.f32 0.0, %v3207
      %v3209 = vpop.f32.mrb[0].mxu0
      %v3210 = vpop.f32.mrb[0].mxu0
      %v3211 = vadd.f32 0.0, %v3210
      %v3212 = vpop.f32.mrb[0].mxu0
      %3213 = vmatprep.mubr.bf16.mxu0 0
      %3214 = vmatmul.mubr.bf16.gmra.mrb[0].mxu0 %v486
      %v3215 = vpop.f32.mrb[0].mxu0
      %v3216 = vadd.f32 0.0, %v3215
      %v3217 = vpop.f32.mrb[0].mxu0
      %v3218 = vpop.f32.mrb[0].mxu0
      %v3219 = vadd.f32 0.0, %v3218
      %v3220 = vpop.f32.mrb[0].mxu0
      %3221 = vmatprep.mubr.bf16.mxu0 0
      %3222 = vmatmul.mubr.bf16.gmra.mrb[0].mxu0 %v487
      %v3223 = vpop.f32.mrb[0].mxu0
      %v3224 = vadd.f32 0.0, %v3223
      %v3225 = vpop.f32.mrb[0].mxu0
      %v3226 = vpop.f32.mrb[0].mxu0
      %v3227 = vadd.f32 0.0, %v3226
      %v3228 = vpop.f32.mrb[0].mxu0
      %3229 = vmatprep.mubr.bf16.mxu0 0
      %3230 = vmatmul.mubr.bf16.gmra.mrb[0].mxu0 %v488
      %v3231 = vpop.f32.mrb[0].mxu0
      %v3232 = vadd.f32 0.0, %v3231
      %v3233 = vpop.f32.mrb[0].mxu0
      %v3234 = vpop.f32.mrb[0].mxu0
      %v3235 = vadd.f32 0.0, %v3234
      %v3236 = vpop.f32.mrb[0].mxu0
      %3237 = vmatprep.mubr.bf16.mxu0 0
      %3238 = vmatmul.mubr.bf16.gmra.mrb[0].mxu0 %v489
      %v3239 = vpop.f32.mrb[0].mxu0
      %v3240 = vadd.f32 0.0, %v3239
      %v3241 = vpop.f32.mrb[0].mxu0
      %v3242 = vpop.f32.mrb[0].mxu0
      %v3243 = vadd.f32 0.0, %v3242
      %v3244 = vpop.f32.mrb[0].mxu0
      %3245 = vmatprep.mubr.bf16.mxu0 0
      %3246 = vmatmul.mubr.bf16.gmra.mrb[0].mxu0 %v490
      %v3247 = vpop.f32.mrb[0].mxu0
      %v3248 = vadd.f32 0.0, %v3247
      %v3249 = vpop.f32.mrb[0].mxu0
      %v3250 = vpop.f32.mrb[0].mxu0
      %v3251 = vadd.f32 0.0, %v3250
      %v3252 = vpop.f32.mrb[0].mxu0
      %3253 = vmatprep.mubr.bf16.mxu0 0
      %3254 = vmatmul.mubr.bf16.gmra.mrb[0].mxu0 %v491
      %v3255 = vpop.f32.mrb[0].mxu0
      %v3256 = vadd.f32 0.0, %v3255
      %v3257 = vpop.f32.mrb[0].mxu0
      %v3258 = vpop.f32.mrb[0].mxu0
      %v3259 = vadd.f32 0.0, %v3258
      %v3260 = vpop.f32.mrb[0].mxu0
      %3261 = vmatprep.mubr.bf16.mxu0 0
      %3262 = vmatmul.mubr.bf16.gmra.mrb[0].mxu0 %v492
      %v3263 = vpop.f32.mrb[0].mxu0
      %v3264 = vadd.f32 0.0, %v3263
      %v3265 = vpop.f32.mrb[0].mxu0
      %v3266 = vpop.f32.mrb[0].mxu0
      %v3267 = vadd.f32 0.0, %v3266
      %v3268 = vpop.f32.mrb[0].mxu0
      %3269 = vmatprep.mubr.bf16.mxu0 0
      %3270 = vmatmul.mubr.bf16.gmra.mrb[0].mxu0 %v493
      %v3271 = vpop.f32.mrb[0].mxu0
      %v3272 = vadd.f32 0.0, %v3271
      %v3273 = vpop.f32.mrb[0].mxu0
      %v3274 = vpop.f32.mrb[0].mxu0
      %v3275 = vadd.f32 0.0, %v3274
      %v3276 = vpop.f32.mrb[0].mxu0
      %3277 = vmatprep.mubr.bf16.mxu0 0
      %3278 = vmatmul.mubr.bf16.gmra.mrb[0].mxu0 %v494
      %v3279 = vpop.f32.mrb[0].mxu0
      %v3280 = vadd.f32 0.0, %v3279
      %v3281 = vpop.f32.mrb[0].mxu0
      %v3282 = vpop.f32.mrb[0].mxu0
      %v3283 = vadd.f32 0.0, %v3282
      %v3284 = vpop.f32.mrb[0].mxu0
      %3285 = vmatprep.mubr.bf16.mxu0 0
      %3286 = vmatmul.mubr.bf16.gmra.mrb[0].mxu0 %v495
      %v3287 = vpop.f32.mrb[0].mxu0
      %v3288 = vadd.f32 0.0, %v3287
      %v3289 = vpop.f32.mrb[0].mxu0
      %v3290 = vpop.f32.mrb[0].mxu0
      %v3291 = vadd.f32 0.0, %v3290
      %v3292 = vpop.f32.mrb[0].mxu0
      %3293 = vmatprep.mubr.bf16.mxu0 0
      %3294 = vmatmul.mubr.bf16.gmra.mrb[0].mxu0 %v496
      %v3295 = vpop.f32.mrb[0].mxu0
      %v3296 = vadd.f32 0.0, %v3295
      %v3297 = vpop.f32.mrb[0].mxu0
      %v3298 = vpop.f32.mrb[0].mxu0
      %v3299 = vadd.f32 0.0, %v3298
      %v3300 = vpop.f32.mrb[0].mxu0
      %3301 = vmatprep.mubr.bf16.mxu0 0
      %3302 = vmatmul.mubr.bf16.gmra.mrb[0].mxu0 %v497
      %v3303 = vpop.f32.mrb[0].mxu0
      %v3304 = vadd.f32 0.0, %v3303
      %v3305 = vpop.f32.mrb[0].mxu0
      %v3306 = vpop.f32.mrb[0].mxu0
      %v3307 = vadd.f32 0.0, %v3306
      %v3308 = vpop.f32.mrb[0].mxu0
      %3309 = vmatprep.mubr.bf16.mxu0 0
      %3310 = vmatmul.mubr.bf16.gmra.mrb[0].mxu0 %v498
      %v3311 = vpop.f32.mrb[0].mxu0
      %v3312 = vadd.f32 0.0, %v3311
      %v3313 = vpop.f32.mrb[0].mxu0
      %v3314 = vpop.f32.mrb[0].mxu0
      %v3315 = vadd.f32 0.0, %v3314
      %v3316 = vpop.f32.mrb[0].mxu0
      %3317 = vmatprep.mubr.bf16.mxu0 0
      %3318 = vmatmul.mubr.bf16.gmra.mrb[0].mxu0 %v499
      %v3319 = vpop.f32.mrb[0].mxu0
      %v3320 = vadd.f32 0.0, %v3319
      %v3321 = vpop.f32.mrb[0].mxu0
      %v3322 = vpop.f32.mrb[0].mxu0
      %v3323 = vadd.f32 0.0, %v3322
      %v3324 = vpop.f32.mrb[0].mxu0
      %3325 = vmatprep.mubr.bf16.mxu0 0
      %3326 = vmatmul.mubr.bf16.gmra.mrb[0].mxu0 %v500
      %v3327 = vpop.f32.mrb[0].mxu0
      %v3328 = vadd.f32 0.0, %v3327
      %v3329 = vpop.f32.mrb[0].mxu0
      %v3330 = vpop.f32.mrb[0].mxu0
      %v3331 = vadd.f32 0.0, %v3330
      %v3332 = vpop.f32.mrb[0].mxu0
      %3333 = vmatprep.mubr.bf16.mxu0 0
      %3334 = vmatmul.mubr.bf16.gmra.mrb[0].mxu0 %v501
      %v3335 = vpop.f32.mrb[0].mxu0
      %v3336 = vadd.f32 0.0, %v3335
      %v3337 = vpop.f32.mrb[0].mxu0
      %v3338 = vpop.f32.mrb[0].mxu0
      %v3339 = vadd.f32 0.0, %v3338
      %v3340 = vpop.f32.mrb[0].mxu0
      %3341 = vmatprep.mubr.bf16.mxu0 0
      %3342 = vmatmul.mubr.bf16.gmra.mrb[0].mxu0 %v502
      %v3343 = vpop.f32.mrb[0].mxu0
      %v3344 = vadd.f32 0.0, %v3343
      %v3345 = vpop.f32.mrb[0].mxu0
      %v3346 = vpop.f32.mrb[0].mxu0
      %v3347 = vadd.f32 0.0, %v3346
      %v3348 = vpop.f32.mrb[0].mxu0
      %3349 = vmatprep.mubr.bf16.mxu0 0
      %3350 = vmatmul.mubr.bf16.gmra.mrb[0].mxu0 %v503
      %v3351 = vpop.f32.mrb[0].mxu0
      %v3352 = vadd.f32 0.0, %v3351
      %v3353 = vpop.f32.mrb[0].mxu0
      %v3354 = vpop.f32.mrb[0].mxu0
      %v3355 = vadd.f32 0.0, %v3354
      %v3356 = vpop.f32.mrb[0].mxu0
      %3357 = vmatprep.mubr.bf16.mxu0 0
      %3358 = vmatmul.mubr.bf16.gmra.mrb[0].mxu0 %v504
      %v3359 = vpop.f32.mrb[0].mxu0
      %v3360 = vadd.f32 0.0, %v3359
      %v3361 = vpop.f32.mrb[0].mxu0
      %v3362 = vpop.f32.mrb[0].mxu0
      %v3363 = vadd.f32 0.0, %v3362
      %v3364 = vpop.f32.mrb[0].mxu0
      %3365 = vmatprep.mubr.bf16.mxu0 0
      %3366 = vmatmul.mubr.bf16.gmra.mrb[0].mxu0 %v505
      %v3367 = vpop.f32.mrb[0].mxu0
      %v3368 = vadd.f32 0.0, %v3367
      %v3369 = vpop.f32.mrb[0].mxu0
      %v3370 = vpop.f32.mrb[0].mxu0
      %v3371 = vadd.f32 0.0, %v3370
      %v3372 = vpop.f32.mrb[0].mxu0
      %3373 = vmatprep.mubr.bf16.mxu0 0
      %3374 = vmatmul.mubr.bf16.gmra.mrb[0].mxu0 %v2631
      %v3375 = vpop.f32.mrb[0].mxu0
      %v3376 = vadd.f32 0.0, %v3375
      %v3377 = vpop.f32.mrb[0].mxu0
      %v3378 = vpop.f32.mrb[0].mxu0
      %v3379 = vadd.f32 0.0, %v3378
      %v3380 = vpop.f32.mrb[0].mxu0
      %3381 = vmatprep.mubr.bf16.mxu0 0
      %3382 = vmatmul.mubr.bf16.gmra.mrb[0].mxu0 %v2632
      %v3383 = vpop.f32.mrb[0].mxu0
      %v3384 = vadd.f32 0.0, %v3383
      %v3385 = vpop.f32.mrb[0].mxu0
      %v3386 = vpop.f32.mrb[0].mxu0
      %v3387 = vadd.f32 0.0, %v3386
      %v3388 = vpop.f32.mrb[0].mxu0
      %3389 = vdwg.mxu0
      %v3390 = vadd.f32 %v1661, %v3136
      %v3391 = vadd.f32 %v1664, %v3139
      %v3392 = vadd.f32 %v1669, %v3144
      %v3393 = vadd.f32 %v1672, %v3147
      %v3394 = vadd.f32 %v1677, %v3152
      %v3395 = vadd.f32 %v1680, %v3155
      %v3396 = vadd.f32 %v1685, %v3160
      %v3397 = vadd.f32 %v1688, %v3163
      %v3398 = vadd.f32 %v1693, %v3168
      %v3399 = vadd.f32 %v1696, %v3171
      %v3400 = vadd.f32 %v1701, %v3176
      %v3401 = vadd.f32 %v1704, %v3179
      %v3402 = vadd.f32 %v1709, %v3184
      %v3403 = vadd.f32 %v1712, %v3187
      %v3404 = vadd.f32 %v1717, %v3192
      %v3405 = vadd.f32 %v1720, %v3195
      %v3406 = vadd.f32 %v1725, %v3200
      %v3407 = vadd.f32 %v1728, %v3203
      %v3408 = vadd.f32 %v1733, %v3208
      %v3409 = vadd.f32 %v1736, %v3211
      %v3410 = vadd.f32 %v1741, %v3216
      %v3411 = vadd.f32 %v1744, %v3219
      %v3412 = vadd.f32 %v1749, %v3224
      %v3413 = vadd.f32 %v1752, %v3227
      %v3414 = vadd.f32 %v1757, %v3232
      %v3415 = vadd.f32 %v1760, %v3235
      %v3416 = vadd.f32 %v1765, %v3240
      %v3417 = vadd.f32 %v1768, %v3243
      %v3418 = vadd.f32 %v1773, %v3248
      %v3419 = vadd.f32 %v1776, %v3251
      %v3420 = vadd.f32 %v1781, %v3256
      %v3421 = vadd.f32 %v1784, %v3259
      %v3422 = vadd.f32 %v1789, %v3264
      %v3423 = vadd.f32 %v1792, %v3267
      %v3424 = vadd.f32 %v1797, %v3272
      %v3425 = vadd.f32 %v1800, %v3275
      %v3426 = vadd.f32 %v1805, %v3280
      %v3427 = vadd.f32 %v1808, %v3283
      %v3428 = vadd.f32 %v1813, %v3288
      %v3429 = vadd.f32 %v1816, %v3291
      %v3430 = vadd.f32 %v1821, %v3296
      %v3431 = vadd.f32 %v1824, %v3299
      %v3432 = vadd.f32 %v1829, %v3304
      %v3433 = vadd.f32 %v1832, %v3307
      %v3434 = vadd.f32 %v1837, %v3312
      %v3435 = vadd.f32 %v1840, %v3315
      %v3436 = vadd.f32 %v1845, %v3320
      %v3437 = vadd.f32 %v1848, %v3323
      %v3438 = vadd.f32 %v1853, %v3328
      %v3439 = vadd.f32 %v1856, %v3331
      %v3440 = vadd.f32 %v1861, %v3336
      %v3441 = vadd.f32 %v1864, %v3339
      %v3442 = vadd.f32 %v1869, %v3344
      %v3443 = vadd.f32 %v1872, %v3347
      %v3444 = vadd.f32 %v1877, %v3352
      %v3445 = vadd.f32 %v1880, %v3355
      %v3446 = vadd.f32 %v1885, %v3360
      %v3447 = vadd.f32 %v1888, %v3363
      %v3448 = vadd.f32 %v1893, %v3368
      %v3449 = vadd.f32 %v1896, %v3371
      %v3450 = vadd.f32 %v1901, %v3376
      %v3451 = vadd.f32 %v1904, %v3379
      %v3452 = vadd.f32 %v1909, %v3384
      %v3453 = vadd.f32 %v1912, %v3387
      %s3454 = scalar_lea.vmem %s1, 512
      %v3455 = vld [vmem:[%s3454] sm:$0xf]
      %v3456 = vld [vmem:[%s3454 + $0x4] sm:$0xf]
      %v3457 = vld [vmem:[%s3454 + $0x8] sm:$0xf]
      %v3458 = vld [vmem:[%s3454 + $0xc] sm:$0xf]
      %v3459 = vld [vmem:[%s3454 + $0x10] sm:$0xf]
      %v3460 = vld [vmem:[%s3454 + $0x14] sm:$0xf]
      %v3461 = vld [vmem:[%s3454 + $0x18] sm:$0xf]
      %v3462 = vld [vmem:[%s3454 + $0x1c] sm:$0xf]
      %v3463 = vld [vmem:[%s3454 + $0x20] sm:$0xf]
      %v3464 = vld [vmem:[%s3454 + $0x24] sm:$0xf]
      %v3465 = vld [vmem:[%s3454 + $0x28] sm:$0xf]
      %v3466 = vld [vmem:[%s3454 + $0x2c] sm:$0xf]
      %v3467 = vld [vmem:[%s3454 + $0x30] sm:$0xf]
      %v3468 = vld [vmem:[%s3454 + $0x34] sm:$0xf]
      %v3469 = vld [vmem:[%s3454 + $0x38] sm:$0xf]
      %v3470 = vld [vmem:[%s3454 + $0x3c] sm:$0xf]
      %v3487 = vunpack.c.l.b16 %v3455
      %v3488 = vunpack.c.l.b16 %v3456
      %v3489 = vunpack.c.l.b16 %v3457
      %v3490 = vunpack.c.l.b16 %v3458
      %v3491 = vunpack.c.l.b16 %v3459
      %v3492 = vunpack.c.l.b16 %v3460
      %v3493 = vunpack.c.l.b16 %v3461
      %v3494 = vunpack.c.l.b16 %v3462
      %v3495 = vunpack.c.l.b16 %v3463
      %v3496 = vunpack.c.l.b16 %v3464
      %v3497 = vunpack.c.l.b16 %v3465
      %v3498 = vunpack.c.l.b16 %v3466
      %v3499 = vunpack.c.l.b16 %v3467
      %v3500 = vunpack.c.l.b16 %v3468
      %v3501 = vunpack.c.l.b16 %v3469
      %v3502 = vunpack.c.l.b16 %v3470
      %v3503 = vpack.c.b16 %v3488, %v3487
      %v3504 = vpack.c.b16 %v3490, %v3489
      %v3505 = vpack.c.b16 %v3492, %v3491
      %v3506 = vpack.c.b16 %v3494, %v3493
      %v3507 = vpack.c.b16 %v3496, %v3495
      %v3508 = vpack.c.b16 %v3498, %v3497
      %v3509 = vpack.c.b16 %v3500, %v3499
      %v3510 = vpack.c.b16 %v3502, %v3501
      %3519 = vmatprep.subr.bf16.mxu0 0
      %3520 = vmatpush1.bf16.msra.mxu0 %v3503
      %3521 = vmatprep.subr.bf16.mxu0 0
      %3522 = vmatpush1.bf16.msra.mxu0 %v3504
      %3523 = vmatprep.subr.bf16.mxu0 0
      %3524 = vmatpush1.bf16.msra.mxu0 %v3505
      %3525 = vmatprep.subr.bf16.mxu0 0
      %3526 = vmatpush1.bf16.msra.mxu0 %v3506
      %3527 = vmatprep.subr.bf16.mxu0 0
      %3528 = vmatpush1.bf16.msra.mxu0 %v3507
      %3529 = vmatprep.subr.bf16.mxu0 0
      %3530 = vmatpush1.bf16.msra.mxu0 %v3508
      %3531 = vmatprep.subr.bf16.mxu0 0
      %3532 = vmatpush1.bf16.msra.mxu0 %v3509
      %3533 = vmatprep.subr.bf16.mxu0 0
      %3534 = vmatpush1.bf16.msra.mxu0 %v3510
      %3535 = vmatprep.subr.bf16.mxu0 0
      %3536 = vmatpush1.bf16.msra.mxu0 0
      %3537 = vmatprep.subr.bf16.mxu0 0
      %3538 = vmatpush1.bf16.msra.mxu0 0
      %3539 = vmatprep.subr.bf16.mxu0 0
      %3540 = vmatpush1.bf16.msra.mxu0 0
      %3541 = vmatprep.subr.bf16.mxu0 0
      %3542 = vmatpush1.bf16.msra.mxu0 0
      %3543 = vmatprep.subr.bf16.mxu0 0
      %3544 = vmatpush1.bf16.msra.mxu0 0
      %3545 = vmatprep.subr.bf16.mxu0 0
      %3546 = vmatpush1.bf16.msra.mxu0 0
      %3547 = vmatprep.subr.bf16.mxu0 0
      %3548 = vmatpush1.bf16.msra.mxu0 0
      %3549 = vmatprep.subr.bf16.mxu0 0
      %3550 = vmatpush1.bf16.msra.mxu0 0
      %3551 = vmatprep.mubr.bf16.mxu0 0
      %3552 = vmatmul.mubr.bf16.gmra.mrb[0].mxu0 %v476
      %v3553 = vpop.f32.mrb[0].mxu0
      %v3554 = vadd.f32 0.0, %v3553
      %v3555 = vpop.f32.mrb[0].mxu0
      %v3556 = vpop.f32.mrb[0].mxu0
      %v3557 = vadd.f32 0.0, %v3556
      %v3558 = vpop.f32.mrb[0].mxu0
      %3559 = vmatprep.mubr.bf16.mxu0 0
      %3560 = vmatmul.mubr.bf16.gmra.mrb[0].mxu0 %v477
      %v3561 = vpop.f32.mrb[0].mxu0
      %v3562 = vadd.f32 0.0, %v3561
      %v3563 = vpop.f32.mrb[0].mxu0
      %v3564 = vpop.f32.mrb[0].mxu0
      %v3565 = vadd.f32 0.0, %v3564
      %v3566 = vpop.f32.mrb[0].mxu0
      %3567 = vmatprep.mubr.bf16.mxu0 0
      %3568 = vmatmul.mubr.bf16.gmra.mrb[0].mxu0 %v478
      %v3569 = vpop.f32.mrb[0].mxu0
      %v3570 = vadd.f32 0.0, %v3569
      %v3571 = vpop.f32.mrb[0].mxu0
      %v3572 = vpop.f32.mrb[0].mxu0
      %v3573 = vadd.f32 0.0, %v3572
      %v3574 = vpop.f32.mrb[0].mxu0
      %3575 = vmatprep.mubr.bf16.mxu0 0
      %3576 = vmatmul.mubr.bf16.gmra.mrb[0].mxu0 %v479
      %v3577 = vpop.f32.mrb[0].mxu0
      %v3578 = vadd.f32 0.0, %v3577
      %v3579 = vpop.f32.mrb[0].mxu0
      %v3580 = vpop.f32.mrb[0].mxu0
      %v3581 = vadd.f32 0.0, %v3580
      %v3582 = vpop.f32.mrb[0].mxu0
      %3583 = vmatprep.mubr.bf16.mxu0 0
      %3584 = vmatmul.mubr.bf16.gmra.mrb[0].mxu0 %v480
      %v3585 = vpop.f32.mrb[0].mxu0
      %v3586 = vadd.f32 0.0, %v3585
      %v3587 = vpop.f32.mrb[0].mxu0
      %v3588 = vpop.f32.mrb[0].mxu0
      %v3589 = vadd.f32 0.0, %v3588
      %v3590 = vpop.f32.mrb[0].mxu0
      %3591 = vmatprep.mubr.bf16.mxu0 0
      %3592 = vmatmul.mubr.bf16.gmra.mrb[0].mxu0 %v481
      %v3593 = vpop.f32.mrb[0].mxu0
      %v3594 = vadd.f32 0.0, %v3593
      %v3595 = vpop.f32.mrb[0].mxu0
      %v3596 = vpop.f32.mrb[0].mxu0
      %v3597 = vadd.f32 0.0, %v3596
      %v3598 = vpop.f32.mrb[0].mxu0
      %3599 = vmatprep.mubr.bf16.mxu0 0
      %3600 = vmatmul.mubr.bf16.gmra.mrb[0].mxu0 %v482
      %v3601 = vpop.f32.mrb[0].mxu0
      %v3602 = vadd.f32 0.0, %v3601
      %v3603 = vpop.f32.mrb[0].mxu0
      %v3604 = vpop.f32.mrb[0].mxu0
      %v3605 = vadd.f32 0.0, %v3604
      %v3606 = vpop.f32.mrb[0].mxu0
      %3607 = vmatprep.mubr.bf16.mxu0 0
      %3608 = vmatmul.mubr.bf16.gmra.mrb[0].mxu0 %v483
      %v3609 = vpop.f32.mrb[0].mxu0
      %v3610 = vadd.f32 0.0, %v3609
      %v3611 = vpop.f32.mrb[0].mxu0
      %v3612 = vpop.f32.mrb[0].mxu0
      %v3613 = vadd.f32 0.0, %v3612
      %v3614 = vpop.f32.mrb[0].mxu0
      %3615 = vmatprep.mubr.bf16.mxu0 0
      %3616 = vmatmul.mubr.bf16.gmra.mrb[0].mxu0 %v484
      %v3617 = vpop.f32.mrb[0].mxu0
      %v3618 = vadd.f32 0.0, %v3617
      %v3619 = vpop.f32.mrb[0].mxu0
      %v3620 = vpop.f32.mrb[0].mxu0
      %v3621 = vadd.f32 0.0, %v3620
      %v3622 = vpop.f32.mrb[0].mxu0
      %3623 = vmatprep.mubr.bf16.mxu0 0
      %3624 = vmatmul.mubr.bf16.gmra.mrb[0].mxu0 %v485
      %v3625 = vpop.f32.mrb[0].mxu0
      %v3626 = vadd.f32 0.0, %v3625
      %v3627 = vpop.f32.mrb[0].mxu0
      %v3628 = vpop.f32.mrb[0].mxu0
      %v3629 = vadd.f32 0.0, %v3628
      %v3630 = vpop.f32.mrb[0].mxu0
      %3631 = vmatprep.mubr.bf16.mxu0 0
      %3632 = vmatmul.mubr.bf16.gmra.mrb[0].mxu0 %v486
      %v3633 = vpop.f32.mrb[0].mxu0
      %v3634 = vadd.f32 0.0, %v3633
      %v3635 = vpop.f32.mrb[0].mxu0
      %v3636 = vpop.f32.mrb[0].mxu0
      %v3637 = vadd.f32 0.0, %v3636
      %v3638 = vpop.f32.mrb[0].mxu0
      %3639 = vmatprep.mubr.bf16.mxu0 0
      %3640 = vmatmul.mubr.bf16.gmra.mrb[0].mxu0 %v487
      %v3641 = vpop.f32.mrb[0].mxu0
      %v3642 = vadd.f32 0.0, %v3641
      %v3643 = vpop.f32.mrb[0].mxu0
      %v3644 = vpop.f32.mrb[0].mxu0
      %v3645 = vadd.f32 0.0, %v3644
      %v3646 = vpop.f32.mrb[0].mxu0
      %3647 = vmatprep.mubr.bf16.mxu0 0
      %3648 = vmatmul.mubr.bf16.gmra.mrb[0].mxu0 %v488
      %v3649 = vpop.f32.mrb[0].mxu0
      %v3650 = vadd.f32 0.0, %v3649
      %v3651 = vpop.f32.mrb[0].mxu0
      %v3652 = vpop.f32.mrb[0].mxu0
      %v3653 = vadd.f32 0.0, %v3652
      %v3654 = vpop.f32.mrb[0].mxu0
      %3655 = vmatprep.mubr.bf16.mxu0 0
      %3656 = vmatmul.mubr.bf16.gmra.mrb[0].mxu0 %v489
      %v3657 = vpop.f32.mrb[0].mxu0
      %v3658 = vadd.f32 0.0, %v3657
      %v3659 = vpop.f32.mrb[0].mxu0
      %v3660 = vpop.f32.mrb[0].mxu0
      %v3661 = vadd.f32 0.0, %v3660
      %v3662 = vpop.f32.mrb[0].mxu0
      %3663 = vmatprep.mubr.bf16.mxu0 0
      %3664 = vmatmul.mubr.bf16.gmra.mrb[0].mxu0 %v490
      %v3665 = vpop.f32.mrb[0].mxu0
      %v3666 = vadd.f32 0.0, %v3665
      %v3667 = vpop.f32.mrb[0].mxu0
      %v3668 = vpop.f32.mrb[0].mxu0
      %v3669 = vadd.f32 0.0, %v3668
      %v3670 = vpop.f32.mrb[0].mxu0
      %3671 = vmatprep.mubr.bf16.mxu0 0
      %3672 = vmatmul.mubr.bf16.gmra.mrb[0].mxu0 %v491
      %v3673 = vpop.f32.mrb[0].mxu0
      %v3674 = vadd.f32 0.0, %v3673
      %v3675 = vpop.f32.mrb[0].mxu0
      %v3676 = vpop.f32.mrb[0].mxu0
      %v3677 = vadd.f32 0.0, %v3676
      %v3678 = vpop.f32.mrb[0].mxu0
      %3679 = vmatprep.mubr.bf16.mxu0 0
      %3680 = vmatmul.mubr.bf16.gmra.mrb[0].mxu0 %v492
      %v3681 = vpop.f32.mrb[0].mxu0
      %v3682 = vadd.f32 0.0, %v3681
      %v3683 = vpop.f32.mrb[0].mxu0
      %v3684 = vpop.f32.mrb[0].mxu0
      %v3685 = vadd.f32 0.0, %v3684
      %v3686 = vpop.f32.mrb[0].mxu0
      %3687 = vmatprep.mubr.bf16.mxu0 0
      %3688 = vmatmul.mubr.bf16.gmra.mrb[0].mxu0 %v493
      %v3689 = vpop.f32.mrb[0].mxu0
      %v3690 = vadd.f32 0.0, %v3689
      %v3691 = vpop.f32.mrb[0].mxu0
      %v3692 = vpop.f32.mrb[0].mxu0
      %v3693 = vadd.f32 0.0, %v3692
      %v3694 = vpop.f32.mrb[0].mxu0
      %3695 = vmatprep.mubr.bf16.mxu0 0
      %3696 = vmatmul.mubr.bf16.gmra.mrb[0].mxu0 %v494
      %v3697 = vpop.f32.mrb[0].mxu0
      %v3698 = vadd.f32 0.0, %v3697
      %v3699 = vpop.f32.mrb[0].mxu0
      %v3700 = vpop.f32.mrb[0].mxu0
      %v3701 = vadd.f32 0.0, %v3700
      %v3702 = vpop.f32.mrb[0].mxu0
      %3703 = vmatprep.mubr.bf16.mxu0 0
      %3704 = vmatmul.mubr.bf16.gmra.mrb[0].mxu0 %v495
      %v3705 = vpop.f32.mrb[0].mxu0
      %v3706 = vadd.f32 0.0, %v3705
      %v3707 = vpop.f32.mrb[0].mxu0
      %v3708 = vpop.f32.mrb[0].mxu0
      %v3709 = vadd.f32 0.0, %v3708
      %v3710 = vpop.f32.mrb[0].mxu0
      %3711 = vmatprep.mubr.bf16.mxu0 0
      %3712 = vmatmul.mubr.bf16.gmra.mrb[0].mxu0 %v496
      %v3713 = vpop.f32.mrb[0].mxu0
      %v3714 = vadd.f32 0.0, %v3713
      %v3715 = vpop.f32.mrb[0].mxu0
      %v3716 = vpop.f32.mrb[0].mxu0
      %v3717 = vadd.f32 0.0, %v3716
      %v3718 = vpop.f32.mrb[0].mxu0
      %3719 = vmatprep.mubr.bf16.mxu0 0
      %3720 = vmatmul.mubr.bf16.gmra.mrb[0].mxu0 %v497
      %v3721 = vpop.f32.mrb[0].mxu0
      %v3722 = vadd.f32 0.0, %v3721
      %v3723 = vpop.f32.mrb[0].mxu0
      %v3724 = vpop.f32.mrb[0].mxu0
      %v3725 = vadd.f32 0.0, %v3724
      %v3726 = vpop.f32.mrb[0].mxu0
      %3727 = vmatprep.mubr.bf16.mxu0 0
      %3728 = vmatmul.mubr.bf16.gmra.mrb[0].mxu0 %v498
      %v3729 = vpop.f32.mrb[0].mxu0
      %v3730 = vadd.f32 0.0, %v3729
      %v3731 = vpop.f32.mrb[0].mxu0
      %v3732 = vpop.f32.mrb[0].mxu0
      %v3733 = vadd.f32 0.0, %v3732
      %v3734 = vpop.f32.mrb[0].mxu0
      %3735 = vmatprep.mubr.bf16.mxu0 0
      %3736 = vmatmul.mubr.bf16.gmra.mrb[0].mxu0 %v499
      %v3737 = vpop.f32.mrb[0].mxu0
      %v3738 = vadd.f32 0.0, %v3737
      %v3739 = vpop.f32.mrb[0].mxu0
      %v3740 = vpop.f32.mrb[0].mxu0
      %v3741 = vadd.f32 0.0, %v3740
      %v3742 = vpop.f32.mrb[0].mxu0
      %3743 = vmatprep.mubr.bf16.mxu0 0
      %3744 = vmatmul.mubr.bf16.gmra.mrb[0].mxu0 %v500
      %v3745 = vpop.f32.mrb[0].mxu0
      %v3746 = vadd.f32 0.0, %v3745
      %v3747 = vpop.f32.mrb[0].mxu0
      %v3748 = vpop.f32.mrb[0].mxu0
      %v3749 = vadd.f32 0.0, %v3748
      %v3750 = vpop.f32.mrb[0].mxu0
      %3751 = vmatprep.mubr.bf16.mxu0 0
      %3752 = vmatmul.mubr.bf16.gmra.mrb[0].mxu0 %v501
      %v3753 = vpop.f32.mrb[0].mxu0
      %v3754 = vadd.f32 0.0, %v3753
      %v3755 = vpop.f32.mrb[0].mxu0
      %v3756 = vpop.f32.mrb[0].mxu0
      %v3757 = vadd.f32 0.0, %v3756
      %v3758 = vpop.f32.mrb[0].mxu0
      %3759 = vmatprep.mubr.bf16.mxu0 0
      %3760 = vmatmul.mubr.bf16.gmra.mrb[0].mxu0 %v502
      %v3761 = vpop.f32.mrb[0].mxu0
      %v3762 = vadd.f32 0.0, %v3761
      %v3763 = vpop.f32.mrb[0].mxu0
      %v3764 = vpop.f32.mrb[0].mxu0
      %v3765 = vadd.f32 0.0, %v3764
      %v3766 = vpop.f32.mrb[0].mxu0
      %3767 = vmatprep.mubr.bf16.mxu0 0
      %3768 = vmatmul.mubr.bf16.gmra.mrb[0].mxu0 %v503
      %v3769 = vpop.f32.mrb[0].mxu0
      %v3770 = vadd.f32 0.0, %v3769
      %v3771 = vpop.f32.mrb[0].mxu0
      %v3772 = vpop.f32.mrb[0].mxu0
      %v3773 = vadd.f32 0.0, %v3772
      %v3774 = vpop.f32.mrb[0].mxu0
      %3775 = vmatprep.mubr.bf16.mxu0 0
      %3776 = vmatmul.mubr.bf16.gmra.mrb[0].mxu0 %v504
      %v3777 = vpop.f32.mrb[0].mxu0
      %v3778 = vadd.f32 0.0, %v3777
      %v3779 = vpop.f32.mrb[0].mxu0
      %v3780 = vpop.f32.mrb[0].mxu0
      %v3781 = vadd.f32 0.0, %v3780
      %v3782 = vpop.f32.mrb[0].mxu0
      %3783 = vmatprep.mubr.bf16.mxu0 0
      %3784 = vmatmul.mubr.bf16.gmra.mrb[0].mxu0 %v505
      %v3785 = vpop.f32.mrb[0].mxu0
      %v3786 = vadd.f32 0.0, %v3785
      %v3787 = vpop.f32.mrb[0].mxu0
      %v3788 = vpop.f32.mrb[0].mxu0
      %v3789 = vadd.f32 0.0, %v3788
      %v3790 = vpop.f32.mrb[0].mxu0
      %3791 = vmatprep.mubr.bf16.mxu0 0
      %3792 = vmatmul.mubr.bf16.gmra.mrb[0].mxu0 %v2631
      %v3793 = vpop.f32.mrb[0].mxu0
      %v3794 = vadd.f32 0.0, %v3793
      %v3795 = vpop.f32.mrb[0].mxu0
      %v3796 = vpop.f32.mrb[0].mxu0
      %v3797 = vadd.f32 0.0, %v3796
      %v3798 = vpop.f32.mrb[0].mxu0
      %3799 = vmatprep.mubr.bf16.mxu0 0
      %3800 = vmatmul.mubr.bf16.gmra.mrb[0].mxu0 %v2632
      %v3801 = vpop.f32.mrb[0].mxu0
      %v3802 = vadd.f32 0.0, %v3801
      %v3803 = vpop.f32.mrb[0].mxu0
      %v3804 = vpop.f32.mrb[0].mxu0
      %v3805 = vadd.f32 0.0, %v3804
      %v3806 = vpop.f32.mrb[0].mxu0
      %3807 = vdwg.mxu0
      %v3808 = vadd.f32 %v2352, %v3554
      %v3809 = vadd.f32 %v2355, %v3557
      %v3810 = vadd.f32 %v2360, %v3562
      %v3811 = vadd.f32 %v2363, %v3565
      %v3812 = vadd.f32 %v2368, %v3570
      %v3813 = vadd.f32 %v2371, %v3573
      %v3814 = vadd.f32 %v2376, %v3578
      %v3815 = vadd.f32 %v2379, %v3581
      %v3816 = vadd.f32 %v2384, %v3586
      %v3817 = vadd.f32 %v2387, %v3589
      %v3818 = vadd.f32 %v2392, %v3594
      %v3819 = vadd.f32 %v2395, %v3597
      %v3820 = vadd.f32 %v2400, %v3602
      %v3821 = vadd.f32 %v2403, %v3605
      %v3822 = vadd.f32 %v2408, %v3610
      %v3823 = vadd.f32 %v2411, %v3613
      %v3824 = vadd.f32 %v2416, %v3618
      %v3825 = vadd.f32 %v2419, %v3621
      %v3826 = vadd.f32 %v2424, %v3626
      %v3827 = vadd.f32 %v2427, %v3629
      %v3828 = vadd.f32 %v2432, %v3634
      %v3829 = vadd.f32 %v2435, %v3637
      %v3830 = vadd.f32 %v2440, %v3642
      %v3831 = vadd.f32 %v2443, %v3645
      %v3832 = vadd.f32 %v2448, %v3650
      %v3833 = vadd.f32 %v2451, %v3653
      %v3834 = vadd.f32 %v2456, %v3658
      %v3835 = vadd.f32 %v2459, %v3661
      %v3836 = vadd.f32 %v2464, %v3666
      %v3837 = vadd.f32 %v2467, %v3669
      %v3838 = vadd.f32 %v2472, %v3674
      %v3839 = vadd.f32 %v2475, %v3677
      %v3840 = vadd.f32 %v2480, %v3682
      %v3841 = vadd.f32 %v2483, %v3685
      %v3842 = vadd.f32 %v2488, %v3690
      %v3843 = vadd.f32 %v2491, %v3693
      %v3844 = vadd.f32 %v2496, %v3698
      %v3845 = vadd.f32 %v2499, %v3701
      %v3846 = vadd.f32 %v2504, %v3706
      %v3847 = vadd.f32 %v2507, %v3709
      %v3848 = vadd.f32 %v2512, %v3714
      %v3849 = vadd.f32 %v2515, %v3717
      %v3850 = vadd.f32 %v2520, %v3722
      %v3851 = vadd.f32 %v2523, %v3725
      %v3852 = vadd.f32 %v2528, %v3730
      %v3853 = vadd.f32 %v2531, %v3733
      %v3854 = vadd.f32 %v2536, %v3738
      %v3855 = vadd.f32 %v2539, %v3741
      %v3856 = vadd.f32 %v2544, %v3746
      %v3857 = vadd.f32 %v2547, %v3749
      %v3858 = vadd.f32 %v2552, %v3754
      %v3859 = vadd.f32 %v2555, %v3757
      %v3860 = vadd.f32 %v2560, %v3762
      %v3861 = vadd.f32 %v2563, %v3765
      %v3862 = vadd.f32 %v2568, %v3770
      %v3863 = vadd.f32 %v2571, %v3773
      %v3864 = vadd.f32 %v2576, %v3778
      %v3865 = vadd.f32 %v2579, %v3781
      %v3866 = vadd.f32 %v2584, %v3786
      %v3867 = vadd.f32 %v2587, %v3789
      %v3868 = vadd.f32 %v2592, %v3794
      %v3869 = vadd.f32 %v2595, %v3797
      %v3870 = vadd.f32 %v2600, %v3802
      %v3871 = vadd.f32 %v2603, %v3805
      %v3872 = vrot.slane %v2972, 7
      %v3873 = vrot.slane %v2973, 7
      %v3874 = vrot.slane %v2974, 7
      %v3875 = vrot.slane %v2975, 7
      %v3876 = vrot.slane %v2976, 7
      %v3877 = vrot.slane %v2977, 7
      %v3878 = vrot.slane %v2978, 7
      %v3879 = vrot.slane %v2979, 7
      %v3880 = vrot.slane %v2980, 7
      %v3881 = vrot.slane %v2981, 7
      %v3882 = vrot.slane %v2982, 7
      %v3883 = vrot.slane %v2983, 7
      %v3884 = vrot.slane %v2984, 7
      %v3885 = vrot.slane %v2985, 7
      %v3886 = vrot.slane %v2986, 7
      %v3887 = vrot.slane %v2987, 7
      %v3888 = vrot.slane %v2988, 7
      %v3889 = vrot.slane %v2989, 7
      %v3890 = vrot.slane %v2990, 7
      %v3891 = vrot.slane %v2991, 7
      %v3892 = vrot.slane %v2992, 7
      %v3893 = vrot.slane %v2993, 7
      %v3894 = vrot.slane %v2994, 7
      %v3895 = vrot.slane %v2995, 7
      %v3896 = vrot.slane %v2996, 7
      %v3897 = vrot.slane %v2997, 7
      %v3898 = vrot.slane %v2998, 7
      %v3899 = vrot.slane %v2999, 7
      %v3900 = vrot.slane %v3000, 7
      %v3901 = vrot.slane %v3001, 7
      %v3902 = vrot.slane %v3002, 7
      %v3903 = vrot.slane %v3003, 7
      %v3904 = vrot.slane %v3004, 7
      %v3905 = vrot.slane %v3005, 7
      %v3906 = vrot.slane %v3006, 7
      %v3907 = vrot.slane %v3007, 7
      %v3908 = vrot.slane %v3008, 7
      %v3909 = vrot.slane %v3009, 7
      %v3910 = vrot.slane %v3010, 7
      %v3911 = vrot.slane %v3011, 7
      %v3912 = vrot.slane %v3012, 7
      %v3913 = vrot.slane %v3013, 7
      %v3914 = vrot.slane %v3014, 7
      %v3915 = vrot.slane %v3015, 7
      %v3916 = vrot.slane %v3016, 7
      %v3917 = vrot.slane %v3017, 7
      %v3918 = vrot.slane %v3018, 7
      %v3919 = vrot.slane %v3019, 7
      %v3920 = vrot.slane %v3020, 7
      %v3921 = vrot.slane %v3021, 7
      %v3922 = vrot.slane %v3022, 7
      %v3923 = vrot.slane %v3023, 7
      %v3924 = vrot.slane %v3024, 7
      %v3925 = vrot.slane %v3025, 7
      %v3926 = vrot.slane %v3026, 7
      %v3927 = vrot.slane %v3027, 7
      %v3928 = vrot.slane %v3028, 7
      %v3929 = vrot.slane %v3029, 7
      %v3930 = vrot.slane %v3030, 7
      %v3931 = vrot.slane %v3031, 7
      %v3932 = vrot.slane %v3032, 7
      %v3933 = vrot.slane %v3033, 7
      %v3934 = vrot.slane %v3034, 7
      %v3935 = vrot.slane %v3035, 7
      %v3936 = vlaneseq
      %v3937 = vshrl.u32 %v3936, 7
      %vm3938 = vcmp.lt.s32.totalorder %v3937, 1
      %v3939 = vsel %vm3938, %v3934, %v3935
      %v3940 = vsel %vm3938, %v3933, %v3934
      %v3941 = vsel %vm3938, %v3932, %v3933
      %v3942 = vsel %vm3938, %v3931, %v3932
      %v3943 = vsel %vm3938, %v3930, %v3931
      %v3944 = vsel %vm3938, %v3929, %v3930
      %v3945 = vsel %vm3938, %v3928, %v3929
      %v3946 = vsel %vm3938, %v3927, %v3928
      %v3947 = vsel %vm3938, %v3926, %v3927
      %v3948 = vsel %vm3938, %v3925, %v3926
      %v3949 = vsel %vm3938, %v3924, %v3925
      %v3950 = vsel %vm3938, %v3923, %v3924
      %v3951 = vsel %vm3938, %v3922, %v3923
      %v3952 = vsel %vm3938, %v3921, %v3922
      %v3953 = vsel %vm3938, %v3920, %v3921
      %v3954 = vsel %vm3938, %v3919, %v3920
      %v3955 = vsel %vm3938, %v3918, %v3919
      %v3956 = vsel %vm3938, %v3917, %v3918
      %v3957 = vsel %vm3938, %v3916, %v3917
      %v3958 = vsel %vm3938, %v3915, %v3916
      %v3959 = vsel %vm3938, %v3914, %v3915
      %v3960 = vsel %vm3938, %v3913, %v3914
      %v3961 = vsel %vm3938, %v3912, %v3913
      %v3962 = vsel %vm3938, %v3911, %v3912
      %v3963 = vsel %vm3938, %v3910, %v3911
      %v3964 = vsel %vm3938, %v3909, %v3910
      %v3965 = vsel %vm3938, %v3908, %v3909
      %v3966 = vsel %vm3938, %v3907, %v3908
      %v3967 = vsel %vm3938, %v3906, %v3907
      %v3968 = vsel %vm3938, %v3905, %v3906
      %v3969 = vsel %vm3938, %v3904, %v3905
      %v3970 = vsel %vm3938, %v3903, %v3904
      %v3971 = vsel %vm3938, %v3902, %v3903
      %v3972 = vsel %vm3938, %v3901, %v3902
      %v3973 = vsel %vm3938, %v3900, %v3901
      %v3974 = vsel %vm3938, %v3899, %v3900
      %v3975 = vsel %vm3938, %v3898, %v3899
      %v3976 = vsel %vm3938, %v3897, %v3898
      %v3977 = vsel %vm3938, %v3896, %v3897
      %v3978 = vsel %vm3938, %v3895, %v3896
      %v3979 = vsel %vm3938, %v3894, %v3895
      %v3980 = vsel %vm3938, %v3893, %v3894
      %v3981 = vsel %vm3938, %v3892, %v3893
      %v3982 = vsel %vm3938, %v3891, %v3892
      %v3983 = vsel %vm3938, %v3890, %v3891
      %v3984 = vsel %vm3938, %v3889, %v3890
      %v3985 = vsel %vm3938, %v3888, %v3889
      %v3986 = vsel %vm3938, %v3887, %v3888
      %v3987 = vsel %vm3938, %v3886, %v3887
      %v3988 = vsel %vm3938, %v3885, %v3886
      %v3989 = vsel %vm3938, %v3884, %v3885
      %v3990 = vsel %vm3938, %v3883, %v3884
      %v3991 = vsel %vm3938, %v3882, %v3883
      %v3992 = vsel %vm3938, %v3881, %v3882
      %v3993 = vsel %vm3938, %v3880, %v3881
      %v3994 = vsel %vm3938, %v3879, %v3880
      %v3995 = vsel %vm3938, %v3878, %v3879
      %v3996 = vsel %vm3938, %v3877, %v3878
      %v3997 = vsel %vm3938, %v3876, %v3877
      %v3998 = vsel %vm3938, %v3875, %v3876
      %v3999 = vsel %vm3938, %v3874, %v3875
      %v4000 = vsel %vm3938, %v3873, %v3874
      %v4001 = vsel %vm3938, %v3872, %v3873
      %v4002 = vsel %vm3938, %v3935, %v3872
      %v4003 = vadd.f32 %v4002, %v3390
      %v4004 = vadd.f32 %v4001, %v3391
      %v4005 = vadd.f32 %v4000, %v3392
      %v4006 = vadd.f32 %v3999, %v3393
      %v4007 = vadd.f32 %v3998, %v3394
      %v4008 = vadd.f32 %v3997, %v3395
      %v4009 = vadd.f32 %v3996, %v3396
      %v4010 = vadd.f32 %v3995, %v3397
      %v4011 = vadd.f32 %v3994, %v3398
      %v4012 = vadd.f32 %v3993, %v3399
      %v4013 = vadd.f32 %v3992, %v3400
      %v4014 = vadd.f32 %v3991, %v3401
      %v4015 = vadd.f32 %v3990, %v3402
      %v4016 = vadd.f32 %v3989, %v3403
      %v4017 = vadd.f32 %v3988, %v3404
      %v4018 = vadd.f32 %v3987, %v3405
      %v4019 = vadd.f32 %v3986, %v3406
      %v4020 = vadd.f32 %v3985, %v3407
      %v4021 = vadd.f32 %v3984, %v3408
      %v4022 = vadd.f32 %v3983, %v3409
      %v4023 = vadd.f32 %v3982, %v3410
      %v4024 = vadd.f32 %v3981, %v3411
      %v4025 = vadd.f32 %v3980, %v3412
      %v4026 = vadd.f32 %v3979, %v3413
      %v4027 = vadd.f32 %v3978, %v3414
      %v4028 = vadd.f32 %v3977, %v3415
      %v4029 = vadd.f32 %v3976, %v3416
      %v4030 = vadd.f32 %v3975, %v3417
      %v4031 = vadd.f32 %v3974, %v3418
      %v4032 = vadd.f32 %v3973, %v3419
      %v4033 = vadd.f32 %v3972, %v3420
      %v4034 = vadd.f32 %v3971, %v3421
      %v4035 = vadd.f32 %v3970, %v3422
      %v4036 = vadd.f32 %v3969, %v3423
      %v4037 = vadd.f32 %v3968, %v3424
      %v4038 = vadd.f32 %v3967, %v3425
      %v4039 = vadd.f32 %v3966, %v3426
      %v4040 = vadd.f32 %v3965, %v3427
      %v4041 = vadd.f32 %v3964, %v3428
      %v4042 = vadd.f32 %v3963, %v3429
      %v4043 = vadd.f32 %v3962, %v3430
      %v4044 = vadd.f32 %v3961, %v3431
      %v4045 = vadd.f32 %v3960, %v3432
      %v4046 = vadd.f32 %v3959, %v3433
      %v4047 = vadd.f32 %v3958, %v3434
      %v4048 = vadd.f32 %v3957, %v3435
      %v4049 = vadd.f32 %v3956, %v3436
      %v4050 = vadd.f32 %v3955, %v3437
      %v4051 = vadd.f32 %v3954, %v3438
      %v4052 = vadd.f32 %v3953, %v3439
      %v4053 = vadd.f32 %v3952, %v3440
      %v4054 = vadd.f32 %v3951, %v3441
      %v4055 = vadd.f32 %v3950, %v3442
      %v4056 = vadd.f32 %v3949, %v3443
      %v4057 = vadd.f32 %v3948, %v3444
      %v4058 = vadd.f32 %v3947, %v3445
      %v4059 = vadd.f32 %v3946, %v3446
      %v4060 = vadd.f32 %v3945, %v3447
      %v4061 = vadd.f32 %v3944, %v3448
      %v4062 = vadd.f32 %v3943, %v3449
      %v4063 = vadd.f32 %v3942, %v3450
      %v4064 = vadd.f32 %v3941, %v3451
      %v4065 = vadd.f32 %v3940, %v3452
      %v4066 = vadd.f32 %v3939, %v3453
      %v4067 = vrot.slane %v3808, 1
      %v4068 = vrot.slane %v3809, 1
      %v4069 = vrot.slane %v3810, 1
      %v4070 = vrot.slane %v3811, 1
      %v4071 = vrot.slane %v3812, 1
      %v4072 = vrot.slane %v3813, 1
      %v4073 = vrot.slane %v3814, 1
      %v4074 = vrot.slane %v3815, 1
      %v4075 = vrot.slane %v3816, 1
      %v4076 = vrot.slane %v3817, 1
      %v4077 = vrot.slane %v3818, 1
      %v4078 = vrot.slane %v3819, 1
      %v4079 = vrot.slane %v3820, 1
      %v4080 = vrot.slane %v3821, 1
      %v4081 = vrot.slane %v3822, 1
      %v4082 = vrot.slane %v3823, 1
      %v4083 = vrot.slane %v3824, 1
      %v4084 = vrot.slane %v3825, 1
      %v4085 = vrot.slane %v3826, 1
      %v4086 = vrot.slane %v3827, 1
      %v4087 = vrot.slane %v3828, 1
      %v4088 = vrot.slane %v3829, 1
      %v4089 = vrot.slane %v3830, 1
      %v4090 = vrot.slane %v3831, 1
      %v4091 = vrot.slane %v3832, 1
      %v4092 = vrot.slane %v3833, 1
      %v4093 = vrot.slane %v3834, 1
      %v4094 = vrot.slane %v3835, 1
      %v4095 = vrot.slane %v3836, 1
      %v4096 = vrot.slane %v3837, 1
      %v4097 = vrot.slane %v3838, 1
      %v4098 = vrot.slane %v3839, 1
      %v4099 = vrot.slane %v3840, 1
      %v4100 = vrot.slane %v3841, 1
      %v4101 = vrot.slane %v3842, 1
      %v4102 = vrot.slane %v3843, 1
      %v4103 = vrot.slane %v3844, 1
      %v4104 = vrot.slane %v3845, 1
      %v4105 = vrot.slane %v3846, 1
      %v4106 = vrot.slane %v3847, 1
      %v4107 = vrot.slane %v3848, 1
      %v4108 = vrot.slane %v3849, 1
      %v4109 = vrot.slane %v3850, 1
      %v4110 = vrot.slane %v3851, 1
      %v4111 = vrot.slane %v3852, 1
      %v4112 = vrot.slane %v3853, 1
      %v4113 = vrot.slane %v3854, 1
      %v4114 = vrot.slane %v3855, 1
      %v4115 = vrot.slane %v3856, 1
      %v4116 = vrot.slane %v3857, 1
      %v4117 = vrot.slane %v3858, 1
      %v4118 = vrot.slane %v3859, 1
      %v4119 = vrot.slane %v3860, 1
      %v4120 = vrot.slane %v3861, 1
      %v4121 = vrot.slane %v3862, 1
      %v4122 = vrot.slane %v3863, 1
      %v4123 = vrot.slane %v3864, 1
      %v4124 = vrot.slane %v3865, 1
      %v4125 = vrot.slane %v3866, 1
      %v4126 = vrot.slane %v3867, 1
      %v4127 = vrot.slane %v3868, 1
      %v4128 = vrot.slane %v3869, 1
      %v4129 = vrot.slane %v3870, 1
      %v4130 = vrot.slane %v3871, 1
      %vm4131 = vcmp.lt.s32.totalorder %v3937, 7
      %v4132 = vsel %vm4131, %v4129, %v4130
      %v4133 = vsel %vm4131, %v4128, %v4129
      %v4134 = vsel %vm4131, %v4127, %v4128
      %v4135 = vsel %vm4131, %v4126, %v4127
      %v4136 = vsel %vm4131, %v4125, %v4126
      %v4137 = vsel %vm4131, %v4124, %v4125
      %v4138 = vsel %vm4131, %v4123, %v4124
      %v4139 = vsel %vm4131, %v4122, %v4123
      %v4140 = vsel %vm4131, %v4121, %v4122
      %v4141 = vsel %vm4131, %v4120, %v4121
      %v4142 = vsel %vm4131, %v4119, %v4120
      %v4143 = vsel %vm4131, %v4118, %v4119
      %v4144 = vsel %vm4131, %v4117, %v4118
      %v4145 = vsel %vm4131, %v4116, %v4117
      %v4146 = vsel %vm4131, %v4115, %v4116
      %v4147 = vsel %vm4131, %v4114, %v4115
      %v4148 = vsel %vm4131, %v4113, %v4114
      %v4149 = vsel %vm4131, %v4112, %v4113
      %v4150 = vsel %vm4131, %v4111, %v4112
      %v4151 = vsel %vm4131, %v4110, %v4111
      %v4152 = vsel %vm4131, %v4109, %v4110
      %v4153 = vsel %vm4131, %v4108, %v4109
      %v4154 = vsel %vm4131, %v4107, %v4108
      %v4155 = vsel %vm4131, %v4106, %v4107
      %v4156 = vsel %vm4131, %v4105, %v4106
      %v4157 = vsel %vm4131, %v4104, %v4105
      %v4158 = vsel %vm4131, %v4103, %v4104
      %v4159 = vsel %vm4131, %v4102, %v4103
      %v4160 = vsel %vm4131, %v4101, %v4102
      %v4161 = vsel %vm4131, %v4100, %v4101
      %v4162 = vsel %vm4131, %v4099, %v4100
      %v4163 = vsel %vm4131, %v4098, %v4099
      %v4164 = vsel %vm4131, %v4097, %v4098
      %v4165 = vsel %vm4131, %v4096, %v4097
      %v4166 = vsel %vm4131, %v4095, %v4096
      %v4167 = vsel %vm4131, %v4094, %v4095
      %v4168 = vsel %vm4131, %v4093, %v4094
      %v4169 = vsel %vm4131, %v4092, %v4093
      %v4170 = vsel %vm4131, %v4091, %v4092
      %v4171 = vsel %vm4131, %v4090, %v4091
      %v4172 = vsel %vm4131, %v4089, %v4090
      %v4173 = vsel %vm4131, %v4088, %v4089
      %v4174 = vsel %vm4131, %v4087, %v4088
      %v4175 = vsel %vm4131, %v4086, %v4087
      %v4176 = vsel %vm4131, %v4085, %v4086
      %v4177 = vsel %vm4131, %v4084, %v4085
      %v4178 = vsel %vm4131, %v4083, %v4084
      %v4179 = vsel %vm4131, %v4082, %v4083
      %v4180 = vsel %vm4131, %v4081, %v4082
      %v4181 = vsel %vm4131, %v4080, %v4081
      %v4182 = vsel %vm4131, %v4079, %v4080
      %v4183 = vsel %vm4131, %v4078, %v4079
      %v4184 = vsel %vm4131, %v4077, %v4078
      %v4185 = vsel %vm4131, %v4076, %v4077
      %v4186 = vsel %vm4131, %v4075, %v4076
      %v4187 = vsel %vm4131, %v4074, %v4075
      %v4188 = vsel %vm4131, %v4073, %v4074
      %v4189 = vsel %vm4131, %v4072, %v4073
      %v4190 = vsel %vm4131, %v4071, %v4072
      %v4191 = vsel %vm4131, %v4070, %v4071
      %v4192 = vsel %vm4131, %v4069, %v4070
      %v4193 = vsel %vm4131, %v4068, %v4069
      %v4194 = vsel %vm4131, %v4067, %v4068
      %v4195 = vsel %vm4131, %v4130, %v4067
      %v4196 = vadd.f32 %v4003, %v4194
      %v4197 = vadd.f32 %v4004, %v4193
      %v4198 = vadd.f32 %v4005, %v4192
      %v4199 = vadd.f32 %v4006, %v4191
      %v4200 = vadd.f32 %v4007, %v4190
      %v4201 = vadd.f32 %v4008, %v4189
      %v4202 = vadd.f32 %v4009, %v4188
      %v4203 = vadd.f32 %v4010, %v4187
      %v4204 = vadd.f32 %v4011, %v4186
      %v4205 = vadd.f32 %v4012, %v4185
      %v4206 = vadd.f32 %v4013, %v4184
      %v4207 = vadd.f32 %v4014, %v4183
      %v4208 = vadd.f32 %v4015, %v4182
      %v4209 = vadd.f32 %v4016, %v4181
      %v4210 = vadd.f32 %v4017, %v4180
      %v4211 = vadd.f32 %v4018, %v4179
      %v4212 = vadd.f32 %v4019, %v4178
      %v4213 = vadd.f32 %v4020, %v4177
      %v4214 = vadd.f32 %v4021, %v4176
      %v4215 = vadd.f32 %v4022, %v4175
      %v4216 = vadd.f32 %v4023, %v4174
      %v4217 = vadd.f32 %v4024, %v4173
      %v4218 = vadd.f32 %v4025, %v4172
      %v4219 = vadd.f32 %v4026, %v4171
      %v4220 = vadd.f32 %v4027, %v4170
      %v4221 = vadd.f32 %v4028, %v4169
      %v4222 = vadd.f32 %v4029, %v4168
      %v4223 = vadd.f32 %v4030, %v4167
      %v4224 = vadd.f32 %v4031, %v4166
      %v4225 = vadd.f32 %v4032, %v4165
      %v4226 = vadd.f32 %v4033, %v4164
      %v4227 = vadd.f32 %v4034, %v4163
      %v4228 = vadd.f32 %v4035, %v4162
      %v4229 = vadd.f32 %v4036, %v4161
      %v4230 = vadd.f32 %v4037, %v4160
      %v4231 = vadd.f32 %v4038, %v4159
      %v4232 = vadd.f32 %v4039, %v4158
      %v4233 = vadd.f32 %v4040, %v4157
      %v4234 = vadd.f32 %v4041, %v4156
      %v4235 = vadd.f32 %v4042, %v4155
      %v4236 = vadd.f32 %v4043, %v4154
      %v4237 = vadd.f32 %v4044, %v4153
      %v4238 = vadd.f32 %v4045, %v4152
      %v4239 = vadd.f32 %v4046, %v4151
      %v4240 = vadd.f32 %v4047, %v4150
      %v4241 = vadd.f32 %v4048, %v4149
      %v4242 = vadd.f32 %v4049, %v4148
      %v4243 = vadd.f32 %v4050, %v4147
      %v4244 = vadd.f32 %v4051, %v4146
      %v4245 = vadd.f32 %v4052, %v4145
      %v4246 = vadd.f32 %v4053, %v4144
      %v4247 = vadd.f32 %v4054, %v4143
      %v4248 = vadd.f32 %v4055, %v4142
      %v4249 = vadd.f32 %v4056, %v4141
      %v4250 = vadd.f32 %v4057, %v4140
      %v4251 = vadd.f32 %v4058, %v4139
      %v4252 = vadd.f32 %v4059, %v4138
      %v4253 = vadd.f32 %v4060, %v4137
      %v4254 = vadd.f32 %v4061, %v4136
      %v4255 = vadd.f32 %v4062, %v4135
      %v4256 = vadd.f32 %v4063, %v4134
      %v4257 = vadd.f32 %v4064, %v4133
      %v4258 = vadd.f32 %v4065, %v4132
      %v4259 = vadd.f32 %v4066, %v4195
      %v4260 = vadd.s32 %v3937, 8
      %v4261 = vadd.s32 %v3937, 16
      %v4262 = vadd.s32 %v3937, 24
      %vm4263 = vcmp.ge.s32.totalorder %v3937, 1
      %vm4264 = vcmp.ge.s32.totalorder %v4260, 1
      %vm4265 = vcmp.ge.s32.totalorder %v4261, 1
      %vm4266 = vcmp.ge.s32.totalorder %v4262, 1
      %vm4267 = vcmp.le.s32.totalorder %v3937, 16
      %vm4268 = vcmp.le.s32.totalorder %v4260, 16
      %vm4269 = vcmp.le.s32.totalorder %v4261, 16
      %vm4270 = vcmp.le.s32.totalorder %v4262, 16
      %vm4271 = vmand %vm4263, %vm4267
      %vm4272 = vmand %vm4264, %vm4268
      %vm4273 = vmand %vm4265, %vm4269
      %vm4274 = vmand %vm4266, %vm4270
      %v4275 = vsel %vm4271, 1, 0
      %v4276 = vsel %vm4272, 1, 0
      %v4277 = vsel %vm4273, 1, 0
      %v4278 = vsel %vm4274, 1, 0
      %vm4279 = vcmp.eq.s32.totalorder %v4275, 1
      %vm4280 = vcmp.eq.s32.totalorder %v4276, 1
      %vm4281 = vcmp.eq.s32.totalorder %v4277, 1
      %vm4282 = vcmp.eq.s32.totalorder %v4278, 1
      %v4283 = vsel %vm4279, %v4196, 0.0
      %v4284 = vsel %vm4280, %v4197, 0.0
      %v4285 = vsel %vm4281, %v4198, 0.0
      %v4286 = vsel %vm4282, %v4199, 0.0
      %v4287 = vsel %vm4279, %v4200, 0.0
      %v4288 = vsel %vm4280, %v4201, 0.0
      %v4289 = vsel %vm4281, %v4202, 0.0
      %v4290 = vsel %vm4282, %v4203, 0.0
      %v4291 = vsel %vm4279, %v4204, 0.0
      %v4292 = vsel %vm4280, %v4205, 0.0
      %v4293 = vsel %vm4281, %v4206, 0.0
      %v4294 = vsel %vm4282, %v4207, 0.0
      %v4295 = vsel %vm4279, %v4208, 0.0
      %v4296 = vsel %vm4280, %v4209, 0.0
      %v4297 = vsel %vm4281, %v4210, 0.0
      %v4298 = vsel %vm4282, %v4211, 0.0
      %v4299 = vsel %vm4279, %v4212, 0.0
      %v4300 = vsel %vm4280, %v4213, 0.0
      %v4301 = vsel %vm4281, %v4214, 0.0
      %v4302 = vsel %vm4282, %v4215, 0.0
      %v4303 = vsel %vm4279, %v4216, 0.0
      %v4304 = vsel %vm4280, %v4217, 0.0
      %v4305 = vsel %vm4281, %v4218, 0.0
      %v4306 = vsel %vm4282, %v4219, 0.0
      %v4307 = vsel %vm4279, %v4220, 0.0
      %v4308 = vsel %vm4280, %v4221, 0.0
      %v4309 = vsel %vm4281, %v4222, 0.0
      %v4310 = vsel %vm4282, %v4223, 0.0
      %v4311 = vsel %vm4279, %v4224, 0.0
      %v4312 = vsel %vm4280, %v4225, 0.0
      %v4313 = vsel %vm4281, %v4226, 0.0
      %v4314 = vsel %vm4282, %v4227, 0.0
      %v4315 = vsel %vm4279, %v4228, 0.0
      %v4316 = vsel %vm4280, %v4229, 0.0
      %v4317 = vsel %vm4281, %v4230, 0.0
      %v4318 = vsel %vm4282, %v4231, 0.0
      %v4319 = vsel %vm4279, %v4232, 0.0
      %v4320 = vsel %vm4280, %v4233, 0.0
      %v4321 = vsel %vm4281, %v4234, 0.0
      %v4322 = vsel %vm4282, %v4235, 0.0
      %v4323 = vsel %vm4279, %v4236, 0.0
      %v4324 = vsel %vm4280, %v4237, 0.0
      %v4325 = vsel %vm4281, %v4238, 0.0
      %v4326 = vsel %vm4282, %v4239, 0.0
      %v4327 = vsel %vm4279, %v4240, 0.0
      %v4328 = vsel %vm4280, %v4241, 0.0
      %v4329 = vsel %vm4281, %v4242, 0.0
      %v4330 = vsel %vm4282, %v4243, 0.0
      %v4331 = vsel %vm4279, %v4244, 0.0
      %v4332 = vsel %vm4280, %v4245, 0.0
      %v4333 = vsel %vm4281, %v4246, 0.0
      %v4334 = vsel %vm4282, %v4247, 0.0
      %v4335 = vsel %vm4279, %v4248, 0.0
      %v4336 = vsel %vm4280, %v4249, 0.0
      %v4337 = vsel %vm4281, %v4250, 0.0
      %v4338 = vsel %vm4282, %v4251, 0.0
      %v4339 = vsel %vm4279, %v4252, 0.0
      %v4340 = vsel %vm4280, %v4253, 0.0
      %v4341 = vsel %vm4281, %v4254, 0.0
      %v4342 = vsel %vm4282, %v4255, 0.0
      %v4343 = vsel %vm4279, %v4256, 0.0
      %v4344 = vsel %vm4280, %v4257, 0.0
      %v4345 = vsel %vm4281, %v4258, 0.0
      %v4346 = vsel %vm4282, %v4259, 0.0
      %v4347 = vadd.f32 %v4283, %v4284
      %v4348 = vadd.f32 %v4347, %v4285
      %v4349 = vadd.f32 %v4348, %v4286
      %v4350 = vadd.f32 %v4349, %v4287
      %v4351 = vadd.f32 %v4350, %v4288
      %v4352 = vadd.f32 %v4351, %v4289
      %v4353 = vadd.f32 %v4352, %v4290
      %v4354 = vadd.f32 %v4353, %v4291
      %v4355 = vadd.f32 %v4354, %v4292
      %v4356 = vadd.f32 %v4355, %v4293
      %v4357 = vadd.f32 %v4356, %v4294
      %v4358 = vadd.f32 %v4357, %v4295
      %v4359 = vadd.f32 %v4358, %v4296
      %v4360 = vadd.f32 %v4359, %v4297
      %v4361 = vadd.f32 %v4360, %v4298
      %v4362 = vadd.f32 %v4361, %v4299
      %v4363 = vadd.f32 %v4362, %v4300
      %v4364 = vadd.f32 %v4363, %v4301
      %v4365 = vadd.f32 %v4364, %v4302
      %v4366 = vadd.f32 %v4365, %v4303
      %v4367 = vadd.f32 %v4366, %v4304
      %v4368 = vadd.f32 %v4367, %v4305
      %v4369 = vadd.f32 %v4368, %v4306
      %v4370 = vadd.f32 %v4369, %v4307
      %v4371 = vadd.f32 %v4370, %v4308
      %v4372 = vadd.f32 %v4371, %v4309
      %v4373 = vadd.f32 %v4372, %v4310
      %v4374 = vadd.f32 %v4373, %v4311
      %v4375 = vadd.f32 %v4374, %v4312
      %v4376 = vadd.f32 %v4375, %v4313
      %v4377 = vadd.f32 %v4376, %v4314
      %v4378 = vadd.f32 %v4377, %v4315
      %v4379 = vadd.f32 %v4378, %v4316
      %v4380 = vadd.f32 %v4379, %v4317
      %v4381 = vadd.f32 %v4380, %v4318
      %v4382 = vadd.f32 %v4381, %v4319
      %v4383 = vadd.f32 %v4382, %v4320
      %v4384 = vadd.f32 %v4383, %v4321
      %v4385 = vadd.f32 %v4384, %v4322
      %v4386 = vadd.f32 %v4385, %v4323
      %v4387 = vadd.f32 %v4386, %v4324
      %v4388 = vadd.f32 %v4387, %v4325
      %v4389 = vadd.f32 %v4388, %v4326
      %v4390 = vadd.f32 %v4389, %v4327
      %v4391 = vadd.f32 %v4390, %v4328
      %v4392 = vadd.f32 %v4391, %v4329
      %v4393 = vadd.f32 %v4392, %v4330
      %v4394 = vadd.f32 %v4393, %v4331
      %v4395 = vadd.f32 %v4394, %v4332
      %v4396 = vadd.f32 %v4395, %v4333
      %v4397 = vadd.f32 %v4396, %v4334
      %v4398 = vadd.f32 %v4397, %v4335
      %v4399 = vadd.f32 %v4398, %v4336
      %v4400 = vadd.f32 %v4399, %v4337
      %v4401 = vadd.f32 %v4400, %v4338
      %v4402 = vadd.f32 %v4401, %v4339
      %v4403 = vadd.f32 %v4402, %v4340
      %v4404 = vadd.f32 %v4403, %v4341
      %v4405 = vadd.f32 %v4404, %v4342
      %v4406 = vadd.f32 %v4405, %v4343
      %v4407 = vadd.f32 %v4406, %v4344
      %v4408 = vadd.f32 %v4407, %v4345
      %v4409 = vadd.f32 %v4408, %v4346
      %v4410 = vrot.slane %v4409, 4
      %v4411 = vadd.f32 %v4409, %v4410
      %v4412 = vrot.slane %v4411, 2
      %v4413 = vadd.f32 %v4411, %v4412
      %v4414 = vrot.slane %v4413, 1
      %v4415 = vadd.f32 %v4413, %v4414
      %v4416 = vmul.f32 %v4283, %v4283
      %v4417 = vmul.f32 %v4284, %v4284
      %v4418 = vmul.f32 %v4285, %v4285
      %v4419 = vmul.f32 %v4286, %v4286
      %v4420 = vmul.f32 %v4287, %v4287
      %v4421 = vmul.f32 %v4288, %v4288
      %v4422 = vmul.f32 %v4289, %v4289
      %v4423 = vmul.f32 %v4290, %v4290
      %v4424 = vmul.f32 %v4291, %v4291
      %v4425 = vmul.f32 %v4292, %v4292
      %v4426 = vmul.f32 %v4293, %v4293
      %v4427 = vmul.f32 %v4294, %v4294
      %v4428 = vmul.f32 %v4295, %v4295
      %v4429 = vmul.f32 %v4296, %v4296
      %v4430 = vmul.f32 %v4297, %v4297
      %v4431 = vmul.f32 %v4298, %v4298
      %v4432 = vmul.f32 %v4299, %v4299
      %v4433 = vmul.f32 %v4300, %v4300
      %v4434 = vmul.f32 %v4301, %v4301
      %v4435 = vmul.f32 %v4302, %v4302
      %v4436 = vmul.f32 %v4303, %v4303
      %v4437 = vmul.f32 %v4304, %v4304
      %v4438 = vmul.f32 %v4305, %v4305
      %v4439 = vmul.f32 %v4306, %v4306
      %v4440 = vmul.f32 %v4307, %v4307
      %v4441 = vmul.f32 %v4308, %v4308
      %v4442 = vmul.f32 %v4309, %v4309
      %v4443 = vmul.f32 %v4310, %v4310
      %v4444 = vmul.f32 %v4311, %v4311
      %v4445 = vmul.f32 %v4312, %v4312
      %v4446 = vmul.f32 %v4313, %v4313
      %v4447 = vmul.f32 %v4314, %v4314
      %v4448 = vmul.f32 %v4315, %v4315
      %v4449 = vmul.f32 %v4316, %v4316
      %v4450 = vmul.f32 %v4317, %v4317
      %v4451 = vmul.f32 %v4318, %v4318
      %v4452 = vmul.f32 %v4319, %v4319
      %v4453 = vmul.f32 %v4320, %v4320
      %v4454 = vmul.f32 %v4321, %v4321
      %v4455 = vmul.f32 %v4322, %v4322
      %v4456 = vmul.f32 %v4323, %v4323
      %v4457 = vmul.f32 %v4324, %v4324
      %v4458 = vmul.f32 %v4325, %v4325
      %v4459 = vmul.f32 %v4326, %v4326
      %v4460 = vmul.f32 %v4327, %v4327
      %v4461 = vmul.f32 %v4328, %v4328
      %v4462 = vmul.f32 %v4329, %v4329
      %v4463 = vmul.f32 %v4330, %v4330
      %v4464 = vmul.f32 %v4331, %v4331
      %v4465 = vmul.f32 %v4332, %v4332
      %v4466 = vmul.f32 %v4333, %v4333
      %v4467 = vmul.f32 %v4334, %v4334
      %v4468 = vmul.f32 %v4335, %v4335
      %v4469 = vmul.f32 %v4336, %v4336
      %v4470 = vmul.f32 %v4337, %v4337
      %v4471 = vmul.f32 %v4338, %v4338
      %v4472 = vmul.f32 %v4339, %v4339
      %v4473 = vmul.f32 %v4340, %v4340
      %v4474 = vmul.f32 %v4341, %v4341
      %v4475 = vmul.f32 %v4342, %v4342
      %v4476 = vmul.f32 %v4343, %v4343
      %v4477 = vmul.f32 %v4344, %v4344
      %v4478 = vmul.f32 %v4345, %v4345
      %v4479 = vmul.f32 %v4346, %v4346
      %v4480 = vadd.f32 %v4416, %v4417
      %v4481 = vadd.f32 %v4480, %v4418
      %v4482 = vadd.f32 %v4481, %v4419
      %v4483 = vadd.f32 %v4482, %v4420
      %v4484 = vadd.f32 %v4483, %v4421
      %v4485 = vadd.f32 %v4484, %v4422
      %v4486 = vadd.f32 %v4485, %v4423
      %v4487 = vadd.f32 %v4486, %v4424
      %v4488 = vadd.f32 %v4487, %v4425
      %v4489 = vadd.f32 %v4488, %v4426
      %v4490 = vadd.f32 %v4489, %v4427
      %v4491 = vadd.f32 %v4490, %v4428
      %v4492 = vadd.f32 %v4491, %v4429
      %v4493 = vadd.f32 %v4492, %v4430
      %v4494 = vadd.f32 %v4493, %v4431
      %v4495 = vadd.f32 %v4494, %v4432
      %v4496 = vadd.f32 %v4495, %v4433
      %v4497 = vadd.f32 %v4496, %v4434
      %v4498 = vadd.f32 %v4497, %v4435
      %v4499 = vadd.f32 %v4498, %v4436
      %v4500 = vadd.f32 %v4499, %v4437
      %v4501 = vadd.f32 %v4500, %v4438
      %v4502 = vadd.f32 %v4501, %v4439
      %v4503 = vadd.f32 %v4502, %v4440
      %v4504 = vadd.f32 %v4503, %v4441
      %v4505 = vadd.f32 %v4504, %v4442
      %v4506 = vadd.f32 %v4505, %v4443
      %v4507 = vadd.f32 %v4506, %v4444
      %v4508 = vadd.f32 %v4507, %v4445
      %v4509 = vadd.f32 %v4508, %v4446
      %v4510 = vadd.f32 %v4509, %v4447
      %v4511 = vadd.f32 %v4510, %v4448
      %v4512 = vadd.f32 %v4511, %v4449
      %v4513 = vadd.f32 %v4512, %v4450
      %v4514 = vadd.f32 %v4513, %v4451
      %v4515 = vadd.f32 %v4514, %v4452
      %v4516 = vadd.f32 %v4515, %v4453
      %v4517 = vadd.f32 %v4516, %v4454
      %v4518 = vadd.f32 %v4517, %v4455
      %v4519 = vadd.f32 %v4518, %v4456
      %v4520 = vadd.f32 %v4519, %v4457
      %v4521 = vadd.f32 %v4520, %v4458
      %v4522 = vadd.f32 %v4521, %v4459
      %v4523 = vadd.f32 %v4522, %v4460
      %v4524 = vadd.f32 %v4523, %v4461
      %v4525 = vadd.f32 %v4524, %v4462
      %v4526 = vadd.f32 %v4525, %v4463
      %v4527 = vadd.f32 %v4526, %v4464
      %v4528 = vadd.f32 %v4527, %v4465
      %v4529 = vadd.f32 %v4528, %v4466
      %v4530 = vadd.f32 %v4529, %v4467
      %v4531 = vadd.f32 %v4530, %v4468
      %v4532 = vadd.f32 %v4531, %v4469
      %v4533 = vadd.f32 %v4532, %v4470
      %v4534 = vadd.f32 %v4533, %v4471
      %v4535 = vadd.f32 %v4534, %v4472
      %v4536 = vadd.f32 %v4535, %v4473
      %v4537 = vadd.f32 %v4536, %v4474
      %v4538 = vadd.f32 %v4537, %v4475
      %v4539 = vadd.f32 %v4538, %v4476
      %v4540 = vadd.f32 %v4539, %v4477
      %v4541 = vadd.f32 %v4540, %v4478
      %v4542 = vadd.f32 %v4541, %v4479
      %v4543 = vrot.slane %v4542, 4
      %v4544 = vadd.f32 %v4542, %v4543
      %v4545 = vrot.slane %v4544, 2
      %v4546 = vadd.f32 %v4544, %v4545
      %v4547 = vrot.slane %v4546, 1
      %v4548 = vadd.f32 %v4546, %v4547
      %p4549 = scmp.eq.s32.totalorder %s20, 0
      // Predicated region
      $region29: #{unet_encoder_forward.2} parent=27 // pred_check
        %p4550 = pneg %p4549
      $region30: #{unet_encoder_forward.2} parent=27 // pred_check_branch
        %4552 = sbr.rel (%p4550) target = $region32
      $region31: #{unet_encoder_forward.2} parent=27 // pred_region
        %4553 = vst [vmem:[%s205] sm:$0x3] 0.0
      $region32: #{unet_encoder_forward.2} parent=27 // pred_fallthru
        _
      %v4554 = vld [vmem:[%s205] sm:$0x3]
      %vm4555 = vcmask 1040384
      %v4556 = vsel %vm4555, %v4415, %v4548
      %v4557 = vadd.f32 %v4554, %v4556
      %4558 = vst [vmem:[%s205] sm:$0x3] %v4557
      %v4559 = vpack.c.bf16 %v4284, %v4283
      %v4560 = vpack.c.bf16 %v4286, %v4285
      %v4561 = vpack.c.bf16 %v4288, %v4287
      %v4562 = vpack.c.bf16 %v4290, %v4289
      %v4563 = vpack.c.bf16 %v4292, %v4291
      %v4564 = vpack.c.bf16 %v4294, %v4293
      %v4565 = vpack.c.bf16 %v4296, %v4295
      %v4566 = vpack.c.bf16 %v4298, %v4297
      %v4567 = vpack.c.bf16 %v4300, %v4299
      %v4568 = vpack.c.bf16 %v4302, %v4301
      %v4569 = vpack.c.bf16 %v4304, %v4303
      %v4570 = vpack.c.bf16 %v4306, %v4305
      %v4571 = vpack.c.bf16 %v4308, %v4307
      %v4572 = vpack.c.bf16 %v4310, %v4309
      %v4573 = vpack.c.bf16 %v4312, %v4311
      %v4574 = vpack.c.bf16 %v4314, %v4313
      %v4575 = vpack.c.bf16 %v4316, %v4315
      %v4576 = vpack.c.bf16 %v4318, %v4317
      %v4577 = vpack.c.bf16 %v4320, %v4319
      %v4578 = vpack.c.bf16 %v4322, %v4321
      %v4579 = vpack.c.bf16 %v4324, %v4323
      %v4580 = vpack.c.bf16 %v4326, %v4325
      %v4581 = vpack.c.bf16 %v4328, %v4327
      %v4582 = vpack.c.bf16 %v4330, %v4329
      %v4583 = vpack.c.bf16 %v4332, %v4331
      %v4584 = vpack.c.bf16 %v4334, %v4333
      %v4585 = vpack.c.bf16 %v4336, %v4335
      %v4586 = vpack.c.bf16 %v4338, %v4337
      %v4587 = vpack.c.bf16 %v4340, %v4339
      %v4588 = vpack.c.bf16 %v4342, %v4341
      %v4589 = vpack.c.bf16 %v4344, %v4343
      %v4590 = vpack.c.bf16 %v4346, %v4345
      %v4624 = vunpack.c.l.b16 0
      %v4625 = vunpack.c.h.b16 0
      %v4626 = vunpack.c.l.b16 %v4559
      %v4627 = vunpack.c.h.b16 %v4559
      %v4628 = vunpack.c.l.b16 %v4560
      %v4629 = vunpack.c.h.b16 %v4560
      %v4630 = vunpack.c.l.b16 %v4561
      %v4631 = vunpack.c.h.b16 %v4561
      %v4632 = vunpack.c.l.b16 %v4562
      %v4633 = vunpack.c.h.b16 %v4562
      %v4634 = vunpack.c.l.b16 %v4563
      %v4635 = vunpack.c.h.b16 %v4563
      %v4636 = vunpack.c.l.b16 %v4564
      %v4637 = vunpack.c.h.b16 %v4564
      %v4638 = vunpack.c.l.b16 %v4565
      %v4639 = vunpack.c.h.b16 %v4565
      %v4640 = vunpack.c.l.b16 %v4566
      %v4641 = vunpack.c.h.b16 %v4566
      %v4642 = vunpack.c.l.b16 %v4567
      %v4643 = vunpack.c.h.b16 %v4567
      %v4644 = vunpack.c.l.b16 %v4568
      %v4645 = vunpack.c.h.b16 %v4568
      %v4646 = vunpack.c.l.b16 %v4569
      %v4647 = vunpack.c.h.b16 %v4569
      %v4648 = vunpack.c.l.b16 %v4570
      %v4649 = vunpack.c.h.b16 %v4570
      %v4650 = vunpack.c.l.b16 %v4571
      %v4651 = vunpack.c.h.b16 %v4571
      %v4652 = vunpack.c.l.b16 %v4572
      %v4653 = vunpack.c.h.b16 %v4572
      %v4654 = vunpack.c.l.b16 %v4573
      %v4655 = vunpack.c.h.b16 %v4573
      %v4656 = vunpack.c.l.b16 %v4574
      %v4657 = vunpack.c.h.b16 %v4574
      %v4658 = vunpack.c.l.b16 %v4575
      %v4659 = vunpack.c.h.b16 %v4575
      %v4660 = vunpack.c.l.b16 %v4576
      %v4661 = vunpack.c.h.b16 %v4576
      %v4662 = vunpack.c.l.b16 %v4577
      %v4663 = vunpack.c.h.b16 %v4577
      %v4664 = vunpack.c.l.b16 %v4578
      %v4665 = vunpack.c.h.b16 %v4578
      %v4666 = vunpack.c.l.b16 %v4579
      %v4667 = vunpack.c.h.b16 %v4579
      %v4668 = vunpack.c.l.b16 %v4580
      %v4669 = vunpack.c.h.b16 %v4580
      %v4670 = vunpack.c.l.b16 %v4581
      %v4671 = vunpack.c.h.b16 %v4581
      %v4672 = vunpack.c.l.b16 %v4582
      %v4673 = vunpack.c.h.b16 %v4582
      %v4674 = vunpack.c.l.b16 %v4583
      %v4675 = vunpack.c.h.b16 %v4583
      %v4676 = vunpack.c.l.b16 %v4584
      %v4677 = vunpack.c.h.b16 %v4584
      %v4678 = vunpack.c.l.b16 %v4585
      %v4679 = vunpack.c.h.b16 %v4585
      %v4680 = vunpack.c.l.b16 %v4586
      %v4681 = vunpack.c.h.b16 %v4586
      %v4682 = vunpack.c.l.b16 %v4587
      %v4683 = vunpack.c.h.b16 %v4587
      %v4684 = vunpack.c.l.b16 %v4588
      %v4685 = vunpack.c.h.b16 %v4588
      %v4686 = vunpack.c.l.b16 %v4589
      %v4687 = vunpack.c.h.b16 %v4589
      %v4688 = vunpack.c.l.b16 %v4590
      %v4689 = vunpack.c.h.b16 %v4590
      %v4690 = vpack.c.b16 %v4624, %v4624
      %v4691 = vpack.c.b16 %v4625, %v4625
      %v4692 = vpack.c.b16 %v4626, %v4626
      %v4693 = vpack.c.b16 %v4627, %v4627
      %v4694 = vpack.c.b16 %v4628, %v4628
      %v4695 = vpack.c.b16 %v4629, %v4629
      %v4696 = vpack.c.b16 %v4630, %v4630
      %v4697 = vpack.c.b16 %v4631, %v4631
      %v4698 = vpack.c.b16 %v4632, %v4632
      %v4699 = vpack.c.b16 %v4633, %v4633
      %v4700 = vpack.c.b16 %v4634, %v4634
      %v4701 = vpack.c.b16 %v4635, %v4635
      %v4702 = vpack.c.b16 %v4636, %v4636
      %v4703 = vpack.c.b16 %v4637, %v4637
      %v4704 = vpack.c.b16 %v4638, %v4638
      %v4705 = vpack.c.b16 %v4639, %v4639
      %v4706 = vpack.c.b16 %v4640, %v4640
      %v4707 = vpack.c.b16 %v4641, %v4641
      %v4708 = vpack.c.b16 %v4642, %v4642
      %v4709 = vpack.c.b16 %v4643, %v4643
      %v4710 = vpack.c.b16 %v4644, %v4644
      %v4711 = vpack.c.b16 %v4645, %v4645
      %v4712 = vpack.c.b16 %v4646, %v4646
      %v4713 = vpack.c.b16 %v4647, %v4647
      %v4714 = vpack.c.b16 %v4648, %v4648
      %v4715 = vpack.c.b16 %v4649, %v4649
      %v4716 = vpack.c.b16 %v4650, %v4650
      %v4717 = vpack.c.b16 %v4651, %v4651
      %v4718 = vpack.c.b16 %v4652, %v4652
      %v4719 = vpack.c.b16 %v4653, %v4653
      %v4720 = vpack.c.b16 %v4654, %v4654
      %v4721 = vpack.c.b16 %v4655, %v4655
      %v4722 = vpack.c.b16 %v4656, %v4656
      %v4723 = vpack.c.b16 %v4657, %v4657
      %v4724 = vpack.c.b16 %v4658, %v4658
      %v4725 = vpack.c.b16 %v4659, %v4659
      %v4726 = vpack.c.b16 %v4660, %v4660
      %v4727 = vpack.c.b16 %v4661, %v4661
      %v4728 = vpack.c.b16 %v4662, %v4662
      %v4729 = vpack.c.b16 %v4663, %v4663
      %v4730 = vpack.c.b16 %v4664, %v4664
      %v4731 = vpack.c.b16 %v4665, %v4665
      %v4732 = vpack.c.b16 %v4666, %v4666
      %v4733 = vpack.c.b16 %v4667, %v4667
      %v4734 = vpack.c.b16 %v4668, %v4668
      %v4735 = vpack.c.b16 %v4669, %v4669
      %v4736 = vpack.c.b16 %v4670, %v4670
      %v4737 = vpack.c.b16 %v4671, %v4671
      %v4738 = vpack.c.b16 %v4672, %v4672
      %v4739 = vpack.c.b16 %v4673, %v4673
      %v4740 = vpack.c.b16 %v4674, %v4674
      %v4741 = vpack.c.b16 %v4675, %v4675
      %v4742 = vpack.c.b16 %v4676, %v4676
      %v4743 = vpack.c.b16 %v4677, %v4677
      %v4744 = vpack.c.b16 %v4678, %v4678
      %v4745 = vpack.c.b16 %v4679, %v4679
      %v4746 = vpack.c.b16 %v4680, %v4680
      %v4747 = vpack.c.b16 %v4681, %v4681
      %v4748 = vpack.c.b16 %v4682, %v4682
      %v4749 = vpack.c.b16 %v4683, %v4683
      %v4750 = vpack.c.b16 %v4684, %v4684
      %v4751 = vpack.c.b16 %v4685, %v4685
      %v4752 = vpack.c.b16 %v4686, %v4686
      %v4753 = vpack.c.b16 %v4687, %v4687
      %v4754 = vpack.c.b16 %v4688, %v4688
      %v4755 = vpack.c.b16 %v4689, %v4689
      %4822 = vst [vmem:[%s200] sm:$0xf] %v4690
      %4823 = vst [vmem:[%s200 + $0x4] sm:$0xf] %v4691
      %4824 = vst [vmem:[%s200 + $0x8] sm:$0xf] %v4690
      %4825 = vst [vmem:[%s200 + $0xc] sm:$0xf] %v4691
      %4826 = vst [vmem:[%s200 + $0x10] sm:$0xf] %v4692
      %4827 = vst [vmem:[%s200 + $0x14] sm:$0xf] %v4693
      %4828 = vst [vmem:[%s200 + $0x18] sm:$0xf] %v4694
      %4829 = vst [vmem:[%s200 + $0x1c] sm:$0xf] %v4695
      %4830 = vst [vmem:[%s200 + $0x20] sm:$0xf] %v4696
      %4831 = vst [vmem:[%s200 + $0x24] sm:$0xf] %v4697
      %4832 = vst [vmem:[%s200 + $0x28] sm:$0xf] %v4698
      %4833 = vst [vmem:[%s200 + $0x2c] sm:$0xf] %v4699
      %4834 = vst [vmem:[%s200 + $0x30] sm:$0xf] %v4700
      %4835 = vst [vmem:[%s200 + $0x34] sm:$0xf] %v4701
      %4836 = vst [vmem:[%s200 + $0x38] sm:$0xf] %v4702
      %4837 = vst [vmem:[%s200 + $0x3c] sm:$0xf] %v4703
      %4838 = vst [vmem:[%s200 + $0x40] sm:$0xf] %v4704
      %4839 = vst [vmem:[%s200 + $0x44] sm:$0xf] %v4705
      %4840 = vst [vmem:[%s200 + $0x48] sm:$0xf] %v4706
      %4841 = vst [vmem:[%s200 + $0x4c] sm:$0xf] %v4707
      %4842 = vst [vmem:[%s200 + $0x50] sm:$0xf] %v4708
      %4843 = vst [vmem:[%s200 + $0x54] sm:$0xf] %v4709
      %4844 = vst [vmem:[%s200 + $0x58] sm:$0xf] %v4710
      %4845 = vst [vmem:[%s200 + $0x5c] sm:$0xf] %v4711
      %4846 = vst [vmem:[%s200 + $0x60] sm:$0xf] %v4712
      %4847 = vst [vmem:[%s200 + $0x64] sm:$0xf] %v4713
      %4848 = vst [vmem:[%s200 + $0x68] sm:$0xf] %v4714
      %4849 = vst [vmem:[%s200 + $0x6c] sm:$0xf] %v4715
      %4850 = vst [vmem:[%s200 + $0x70] sm:$0xf] %v4716
      %4851 = vst [vmem:[%s200 + $0x74] sm:$0xf] %v4717
      %4852 = vst [vmem:[%s200 + $0x78] sm:$0xf] %v4718
      %4853 = vst [vmem:[%s200 + $0x7c] sm:$0xf] %v4719
      %4854 = vst [vmem:[%s200 + $0x80] sm:$0xf] %v4720
      %4855 = vst [vmem:[%s200 + $0x84] sm:$0xf] %v4721
      %4856 = vst [vmem:[%s200 + $0x88] sm:$0xf] %v4722
      %4857 = vst [vmem:[%s200 + $0x8c] sm:$0xf] %v4723
      %4858 = vst [vmem:[%s200 + $0x90] sm:$0xf] %v4724
      %4859 = vst [vmem:[%s200 + $0x94] sm:$0xf] %v4725
      %4860 = vst [vmem:[%s200 + $0x98] sm:$0xf] %v4726
      %4861 = vst [vmem:[%s200 + $0x9c] sm:$0xf] %v4727
      %4862 = vst [vmem:[%s200 + $0xa0] sm:$0xf] %v4728
      %4863 = vst [vmem:[%s200 + $0xa4] sm:$0xf] %v4729
      %4864 = vst [vmem:[%s200 + $0xa8] sm:$0xf] %v4730
      %4865 = vst [vmem:[%s200 + $0xac] sm:$0xf] %v4731
      %4866 = vst [vmem:[%s200 + $0xb0] sm:$0xf] %v4732
      %4867 = vst [vmem:[%s200 + $0xb4] sm:$0xf] %v4733
      %4868 = vst [vmem:[%s200 + $0xb8] sm:$0xf] %v4734
      %4869 = vst [vmem:[%s200 + $0xbc] sm:$0xf] %v4735
      %4870 = vst [vmem:[%s200 + $0xc0] sm:$0xf] %v4736
      %4871 = vst [vmem:[%s200 + $0xc4] sm:$0xf] %v4737
      %4872 = vst [vmem:[%s200 + $0xc8] sm:$0xf] %v4738
      %4873 = vst [vmem:[%s200 + $0xcc] sm:$0xf] %v4739
      %4874 = vst [vmem:[%s200 + $0xd0] sm:$0xf] %v4740
      %4875 = vst [vmem:[%s200 + $0xd4] sm:$0xf] %v4741
      %4876 = vst [vmem:[%s200 + $0xd8] sm:$0xf] %v4742
      %4877 = vst [vmem:[%s200 + $0xdc] sm:$0xf] %v4743
      %4878 = vst [vmem:[%s200 + $0xe0] sm:$0xf] %v4744
      %4879 = vst [vmem:[%s200 + $0xe4] sm:$0xf] %v4745
      %4880 = vst [vmem:[%s200 + $0xe8] sm:$0xf] %v4746
      %4881 = vst [vmem:[%s200 + $0xec] sm:$0xf] %v4747
      %4882 = vst [vmem:[%s200 + $0xf0] sm:$0xf] %v4748
      %4883 = vst [vmem:[%s200 + $0xf4] sm:$0xf] %v4749
      %4884 = vst [vmem:[%s200 + $0xf8] sm:$0xf] %v4750
      %4885 = vst [vmem:[%s200 + $0xfc] sm:$0xf] %v4751
      %4886 = vst [vmem:[%s200 + $0x100] sm:$0xf] %v4752
      %4887 = vst [vmem:[%s200 + $0x104] sm:$0xf] %v4753
      %4888 = vst [vmem:[%s200 + $0x108] sm:$0xf] %v4754
      %4889 = vst [vmem:[%s200 + $0x10c] sm:$0xf] %v4755
      %4890 = vst [vmem:[%s200 + $0x110] sm:$0xf] %v4690
      %4891 = vst [vmem:[%s200 + $0x114] sm:$0xf] %v4691
      %4892 = vst [vmem:[%s200 + $0x118] sm:$0xf] %v4690
      %4893 = vst [vmem:[%s200 + $0x11c] sm:$0xf] %v4691
      %s4894 = sadd.s32 %s19, %s20
      %p4895 = scmp.lt.s32.totalorder %s4894, 1
      %s4896 = scalar_select %p4895, %s4894, 1
      %s4897 = smul.addr %s4896, 72
      %s4898 = smul.addr %s4897, 4
      %s4899 = scalar_lea.vmem %s2, %s4898
      %p4900 = scmp.lt.s32.totalorder %s19, 1
      %s4901 = scalar_select %p4900, %s19, 1
      %s4902 = smul.addr %s4901, 2
      %s4903 = scalar_lea.vmem %s3, %s4902
      // Predicated region
      $region33: #{unet_encoder_forward.2} parent=27 // pred_check
        %p4904 = pneg %p96
      $region34: #{unet_encoder_forward.2} parent=27 // pred_check_branch
        %4906 = sbr.rel (%p4904) target = $region36
      $region35: #{unet_encoder_forward.2} parent=27 // pred_region
        %s4907 = sadd.s32 %s19, %s20
      $region36: #{unet_encoder_forward.2} parent=27 // pred_fallthru
        _
      // Predicated region
      $region37: #{unet_encoder_forward.2} parent=27 // pred_check
        %p4908 = pneg %p122
      $region38: #{unet_encoder_forward.2} parent=27 // pred_check_branch
        %4910 = sbr.rel (%p4908) target = $region40
      $region39: #{unet_encoder_forward.2} parent=27 // pred_region
        _
      $region40: #{unet_encoder_forward.2} parent=27 // pred_fallthru
        _
    $region28: #{unet_encoder_forward.2} parent=5 // pred_fallthru
      _
    %p4911 = scmp.le.s32.totalorder 2, %s10
    // Predicated region
    $region41: #{unet_encoder_forward.2} parent=5 // pred_check
      %p4912 = pneg %p4911
    $region42: #{unet_encoder_forward.2} parent=5 // pred_check_branch
      %4914 = sbr.rel (%p4912) target = $region44
    $region43: #{unet_encoder_forward.2} parent=5 // pred_region
      %s4915 = ssub.s32 %s10, 2
      // Predicated region
      $region45: #{unet_encoder_forward.2} parent=43 // pred_check
        %p4916 = pneg %p102
      $region46: #{unet_encoder_forward.2} parent=43 // pred_check_branch
        %4918 = sbr.rel (%p4916) target = $region48
      $region47: #{unet_encoder_forward.2} parent=43 // pred_region
        %s4919 = sadd.s32 %s21, %s22
        %p4920 = scmp.lt.s32.totalorder %s4919, 1
        %s4921 = scalar_select %p4920, %s4919, 1
        %s4922 = smul.addr %s4921, 72
        %s4923 = smul.addr %s4922, 4
        %s4924 = scalar_lea.vmem %s2, %s4923
      $region48: #{unet_encoder_forward.2} parent=43 // pred_fallthru
        _
      // Predicated region
      $region49: #{unet_encoder_forward.2} parent=43 // pred_check
        %p4925 = pneg %p128
      $region50: #{unet_encoder_forward.2} parent=43 // pred_check_branch
        %4927 = sbr.rel (%p4925) target = $region52
      $region51: #{unet_encoder_forward.2} parent=43 // pred_region
        %p4928 = scmp.lt.s32.totalorder %s21, 1
        %s4929 = scalar_select %p4928, %s21, 1
        %s4930 = smul.addr %s4929, 2
        %s4931 = scalar_lea.vmem %s3, %s4930
      $region52: #{unet_encoder_forward.2} parent=43 // pred_fallthru
        _
    $region44: #{unet_encoder_forward.2} parent=5 // pred_fallthru
      _
  $region6: #{unet_encoder_forward.2} parent=0 // loop_footer
    %s14 = sadd.s32 1, %s10
  $region7: #{unet_encoder_forward.2} parent=0 // loop_footer_branch
    %9 = sbr.rel target = $region3
  $region8: #{unet_encoder_forward.2} parent=0 // loop_exit
    _

</llo_original>
